<compile_context>
chip_gen: v7x
topology: tpu7x:2x2x1
jax: 0.10.0
libtpu: 0.0.40
codegen_flags: <defaults>
</compile_context>

<pallas_src>
import functools
import math

import jax
import jax.numpy as jnp
from jax import lax
from jax.experimental import pallas as pl
from jax.experimental.pallas import tpu as pltpu


# ----------------------------------------------------------------------------
# Small helpers: every kernel here is a single grid step with full-array blocks
# (all operands are tiny and fit VMEM with huge headroom on v5e/v6e/v7x).
# ----------------------------------------------------------------------------
def _full_spec(shape):
    rank = len(shape)
    return pl.BlockSpec(shape, lambda i, _r=rank: (0,) * _r)


def _single_call(kernel, out_shape, args):
    return pl.pallas_call(
        kernel,
        out_shape=out_shape,
        grid=(1,),
        in_specs=[_full_spec(a.shape) for a in args],
        out_specs=_full_spec(out_shape.shape),
        compiler_params=pltpu.CompilerParams(dimension_semantics=("arbitrary",)),
    )(*args)


# ----------------------------------------------------------------------------
# GRU stack: all layers + all timesteps in one kernel
# ----------------------------------------------------------------------------
def _gru_stack_kernel(*refs, num_layers, B, S, H):
    x_ref = refs[0]
    o_ref = refs[-1]
    prm = refs[1:-1]                                   # 4 refs per layer

    h_seq = x_ref[...].astype(jnp.float32)             # (B, S, in_dim)
    for layer in range(num_layers):
        w_ih, w_hh, b_ih, b_hh = prm[4 * layer: 4 * layer + 4]
        in_dim = h_seq.shape[-1]
        # One fused input projection for all timesteps & all gates.
        xg = jnp.dot(h_seq.reshape(B * S, in_dim), w_ih[...],
                     preferred_element_type=jnp.float32) + b_ih[...]
        xg = xg.reshape(B, S, 3 * H)

        h = jnp.zeros((B, H), jnp.float32)              # h_0 = 0 (PyTorch default)
        hs = []
        for t in range(S):                              # static unrolled recurrence
            # One fused hidden matmul for all three gates: (B,H) @ (H,3H).
            hg = jnp.dot(h, w_hh[...], preferred_element_type=jnp.float32) + b_hh[...]
            xt = xg[:, t, :]                            # (B, 3H)
            r = jax.nn.sigmoid(xt[:, 0 * H:1 * H] + hg[:, 0 * H:1 * H])
            z = jax.nn.sigmoid(xt[:, 1 * H:2 * H] + hg[:, 1 * H:2 * H])
            n = jnp.tanh(xt[:, 2 * H:3 * H] + r * hg[:, 2 * H:3 * H])
            h = (1.0 - z) * n + z * h
            hs.append(h)
        h_seq = jnp.stack(hs, axis=1)                   # (B, S, H) batch-major
        # dropout_1 between GRU layers: inference no-op.

    o_ref[...] = h_seq.reshape(B * S, H).astype(o_ref.dtype)


def gru_stack(x, gru_params):
    """x: (B, S, I) -> (B*S, H), rows ordered b*S + s (batch-major)."""
    B, S, _ = x.shape
    H = gru_params[0][1].shape[0]                       # w_hh^T is (H, 3H)
    args = [x]
    for layer in gru_params:
        args.extend(layer)
    kernel = functools.partial(_gru_stack_kernel,
                               num_layers=len(gru_params), B=B, S=S, H=H)
    return _single_call(kernel, jax.ShapeDtypeStruct((B * S, H), jnp.float32), args)


# ----------------------------------------------------------------------------
# Fused attention block: QKV proj -> per-head softmax attention -> out-proj
# + residual + LayerNorm.  Self-attention passes src == x.
# ----------------------------------------------------------------------------
def _mha_block_kernel(x_ref, src_ref, w_ref, b_ref, wo_ref, bo_ref, g_ref, be_ref,
                      o_ref, *, nhead, B, Sq, Sk, eps):
    D = x_ref.shape[-1]
    dh = D // nhead
    scale = 1.0 / math.sqrt(dh)

    x = x_ref[...]                                      # (B*Sq, D) queries / residual
    src = src_ref[...]                                  # (B*Sk, D) keys/values source
    w = w_ref[...]                                      # (D, 3D) = [Wq^T | Wk^T | Wv^T]
    b = b_ref[...]                                      # (1, 3D)

    q = jnp.dot(x, w[:, :D], preferred_element_type=jnp.float32) + b[:, :D]
    kv = jnp.dot(src, w[:, D:], preferred_element_type=jnp.float32) + b[:, D:]
    k = kv[:, :D]
    v = kv[:, D:]

    # Heads & batches handled with static slices (no transposes); B*nhead is tiny.
    ctx_rows = []
    for bi in range(B):
        qb = q[bi * Sq:(bi + 1) * Sq, :]
        kb = k[bi * Sk:(bi + 1) * Sk, :]
        vb = v[bi * Sk:(bi + 1) * Sk, :]
        heads = []
        for hh in range(nhead):
            qh = qb[:, hh * dh:(hh + 1) * dh]
            kh = kb[:, hh * dh:(hh + 1) * dh]
            vh = vb[:, hh * dh:(hh + 1) * dh]
            s = lax.dot_general(qh, kh, (((1,), (1,)), ((), ())),
                                preferred_element_type=jnp.float32) * scale
            s = s - jnp.max(s, axis=-1, keepdims=True)
            p = jnp.exp(s)
            p = p / jnp.sum(p, axis=-1, keepdims=True)   # exact divide (matches torch)
            heads.append(jnp.dot(p, vh, preferred_element_type=jnp.float32))
        ctx_rows.append(jnp.concatenate(heads, axis=-1))
    ctx = jnp.concatenate(ctx_rows, axis=0)              # (B*Sq, D), lane-dense

    y = x + jnp.dot(ctx, wo_ref[...], preferred_element_type=jnp.float32) + bo_ref[...]
    mean = jnp.mean(y, axis=-1, keepdims=True)
    yc = y - mean
    var = jnp.mean(yc * yc, axis=-1, keepdims=True)
    o_ref[...] = (yc * lax.rsqrt(var + eps) * g_ref[...] + be_ref[...]).astype(o_ref.dtype)


def mha_block(x2d, src2d, attn_p, norm_w, norm_b, B, Sq, Sk, nhead, eps=1e-5):
    M, D = x2d.shape
    kernel = functools.partial(_mha_block_kernel, nhead=nhead, B=B, Sq=Sq, Sk=Sk, eps=eps)
    args = [x2d, src2d, attn_p["in_proj_w_t"], attn_p["in_proj_b"],
            attn_p["out_proj_w_t"], attn_p["out_proj_b"], norm_w, norm_b]
    return _single_call(kernel, jax.ShapeDtypeStruct((M, D), jnp.float32), args)


# ----------------------------------------------------------------------------
# Fused FFN block: relu MLP + residual + LayerNorm (dff stays in VMEM)
# ----------------------------------------------------------------------------
def _ffn_block_kernel(x_ref, w1_ref, b1_ref, w2_ref, b2_ref, g_ref, be_ref, o_ref, *, eps):
    x = x_ref[...]
    h = jnp.dot(x, w1_ref[...], preferred_element_type=jnp.float32) + b1_ref[...]
    h = jnp.maximum(h, 0.0)
    y = x + jnp.dot(h, w2_ref[...], preferred_element_type=jnp.float32) + b2_ref[...]
    mean = jnp.mean(y, axis=-1, keepdims=True)
    yc = y - mean
    var = jnp.mean(yc * yc, axis=-1, keepdims=True)
    o_ref[...] = (yc * lax.rsqrt(var + eps) * g_ref[...] + be_ref[...]).astype(o_ref.dtype)


def ffn_block(x2d, w1, b1, w2, b2, norm_w, norm_b, eps=1e-5):
    M, D = x2d.shape
    kernel = functools.partial(_ffn_block_kernel, eps=eps)
    return _single_call(kernel, jax.ShapeDtypeStruct((M, D), jnp.float32),
                        [x2d, w1, b1, w2, b2, norm_w, norm_b])


# ----------------------------------------------------------------------------
# Plain LayerNorm (final encoder norm)
# ----------------------------------------------------------------------------
def _layernorm_kernel(x_ref, g_ref, b_ref, o_ref, *, eps):
    x = x_ref[...]
    mean = jnp.mean(x, axis=-1, keepdims=True)
    xc = x - mean
    var = jnp.mean(xc * xc, axis=-1, keepdims=True)
    o_ref[...] = (xc * lax.rsqrt(var + eps) * g_ref[...] + b_ref[...]).astype(o_ref.dtype)


def pallas_layernorm(x2d, gamma, beta, eps=1e-5):
    M, N = x2d.shape
    kernel = functools.partial(_layernorm_kernel, eps=eps)
    return _single_call(kernel, jax.ShapeDtypeStruct((M, N), jnp.float32),
                        [x2d, gamma, beta])


# ----------------------------------------------------------------------------
# Final fused kernel: decoder LayerNorm on last timestep + output head
# ----------------------------------------------------------------------------
def _final_head_kernel(x_ref, g_ref, be_ref, w_ref, b_ref, o_ref, *, B, S, eps):
    x = x_ref[...]                                       # (B*S, D) batch-major rows
    last = jnp.concatenate(
        [x[b * S + S - 1: b * S + S, :] for b in range(B)], axis=0)   # (B, D)
    mean = jnp.mean(last, axis=-1, keepdims=True)
    xc = last - mean
    var = jnp.mean(xc * xc, axis=-1, keepdims=True)
    y = xc * lax.rsqrt(var + eps) * g_ref[...] + be_ref[...]
    o_ref[...] = (jnp.dot(y, w_ref[...], preferred_element_type=jnp.float32)
                  + b_ref[...]).astype(o_ref.dtype)


def final_head(x2d, norm_w, norm_b, w_head, b_head, B, S, eps=1e-5):
    out_dim = w_head.shape[1]
    kernel = functools.partial(_final_head_kernel, B=B, S=S, eps=eps)
    return _single_call(kernel, jax.ShapeDtypeStruct((B, out_dim), jnp.float32),
                        [x2d, norm_w, norm_b, w_head, b_head])


# ----------------------------------------------------------------------------
# Deterministic parameter initialization (pre-transposed / pre-reshaped so the
# forward path has no .T or reshape glue ops)
# ----------------------------------------------------------------------------
def init_params(key, cfg):
    keys = iter(jax.random.split(key, 4096))

    def rnd(shape, scale=0.1):
        return scale * jax.random.normal(next(keys), shape, dtype=jnp.float32)

    I, H = cfg["input_size"], cfg["hidden_size"]
    dff = H * cfg["dim_feedforward_multiplier"]
    params = {}

    # GRU stack (PyTorch gate order r, z, n), stored transposed: (in_dim, 3H)/(H, 3H).
    params["gru"] = []
    for layer in range(cfg["num_layers"]):
        in_dim = I if layer == 0 else H
        params["gru"].append((rnd((in_dim, 3 * H)),      # w_ih^T
                              rnd((H, 3 * H)),           # w_hh^T
                              rnd((1, 3 * H)),           # b_ih
                              rnd((1, 3 * H))))          # b_hh

    def mha_params():
        return {"in_proj_w_t": rnd((H, 3 * H)), "in_proj_b": rnd((1, 3 * H)),
                "out_proj_w_t": rnd((H, H)), "out_proj_b": rnd((1, H))}

    def ln():
        return jnp.ones((1, H), jnp.float32), jnp.zeros((1, H), jnp.float32)

    params["enc_layers"] = []
    for _ in range(cfg["num_transformer_layers"]):
        n1w, n1b = ln()
        n2w, n2b = ln()
        params["enc_layers"].append({
            "self_attn": mha_params(),
            "lin1_w_t": rnd((H, dff)), "lin1_b": rnd((1, dff)),
            "lin2_w_t": rnd((dff, H)), "lin2_b": rnd((1, H)),
            "norm1_w": n1w, "norm1_b": n1b, "norm2_w": n2w, "norm2_b": n2b,
        })

    params["dec_layers"] = []
    for _ in range(cfg["num_transformer_layers"]):
        n1w, n1b = ln()
        n2w, n2b = ln()
        n3w, n3b = ln()
        params["dec_layers"].append({
            "self_attn": mha_params(), "cross_attn": mha_params(),
            "lin1_w_t": rnd((H, dff)), "lin1_b": rnd((1, dff)),
            "lin2_w_t": rnd((dff, H)), "lin2_b": rnd((1, H)),
            "norm1_w": n1w, "norm1_b": n1b, "norm2_w": n2w, "norm2_b": n2b,
            "norm3_w": n3w, "norm3_b": n3b,
        })

    params["enc_norm_w"], params["enc_norm_b"] = ln()
    params["dec_norm_w"], params["dec_norm_b"] = ln()
    params["lin_w_t"] = rnd((H, cfg["output_size"]))
    params["lin_b"] = rnd((1, cfg["output_size"]))
    return params


# ----------------------------------------------------------------------------
# Full forward (inference semantics: dropout = identity)
# ----------------------------------------------------------------------------
def gru_transformer_forward(params, x, cfg):
    nhead = cfg["num_heads"]
    B, S, _ = x.shape
    H = cfg["hidden_size"]

    # 1) GRU stack -> batch-major rows (B*S, H), one kernel.
    x2 = gru_stack(x, params["gru"])

    # 2) Transformer encoder (post-norm layers) + final encoder LayerNorm.
    mem = x2
    for p in params["enc_layers"]:
        mem = mha_block(mem, mem, p["self_attn"], p["norm1_w"], p["norm1_b"],
                        B, S, S, nhead)
        mem = ffn_block(mem, p["lin1_w_t"], p["lin1_b"], p["lin2_w_t"], p["lin2_b"],
                        p["norm2_w"], p["norm2_b"])
    mem = pallas_layernorm(mem, params["enc_norm_w"], params["enc_norm_b"])

    # 3) Transformer decoder with tgt = zeros (as in the PyTorch forward, no masks).
    t2 = jnp.zeros((B * S, H), jnp.float32)
    for p in params["dec_layers"]:
        t2 = mha_block(t2, t2, p["self_attn"], p["norm1_w"], p["norm1_b"],
                       B, S, S, nhead)
        t2 = mha_block(t2, mem, p["cross_attn"], p["norm2_w"], p["norm2_b"],
                       B, S, S, nhead)
        t2 = ffn_block(t2, p["lin1_w_t"], p["lin1_b"], p["lin2_w_t"], p["lin2_b"],
                       p["norm3_w"], p["norm3_b"])

    # 4) Final decoder LayerNorm (on the used rows) + last timestep + Linear head.
    return final_head(t2, params["dec_norm_w"], params["dec_norm_b"],
                      params["lin_w_t"], params["lin_b"], B, S)


if __name__ == "__main__":
    cfg = dict(
        input_size=8,
        hidden_size=32,
        output_size=4,
        num_layers=2,
        num_heads=4,
        num_transformer_layers=2,
        dim_feedforward_multiplier=2,
        dropout_1=0.0,  # inference: dropout is a no-op
        dropout_2=0.0,
    )
    B, S = 2, 8

    key = jax.random.PRNGKey(0)
    k_x, k_p = jax.random.split(key)
    x = jax.random.normal(k_x, (B, S, cfg["input_size"]), dtype=jnp.float32)
    params = init_params(k_p, cfg)

    fwd = jax.jit(functools.partial(gru_transformer_forward, cfg=cfg))
    yhat = jax.block_until_ready(fwd(params, x))
    assert yhat.shape == (B, cfg["output_size"])
    assert bool(jnp.all(jnp.isfinite(yhat)))
    print("KERNEL_OK")
</pallas_src>

<mosaic_0001>
module attributes {stable_mosaic.version = 11 : i64} {
  func.func @_ffn_block_kernel(%arg0: i32, %arg1: memref<16x32xf32, #tpu.memory_space<vmem>>, %arg2: memref<32x64xf32, #tpu.memory_space<vmem>>, %arg3: memref<1x64xf32, #tpu.memory_space<vmem>>, %arg4: memref<64x32xf32, #tpu.memory_space<vmem>>, %arg5: memref<1x32xf32, #tpu.memory_space<vmem>>, %arg6: memref<1x32xf32, #tpu.memory_space<vmem>>, %arg7: memref<1x32xf32, #tpu.memory_space<vmem>>, %arg8: memref<16x32xf32, #tpu.memory_space<vmem>>) attributes {dimension_semantics = [#tpu.dimension_semantics<arbitrary>], iteration_bounds = array<i64: 1>, scalar_prefetch = 0 : i64, scratch_operands = 0 : i64, tpu.core_type = #tpu.core_type<tc>, window_params = [{pipeline_mode = #tpu.pipeline_mode<synchronous>, transform_indices = @transform_0, window_bounds = array<i64: 16, 32>}, {pipeline_mode = #tpu.pipeline_mode<synchronous>, transform_indices = @transform_1, window_bounds = array<i64: 32, 64>}, {pipeline_mode = #tpu.pipeline_mode<synchronous>, transform_indices = @transform_2, window_bounds = array<i64: 1, 64>}, {pipeline_mode = #tpu.pipeline_mode<synchronous>, transform_indices = @transform_3, window_bounds = array<i64: 64, 32>}, {pipeline_mode = #tpu.pipeline_mode<synchronous>, transform_indices = @transform_4, window_bounds = array<i64: 1, 32>}, {pipeline_mode = #tpu.pipeline_mode<synchronous>, transform_indices = @transform_5, window_bounds = array<i64: 1, 32>}, {pipeline_mode = #tpu.pipeline_mode<synchronous>, transform_indices = @transform_6, window_bounds = array<i64: 1, 32>}, {pipeline_mode = #tpu.pipeline_mode<synchronous>, transform_indices = @transform_7, window_bounds = array<i64: 16, 32>}]} {
    %c0 = arith.constant 0 : index
    %c0_0 = arith.constant 0 : index
    %0 = vector.load %arg1[%c0, %c0_0] : memref<16x32xf32, #tpu.memory_space<vmem>>, vector<16x32xf32>
    %c0_1 = arith.constant 0 : index
    %c0_2 = arith.constant 0 : index
    %1 = vector.load %arg2[%c0_1, %c0_2] : memref<32x64xf32, #tpu.memory_space<vmem>>, vector<32x64xf32>
    %cst = arith.constant dense<0.000000e+00> : vector<16x64xf32>
    %2 = tpu.matmul %0, %1, %cst {dimension_numbers = #tpu.dot_dimension_numbers<[1], [0], [0], [1], [0, 0, 1, 1], [], []>} : vector<16x32xf32>, vector<32x64xf32>, vector<16x64xf32> -> vector<16x64xf32>
    %c0_3 = arith.constant 0 : index
    %c0_4 = arith.constant 0 : index
    %3 = vector.load %arg3[%c0_3, %c0_4] : memref<1x64xf32, #tpu.memory_space<vmem>>, vector<1x64xf32>
    %4 = vector.broadcast %3 : vector<1x64xf32> to vector<16x64xf32>
    %5 = arith.addf %2, %4 : vector<16x64xf32>
    %cst_5 = arith.constant 0.000000e+00 : f32
    %6 = vector.broadcast %cst_5 : f32 to vector<16x64xf32>
    %7 = arith.maximumf %5, %6 : vector<16x64xf32>
    %c0_6 = arith.constant 0 : index
    %c0_7 = arith.constant 0 : index
    %8 = vector.load %arg4[%c0_6, %c0_7] : memref<64x32xf32, #tpu.memory_space<vmem>>, vector<64x32xf32>
    %cst_8 = arith.constant dense<0.000000e+00> : vector<16x32xf32>
    %9 = tpu.matmul %7, %8, %cst_8 {dimension_numbers = #tpu.dot_dimension_numbers<[1], [0], [0], [1], [0, 0, 1, 1], [], []>} : vector<16x64xf32>, vector<64x32xf32>, vector<16x32xf32> -> vector<16x32xf32>
    %10 = arith.addf %0, %9 : vector<16x32xf32>
    %c0_9 = arith.constant 0 : index
    %c0_10 = arith.constant 0 : index
    %11 = vector.load %arg5[%c0_9, %c0_10] : memref<1x32xf32, #tpu.memory_space<vmem>>, vector<1x32xf32>
    %12 = vector.broadcast %11 : vector<1x32xf32> to vector<16x32xf32>
    %13 = arith.addf %10, %12 : vector<16x32xf32>
    %cst_11 = arith.constant dense<0.000000e+00> : vector<16xf32>
    %14 = vector.multi_reduction <add>, %13, %cst_11 [1] : vector<16x32xf32> to vector<16xf32>
    %15 = vector.shape_cast %14 : vector<16xf32> to vector<16x1xf32>
    %cst_12 = arith.constant 3.200000e+01 : f32
    %16 = vector.broadcast %cst_12 : f32 to vector<16x1xf32>
    %17 = arith.divf %15, %16 : vector<16x1xf32>
    %18 = vector.broadcast %17 : vector<16x1xf32> to vector<16x32xf32>
    %19 = arith.subf %13, %18 : vector<16x32xf32>
    %20 = arith.mulf %19, %19 : vector<16x32xf32>
    %cst_13 = arith.constant dense<0.000000e+00> : vector<16xf32>
    %21 = vector.multi_reduction <add>, %20, %cst_13 [1] : vector<16x32xf32> to vector<16xf32>
    %22 = vector.shape_cast %21 : vector<16xf32> to vector<16x1xf32>
    %cst_14 = arith.constant 3.200000e+01 : f32
    %23 = vector.broadcast %cst_14 : f32 to vector<16x1xf32>
    %24 = arith.divf %22, %23 : vector<16x1xf32>
    %cst_15 = arith.constant 9.99999974E-6 : f32
    %25 = vector.broadcast %cst_15 : f32 to vector<16x1xf32>
    %26 = arith.addf %24, %25 : vector<16x1xf32>
    %27 = math.rsqrt %26 : vector<16x1xf32>
    %28 = vector.broadcast %27 : vector<16x1xf32> to vector<16x32xf32>
    %29 = arith.mulf %19, %28 : vector<16x32xf32>
    %c0_16 = arith.constant 0 : index
    %c0_17 = arith.constant 0 : index
    %30 = vector.load %arg6[%c0_16, %c0_17] : memref<1x32xf32, #tpu.memory_space<vmem>>, vector<1x32xf32>
    %31 = vector.broadcast %30 : vector<1x32xf32> to vector<16x32xf32>
    %32 = arith.mulf %29, %31 : vector<16x32xf32>
    %c0_18 = arith.constant 0 : index
    %c0_19 = arith.constant 0 : index
    %33 = vector.load %arg7[%c0_18, %c0_19] : memref<1x32xf32, #tpu.memory_space<vmem>>, vector<1x32xf32>
    %34 = vector.broadcast %33 : vector<1x32xf32> to vector<16x32xf32>
    %35 = arith.addf %32, %34 : vector<16x32xf32>
    %c0_20 = arith.constant 0 : index
    %c0_21 = arith.constant 0 : index
    %36 = vector.load %arg8[%c0_20, %c0_21] : memref<16x32xf32, #tpu.memory_space<vmem>>, vector<16x32xf32>
    tpu.vector_store %arg8[%c0_20, %c0_21], %35 {strides = array<i32>} : memref<16x32xf32, #tpu.memory_space<vmem>>, vector<16x32xf32>,
    return
  }
  func.func @transform_0(%arg0: i32) -> (i32, i32) {
    %c0_i32 = arith.constant 0 : i32
    %c0_i32_0 = arith.constant 0 : i32
    %c0_i32_1 = arith.constant 0 : i32
    return %c0_i32, %c0_i32_0 : i32, i32
  }
  func.func @transform_1(%arg0: i32) -> (i32, i32) {
    %c0_i32 = arith.constant 0 : i32
    %c0_i32_0 = arith.constant 0 : i32
    %c0_i32_1 = arith.constant 0 : i32
    return %c0_i32, %c0_i32_0 : i32, i32
  }
  func.func @transform_2(%arg0: i32) -> (i32, i32) {
    %c0_i32 = arith.constant 0 : i32
    %c0_i32_0 = arith.constant 0 : i32
    %c0_i32_1 = arith.constant 0 : i32
    return %c0_i32, %c0_i32_0 : i32, i32
  }
  func.func @transform_3(%arg0: i32) -> (i32, i32) {
    %c0_i32 = arith.constant 0 : i32
    %c0_i32_0 = arith.constant 0 : i32
    %c0_i32_1 = arith.constant 0 : i32
    return %c0_i32, %c0_i32_0 : i32, i32
  }
  func.func @transform_4(%arg0: i32) -> (i32, i32) {
    %c0_i32 = arith.constant 0 : i32
    %c0_i32_0 = arith.constant 0 : i32
    %c0_i32_1 = arith.constant 0 : i32
    return %c0_i32, %c0_i32_0 : i32, i32
  }
  func.func @transform_5(%arg0: i32) -> (i32, i32) {
    %c0_i32 = arith.constant 0 : i32
    %c0_i32_0 = arith.constant 0 : i32
    %c0_i32_1 = arith.constant 0 : i32
    return %c0_i32, %c0_i32_0 : i32, i32
  }
  func.func @transform_6(%arg0: i32) -> (i32, i32) {
    %c0_i32 = arith.constant 0 : i32
    %c0_i32_0 = arith.constant 0 : i32
    %c0_i32_1 = arith.constant 0 : i32
    return %c0_i32, %c0_i32_0 : i32, i32
  }
  func.func @transform_7(%arg0: i32) -> (i32, i32) {
    %c0_i32 = arith.constant 0 : i32
    %c0_i32_0 = arith.constant 0 : i32
    %c0_i32_1 = arith.constant 0 : i32
    return %c0_i32, %c0_i32_0 : i32, i32
  }
}

module attributes {stable_mosaic.version = 11 : i64} {
  func.func @_mha_block_kernel(%arg0: i32, %arg1: memref<16x32xf32, #tpu.memory_space<vmem>>, %arg2: memref<16x32xf32, #tpu.memory_space<vmem>>, %arg3: memref<32x96xf32, #tpu.memory_space<vmem>>, %arg4: memref<1x96xf32, #tpu.memory_space<vmem>>, %arg5: memref<32x32xf32, #tpu.memory_space<vmem>>, %arg6: memref<1x32xf32, #tpu.memory_space<vmem>>, %arg7: memref<1x32xf32, #tpu.memory_space<vmem>>, %arg8: memref<1x32xf32, #tpu.memory_space<vmem>>, %arg9: memref<16x32xf32, #tpu.memory_space<vmem>>) attributes {dimension_semantics = [#tpu.dimension_semantics<arbitrary>], iteration_bounds = array<i64: 1>, scalar_prefetch = 0 : i64, scratch_operands = 0 : i64, tpu.core_type = #tpu.core_type<tc>, window_params = [{pipeline_mode = #tpu.pipeline_mode<synchronous>, transform_indices = @transform_0, window_bounds = array<i64: 16, 32>}, {pipeline_mode = #tpu.pipeline_mode<synchronous>, transform_indices = @transform_1, window_bounds = array<i64: 16, 32>}, {pipeline_mode = #tpu.pipeline_mode<synchronous>, transform_indices = @transform_2, window_bounds = array<i64: 32, 96>}, {pipeline_mode = #tpu.pipeline_mode<synchronous>, transform_indices = @transform_3, window_bounds = array<i64: 1, 96>}, {pipeline_mode = #tpu.pipeline_mode<synchronous>, transform_indices = @transform_4, window_bounds = array<i64: 32, 32>}, {pipeline_mode = #tpu.pipeline_mode<synchronous>, transform_indices = @transform_5, window_bounds = array<i64: 1, 32>}, {pipeline_mode = #tpu.pipeline_mode<synchronous>, transform_indices = @transform_6, window_bounds = array<i64: 1, 32>}, {pipeline_mode = #tpu.pipeline_mode<synchronous>, transform_indices = @transform_7, window_bounds = array<i64: 1, 32>}, {pipeline_mode = #tpu.pipeline_mode<synchronous>, transform_indices = @transform_8, window_bounds = array<i64: 16, 32>}]} {
    %c0 = arith.constant 0 : index
    %c0_0 = arith.constant 0 : index
    %0 = vector.load %arg1[%c0, %c0_0] : memref<16x32xf32, #tpu.memory_space<vmem>>, vector<16x32xf32>
    %c0_1 = arith.constant 0 : index
    %c0_2 = arith.constant 0 : index
    %1 = vector.load %arg2[%c0_1, %c0_2] : memref<16x32xf32, #tpu.memory_space<vmem>>, vector<16x32xf32>
    %c0_3 = arith.constant 0 : index
    %c0_4 = arith.constant 0 : index
    %2 = vector.load %arg3[%c0_3, %c0_4] : memref<32x96xf32, #tpu.memory_space<vmem>>, vector<32x96xf32>
    %c0_5 = arith.constant 0 : index
    %c0_6 = arith.constant 0 : index
    %3 = vector.load %arg4[%c0_5, %c0_6] : memref<1x96xf32, #tpu.memory_space<vmem>>, vector<1x96xf32>
    %4 = vector.extract_strided_slice %2 {offsets = [0, 0], sizes = [32, 32], strides = [1, 1]} : vector<32x96xf32> to vector<32x32xf32>
    %cst = arith.constant dense<0.000000e+00> : vector<16x32xf32>
    %5 = tpu.matmul %0, %4, %cst {dimension_numbers = #tpu.dot_dimension_numbers<[1], [0], [0], [1], [0, 0, 1, 1], [], []>} : vector<16x32xf32>, vector<32x32xf32>, vector<16x32xf32> -> vector<16x32xf32>
    %6 = vector.extract_strided_slice %3 {offsets = [0, 0], sizes = [1, 32], strides = [1, 1]} : vector<1x96xf32> to vector<1x32xf32>
    %7 = vector.broadcast %6 : vector<1x32xf32> to vector<16x32xf32>
    %8 = arith.addf %5, %7 : vector<16x32xf32>
    %9 = vector.extract_strided_slice %2 {offsets = [0, 32], sizes = [32, 64], strides = [1, 1]} : vector<32x96xf32> to vector<32x64xf32>
    %cst_7 = arith.constant dense<0.000000e+00> : vector<16x64xf32>
    %10 = tpu.matmul %1, %9, %cst_7 {dimension_numbers = #tpu.dot_dimension_numbers<[1], [0], [0], [1], [0, 0, 1, 1], [], []>} : vector<16x32xf32>, vector<32x64xf32>, vector<16x64xf32> -> vector<16x64xf32>
    %11 = vector.extract_strided_slice %3 {offsets = [0, 32], sizes = [1, 64], strides = [1, 1]} : vector<1x96xf32> to vector<1x64xf32>
    %12 = vector.broadcast %11 : vector<1x64xf32> to vector<16x64xf32>
    %13 = arith.addf %10, %12 : vector<16x64xf32>
    %14 = vector.extract_strided_slice %13 {offsets = [0, 0], sizes = [16, 32], strides = [1, 1]} : vector<16x64xf32> to vector<16x32xf32>
    %15 = vector.extract_strided_slice %13 {offsets = [0, 32], sizes = [16, 32], strides = [1, 1]} : vector<16x64xf32> to vector<16x32xf32>
    %16 = vector.extract_strided_slice %8 {offsets = [0, 0], sizes = [8, 32], strides = [1, 1]} : vector<16x32xf32> to vector<8x32xf32>
    %17 = vector.extract_strided_slice %14 {offsets = [0, 0], sizes = [8, 32], strides = [1, 1]} : vector<16x32xf32> to vector<8x32xf32>
    %18 = vector.extract_strided_slice %15 {offsets = [0, 0], sizes = [8, 32], strides = [1, 1]} : vector<16x32xf32> to vector<8x32xf32>
    %19 = vector.extract_strided_slice %16 {offsets = [0, 0], sizes = [8, 8], strides = [1, 1]} : vector<8x32xf32> to vector<8x8xf32>
    %20 = vector.extract_strided_slice %17 {offsets = [0, 0], sizes = [8, 8], strides = [1, 1]} : vector<8x32xf32> to vector<8x8xf32>
    %21 = vector.extract_strided_slice %18 {offsets = [0, 0], sizes = [8, 8], strides = [1, 1]} : vector<8x32xf32> to vector<8x8xf32>
    %cst_8 = arith.constant dense<0.000000e+00> : vector<8x8xf32>
    %22 = tpu.matmul %19, %20, %cst_8 {dimension_numbers = #tpu.dot_dimension_numbers<[1], [1], [0], [0], [0, 0, 1, 0], [], []>} : vector<8x8xf32>, vector<8x8xf32>, vector<8x8xf32> -> vector<8x8xf32>
    %cst_9 = arith.constant 0.353553385 : f32
    %23 = vector.broadcast %cst_9 : f32 to vector<8x8xf32>
    %24 = arith.mulf %22, %23 : vector<8x8xf32>
    %cst_10 = arith.constant dense<0xFF800000> : vector<8xf32>
    %25 = vector.multi_reduction <maximumf>, %24, %cst_10 [1] : vector<8x8xf32> to vector<8xf32>
    %26 = vector.shape_cast %25 : vector<8xf32> to vector<8x1xf32>
    %27 = vector.broadcast %26 : vector<8x1xf32> to vector<8x8xf32>
    %28 = arith.subf %24, %27 : vector<8x8xf32>
    %29 = math.exp %28 : vector<8x8xf32>
    %cst_11 = arith.constant dense<0.000000e+00> : vector<8xf32>
    %30 = vector.multi_reduction <add>, %29, %cst_11 [1] : vector<8x8xf32> to vector<8xf32>
    %31 = vector.shape_cast %30 : vector<8xf32> to vector<8x1xf32>
    %32 = vector.broadcast %31 : vector<8x1xf32> to vector<8x8xf32>
    %33 = arith.divf %29, %32 : vector<8x8xf32>
    %cst_12 = arith.constant dense<0.000000e+00> : vector<8x8xf32>
    %34 = tpu.matmul %33, %21, %cst_12 {dimension_numbers = #tpu.dot_dimension_numbers<[1], [0], [0], [1], [0, 0, 1, 1], [], []>} : vector<8x8xf32>, vector<8x8xf32>, vector<8x8xf32> -> vector<8x8xf32>
    %35 = vector.extract_strided_slice %16 {offsets = [0, 8], sizes = [8, 8], strides = [1, 1]} : vector<8x32xf32> to vector<8x8xf32>
    %36 = vector.extract_strided_slice %17 {offsets = [0, 8], sizes = [8, 8], strides = [1, 1]} : vector<8x32xf32> to vector<8x8xf32>
    %37 = vector.extract_strided_slice %18 {offsets = [0, 8], sizes = [8, 8], strides = [1, 1]} : vector<8x32xf32> to vector<8x8xf32>
    %cst_13 = arith.constant dense<0.000000e+00> : vector<8x8xf32>
    %38 = tpu.matmul %35, %36, %cst_13 {dimension_numbers = #tpu.dot_dimension_numbers<[1], [1], [0], [0], [0, 0, 1, 0], [], []>} : vector<8x8xf32>, vector<8x8xf32>, vector<8x8xf32> -> vector<8x8xf32>
    %cst_14 = arith.constant 0.353553385 : f32
    %39 = vector.broadcast %cst_14 : f32 to vector<8x8xf32>
    %40 = arith.mulf %38, %39 : vector<8x8xf32>
    %cst_15 = arith.constant dense<0xFF800000> : vector<8xf32>
    %41 = vector.multi_reduction <maximumf>, %40, %cst_15 [1] : vector<8x8xf32> to vector<8xf32>
    %42 = vector.shape_cast %41 : vector<8xf32> to vector<8x1xf32>
    %43 = vector.broadcast %42 : vector<8x1xf32> to vector<8x8xf32>
    %44 = arith.subf %40, %43 : vector<8x8xf32>
    %45 = math.exp %44 : vector<8x8xf32>
    %cst_16 = arith.constant dense<0.000000e+00> : vector<8xf32>
    %46 = vector.multi_reduction <add>, %45, %cst_16 [1] : vector<8x8xf32> to vector<8xf32>
    %47 = vector.shape_cast %46 : vector<8xf32> to vector<8x1xf32>
    %48 = vector.broadcast %47 : vector<8x1xf32> to vector<8x8xf32>
    %49 = arith.divf %45, %48 : vector<8x8xf32>
    %cst_17 = arith.constant dense<0.000000e+00> : vector<8x8xf32>
    %50 = tpu.matmul %49, %37, %cst_17 {dimension_numbers = #tpu.dot_dimension_numbers<[1], [0], [0], [1], [0, 0, 1, 1], [], []>} : vector<8x8xf32>, vector<8x8xf32>, vector<8x8xf32> -> vector<8x8xf32>
    %51 = vector.extract_strided_slice %16 {offsets = [0, 16], sizes = [8, 8], strides = [1, 1]} : vector<8x32xf32> to vector<8x8xf32>
    %52 = vector.extract_strided_slice %17 {offsets = [0, 16], sizes = [8, 8], strides = [1, 1]} : vector<8x32xf32> to vector<8x8xf32>
    %53 = vector.extract_strided_slice %18 {offsets = [0, 16], sizes = [8, 8], strides = [1, 1]} : vector<8x32xf32> to vector<8x8xf32>
    %cst_18 = arith.constant dense<0.000000e+00> : vector<8x8xf32>
    %54 = tpu.matmul %51, %52, %cst_18 {dimension_numbers = #tpu.dot_dimension_numbers<[1], [1], [0], [0], [0, 0, 1, 0], [], []>} : vector<8x8xf32>, vector<8x8xf32>, vector<8x8xf32> -> vector<8x8xf32>
    %cst_19 = arith.constant 0.353553385 : f32
    %55 = vector.broadcast %cst_19 : f32 to vector<8x8xf32>
    %56 = arith.mulf %54, %55 : vector<8x8xf32>
    %cst_20 = arith.constant dense<0xFF800000> : vector<8xf32>
    %57 = vector.multi_reduction <maximumf>, %56, %cst_20 [1] : vector<8x8xf32> to vector<8xf32>
    %58 = vector.shape_cast %57 : vector<8xf32> to vector<8x1xf32>
    %59 = vector.broadcast %58 : vector<8x1xf32> to vector<8x8xf32>
    %60 = arith.subf %56, %59 : vector<8x8xf32>
    %61 = math.exp %60 : vector<8x8xf32>
    %cst_21 = arith.constant dense<0.000000e+00> : vector<8xf32>
    %62 = vector.multi_reduction <add>, %61, %cst_21 [1] : vector<8x8xf32> to vector<8xf32>
    %63 = vector.shape_cast %62 : vector<8xf32> to vector<8x1xf32>
    %64 = vector.broadcast %63 : vector<8x1xf32> to vector<8x8xf32>
    %65 = arith.divf %61, %64 : vector<8x8xf32>
    %cst_22 = arith.constant dense<0.000000e+00> : vector<8x8xf32>
    %66 = tpu.matmul %65, %53, %cst_22 {dimension_numbers = #tpu.dot_dimension_numbers<[1], [0], [0], [1], [0, 0, 1, 1], [], []>} : vector<8x8xf32>, vector<8x8xf32>, vector<8x8xf32> -> vector<8x8xf32>
    %67 = vector.extract_strided_slice %16 {offsets = [0, 24], sizes = [8, 8], strides = [1, 1]} : vector<8x32xf32> to vector<8x8xf32>
    %68 = vector.extract_strided_slice %17 {offsets = [0, 24], sizes = [8, 8], strides = [1, 1]} : vector<8x32xf32> to vector<8x8xf32>
    %69 = vector.extract_strided_slice %18 {offsets = [0, 24], sizes = [8, 8], strides = [1, 1]} : vector<8x32xf32> to vector<8x8xf32>
    %cst_23 = arith.constant dense<0.000000e+00> : vector<8x8xf32>
    %70 = tpu.matmul %67, %68, %cst_23 {dimension_numbers = #tpu.dot_dimension_numbers<[1], [1], [0], [0], [0, 0, 1, 0], [], []>} : vector<8x8xf32>, vector<8x8xf32>, vector<8x8xf32> -> vector<8x8xf32>
    %cst_24 = arith.constant 0.353553385 : f32
    %71 = vector.broadcast %cst_24 : f32 to vector<8x8xf32>
    %72 = arith.mulf %70, %71 : vector<8x8xf32>
    %cst_25 = arith.constant dense<0xFF800000> : vector<8xf32>
    %73 = vector.multi_reduction <maximumf>, %72, %cst_25 [1] : vector<8x8xf32> to vector<8xf32>
    %74 = vector.shape_cast %73 : vector<8xf32> to vector<8x1xf32>
    %75 = vector.broadcast %74 : vector<8x1xf32> to vector<8x8xf32>
    %76 = arith.subf %72, %75 : vector<8x8xf32>
    %77 = math.exp %76 : vector<8x8xf32>
    %cst_26 = arith.constant dense<0.000000e+00> : vector<8xf32>
    %78 = vector.multi_reduction <add>, %77, %cst_26 [1] : vector<8x8xf32> to vector<8xf32>
    %79 = vector.shape_cast %78 : vector<8xf32> to vector<8x1xf32>
    %80 = vector.broadcast %79 : vector<8x1xf32> to vector<8x8xf32>
    %81 = arith.divf %77, %80 : vector<8x8xf32>
    %cst_27 = arith.constant dense<0.000000e+00> : vector<8x8xf32>
    %82 = tpu.matmul %81, %69, %cst_27 {dimension_numbers = #tpu.dot_dimension_numbers<[1], [0], [0], [1], [0, 0, 1, 1], [], []>} : vector<8x8xf32>, vector<8x8xf32>, vector<8x8xf32> -> vector<8x8xf32>
    %83 = tpu.concatenate %34, %50, %66, %82 in 1 : vector<8x8xf32>, vector<8x8xf32>, vector<8x8xf32>, vector<8x8xf32> -> vector<8x32xf32>
    %84 = vector.extract_strided_slice %8 {offsets = [8, 0], sizes = [8, 32], strides = [1, 1]} : vector<16x32xf32> to vector<8x32xf32>
    %85 = vector.extract_strided_slice %14 {offsets = [8, 0], sizes = [8, 32], strides = [1, 1]} : vector<16x32xf32> to vector<8x32xf32>
    %86 = vector.extract_strided_slice %15 {offsets = [8, 0], sizes = [8, 32], strides = [1, 1]} : vector<16x32xf32> to vector<8x32xf32>
    %87 = vector.extract_strided_slice %84 {offsets = [0, 0], sizes = [8, 8], strides = [1, 1]} : vector<8x32xf32> to vector<8x8xf32>
    %88 = vector.extract_strided_slice %85 {offsets = [0, 0], sizes = [8, 8], strides = [1, 1]} : vector<8x32xf32> to vector<8x8xf32>
    %89 = vector.extract_strided_slice %86 {offsets = [0, 0], sizes = [8, 8], strides = [1, 1]} : vector<8x32xf32> to vector<8x8xf32>
    %cst_28 = arith.constant dense<0.000000e+00> : vector<8x8xf32>
    %90 = tpu.matmul %87, %88, %cst_28 {dimension_numbers = #tpu.dot_dimension_numbers<[1], [1], [0], [0], [0, 0, 1, 0], [], []>} : vector<8x8xf32>, vector<8x8xf32>, vector<8x8xf32> -> vector<8x8xf32>
    %cst_29 = arith.constant 0.353553385 : f32
    %91 = vector.broadcast %cst_29 : f32 to vector<8x8xf32>
    %92 = arith.mulf %90, %91 : vector<8x8xf32>
    %cst_30 = arith.constant dense<0xFF800000> : vector<8xf32>
    %93 = vector.multi_reduction <maximumf>, %92, %cst_30 [1] : vector<8x8xf32> to vector<8xf32>
    %94 = vector.shape_cast %93 : vector<8xf32> to vector<8x1xf32>
    %95 = vector.broadcast %94 : vector<8x1xf32> to vector<8x8xf32>
    %96 = arith.subf %92, %95 : vector<8x8xf32>
    %97 = math.exp %96 : vector<8x8xf32>
    %cst_31 = arith.constant dense<0.000000e+00> : vector<8xf32>
    %98 = vector.multi_reduction <add>, %97, %cst_31 [1] : vector<8x8xf32> to vector<8xf32>
    %99 = vector.shape_cast %98 : vector<8xf32> to vector<8x1xf32>
    %100 = vector.broadcast %99 : vector<8x1xf32> to vector<8x8xf32>
    %101 = arith.divf %97, %100 : vector<8x8xf32>
    %cst_32 = arith.constant dense<0.000000e+00> : vector<8x8xf32>
    %102 = tpu.matmul %101, %89, %cst_32 {dimension_numbers = #tpu.dot_dimension_numbers<[1], [0], [0], [1], [0, 0, 1, 1], [], []>} : vector<8x8xf32>, vector<8x8xf32>, vector<8x8xf32> -> vector<8x8xf32>
    %103 = vector.extract_strided_slice %84 {offsets = [0, 8], sizes = [8, 8], strides = [1, 1]} : vector<8x32xf32> to vector<8x8xf32>
    %104 = vector.extract_strided_slice %85 {offsets = [0, 8], sizes = [8, 8], strides = [1, 1]} : vector<8x32xf32> to vector<8x8xf32>
    %105 = vector.extract_strided_slice %86 {offsets = [0, 8], sizes = [8, 8], strides = [1, 1]} : vector<8x32xf32> to vector<8x8xf32>
    %cst_33 = arith.constant dense<0.000000e+00> : vector<8x8xf32>
    %106 = tpu.matmul %103, %104, %cst_33 {dimension_numbers = #tpu.dot_dimension_numbers<[1], [1], [0], [0], [0, 0, 1, 0], [], []>} : vector<8x8xf32>, vector<8x8xf32>, vector<8x8xf32> -> vector<8x8xf32>
    %cst_34 = arith.constant 0.353553385 : f32
    %107 = vector.broadcast %cst_34 : f32 to vector<8x8xf32>
    %108 = arith.mulf %106, %107 : vector<8x8xf32>
    %cst_35 = arith.constant dense<0xFF800000> : vector<8xf32>
    %109 = vector.multi_reduction <maximumf>, %108, %cst_35 [1] : vector<8x8xf32> to vector<8xf32>
    %110 = vector.shape_cast %109 : vector<8xf32> to vector<8x1xf32>
    %111 = vector.broadcast %110 : vector<8x1xf32> to vector<8x8xf32>
    %112 = arith.subf %108, %111 : vector<8x8xf32>
    %113 = math.exp %112 : vector<8x8xf32>
    %cst_36 = arith.constant dense<0.000000e+00> : vector<8xf32>
    %114 = vector.multi_reduction <add>, %113, %cst_36 [1] : vector<8x8xf32> to vector<8xf32>
    %115 = vector.shape_cast %114 : vector<8xf32> to vector<8x1xf32>
    %116 = vector.broadcast %115 : vector<8x1xf32> to vector<8x8xf32>
    %117 = arith.divf %113, %116 : vector<8x8xf32>
    %cst_37 = arith.constant dense<0.000000e+00> : vector<8x8xf32>
    %118 = tpu.matmul %117, %105, %cst_37 {dimension_numbers = #tpu.dot_dimension_numbers<[1], [0], [0], [1], [0, 0, 1, 1], [], []>} : vector<8x8xf32>, vector<8x8xf32>, vector<8x8xf32> -> vector<8x8xf32>
    %119 = vector.extract_strided_slice %84 {offsets = [0, 16], sizes = [8, 8], strides = [1, 1]} : vector<8x32xf32> to vector<8x8xf32>
    %120 = vector.extract_strided_slice %85 {offsets = [0, 16], sizes = [8, 8], strides = [1, 1]} : vector<8x32xf32> to vector<8x8xf32>
    %121 = vector.extract_strided_slice %86 {offsets = [0, 16], sizes = [8, 8], strides = [1, 1]} : vector<8x32xf32> to vector<8x8xf32>
    %cst_38 = arith.constant dense<0.000000e+00> : vector<8x8xf32>
    %122 = tpu.matmul %119, %120, %cst_38 {dimension_numbers = #tpu.dot_dimension_numbers<[1], [1], [0], [0], [0, 0, 1, 0], [], []>} : vector<8x8xf32>, vector<8x8xf32>, vector<8x8xf32> -> vector<8x8xf32>
    %cst_39 = arith.constant 0.353553385 : f32
    %123 = vector.broadcast %cst_39 : f32 to vector<8x8xf32>
    %124 = arith.mulf %122, %123 : vector<8x8xf32>
    %cst_40 = arith.constant dense<0xFF800000> : vector<8xf32>
    %125 = vector.multi_reduction <maximumf>, %124, %cst_40 [1] : vector<8x8xf32> to vector<8xf32>
    %126 = vector.shape_cast %125 : vector<8xf32> to vector<8x1xf32>
    %127 = vector.broadcast %126 : vector<8x1xf32> to vector<8x8xf32>
    %128 = arith.subf %124, %127 : vector<8x8xf32>
    %129 = math.exp %128 : vector<8x8xf32>
    %cst_41 = arith.constant dense<0.000000e+00> : vector<8xf32>
    %130 = vector.multi_reduction <add>, %129, %cst_41 [1] : vector<8x8xf32> to vector<8xf32>
    %131 = vector.shape_cast %130 : vector<8xf32> to vector<8x1xf32>
    %132 = vector.broadcast %131 : vector<8x1xf32> to vector<8x8xf32>
    %133 = arith.divf %129, %132 : vector<8x8xf32>
    %cst_42 = arith.constant dense<0.000000e+00> : vector<8x8xf32>
    %134 = tpu.matmul %133, %121, %cst_42 {dimension_numbers = #tpu.dot_dimension_numbers<[1], [0], [0], [1], [0, 0, 1, 1], [], []>} : vector<8x8xf32>, vector<8x8xf32>, vector<8x8xf32> -> vector<8x8xf32>
    %135 = vector.extract_strided_slice %84 {offsets = [0, 24], sizes = [8, 8], strides = [1, 1]} : vector<8x32xf32> to vector<8x8xf32>
    %136 = vector.extract_strided_slice %85 {offsets = [0, 24], sizes = [8, 8], strides = [1, 1]} : vector<8x32xf32> to vector<8x8xf32>
    %137 = vector.extract_strided_slice %86 {offsets = [0, 24], sizes = [8, 8], strides = [1, 1]} : vector<8x32xf32> to vector<8x8xf32>
    %cst_43 = arith.constant dense<0.000000e+00> : vector<8x8xf32>
    %138 = tpu.matmul %135, %136, %cst_43 {dimension_numbers = #tpu.dot_dimension_numbers<[1], [1], [0], [0], [0, 0, 1, 0], [], []>} : vector<8x8xf32>, vector<8x8xf32>, vector<8x8xf32> -> vector<8x8xf32>
    %cst_44 = arith.constant 0.353553385 : f32
    %139 = vector.broadcast %cst_44 : f32 to vector<8x8xf32>
    %140 = arith.mulf %138, %139 : vector<8x8xf32>
    %cst_45 = arith.constant dense<0xFF800000> : vector<8xf32>
    %141 = vector.multi_reduction <maximumf>, %140, %cst_45 [1] : vector<8x8xf32> to vector<8xf32>
    %142 = vector.shape_cast %141 : vector<8xf32> to vector<8x1xf32>
    %143 = vector.broadcast %142 : vector<8x1xf32> to vector<8x8xf32>
    %144 = arith.subf %140, %143 : vector<8x8xf32>
    %145 = math.exp %144 : vector<8x8xf32>
    %cst_46 = arith.constant dense<0.000000e+00> : vector<8xf32>
    %146 = vector.multi_reduction <add>, %145, %cst_46 [1] : vector<8x8xf32> to vector<8xf32>
    %147 = vector.shape_cast %146 : vector<8xf32> to vector<8x1xf32>
    %148 = vector.broadcast %147 : vector<8x1xf32> to vector<8x8xf32>
    %149 = arith.divf %145, %148 : vector<8x8xf32>
    %cst_47 = arith.constant dense<0.000000e+00> : vector<8x8xf32>
    %150 = tpu.matmul %149, %137, %cst_47 {dimension_numbers = #tpu.dot_dimension_numbers<[1], [0], [0], [1], [0, 0, 1, 1], [], []>} : vector<8x8xf32>, vector<8x8xf32>, vector<8x8xf32> -> vector<8x8xf32>
    %151 = tpu.concatenate %102, %118, %134, %150 in 1 : vector<8x8xf32>, vector<8x8xf32>, vector<8x8xf32>, vector<8x8xf32> -> vector<8x32xf32>
    %152 = tpu.concatenate %83, %151 in 0 : vector<8x32xf32>, vector<8x32xf32> -> vector<16x32xf32>
    %c0_48 = arith.constant 0 : index
    %c0_49 = arith.constant 0 : index
    %153 = vector.load %arg5[%c0_48, %c0_49] : memref<32x32xf32, #tpu.memory_space<vmem>>, vector<32x32xf32>
    %cst_50 = arith.constant dense<0.000000e+00> : vector<16x32xf32>
    %154 = tpu.matmul %152, %153, %cst_50 {dimension_numbers = #tpu.dot_dimension_numbers<[1], [0], [0], [1], [0, 0, 1, 1], [], []>} : vector<16x32xf32>, vector<32x32xf32>, vector<16x32xf32> -> vector<16x32xf32>
    %155 = arith.addf %0, %154 : vector<16x32xf32>
    %c0_51 = arith.constant 0 : index
    %c0_52 = arith.constant 0 : index
    %156 = vector.load %arg6[%c0_51, %c0_52] : memref<1x32xf32, #tpu.memory_space<vmem>>, vector<1x32xf32>
    %157 = vector.broadcast %156 : vector<1x32xf32> to vector<16x32xf32>
    %158 = arith.addf %155, %157 : vector<16x32xf32>
    %cst_53 = arith.constant dense<0.000000e+00> : vector<16xf32>
    %159 = vector.multi_reduction <add>, %158, %cst_53 [1] : vector<16x32xf32> to vector<16xf32>
    %160 = vector.shape_cast %159 : vector<16xf32> to vector<16x1xf32>
    %cst_54 = arith.constant 3.200000e+01 : f32
    %161 = vector.broadcast %cst_54 : f32 to vector<16x1xf32>
    %162 = arith.divf %160, %161 : vector<16x1xf32>
    %163 = vector.broadcast %162 : vector<16x1xf32> to vector<16x32xf32>
    %164 = arith.subf %158, %163 : vector<16x32xf32>
    %165 = arith.mulf %164, %164 : vector<16x32xf32>
    %cst_55 = arith.constant dense<0.000000e+00> : vector<16xf32>
    %166 = vector.multi_reduction <add>, %165, %cst_55 [1] : vector<16x32xf32> to vector<16xf32>
    %167 = vector.shape_cast %166 : vector<16xf32> to vector<16x1xf32>
    %cst_56 = arith.constant 3.200000e+01 : f32
    %168 = vector.broadcast %cst_56 : f32 to vector<16x1xf32>
    %169 = arith.divf %167, %168 : vector<16x1xf32>
    %cst_57 = arith.constant 9.99999974E-6 : f32
    %170 = vector.broadcast %cst_57 : f32 to vector<16x1xf32>
    %171 = arith.addf %169, %170 : vector<16x1xf32>
    %172 = math.rsqrt %171 : vector<16x1xf32>
    %173 = vector.broadcast %172 : vector<16x1xf32> to vector<16x32xf32>
    %174 = arith.mulf %164, %173 : vector<16x32xf32>
    %c0_58 = arith.constant 0 : index
    %c0_59 = arith.constant 0 : index
    %175 = vector.load %arg7[%c0_58, %c0_59] : memref<1x32xf32, #tpu.memory_space<vmem>>, vector<1x32xf32>
    %176 = vector.broadcast %175 : vector<1x32xf32> to vector<16x32xf32>
    %177 = arith.mulf %174, %176 : vector<16x32xf32>
    %c0_60 = arith.constant 0 : index
    %c0_61 = arith.constant 0 : index
    %178 = vector.load %arg8[%c0_60, %c0_61] : memref<1x32xf32, #tpu.memory_space<vmem>>, vector<1x32xf32>
    %179 = vector.broadcast %178 : vector<1x32xf32> to vector<16x32xf32>
    %180 = arith.addf %177, %179 : vector<16x32xf32>
    %c0_62 = arith.constant 0 : index
    %c0_63 = arith.constant 0 : index
    %181 = vector.load %arg9[%c0_62, %c0_63] : memref<16x32xf32, #tpu.memory_space<vmem>>, vector<16x32xf32>
    tpu.vector_store %arg9[%c0_62, %c0_63], %180 {strides = array<i32>} : memref<16x32xf32, #tpu.memory_space<vmem>>, vector<16x32xf32>,
    return
  }
  func.func @transform_0(%arg0: i32) -> (i32, i32) {
    %c0_i32 = arith.constant 0 : i32
    %c0_i32_0 = arith.constant 0 : i32
    %c0_i32_1 = arith.constant 0 : i32
    return %c0_i32, %c0_i32_0 : i32, i32
  }
  func.func @transform_1(%arg0: i32) -> (i32, i32) {
    %c0_i32 = arith.constant 0 : i32
    %c0_i32_0 = arith.constant 0 : i32
    %c0_i32_1 = arith.constant 0 : i32
    return %c0_i32, %c0_i32_0 : i32, i32
  }
  func.func @transform_2(%arg0: i32) -> (i32, i32) {
    %c0_i32 = arith.constant 0 : i32
    %c0_i32_0 = arith.constant 0 : i32
    %c0_i32_1 = arith.constant 0 : i32
    return %c0_i32, %c0_i32_0 : i32, i32
  }
  func.func @transform_3(%arg0: i32) -> (i32, i32) {
    %c0_i32 = arith.constant 0 : i32
    %c0_i32_0 = arith.constant 0 : i32
    %c0_i32_1 = arith.constant 0 : i32
    return %c0_i32, %c0_i32_0 : i32, i32
  }
  func.func @transform_4(%arg0: i32) -> (i32, i32) {
    %c0_i32 = arith.constant 0 : i32
    %c0_i32_0 = arith.constant 0 : i32
    %c0_i32_1 = arith.constant 0 : i32
    return %c0_i32, %c0_i32_0 : i32, i32
  }
  func.func @transform_5(%arg0: i32) -> (i32, i32) {
    %c0_i32 = arith.constant 0 : i32
    %c0_i32_0 = arith.constant 0 : i32
    %c0_i32_1 = arith.constant 0 : i32
    return %c0_i32, %c0_i32_0 : i32, i32
  }
  func.func @transform_6(%arg0: i32) -> (i32, i32) {
    %c0_i32 = arith.constant 0 : i32
    %c0_i32_0 = arith.constant 0 : i32
    %c0_i32_1 = arith.constant 0 : i32
    return %c0_i32, %c0_i32_0 : i32, i32
  }
  func.func @transform_7(%arg0: i32) -> (i32, i32) {
    %c0_i32 = arith.constant 0 : i32
    %c0_i32_0 = arith.constant 0 : i32
    %c0_i32_1 = arith.constant 0 : i32
    return %c0_i32, %c0_i32_0 : i32, i32
  }
  func.func @transform_8(%arg0: i32) -> (i32, i32) {
    %c0_i32 = arith.constant 0 : i32
    %c0_i32_0 = arith.constant 0 : i32
    %c0_i32_1 = arith.constant 0 : i32
    return %c0_i32, %c0_i32_0 : i32, i32
  }
}

module attributes {stable_mosaic.version = 11 : i64} {
  func.func @_gru_stack_kernel(%arg0: i32, %arg1: memref<2x8x8xf32, #tpu.memory_space<vmem>>, %arg2: memref<8x96xf32, #tpu.memory_space<vmem>>, %arg3: memref<32x96xf32, #tpu.memory_space<vmem>>, %arg4: memref<1x96xf32, #tpu.memory_space<vmem>>, %arg5: memref<1x96xf32, #tpu.memory_space<vmem>>, %arg6: memref<32x96xf32, #tpu.memory_space<vmem>>, %arg7: memref<32x96xf32, #tpu.memory_space<vmem>>, %arg8: memref<1x96xf32, #tpu.memory_space<vmem>>, %arg9: memref<1x96xf32, #tpu.memory_space<vmem>>, %arg10: memref<16x32xf32, #tpu.memory_space<vmem>>) attributes {dimension_semantics = [#tpu.dimension_semantics<arbitrary>], iteration_bounds = array<i64: 1>, scalar_prefetch = 0 : i64, scratch_operands = 0 : i64, tpu.core_type = #tpu.core_type<tc>, window_params = [{pipeline_mode = #tpu.pipeline_mode<synchronous>, transform_indices = @transform_0, window_bounds = array<i64: 2, 8, 8>}, {pipeline_mode = #tpu.pipeline_mode<synchronous>, transform_indices = @transform_1, window_bounds = array<i64: 8, 96>}, {pipeline_mode = #tpu.pipeline_mode<synchronous>, transform_indices = @transform_2, window_bounds = array<i64: 32, 96>}, {pipeline_mode = #tpu.pipeline_mode<synchronous>, transform_indices = @transform_3, window_bounds = array<i64: 1, 96>}, {pipeline_mode = #tpu.pipeline_mode<synchronous>, transform_indices = @transform_4, window_bounds = array<i64: 1, 96>}, {pipeline_mode = #tpu.pipeline_mode<synchronous>, transform_indices = @transform_5, window_bounds = array<i64: 32, 96>}, {pipeline_mode = #tpu.pipeline_mode<synchronous>, transform_indices = @transform_6, window_bounds = array<i64: 32, 96>}, {pipeline_mode = #tpu.pipeline_mode<synchronous>, transform_indices = @transform_7, window_bounds = array<i64: 1, 96>}, {pipeline_mode = #tpu.pipeline_mode<synchronous>, transform_indices = @transform_8, window_bounds = array<i64: 1, 96>}, {pipeline_mode = #tpu.pipeline_mode<synchronous>, transform_indices = @transform_9, window_bounds = array<i64: 16, 32>}]} {
    %c0 = arith.constant 0 : index
    %c0_0 = arith.constant 0 : index
    %c0_1 = arith.constant 0 : index
    %0 = vector.load %arg1[%c0, %c0_0, %c0_1] : memref<2x8x8xf32, #tpu.memory_space<vmem>>, vector<2x8x8xf32>
    %1 = vector.shape_cast %0 : vector<2x8x8xf32> to vector<16x8xf32>
    %c0_2 = arith.constant 0 : index
    %c0_3 = arith.constant 0 : index
    %2 = vector.load %arg2[%c0_2, %c0_3] : memref<8x96xf32, #tpu.memory_space<vmem>>, vector<8x96xf32>
    %cst = arith.constant dense<0.000000e+00> : vector<16x96xf32>
    %3 = tpu.matmul %1, %2, %cst {dimension_numbers = #tpu.dot_dimension_numbers<[1], [0], [0], [1], [0, 0, 1, 1], [], []>} : vector<16x8xf32>, vector<8x96xf32>, vector<16x96xf32> -> vector<16x96xf32>
    %c0_4 = arith.constant 0 : index
    %c0_5 = arith.constant 0 : index
    %4 = vector.load %arg4[%c0_4, %c0_5] : memref<1x96xf32, #tpu.memory_space<vmem>>, vector<1x96xf32>
    %5 = vector.broadcast %4 : vector<1x96xf32> to vector<16x96xf32>
    %6 = arith.addf %3, %5 : vector<16x96xf32>
    %7 = vector.shape_cast %6 : vector<16x96xf32> to vector<2x8x96xf32>
    %cst_6 = arith.constant 0.000000e+00 : f32
    %8 = vector.broadcast %cst_6 : f32 to vector<2x32xf32>
    %c0_7 = arith.constant 0 : index
    %c0_8 = arith.constant 0 : index
    %9 = vector.load %arg3[%c0_7, %c0_8] : memref<32x96xf32, #tpu.memory_space<vmem>>, vector<32x96xf32>
    %cst_9 = arith.constant dense<0.000000e+00> : vector<2x96xf32>
    %10 = tpu.matmul %8, %9, %cst_9 {dimension_numbers = #tpu.dot_dimension_numbers<[1], [0], [0], [1], [0, 0, 1, 1], [], []>} : vector<2x32xf32>, vector<32x96xf32>, vector<2x96xf32> -> vector<2x96xf32>
    %c0_10 = arith.constant 0 : index
    %c0_11 = arith.constant 0 : index
    %11 = vector.load %arg5[%c0_10, %c0_11] : memref<1x96xf32, #tpu.memory_space<vmem>>, vector<1x96xf32>
    %12 = vector.broadcast %11 : vector<1x96xf32> to vector<2x96xf32>
    %13 = arith.addf %10, %12 : vector<2x96xf32>
    %14 = vector.extract_strided_slice %7 {offsets = [0, 0, 0], sizes = [2, 1, 96], strides = [1, 1, 1]} : vector<2x8x96xf32> to vector<2x1x96xf32>
    %15 = vector.shape_cast %14 : vector<2x1x96xf32> to vector<2x96xf32>
    %16 = vector.extract_strided_slice %15 {offsets = [0, 0], sizes = [2, 32], strides = [1, 1]} : vector<2x96xf32> to vector<2x32xf32>
    %17 = vector.extract_strided_slice %13 {offsets = [0, 0], sizes = [2, 32], strides = [1, 1]} : vector<2x96xf32> to vector<2x32xf32>
    %18 = arith.addf %16, %17 : vector<2x32xf32>
    %19 = arith.negf %18 : vector<2x32xf32>
    %20 = math.exp %19 : vector<2x32xf32>
    %cst_12 = arith.constant 1.000000e+00 : f32
    %21 = vector.broadcast %cst_12 : f32 to vector<2x32xf32>
    %22 = arith.addf %21, %20 : vector<2x32xf32>
    %23 = arith.divf %21, %22 : vector<2x32xf32>
    %24 = vector.extract_strided_slice %15 {offsets = [0, 32], sizes = [2, 32], strides = [1, 1]} : vector<2x96xf32> to vector<2x32xf32>
    %25 = vector.extract_strided_slice %13 {offsets = [0, 32], sizes = [2, 32], strides = [1, 1]} : vector<2x96xf32> to vector<2x32xf32>
    %26 = arith.addf %24, %25 : vector<2x32xf32>
    %27 = arith.negf %26 : vector<2x32xf32>
    %28 = math.exp %27 : vector<2x32xf32>
    %cst_13 = arith.constant 1.000000e+00 : f32
    %29 = vector.broadcast %cst_13 : f32 to vector<2x32xf32>
    %30 = arith.addf %29, %28 : vector<2x32xf32>
    %31 = arith.divf %29, %30 : vector<2x32xf32>
    %32 = vector.extract_strided_slice %15 {offsets = [0, 64], sizes = [2, 32], strides = [1, 1]} : vector<2x96xf32> to vector<2x32xf32>
    %33 = vector.extract_strided_slice %13 {offsets = [0, 64], sizes = [2, 32], strides = [1, 1]} : vector<2x96xf32> to vector<2x32xf32>
    %34 = arith.mulf %23, %33 : vector<2x32xf32>
    %35 = arith.addf %32, %34 : vector<2x32xf32>
    %36 = math.tanh %35 : vector<2x32xf32>
    %cst_14 = arith.constant 1.000000e+00 : f32
    %37 = vector.broadcast %cst_14 : f32 to vector<2x32xf32>
    %38 = arith.subf %37, %31 : vector<2x32xf32>
    %39 = arith.mulf %38, %36 : vector<2x32xf32>
    %40 = arith.mulf %31, %8 : vector<2x32xf32>
    %41 = arith.addf %39, %40 : vector<2x32xf32>
    %c0_15 = arith.constant 0 : index
    %c0_16 = arith.constant 0 : index
    %42 = vector.load %arg3[%c0_15, %c0_16] : memref<32x96xf32, #tpu.memory_space<vmem>>, vector<32x96xf32>
    %cst_17 = arith.constant dense<0.000000e+00> : vector<2x96xf32>
    %43 = tpu.matmul %41, %42, %cst_17 {dimension_numbers = #tpu.dot_dimension_numbers<[1], [0], [0], [1], [0, 0, 1, 1], [], []>} : vector<2x32xf32>, vector<32x96xf32>, vector<2x96xf32> -> vector<2x96xf32>
    %c0_18 = arith.constant 0 : index
    %c0_19 = arith.constant 0 : index
    %44 = vector.load %arg5[%c0_18, %c0_19] : memref<1x96xf32, #tpu.memory_space<vmem>>, vector<1x96xf32>
    %45 = vector.broadcast %44 : vector<1x96xf32> to vector<2x96xf32>
    %46 = arith.addf %43, %45 : vector<2x96xf32>
    %47 = vector.extract_strided_slice %7 {offsets = [0, 1, 0], sizes = [2, 1, 96], strides = [1, 1, 1]} : vector<2x8x96xf32> to vector<2x1x96xf32>
    %48 = vector.shape_cast %47 : vector<2x1x96xf32> to vector<2x96xf32>
    %49 = vector.extract_strided_slice %48 {offsets = [0, 0], sizes = [2, 32], strides = [1, 1]} : vector<2x96xf32> to vector<2x32xf32>
    %50 = vector.extract_strided_slice %46 {offsets = [0, 0], sizes = [2, 32], strides = [1, 1]} : vector<2x96xf32> to vector<2x32xf32>
    %51 = arith.addf %49, %50 : vector<2x32xf32>
    %52 = arith.negf %51 : vector<2x32xf32>
    %53 = math.exp %52 : vector<2x32xf32>
    %cst_20 = arith.constant 1.000000e+00 : f32
    %54 = vector.broadcast %cst_20 : f32 to vector<2x32xf32>
    %55 = arith.addf %54, %53 : vector<2x32xf32>
    %56 = arith.divf %54, %55 : vector<2x32xf32>
    %57 = vector.extract_strided_slice %48 {offsets = [0, 32], sizes = [2, 32], strides = [1, 1]} : vector<2x96xf32> to vector<2x32xf32>
    %58 = vector.extract_strided_slice %46 {offsets = [0, 32], sizes = [2, 32], strides = [1, 1]} : vector<2x96xf32> to vector<2x32xf32>
    %59 = arith.addf %57, %58 : vector<2x32xf32>
    %60 = arith.negf %59 : vector<2x32xf32>
    %61 = math.exp %60 : vector<2x32xf32>
    %cst_21 = arith.constant 1.000000e+00 : f32
    %62 = vector.broadcast %cst_21 : f32 to vector<2x32xf32>
    %63 = arith.addf %62, %61 : vector<2x32xf32>
    %64 = arith.divf %62, %63 : vector<2x32xf32>
    %65 = vector.extract_strided_slice %48 {offsets = [0, 64], sizes = [2, 32], strides = [1, 1]} : vector<2x96xf32> to vector<2x32xf32>
    %66 = vector.extract_strided_slice %46 {offsets = [0, 64], sizes = [2, 32], strides = [1, 1]} : vector<2x96xf32> to vector<2x32xf32>
    %67 = arith.mulf %56, %66 : vector<2x32xf32>
    %68 = arith.addf %65, %67 : vector<2x32xf32>
    %69 = math.tanh %68 : vector<2x32xf32>
    %cst_22 = arith.constant 1.000000e+00 : f32
    %70 = vector.broadcast %cst_22 : f32 to vector<2x32xf32>
    %71 = arith.subf %70, %64 : vector<2x32xf32>
    %72 = arith.mulf %71, %69 : vector<2x32xf32>
    %73 = arith.mulf %64, %41 : vector<2x32xf32>
    %74 = arith.addf %72, %73 : vector<2x32xf32>
    %c0_23 = arith.constant 0 : index
    %c0_24 = arith.constant 0 : index
    %75 = vector.load %arg3[%c0_23, %c0_24] : memref<32x96xf32, #tpu.memory_space<vmem>>, vector<32x96xf32>
    %cst_25 = arith.constant dense<0.000000e+00> : vector<2x96xf32>
    %76 = tpu.matmul %74, %75, %cst_25 {dimension_numbers = #tpu.dot_dimension_numbers<[1], [0], [0], [1], [0, 0, 1, 1], [], []>} : vector<2x32xf32>, vector<32x96xf32>, vector<2x96xf32> -> vector<2x96xf32>
    %c0_26 = arith.constant 0 : index
    %c0_27 = arith.constant 0 : index
    %77 = vector.load %arg5[%c0_26, %c0_27] : memref<1x96xf32, #tpu.memory_space<vmem>>, vector<1x96xf32>
    %78 = vector.broadcast %77 : vector<1x96xf32> to vector<2x96xf32>
    %79 = arith.addf %76, %78 : vector<2x96xf32>
    %80 = vector.extract_strided_slice %7 {offsets = [0, 2, 0], sizes = [2, 1, 96], strides = [1, 1, 1]} : vector<2x8x96xf32> to vector<2x1x96xf32>
    %81 = vector.shape_cast %80 : vector<2x1x96xf32> to vector<2x96xf32>
    %82 = vector.extract_strided_slice %81 {offsets = [0, 0], sizes = [2, 32], strides = [1, 1]} : vector<2x96xf32> to vector<2x32xf32>
    %83 = vector.extract_strided_slice %79 {offsets = [0, 0], sizes = [2, 32], strides = [1, 1]} : vector<2x96xf32> to vector<2x32xf32>
    %84 = arith.addf %82, %83 : vector<2x32xf32>
    %85 = arith.negf %84 : vector<2x32xf32>
    %86 = math.exp %85 : vector<2x32xf32>
    %cst_28 = arith.constant 1.000000e+00 : f32
    %87 = vector.broadcast %cst_28 : f32 to vector<2x32xf32>
    %88 = arith.addf %87, %86 : vector<2x32xf32>
    %89 = arith.divf %87, %88 : vector<2x32xf32>
    %90 = vector.extract_strided_slice %81 {offsets = [0, 32], sizes = [2, 32], strides = [1, 1]} : vector<2x96xf32> to vector<2x32xf32>
    %91 = vector.extract_strided_slice %79 {offsets = [0, 32], sizes = [2, 32], strides = [1, 1]} : vector<2x96xf32> to vector<2x32xf32>
    %92 = arith.addf %90, %91 : vector<2x32xf32>
    %93 = arith.negf %92 : vector<2x32xf32>
    %94 = math.exp %93 : vector<2x32xf32>
    %cst_29 = arith.constant 1.000000e+00 : f32
    %95 = vector.broadcast %cst_29 : f32 to vector<2x32xf32>
    %96 = arith.addf %95, %94 : vector<2x32xf32>
    %97 = arith.divf %95, %96 : vector<2x32xf32>
    %98 = vector.extract_strided_slice %81 {offsets = [0, 64], sizes = [2, 32], strides = [1, 1]} : vector<2x96xf32> to vector<2x32xf32>
    %99 = vector.extract_strided_slice %79 {offsets = [0, 64], sizes = [2, 32], strides = [1, 1]} : vector<2x96xf32> to vector<2x32xf32>
    %100 = arith.mulf %89, %99 : vector<2x32xf32>
    %101 = arith.addf %98, %100 : vector<2x32xf32>
    %102 = math.tanh %101 : vector<2x32xf32>
    %cst_30 = arith.constant 1.000000e+00 : f32
    %103 = vector.broadcast %cst_30 : f32 to vector<2x32xf32>
    %104 = arith.subf %103, %97 : vector<2x32xf32>
    %105 = arith.mulf %104, %102 : vector<2x32xf32>
    %106 = arith.mulf %97, %74 : vector<2x32xf32>
    %107 = arith.addf %105, %106 : vector<2x32xf32>
    %c0_31 = arith.constant 0 : index
    %c0_32 = arith.constant 0 : index
    %108 = vector.load %arg3[%c0_31, %c0_32] : memref<32x96xf32, #tpu.memory_space<vmem>>, vector<32x96xf32>
    %cst_33 = arith.constant dense<0.000000e+00> : vector<2x96xf32>
    %109 = tpu.matmul %107, %108, %cst_33 {dimension_numbers = #tpu.dot_dimension_numbers<[1], [0], [0], [1], [0, 0, 1, 1], [], []>} : vector<2x32xf32>, vector<32x96xf32>, vector<2x96xf32> -> vector<2x96xf32>
    %c0_34 = arith.constant 0 : index
    %c0_35 = arith.constant 0 : index
    %110 = vector.load %arg5[%c0_34, %c0_35] : memref<1x96xf32, #tpu.memory_space<vmem>>, vector<1x96xf32>
    %111 = vector.broadcast %110 : vector<1x96xf32> to vector<2x96xf32>
    %112 = arith.addf %109, %111 : vector<2x96xf32>
    %113 = vector.extract_strided_slice %7 {offsets = [0, 3, 0], sizes = [2, 1, 96], strides = [1, 1, 1]} : vector<2x8x96xf32> to vector<2x1x96xf32>
    %114 = vector.shape_cast %113 : vector<2x1x96xf32> to vector<2x96xf32>
    %115 = vector.extract_strided_slice %114 {offsets = [0, 0], sizes = [2, 32], strides = [1, 1]} : vector<2x96xf32> to vector<2x32xf32>
    %116 = vector.extract_strided_slice %112 {offsets = [0, 0], sizes = [2, 32], strides = [1, 1]} : vector<2x96xf32> to vector<2x32xf32>
    %117 = arith.addf %115, %116 : vector<2x32xf32>
    %118 = arith.negf %117 : vector<2x32xf32>
    %119 = math.exp %118 : vector<2x32xf32>
    %cst_36 = arith.constant 1.000000e+00 : f32
    %120 = vector.broadcast %cst_36 : f32 to vector<2x32xf32>
    %121 = arith.addf %120, %119 : vector<2x32xf32>
    %122 = arith.divf %120, %121 : vector<2x32xf32>
    %123 = vector.extract_strided_slice %114 {offsets = [0, 32], sizes = [2, 32], strides = [1, 1]} : vector<2x96xf32> to vector<2x32xf32>
    %124 = vector.extract_strided_slice %112 {offsets = [0, 32], sizes = [2, 32], strides = [1, 1]} : vector<2x96xf32> to vector<2x32xf32>
    %125 = arith.addf %123, %124 : vector<2x32xf32>
    %126 = arith.negf %125 : vector<2x32xf32>
    %127 = math.exp %126 : vector<2x32xf32>
    %cst_37 = arith.constant 1.000000e+00 : f32
    %128 = vector.broadcast %cst_37 : f32 to vector<2x32xf32>
    %129 = arith.addf %128, %127 : vector<2x32xf32>
    %130 = arith.divf %128, %129 : vector<2x32xf32>
    %131 = vector.extract_strided_slice %114 {offsets = [0, 64], sizes = [2, 32], strides = [1, 1]} : vector<2x96xf32> to vector<2x32xf32>
    %132 = vector.extract_strided_slice %112 {offsets = [0, 64], sizes = [2, 32], strides = [1, 1]} : vector<2x96xf32> to vector<2x32xf32>
    %133 = arith.mulf %122, %132 : vector<2x32xf32>
    %134 = arith.addf %131, %133 : vector<2x32xf32>
    %135 = math.tanh %134 : vector<2x32xf32>
    %cst_38 = arith.constant 1.000000e+00 : f32
    %136 = vector.broadcast %cst_38 : f32 to vector<2x32xf32>
    %137 = arith.subf %136, %130 : vector<2x32xf32>
    %138 = arith.mulf %137, %135 : vector<2x32xf32>
    %139 = arith.mulf %130, %107 : vector<2x32xf32>
    %140 = arith.addf %138, %139 : vector<2x32xf32>
    %c0_39 = arith.constant 0 : index
    %c0_40 = arith.constant 0 : index
    %141 = vector.load %arg3[%c0_39, %c0_40] : memref<32x96xf32, #tpu.memory_space<vmem>>, vector<32x96xf32>
    %cst_41 = arith.constant dense<0.000000e+00> : vector<2x96xf32>
    %142 = tpu.matmul %140, %141, %cst_41 {dimension_numbers = #tpu.dot_dimension_numbers<[1], [0], [0], [1], [0, 0, 1, 1], [], []>} : vector<2x32xf32>, vector<32x96xf32>, vector<2x96xf32> -> vector<2x96xf32>
    %c0_42 = arith.constant 0 : index
    %c0_43 = arith.constant 0 : index
    %143 = vector.load %arg5[%c0_42, %c0_43] : memref<1x96xf32, #tpu.memory_space<vmem>>, vector<1x96xf32>
    %144 = vector.broadcast %143 : vector<1x96xf32> to vector<2x96xf32>
    %145 = arith.addf %142, %144 : vector<2x96xf32>
    %146 = vector.extract_strided_slice %7 {offsets = [0, 4, 0], sizes = [2, 1, 96], strides = [1, 1, 1]} : vector<2x8x96xf32> to vector<2x1x96xf32>
    %147 = vector.shape_cast %146 : vector<2x1x96xf32> to vector<2x96xf32>
    %148 = vector.extract_strided_slice %147 {offsets = [0, 0], sizes = [2, 32], strides = [1, 1]} : vector<2x96xf32> to vector<2x32xf32>
    %149 = vector.extract_strided_slice %145 {offsets = [0, 0], sizes = [2, 32], strides = [1, 1]} : vector<2x96xf32> to vector<2x32xf32>
    %150 = arith.addf %148, %149 : vector<2x32xf32>
    %151 = arith.negf %150 : vector<2x32xf32>
    %152 = math.exp %151 : vector<2x32xf32>
    %cst_44 = arith.constant 1.000000e+00 : f32
    %153 = vector.broadcast %cst_44 : f32 to vector<2x32xf32>
    %154 = arith.addf %153, %152 : vector<2x32xf32>
    %155 = arith.divf %153, %154 : vector<2x32xf32>
    %156 = vector.extract_strided_slice %147 {offsets = [0, 32], sizes = [2, 32], strides = [1, 1]} : vector<2x96xf32> to vector<2x32xf32>
    %157 = vector.extract_strided_slice %145 {offsets = [0, 32], sizes = [2, 32], strides = [1, 1]} : vector<2x96xf32> to vector<2x32xf32>
    %158 = arith.addf %156, %157 : vector<2x32xf32>
    %159 = arith.negf %158 : vector<2x32xf32>
    %160 = math.exp %159 : vector<2x32xf32>
    %cst_45 = arith.constant 1.000000e+00 : f32
    %161 = vector.broadcast %cst_45 : f32 to vector<2x32xf32>
    %162 = arith.addf %161, %160 : vector<2x32xf32>
    %163 = arith.divf %161, %162 : vector<2x32xf32>
    %164 = vector.extract_strided_slice %147 {offsets = [0, 64], sizes = [2, 32], strides = [1, 1]} : vector<2x96xf32> to vector<2x32xf32>
    %165 = vector.extract_strided_slice %145 {offsets = [0, 64], sizes = [2, 32], strides = [1, 1]} : vector<2x96xf32> to vector<2x32xf32>
    %166 = arith.mulf %155, %165 : vector<2x32xf32>
    %167 = arith.addf %164, %166 : vector<2x32xf32>
    %168 = math.tanh %167 : vector<2x32xf32>
    %cst_46 = arith.constant 1.000000e+00 : f32
    %169 = vector.broadcast %cst_46 : f32 to vector<2x32xf32>
    %170 = arith.subf %169, %163 : vector<2x32xf32>
    %171 = arith.mulf %170, %168 : vector<2x32xf32>
    %172 = arith.mulf %163, %140 : vector<2x32xf32>
    %173 = arith.addf %171, %172 : vector<2x32xf32>
    %c0_47 = arith.constant 0 : index
    %c0_48 = arith.constant 0 : index
    %174 = vector.load %arg3[%c0_47, %c0_48] : memref<32x96xf32, #tpu.memory_space<vmem>>, vector<32x96xf32>
    %cst_49 = arith.constant dense<0.000000e+00> : vector<2x96xf32>
    %175 = tpu.matmul %173, %174, %cst_49 {dimension_numbers = #tpu.dot_dimension_numbers<[1], [0], [0], [1], [0, 0, 1, 1], [], []>} : vector<2x32xf32>, vector<32x96xf32>, vector<2x96xf32> -> vector<2x96xf32>
    %c0_50 = arith.constant 0 : index
    %c0_51 = arith.constant 0 : index
    %176 = vector.load %arg5[%c0_50, %c0_51] : memref<1x96xf32, #tpu.memory_space<vmem>>, vector<1x96xf32>
    %177 = vector.broadcast %176 : vector<1x96xf32> to vector<2x96xf32>
    %178 = arith.addf %175, %177 : vector<2x96xf32>
    %179 = vector.extract_strided_slice %7 {offsets = [0, 5, 0], sizes = [2, 1, 96], strides = [1, 1, 1]} : vector<2x8x96xf32> to vector<2x1x96xf32>
    %180 = vector.shape_cast %179 : vector<2x1x96xf32> to vector<2x96xf32>
    %181 = vector.extract_strided_slice %180 {offsets = [0, 0], sizes = [2, 32], strides = [1, 1]} : vector<2x96xf32> to vector<2x32xf32>
    %182 = vector.extract_strided_slice %178 {offsets = [0, 0], sizes = [2, 32], strides = [1, 1]} : vector<2x96xf32> to vector<2x32xf32>
    %183 = arith.addf %181, %182 : vector<2x32xf32>
    %184 = arith.negf %183 : vector<2x32xf32>
    %185 = math.exp %184 : vector<2x32xf32>
    %cst_52 = arith.constant 1.000000e+00 : f32
    %186 = vector.broadcast %cst_52 : f32 to vector<2x32xf32>
    %187 = arith.addf %186, %185 : vector<2x32xf32>
    %188 = arith.divf %186, %187 : vector<2x32xf32>
    %189 = vector.extract_strided_slice %180 {offsets = [0, 32], sizes = [2, 32], strides = [1, 1]} : vector<2x96xf32> to vector<2x32xf32>
    %190 = vector.extract_strided_slice %178 {offsets = [0, 32], sizes = [2, 32], strides = [1, 1]} : vector<2x96xf32> to vector<2x32xf32>
    %191 = arith.addf %189, %190 : vector<2x32xf32>
    %192 = arith.negf %191 : vector<2x32xf32>
    %193 = math.exp %192 : vector<2x32xf32>
    %cst_53 = arith.constant 1.000000e+00 : f32
    %194 = vector.broadcast %cst_53 : f32 to vector<2x32xf32>
    %195 = arith.addf %194, %193 : vector<2x32xf32>
    %196 = arith.divf %194, %195 : vector<2x32xf32>
    %197 = vector.extract_strided_slice %180 {offsets = [0, 64], sizes = [2, 32], strides = [1, 1]} : vector<2x96xf32> to vector<2x32xf32>
    %198 = vector.extract_strided_slice %178 {offsets = [0, 64], sizes = [2, 32], strides = [1, 1]} : vector<2x96xf32> to vector<2x32xf32>
    %199 = arith.mulf %188, %198 : vector<2x32xf32>
    %200 = arith.addf %197, %199 : vector<2x32xf32>
    %201 = math.tanh %200 : vector<2x32xf32>
    %cst_54 = arith.constant 1.000000e+00 : f32
    %202 = vector.broadcast %cst_54 : f32 to vector<2x32xf32>
    %203 = arith.subf %202, %196 : vector<2x32xf32>
    %204 = arith.mulf %203, %201 : vector<2x32xf32>
    %205 = arith.mulf %196, %173 : vector<2x32xf32>
    %206 = arith.addf %204, %205 : vector<2x32xf32>
    %c0_55 = arith.constant 0 : index
    %c0_56 = arith.constant 0 : index
    %207 = vector.load %arg3[%c0_55, %c0_56] : memref<32x96xf32, #tpu.memory_space<vmem>>, vector<32x96xf32>
    %cst_57 = arith.constant dense<0.000000e+00> : vector<2x96xf32>
    %208 = tpu.matmul %206, %207, %cst_57 {dimension_numbers = #tpu.dot_dimension_numbers<[1], [0], [0], [1], [0, 0, 1, 1], [], []>} : vector<2x32xf32>, vector<32x96xf32>, vector<2x96xf32> -> vector<2x96xf32>
    %c0_58 = arith.constant 0 : index
    %c0_59 = arith.constant 0 : index
    %209 = vector.load %arg5[%c0_58, %c0_59] : memref<1x96xf32, #tpu.memory_space<vmem>>, vector<1x96xf32>
    %210 = vector.broadcast %209 : vector<1x96xf32> to vector<2x96xf32>
    %211 = arith.addf %208, %210 : vector<2x96xf32>
    %212 = vector.extract_strided_slice %7 {offsets = [0, 6, 0], sizes = [2, 1, 96], strides = [1, 1, 1]} : vector<2x8x96xf32> to vector<2x1x96xf32>
    %213 = vector.shape_cast %212 : vector<2x1x96xf32> to vector<2x96xf32>
    %214 = vector.extract_strided_slice %213 {offsets = [0, 0], sizes = [2, 32], strides = [1, 1]} : vector<2x96xf32> to vector<2x32xf32>
    %215 = vector.extract_strided_slice %211 {offsets = [0, 0], sizes = [2, 32], strides = [1, 1]} : vector<2x96xf32> to vector<2x32xf32>
    %216 = arith.addf %214, %215 : vector<2x32xf32>
    %217 = arith.negf %216 : vector<2x32xf32>
    %218 = math.exp %217 : vector<2x32xf32>
    %cst_60 = arith.constant 1.000000e+00 : f32
    %219 = vector.broadcast %cst_60 : f32 to vector<2x32xf32>
    %220 = arith.addf %219, %218 : vector<2x32xf32>
    %221 = arith.divf %219, %220 : vector<2x32xf32>
    %222 = vector.extract_strided_slice %213 {offsets = [0, 32], sizes = [2, 32], strides = [1, 1]} : vector<2x96xf32> to vector<2x32xf32>
    %223 = vector.extract_strided_slice %211 {offsets = [0, 32], sizes = [2, 32], strides = [1, 1]} : vector<2x96xf32> to vector<2x32xf32>
    %224 = arith.addf %222, %223 : vector<2x32xf32>
    %225 = arith.negf %224 : vector<2x32xf32>
    %226 = math.exp %225 : vector<2x32xf32>
    %cst_61 = arith.constant 1.000000e+00 : f32
    %227 = vector.broadcast %cst_61 : f32 to vector<2x32xf32>
    %228 = arith.addf %227, %226 : vector<2x32xf32>
    %229 = arith.divf %227, %228 : vector<2x32xf32>
    %230 = vector.extract_strided_slice %213 {offsets = [0, 64], sizes = [2, 32], strides = [1, 1]} : vector<2x96xf32> to vector<2x32xf32>
    %231 = vector.extract_strided_slice %211 {offsets = [0, 64], sizes = [2, 32], strides = [1, 1]} : vector<2x96xf32> to vector<2x32xf32>
    %232 = arith.mulf %221, %231 : vector<2x32xf32>
    %233 = arith.addf %230, %232 : vector<2x32xf32>
    %234 = math.tanh %233 : vector<2x32xf32>
    %cst_62 = arith.constant 1.000000e+00 : f32
    %235 = vector.broadcast %cst_62 : f32 to vector<2x32xf32>
    %236 = arith.subf %235, %229 : vector<2x32xf32>
    %237 = arith.mulf %236, %234 : vector<2x32xf32>
    %238 = arith.mulf %229, %206 : vector<2x32xf32>
    %239 = arith.addf %237, %238 : vector<2x32xf32>
    %c0_63 = arith.constant 0 : index
    %c0_64 = arith.constant 0 : index
    %240 = vector.load %arg3[%c0_63, %c0_64] : memref<32x96xf32, #tpu.memory_space<vmem>>, vector<32x96xf32>
    %cst_65 = arith.constant dense<0.000000e+00> : vector<2x96xf32>
    %241 = tpu.matmul %239, %240, %cst_65 {dimension_numbers = #tpu.dot_dimension_numbers<[1], [0], [0], [1], [0, 0, 1, 1], [], []>} : vector<2x32xf32>, vector<32x96xf32>, vector<2x96xf32> -> vector<2x96xf32>
    %c0_66 = arith.constant 0 : index
    %c0_67 = arith.constant 0 : index
    %242 = vector.load %arg5[%c0_66, %c0_67] : memref<1x96xf32, #tpu.memory_space<vmem>>, vector<1x96xf32>
    %243 = vector.broadcast %242 : vector<1x96xf32> to vector<2x96xf32>
    %244 = arith.addf %241, %243 : vector<2x96xf32>
    %245 = vector.extract_strided_slice %7 {offsets = [0, 7, 0], sizes = [2, 1, 96], strides = [1, 1, 1]} : vector<2x8x96xf32> to vector<2x1x96xf32>
    %246 = vector.shape_cast %245 : vector<2x1x96xf32> to vector<2x96xf32>
    %247 = vector.extract_strided_slice %246 {offsets = [0, 0], sizes = [2, 32], strides = [1, 1]} : vector<2x96xf32> to vector<2x32xf32>
    %248 = vector.extract_strided_slice %244 {offsets = [0, 0], sizes = [2, 32], strides = [1, 1]} : vector<2x96xf32> to vector<2x32xf32>
    %249 = arith.addf %247, %248 : vector<2x32xf32>
    %250 = arith.negf %249 : vector<2x32xf32>
    %251 = math.exp %250 : vector<2x32xf32>
    %cst_68 = arith.constant 1.000000e+00 : f32
    %252 = vector.broadcast %cst_68 : f32 to vector<2x32xf32>
    %253 = arith.addf %252, %251 : vector<2x32xf32>
    %254 = arith.divf %252, %253 : vector<2x32xf32>
    %255 = vector.extract_strided_slice %246 {offsets = [0, 32], sizes = [2, 32], strides = [1, 1]} : vector<2x96xf32> to vector<2x32xf32>
    %256 = vector.extract_strided_slice %244 {offsets = [0, 32], sizes = [2, 32], strides = [1, 1]} : vector<2x96xf32> to vector<2x32xf32>
    %257 = arith.addf %255, %256 : vector<2x32xf32>
    %258 = arith.negf %257 : vector<2x32xf32>
    %259 = math.exp %258 : vector<2x32xf32>
    %cst_69 = arith.constant 1.000000e+00 : f32
    %260 = vector.broadcast %cst_69 : f32 to vector<2x32xf32>
    %261 = arith.addf %260, %259 : vector<2x32xf32>
    %262 = arith.divf %260, %261 : vector<2x32xf32>
    %263 = vector.extract_strided_slice %246 {offsets = [0, 64], sizes = [2, 32], strides = [1, 1]} : vector<2x96xf32> to vector<2x32xf32>
    %264 = vector.extract_strided_slice %244 {offsets = [0, 64], sizes = [2, 32], strides = [1, 1]} : vector<2x96xf32> to vector<2x32xf32>
    %265 = arith.mulf %254, %264 : vector<2x32xf32>
    %266 = arith.addf %263, %265 : vector<2x32xf32>
    %267 = math.tanh %266 : vector<2x32xf32>
    %cst_70 = arith.constant 1.000000e+00 : f32
    %268 = vector.broadcast %cst_70 : f32 to vector<2x32xf32>
    %269 = arith.subf %268, %262 : vector<2x32xf32>
    %270 = arith.mulf %269, %267 : vector<2x32xf32>
    %271 = arith.mulf %262, %239 : vector<2x32xf32>
    %272 = arith.addf %270, %271 : vector<2x32xf32>
    %273 = vector.shape_cast %41 : vector<2x32xf32> to vector<2x1x32xf32>
    %274 = vector.shape_cast %74 : vector<2x32xf32> to vector<2x1x32xf32>
    %275 = vector.shape_cast %107 : vector<2x32xf32> to vector<2x1x32xf32>
    %276 = vector.shape_cast %140 : vector<2x32xf32> to vector<2x1x32xf32>
    %277 = vector.shape_cast %173 : vector<2x32xf32> to vector<2x1x32xf32>
    %278 = vector.shape_cast %206 : vector<2x32xf32> to vector<2x1x32xf32>
    %279 = vector.shape_cast %239 : vector<2x32xf32> to vector<2x1x32xf32>
    %280 = vector.shape_cast %272 : vector<2x32xf32> to vector<2x1x32xf32>
    %281 = tpu.concatenate %273, %274, %275, %276, %277, %278, %279, %280 in 1 : vector<2x1x32xf32>, vector<2x1x32xf32>, vector<2x1x32xf32>, vector<2x1x32xf32>, vector<2x1x32xf32>, vector<2x1x32xf32>, vector<2x1x32xf32>, vector<2x1x32xf32> -> vector<2x8x32xf32>
    %282 = vector.shape_cast %281 : vector<2x8x32xf32> to vector<16x32xf32>
    %c0_71 = arith.constant 0 : index
    %c0_72 = arith.constant 0 : index
    %283 = vector.load %arg6[%c0_71, %c0_72] : memref<32x96xf32, #tpu.memory_space<vmem>>, vector<32x96xf32>
    %cst_73 = arith.constant dense<0.000000e+00> : vector<16x96xf32>
    %284 = tpu.matmul %282, %283, %cst_73 {dimension_numbers = #tpu.dot_dimension_numbers<[1], [0], [0], [1], [0, 0, 1, 1], [], []>} : vector<16x32xf32>, vector<32x96xf32>, vector<16x96xf32> -> vector<16x96xf32>
    %c0_74 = arith.constant 0 : index
    %c0_75 = arith.constant 0 : index
    %285 = vector.load %arg8[%c0_74, %c0_75] : memref<1x96xf32, #tpu.memory_space<vmem>>, vector<1x96xf32>
    %286 = vector.broadcast %285 : vector<1x96xf32> to vector<16x96xf32>
    %287 = arith.addf %284, %286 : vector<16x96xf32>
    %288 = vector.shape_cast %287 : vector<16x96xf32> to vector<2x8x96xf32>
    %cst_76 = arith.constant 0.000000e+00 : f32
    %289 = vector.broadcast %cst_76 : f32 to vector<2x32xf32>
    %c0_77 = arith.constant 0 : index
    %c0_78 = arith.constant 0 : index
    %290 = vector.load %arg7[%c0_77, %c0_78] : memref<32x96xf32, #tpu.memory_space<vmem>>, vector<32x96xf32>
    %cst_79 = arith.constant dense<0.000000e+00> : vector<2x96xf32>
    %291 = tpu.matmul %289, %290, %cst_79 {dimension_numbers = #tpu.dot_dimension_numbers<[1], [0], [0], [1], [0, 0, 1, 1], [], []>} : vector<2x32xf32>, vector<32x96xf32>, vector<2x96xf32> -> vector<2x96xf32>
    %c0_80 = arith.constant 0 : index
    %c0_81 = arith.constant 0 : index
    %292 = vector.load %arg9[%c0_80, %c0_81] : memref<1x96xf32, #tpu.memory_space<vmem>>, vector<1x96xf32>
    %293 = vector.broadcast %292 : vector<1x96xf32> to vector<2x96xf32>
    %294 = arith.addf %291, %293 : vector<2x96xf32>
    %295 = vector.extract_strided_slice %288 {offsets = [0, 0, 0], sizes = [2, 1, 96], strides = [1, 1, 1]} : vector<2x8x96xf32> to vector<2x1x96xf32>
    %296 = vector.shape_cast %295 : vector<2x1x96xf32> to vector<2x96xf32>
    %297 = vector.extract_strided_slice %296 {offsets = [0, 0], sizes = [2, 32], strides = [1, 1]} : vector<2x96xf32> to vector<2x32xf32>
    %298 = vector.extract_strided_slice %294 {offsets = [0, 0], sizes = [2, 32], strides = [1, 1]} : vector<2x96xf32> to vector<2x32xf32>
    %299 = arith.addf %297, %298 : vector<2x32xf32>
    %300 = arith.negf %299 : vector<2x32xf32>
    %301 = math.exp %300 : vector<2x32xf32>
    %cst_82 = arith.constant 1.000000e+00 : f32
    %302 = vector.broadcast %cst_82 : f32 to vector<2x32xf32>
    %303 = arith.addf %302, %301 : vector<2x32xf32>
    %304 = arith.divf %302, %303 : vector<2x32xf32>
    %305 = vector.extract_strided_slice %296 {offsets = [0, 32], sizes = [2, 32], strides = [1, 1]} : vector<2x96xf32> to vector<2x32xf32>
    %306 = vector.extract_strided_slice %294 {offsets = [0, 32], sizes = [2, 32], strides = [1, 1]} : vector<2x96xf32> to vector<2x32xf32>
    %307 = arith.addf %305, %306 : vector<2x32xf32>
    %308 = arith.negf %307 : vector<2x32xf32>
    %309 = math.exp %308 : vector<2x32xf32>
    %cst_83 = arith.constant 1.000000e+00 : f32
    %310 = vector.broadcast %cst_83 : f32 to vector<2x32xf32>
    %311 = arith.addf %310, %309 : vector<2x32xf32>
    %312 = arith.divf %310, %311 : vector<2x32xf32>
    %313 = vector.extract_strided_slice %296 {offsets = [0, 64], sizes = [2, 32], strides = [1, 1]} : vector<2x96xf32> to vector<2x32xf32>
    %314 = vector.extract_strided_slice %294 {offsets = [0, 64], sizes = [2, 32], strides = [1, 1]} : vector<2x96xf32> to vector<2x32xf32>
    %315 = arith.mulf %304, %314 : vector<2x32xf32>
    %316 = arith.addf %313, %315 : vector<2x32xf32>
    %317 = math.tanh %316 : vector<2x32xf32>
    %cst_84 = arith.constant 1.000000e+00 : f32
    %318 = vector.broadcast %cst_84 : f32 to vector<2x32xf32>
    %319 = arith.subf %318, %312 : vector<2x32xf32>
    %320 = arith.mulf %319, %317 : vector<2x32xf32>
    %321 = arith.mulf %312, %289 : vector<2x32xf32>
    %322 = arith.addf %320, %321 : vector<2x32xf32>
    %c0_85 = arith.constant 0 : index
    %c0_86 = arith.constant 0 : index
    %323 = vector.load %arg7[%c0_85, %c0_86] : memref<32x96xf32, #tpu.memory_space<vmem>>, vector<32x96xf32>
    %cst_87 = arith.constant dense<0.000000e+00> : vector<2x96xf32>
    %324 = tpu.matmul %322, %323, %cst_87 {dimension_numbers = #tpu.dot_dimension_numbers<[1], [0], [0], [1], [0, 0, 1, 1], [], []>} : vector<2x32xf32>, vector<32x96xf32>, vector<2x96xf32> -> vector<2x96xf32>
    %c0_88 = arith.constant 0 : index
    %c0_89 = arith.constant 0 : index
    %325 = vector.load %arg9[%c0_88, %c0_89] : memref<1x96xf32, #tpu.memory_space<vmem>>, vector<1x96xf32>
    %326 = vector.broadcast %325 : vector<1x96xf32> to vector<2x96xf32>
    %327 = arith.addf %324, %326 : vector<2x96xf32>
    %328 = vector.extract_strided_slice %288 {offsets = [0, 1, 0], sizes = [2, 1, 96], strides = [1, 1, 1]} : vector<2x8x96xf32> to vector<2x1x96xf32>
    %329 = vector.shape_cast %328 : vector<2x1x96xf32> to vector<2x96xf32>
    %330 = vector.extract_strided_slice %329 {offsets = [0, 0], sizes = [2, 32], strides = [1, 1]} : vector<2x96xf32> to vector<2x32xf32>
    %331 = vector.extract_strided_slice %327 {offsets = [0, 0], sizes = [2, 32], strides = [1, 1]} : vector<2x96xf32> to vector<2x32xf32>
    %332 = arith.addf %330, %331 : vector<2x32xf32>
    %333 = arith.negf %332 : vector<2x32xf32>
    %334 = math.exp %333 : vector<2x32xf32>
    %cst_90 = arith.constant 1.000000e+00 : f32
    %335 = vector.broadcast %cst_90 : f32 to vector<2x32xf32>
    %336 = arith.addf %335, %334 : vector<2x32xf32>
    %337 = arith.divf %335, %336 : vector<2x32xf32>
    %338 = vector.extract_strided_slice %329 {offsets = [0, 32], sizes = [2, 32], strides = [1, 1]} : vector<2x96xf32> to vector<2x32xf32>
    %339 = vector.extract_strided_slice %327 {offsets = [0, 32], sizes = [2, 32], strides = [1, 1]} : vector<2x96xf32> to vector<2x32xf32>
    %340 = arith.addf %338, %339 : vector<2x32xf32>
    %341 = arith.negf %340 : vector<2x32xf32>
    %342 = math.exp %341 : vector<2x32xf32>
    %cst_91 = arith.constant 1.000000e+00 : f32
    %343 = vector.broadcast %cst_91 : f32 to vector<2x32xf32>
    %344 = arith.addf %343, %342 : vector<2x32xf32>
    %345 = arith.divf %343, %344 : vector<2x32xf32>
    %346 = vector.extract_strided_slice %329 {offsets = [0, 64], sizes = [2, 32], strides = [1, 1]} : vector<2x96xf32> to vector<2x32xf32>
    %347 = vector.extract_strided_slice %327 {offsets = [0, 64], sizes = [2, 32], strides = [1, 1]} : vector<2x96xf32> to vector<2x32xf32>
    %348 = arith.mulf %337, %347 : vector<2x32xf32>
    %349 = arith.addf %346, %348 : vector<2x32xf32>
    %350 = math.tanh %349 : vector<2x32xf32>
    %cst_92 = arith.constant 1.000000e+00 : f32
    %351 = vector.broadcast %cst_92 : f32 to vector<2x32xf32>
    %352 = arith.subf %351, %345 : vector<2x32xf32>
    %353 = arith.mulf %352, %350 : vector<2x32xf32>
    %354 = arith.mulf %345, %322 : vector<2x32xf32>
    %355 = arith.addf %353, %354 : vector<2x32xf32>
    %c0_93 = arith.constant 0 : index
    %c0_94 = arith.constant 0 : index
    %356 = vector.load %arg7[%c0_93, %c0_94] : memref<32x96xf32, #tpu.memory_space<vmem>>, vector<32x96xf32>
    %cst_95 = arith.constant dense<0.000000e+00> : vector<2x96xf32>
    %357 = tpu.matmul %355, %356, %cst_95 {dimension_numbers = #tpu.dot_dimension_numbers<[1], [0], [0], [1], [0, 0, 1, 1], [], []>} : vector<2x32xf32>, vector<32x96xf32>, vector<2x96xf32> -> vector<2x96xf32>
    %c0_96 = arith.constant 0 : index
    %c0_97 = arith.constant 0 : index
    %358 = vector.load %arg9[%c0_96, %c0_97] : memref<1x96xf32, #tpu.memory_space<vmem>>, vector<1x96xf32>
    %359 = vector.broadcast %358 : vector<1x96xf32> to vector<2x96xf32>
    %360 = arith.addf %357, %359 : vector<2x96xf32>
    %361 = vector.extract_strided_slice %288 {offsets = [0, 2, 0], sizes = [2, 1, 96], strides = [1, 1, 1]} : vector<2x8x96xf32> to vector<2x1x96xf32>
    %362 = vector.shape_cast %361 : vector<2x1x96xf32> to vector<2x96xf32>
    %363 = vector.extract_strided_slice %362 {offsets = [0, 0], sizes = [2, 32], strides = [1, 1]} : vector<2x96xf32> to vector<2x32xf32>
    %364 = vector.extract_strided_slice %360 {offsets = [0, 0], sizes = [2, 32], strides = [1, 1]} : vector<2x96xf32> to vector<2x32xf32>
    %365 = arith.addf %363, %364 : vector<2x32xf32>
    %366 = arith.negf %365 : vector<2x32xf32>
    %367 = math.exp %366 : vector<2x32xf32>
    %cst_98 = arith.constant 1.000000e+00 : f32
    %368 = vector.broadcast %cst_98 : f32 to vector<2x32xf32>
    %369 = arith.addf %368, %367 : vector<2x32xf32>
    %370 = arith.divf %368, %369 : vector<2x32xf32>
    %371 = vector.extract_strided_slice %362 {offsets = [0, 32], sizes = [2, 32], strides = [1, 1]} : vector<2x96xf32> to vector<2x32xf32>
    %372 = vector.extract_strided_slice %360 {offsets = [0, 32], sizes = [2, 32], strides = [1, 1]} : vector<2x96xf32> to vector<2x32xf32>
    %373 = arith.addf %371, %372 : vector<2x32xf32>
    %374 = arith.negf %373 : vector<2x32xf32>
    %375 = math.exp %374 : vector<2x32xf32>
    %cst_99 = arith.constant 1.000000e+00 : f32
    %376 = vector.broadcast %cst_99 : f32 to vector<2x32xf32>
    %377 = arith.addf %376, %375 : vector<2x32xf32>
    %378 = arith.divf %376, %377 : vector<2x32xf32>
    %379 = vector.extract_strided_slice %362 {offsets = [0, 64], sizes = [2, 32], strides = [1, 1]} : vector<2x96xf32> to vector<2x32xf32>
    %380 = vector.extract_strided_slice %360 {offsets = [0, 64], sizes = [2, 32], strides = [1, 1]} : vector<2x96xf32> to vector<2x32xf32>
    %381 = arith.mulf %370, %380 : vector<2x32xf32>
    %382 = arith.addf %379, %381 : vector<2x32xf32>
    %383 = math.tanh %382 : vector<2x32xf32>
    %cst_100 = arith.constant 1.000000e+00 : f32
    %384 = vector.broadcast %cst_100 : f32 to vector<2x32xf32>
    %385 = arith.subf %384, %378 : vector<2x32xf32>
    %386 = arith.mulf %385, %383 : vector<2x32xf32>
    %387 = arith.mulf %378, %355 : vector<2x32xf32>
    %388 = arith.addf %386, %387 : vector<2x32xf32>
    %c0_101 = arith.constant 0 : index
    %c0_102 = arith.constant 0 : index
    %389 = vector.load %arg7[%c0_101, %c0_102] : memref<32x96xf32, #tpu.memory_space<vmem>>, vector<32x96xf32>
    %cst_103 = arith.constant dense<0.000000e+00> : vector<2x96xf32>
    %390 = tpu.matmul %388, %389, %cst_103 {dimension_numbers = #tpu.dot_dimension_numbers<[1], [0], [0], [1], [0, 0, 1, 1], [], []>} : vector<2x32xf32>, vector<32x96xf32>, vector<2x96xf32> -> vector<2x96xf32>
    %c0_104 = arith.constant 0 : index
    %c0_105 = arith.constant 0 : index
    %391 = vector.load %arg9[%c0_104, %c0_105] : memref<1x96xf32, #tpu.memory_space<vmem>>, vector<1x96xf32>
    %392 = vector.broadcast %391 : vector<1x96xf32> to vector<2x96xf32>
    %393 = arith.addf %390, %392 : vector<2x96xf32>
    %394 = vector.extract_strided_slice %288 {offsets = [0, 3, 0], sizes = [2, 1, 96], strides = [1, 1, 1]} : vector<2x8x96xf32> to vector<2x1x96xf32>
    %395 = vector.shape_cast %394 : vector<2x1x96xf32> to vector<2x96xf32>
    %396 = vector.extract_strided_slice %395 {offsets = [0, 0], sizes = [2, 32], strides = [1, 1]} : vector<2x96xf32> to vector<2x32xf32>
    %397 = vector.extract_strided_slice %393 {offsets = [0, 0], sizes = [2, 32], strides = [1, 1]} : vector<2x96xf32> to vector<2x32xf32>
    %398 = arith.addf %396, %397 : vector<2x32xf32>
    %399 = arith.negf %398 : vector<2x32xf32>
    %400 = math.exp %399 : vector<2x32xf32>
    %cst_106 = arith.constant 1.000000e+00 : f32
    %401 = vector.broadcast %cst_106 : f32 to vector<2x32xf32>
    %402 = arith.addf %401, %400 : vector<2x32xf32>
    %403 = arith.divf %401, %402 : vector<2x32xf32>
    %404 = vector.extract_strided_slice %395 {offsets = [0, 32], sizes = [2, 32], strides = [1, 1]} : vector<2x96xf32> to vector<2x32xf32>
    %405 = vector.extract_strided_slice %393 {offsets = [0, 32], sizes = [2, 32], strides = [1, 1]} : vector<2x96xf32> to vector<2x32xf32>
    %406 = arith.addf %404, %405 : vector<2x32xf32>
    %407 = arith.negf %406 : vector<2x32xf32>
    %408 = math.exp %407 : vector<2x32xf32>
    %cst_107 = arith.constant 1.000000e+00 : f32
    %409 = vector.broadcast %cst_107 : f32 to vector<2x32xf32>
    %410 = arith.addf %409, %408 : vector<2x32xf32>
    %411 = arith.divf %409, %410 : vector<2x32xf32>
    %412 = vector.extract_strided_slice %395 {offsets = [0, 64], sizes = [2, 32], strides = [1, 1]} : vector<2x96xf32> to vector<2x32xf32>
    %413 = vector.extract_strided_slice %393 {offsets = [0, 64], sizes = [2, 32], strides = [1, 1]} : vector<2x96xf32> to vector<2x32xf32>
    %414 = arith.mulf %403, %413 : vector<2x32xf32>
    %415 = arith.addf %412, %414 : vector<2x32xf32>
    %416 = math.tanh %415 : vector<2x32xf32>
    %cst_108 = arith.constant 1.000000e+00 : f32
    %417 = vector.broadcast %cst_108 : f32 to vector<2x32xf32>
    %418 = arith.subf %417, %411 : vector<2x32xf32>
    %419 = arith.mulf %418, %416 : vector<2x32xf32>
    %420 = arith.mulf %411, %388 : vector<2x32xf32>
    %421 = arith.addf %419, %420 : vector<2x32xf32>
    %c0_109 = arith.constant 0 : index
    %c0_110 = arith.constant 0 : index
    %422 = vector.load %arg7[%c0_109, %c0_110] : memref<32x96xf32, #tpu.memory_space<vmem>>, vector<32x96xf32>
    %cst_111 = arith.constant dense<0.000000e+00> : vector<2x96xf32>
    %423 = tpu.matmul %421, %422, %cst_111 {dimension_numbers = #tpu.dot_dimension_numbers<[1], [0], [0], [1], [0, 0, 1, 1], [], []>} : vector<2x32xf32>, vector<32x96xf32>, vector<2x96xf32> -> vector<2x96xf32>
    %c0_112 = arith.constant 0 : index
    %c0_113 = arith.constant 0 : index
    %424 = vector.load %arg9[%c0_112, %c0_113] : memref<1x96xf32, #tpu.memory_space<vmem>>, vector<1x96xf32>
    %425 = vector.broadcast %424 : vector<1x96xf32> to vector<2x96xf32>
    %426 = arith.addf %423, %425 : vector<2x96xf32>
    %427 = vector.extract_strided_slice %288 {offsets = [0, 4, 0], sizes = [2, 1, 96], strides = [1, 1, 1]} : vector<2x8x96xf32> to vector<2x1x96xf32>
    %428 = vector.shape_cast %427 : vector<2x1x96xf32> to vector<2x96xf32>
    %429 = vector.extract_strided_slice %428 {offsets = [0, 0], sizes = [2, 32], strides = [1, 1]} : vector<2x96xf32> to vector<2x32xf32>
    %430 = vector.extract_strided_slice %426 {offsets = [0, 0], sizes = [2, 32], strides = [1, 1]} : vector<2x96xf32> to vector<2x32xf32>
    %431 = arith.addf %429, %430 : vector<2x32xf32>
    %432 = arith.negf %431 : vector<2x32xf32>
    %433 = math.exp %432 : vector<2x32xf32>
    %cst_114 = arith.constant 1.000000e+00 : f32
    %434 = vector.broadcast %cst_114 : f32 to vector<2x32xf32>
    %435 = arith.addf %434, %433 : vector<2x32xf32>
    %436 = arith.divf %434, %435 : vector<2x32xf32>
    %437 = vector.extract_strided_slice %428 {offsets = [0, 32], sizes = [2, 32], strides = [1, 1]} : vector<2x96xf32> to vector<2x32xf32>
    %438 = vector.extract_strided_slice %426 {offsets = [0, 32], sizes = [2, 32], strides = [1, 1]} : vector<2x96xf32> to vector<2x32xf32>
    %439 = arith.addf %437, %438 : vector<2x32xf32>
    %440 = arith.negf %439 : vector<2x32xf32>
    %441 = math.exp %440 : vector<2x32xf32>
    %cst_115 = arith.constant 1.000000e+00 : f32
    %442 = vector.broadcast %cst_115 : f32 to vector<2x32xf32>
    %443 = arith.addf %442, %441 : vector<2x32xf32>
    %444 = arith.divf %442, %443 : vector<2x32xf32>
    %445 = vector.extract_strided_slice %428 {offsets = [0, 64], sizes = [2, 32], strides = [1, 1]} : vector<2x96xf32> to vector<2x32xf32>
    %446 = vector.extract_strided_slice %426 {offsets = [0, 64], sizes = [2, 32], strides = [1, 1]} : vector<2x96xf32> to vector<2x32xf32>
    %447 = arith.mulf %436, %446 : vector<2x32xf32>
    %448 = arith.addf %445, %447 : vector<2x32xf32>
    %449 = math.tanh %448 : vector<2x32xf32>
    %cst_116 = arith.constant 1.000000e+00 : f32
    %450 = vector.broadcast %cst_116 : f32 to vector<2x32xf32>
    %451 = arith.subf %450, %444 : vector<2x32xf32>
    %452 = arith.mulf %451, %449 : vector<2x32xf32>
    %453 = arith.mulf %444, %421 : vector<2x32xf32>
    %454 = arith.addf %452, %453 : vector<2x32xf32>
    %c0_117 = arith.constant 0 : index
    %c0_118 = arith.constant 0 : index
    %455 = vector.load %arg7[%c0_117, %c0_118] : memref<32x96xf32, #tpu.memory_space<vmem>>, vector<32x96xf32>
    %cst_119 = arith.constant dense<0.000000e+00> : vector<2x96xf32>
    %456 = tpu.matmul %454, %455, %cst_119 {dimension_numbers = #tpu.dot_dimension_numbers<[1], [0], [0], [1], [0, 0, 1, 1], [], []>} : vector<2x32xf32>, vector<32x96xf32>, vector<2x96xf32> -> vector<2x96xf32>
    %c0_120 = arith.constant 0 : index
    %c0_121 = arith.constant 0 : index
    %457 = vector.load %arg9[%c0_120, %c0_121] : memref<1x96xf32, #tpu.memory_space<vmem>>, vector<1x96xf32>
    %458 = vector.broadcast %457 : vector<1x96xf32> to vector<2x96xf32>
    %459 = arith.addf %456, %458 : vector<2x96xf32>
    %460 = vector.extract_strided_slice %288 {offsets = [0, 5, 0], sizes = [2, 1, 96], strides = [1, 1, 1]} : vector<2x8x96xf32> to vector<2x1x96xf32>
    %461 = vector.shape_cast %460 : vector<2x1x96xf32> to vector<2x96xf32>
    %462 = vector.extract_strided_slice %461 {offsets = [0, 0], sizes = [2, 32], strides = [1, 1]} : vector<2x96xf32> to vector<2x32xf32>
    %463 = vector.extract_strided_slice %459 {offsets = [0, 0], sizes = [2, 32], strides = [1, 1]} : vector<2x96xf32> to vector<2x32xf32>
    %464 = arith.addf %462, %463 : vector<2x32xf32>
    %465 = arith.negf %464 : vector<2x32xf32>
    %466 = math.exp %465 : vector<2x32xf32>
    %cst_122 = arith.constant 1.000000e+00 : f32
    %467 = vector.broadcast %cst_122 : f32 to vector<2x32xf32>
    %468 = arith.addf %467, %466 : vector<2x32xf32>
    %469 = arith.divf %467, %468 : vector<2x32xf32>
    %470 = vector.extract_strided_slice %461 {offsets = [0, 32], sizes = [2, 32], strides = [1, 1]} : vector<2x96xf32> to vector<2x32xf32>
    %471 = vector.extract_strided_slice %459 {offsets = [0, 32], sizes = [2, 32], strides = [1, 1]} : vector<2x96xf32> to vector<2x32xf32>
    %472 = arith.addf %470, %471 : vector<2x32xf32>
    %473 = arith.negf %472 : vector<2x32xf32>
    %474 = math.exp %473 : vector<2x32xf32>
    %cst_123 = arith.constant 1.000000e+00 : f32
    %475 = vector.broadcast %cst_123 : f32 to vector<2x32xf32>
    %476 = arith.addf %475, %474 : vector<2x32xf32>
    %477 = arith.divf %475, %476 : vector<2x32xf32>
    %478 = vector.extract_strided_slice %461 {offsets = [0, 64], sizes = [2, 32], strides = [1, 1]} : vector<2x96xf32> to vector<2x32xf32>
    %479 = vector.extract_strided_slice %459 {offsets = [0, 64], sizes = [2, 32], strides = [1, 1]} : vector<2x96xf32> to vector<2x32xf32>
    %480 = arith.mulf %469, %479 : vector<2x32xf32>
    %481 = arith.addf %478, %480 : vector<2x32xf32>
    %482 = math.tanh %481 : vector<2x32xf32>
    %cst_124 = arith.constant 1.000000e+00 : f32
    %483 = vector.broadcast %cst_124 : f32 to vector<2x32xf32>
    %484 = arith.subf %483, %477 : vector<2x32xf32>
    %485 = arith.mulf %484, %482 : vector<2x32xf32>
    %486 = arith.mulf %477, %454 : vector<2x32xf32>
    %487 = arith.addf %485, %486 : vector<2x32xf32>
    %c0_125 = arith.constant 0 : index
    %c0_126 = arith.constant 0 : index
    %488 = vector.load %arg7[%c0_125, %c0_126] : memref<32x96xf32, #tpu.memory_space<vmem>>, vector<32x96xf32>
    %cst_127 = arith.constant dense<0.000000e+00> : vector<2x96xf32>
    %489 = tpu.matmul %487, %488, %cst_127 {dimension_numbers = #tpu.dot_dimension_numbers<[1], [0], [0], [1], [0, 0, 1, 1], [], []>} : vector<2x32xf32>, vector<32x96xf32>, vector<2x96xf32> -> vector<2x96xf32>
    %c0_128 = arith.constant 0 : index
    %c0_129 = arith.constant 0 : index
    %490 = vector.load %arg9[%c0_128, %c0_129] : memref<1x96xf32, #tpu.memory_space<vmem>>, vector<1x96xf32>
    %491 = vector.broadcast %490 : vector<1x96xf32> to vector<2x96xf32>
    %492 = arith.addf %489, %491 : vector<2x96xf32>
    %493 = vector.extract_strided_slice %288 {offsets = [0, 6, 0], sizes = [2, 1, 96], strides = [1, 1, 1]} : vector<2x8x96xf32> to vector<2x1x96xf32>
    %494 = vector.shape_cast %493 : vector<2x1x96xf32> to vector<2x96xf32>
    %495 = vector.extract_strided_slice %494 {offsets = [0, 0], sizes = [2, 32], strides = [1, 1]} : vector<2x96xf32> to vector<2x32xf32>
    %496 = vector.extract_strided_slice %492 {offsets = [0, 0], sizes = [2, 32], strides = [1, 1]} : vector<2x96xf32> to vector<2x32xf32>
    %497 = arith.addf %495, %496 : vector<2x32xf32>
    %498 = arith.negf %497 : vector<2x32xf32>
    %499 = math.exp %498 : vector<2x32xf32>
    %cst_130 = arith.constant 1.000000e+00 : f32
    %500 = vector.broadcast %cst_130 : f32 to vector<2x32xf32>
    %501 = arith.addf %500, %499 : vector<2x32xf32>
    %502 = arith.divf %500, %501 : vector<2x32xf32>
    %503 = vector.extract_strided_slice %494 {offsets = [0, 32], sizes = [2, 32], strides = [1, 1]} : vector<2x96xf32> to vector<2x32xf32>
    %504 = vector.extract_strided_slice %492 {offsets = [0, 32], sizes = [2, 32], strides = [1, 1]} : vector<2x96xf32> to vector<2x32xf32>
    %505 = arith.addf %503, %504 : vector<2x32xf32>
    %506 = arith.negf %505 : vector<2x32xf32>
    %507 = math.exp %506 : vector<2x32xf32>
    %cst_131 = arith.constant 1.000000e+00 : f32
    %508 = vector.broadcast %cst_131 : f32 to vector<2x32xf32>
    %509 = arith.addf %508, %507 : vector<2x32xf32>
    %510 = arith.divf %508, %509 : vector<2x32xf32>
    %511 = vector.extract_strided_slice %494 {offsets = [0, 64], sizes = [2, 32], strides = [1, 1]} : vector<2x96xf32> to vector<2x32xf32>
    %512 = vector.extract_strided_slice %492 {offsets = [0, 64], sizes = [2, 32], strides = [1, 1]} : vector<2x96xf32> to vector<2x32xf32>
    %513 = arith.mulf %502, %512 : vector<2x32xf32>
    %514 = arith.addf %511, %513 : vector<2x32xf32>
    %515 = math.tanh %514 : vector<2x32xf32>
    %cst_132 = arith.constant 1.000000e+00 : f32
    %516 = vector.broadcast %cst_132 : f32 to vector<2x32xf32>
    %517 = arith.subf %516, %510 : vector<2x32xf32>
    %518 = arith.mulf %517, %515 : vector<2x32xf32>
    %519 = arith.mulf %510, %487 : vector<2x32xf32>
    %520 = arith.addf %518, %519 : vector<2x32xf32>
    %c0_133 = arith.constant 0 : index
    %c0_134 = arith.constant 0 : index
    %521 = vector.load %arg7[%c0_133, %c0_134] : memref<32x96xf32, #tpu.memory_space<vmem>>, vector<32x96xf32>
    %cst_135 = arith.constant dense<0.000000e+00> : vector<2x96xf32>
    %522 = tpu.matmul %520, %521, %cst_135 {dimension_numbers = #tpu.dot_dimension_numbers<[1], [0], [0], [1], [0, 0, 1, 1], [], []>} : vector<2x32xf32>, vector<32x96xf32>, vector<2x96xf32> -> vector<2x96xf32>
    %c0_136 = arith.constant 0 : index
    %c0_137 = arith.constant 0 : index
    %523 = vector.load %arg9[%c0_136, %c0_137] : memref<1x96xf32, #tpu.memory_space<vmem>>, vector<1x96xf32>
    %524 = vector.broadcast %523 : vector<1x96xf32> to vector<2x96xf32>
    %525 = arith.addf %522, %524 : vector<2x96xf32>
    %526 = vector.extract_strided_slice %288 {offsets = [0, 7, 0], sizes = [2, 1, 96], strides = [1, 1, 1]} : vector<2x8x96xf32> to vector<2x1x96xf32>
    %527 = vector.shape_cast %526 : vector<2x1x96xf32> to vector<2x96xf32>
    %528 = vector.extract_strided_slice %527 {offsets = [0, 0], sizes = [2, 32], strides = [1, 1]} : vector<2x96xf32> to vector<2x32xf32>
    %529 = vector.extract_strided_slice %525 {offsets = [0, 0], sizes = [2, 32], strides = [1, 1]} : vector<2x96xf32> to vector<2x32xf32>
    %530 = arith.addf %528, %529 : vector<2x32xf32>
    %531 = arith.negf %530 : vector<2x32xf32>
    %532 = math.exp %531 : vector<2x32xf32>
    %cst_138 = arith.constant 1.000000e+00 : f32
    %533 = vector.broadcast %cst_138 : f32 to vector<2x32xf32>
    %534 = arith.addf %533, %532 : vector<2x32xf32>
    %535 = arith.divf %533, %534 : vector<2x32xf32>
    %536 = vector.extract_strided_slice %527 {offsets = [0, 32], sizes = [2, 32], strides = [1, 1]} : vector<2x96xf32> to vector<2x32xf32>
    %537 = vector.extract_strided_slice %525 {offsets = [0, 32], sizes = [2, 32], strides = [1, 1]} : vector<2x96xf32> to vector<2x32xf32>
    %538 = arith.addf %536, %537 : vector<2x32xf32>
    %539 = arith.negf %538 : vector<2x32xf32>
    %540 = math.exp %539 : vector<2x32xf32>
    %cst_139 = arith.constant 1.000000e+00 : f32
    %541 = vector.broadcast %cst_139 : f32 to vector<2x32xf32>
    %542 = arith.addf %541, %540 : vector<2x32xf32>
    %543 = arith.divf %541, %542 : vector<2x32xf32>
    %544 = vector.extract_strided_slice %527 {offsets = [0, 64], sizes = [2, 32], strides = [1, 1]} : vector<2x96xf32> to vector<2x32xf32>
    %545 = vector.extract_strided_slice %525 {offsets = [0, 64], sizes = [2, 32], strides = [1, 1]} : vector<2x96xf32> to vector<2x32xf32>
    %546 = arith.mulf %535, %545 : vector<2x32xf32>
    %547 = arith.addf %544, %546 : vector<2x32xf32>
    %548 = math.tanh %547 : vector<2x32xf32>
    %cst_140 = arith.constant 1.000000e+00 : f32
    %549 = vector.broadcast %cst_140 : f32 to vector<2x32xf32>
    %550 = arith.subf %549, %543 : vector<2x32xf32>
    %551 = arith.mulf %550, %548 : vector<2x32xf32>
    %552 = arith.mulf %543, %520 : vector<2x32xf32>
    %553 = arith.addf %551, %552 : vector<2x32xf32>
    %554 = vector.shape_cast %322 : vector<2x32xf32> to vector<2x1x32xf32>
    %555 = vector.shape_cast %355 : vector<2x32xf32> to vector<2x1x32xf32>
    %556 = vector.shape_cast %388 : vector<2x32xf32> to vector<2x1x32xf32>
    %557 = vector.shape_cast %421 : vector<2x32xf32> to vector<2x1x32xf32>
    %558 = vector.shape_cast %454 : vector<2x32xf32> to vector<2x1x32xf32>
    %559 = vector.shape_cast %487 : vector<2x32xf32> to vector<2x1x32xf32>
    %560 = vector.shape_cast %520 : vector<2x32xf32> to vector<2x1x32xf32>
    %561 = vector.shape_cast %553 : vector<2x32xf32> to vector<2x1x32xf32>
    %562 = tpu.concatenate %554, %555, %556, %557, %558, %559, %560, %561 in 1 : vector<2x1x32xf32>, vector<2x1x32xf32>, vector<2x1x32xf32>, vector<2x1x32xf32>, vector<2x1x32xf32>, vector<2x1x32xf32>, vector<2x1x32xf32>, vector<2x1x32xf32> -> vector<2x8x32xf32>
    %563 = vector.shape_cast %562 : vector<2x8x32xf32> to vector<16x32xf32>
    %c0_141 = arith.constant 0 : index
    %c0_142 = arith.constant 0 : index
    %564 = vector.load %arg10[%c0_141, %c0_142] : memref<16x32xf32, #tpu.memory_space<vmem>>, vector<16x32xf32>
    tpu.vector_store %arg10[%c0_141, %c0_142], %563 {strides = array<i32>} : memref<16x32xf32, #tpu.memory_space<vmem>>, vector<16x32xf32>,
    return
  }
  func.func @transform_0(%arg0: i32) -> (i32, i32, i32) {
    %c0_i32 = arith.constant 0 : i32
    %c0_i32_0 = arith.constant 0 : i32
    %c0_i32_1 = arith.constant 0 : i32
    %c0_i32_2 = arith.constant 0 : i32
    return %c0_i32, %c0_i32_0, %c0_i32_1 : i32, i32, i32
  }
  func.func @transform_1(%arg0: i32) -> (i32, i32) {
    %c0_i32 = arith.constant 0 : i32
    %c0_i32_0 = arith.constant 0 : i32
    %c0_i32_1 = arith.constant 0 : i32
    return %c0_i32, %c0_i32_0 : i32, i32
  }
  func.func @transform_2(%arg0: i32) -> (i32, i32) {
    %c0_i32 = arith.constant 0 : i32
    %c0_i32_0 = arith.constant 0 : i32
    %c0_i32_1 = arith.constant 0 : i32
    return %c0_i32, %c0_i32_0 : i32, i32
  }
  func.func @transform_3(%arg0: i32) -> (i32, i32) {
    %c0_i32 = arith.constant 0 : i32
    %c0_i32_0 = arith.constant 0 : i32
    %c0_i32_1 = arith.constant 0 : i32
    return %c0_i32, %c0_i32_0 : i32, i32
  }
  func.func @transform_4(%arg0: i32) -> (i32, i32) {
    %c0_i32 = arith.constant 0 : i32
    %c0_i32_0 = arith.constant 0 : i32
    %c0_i32_1 = arith.constant 0 : i32
    return %c0_i32, %c0_i32_0 : i32, i32
  }
  func.func @transform_5(%arg0: i32) -> (i32, i32) {
    %c0_i32 = arith.constant 0 : i32
    %c0_i32_0 = arith.constant 0 : i32
    %c0_i32_1 = arith.constant 0 : i32
    return %c0_i32, %c0_i32_0 : i32, i32
  }
  func.func @transform_6(%arg0: i32) -> (i32, i32) {
    %c0_i32 = arith.constant 0 : i32
    %c0_i32_0 = arith.constant 0 : i32
    %c0_i32_1 = arith.constant 0 : i32
    return %c0_i32, %c0_i32_0 : i32, i32
  }
  func.func @transform_7(%arg0: i32) -> (i32, i32) {
    %c0_i32 = arith.constant 0 : i32
    %c0_i32_0 = arith.constant 0 : i32
    %c0_i32_1 = arith.constant 0 : i32
    return %c0_i32, %c0_i32_0 : i32, i32
  }
  func.func @transform_8(%arg0: i32) -> (i32, i32) {
    %c0_i32 = arith.constant 0 : i32
    %c0_i32_0 = arith.constant 0 : i32
    %c0_i32_1 = arith.constant 0 : i32
    return %c0_i32, %c0_i32_0 : i32, i32
  }
  func.func @transform_9(%arg0: i32) -> (i32, i32) {
    %c0_i32 = arith.constant 0 : i32
    %c0_i32_0 = arith.constant 0 : i32
    %c0_i32_1 = arith.constant 0 : i32
    return %c0_i32, %c0_i32_0 : i32, i32
  }
}

module attributes {stable_mosaic.version = 11 : i64} {
  func.func @_layernorm_kernel(%arg0: i32, %arg1: memref<16x32xf32, #tpu.memory_space<vmem>>, %arg2: memref<1x32xf32, #tpu.memory_space<vmem>>, %arg3: memref<1x32xf32, #tpu.memory_space<vmem>>, %arg4: memref<16x32xf32, #tpu.memory_space<vmem>>) attributes {dimension_semantics = [#tpu.dimension_semantics<arbitrary>], iteration_bounds = array<i64: 1>, scalar_prefetch = 0 : i64, scratch_operands = 0 : i64, tpu.core_type = #tpu.core_type<tc>, window_params = [{pipeline_mode = #tpu.pipeline_mode<synchronous>, transform_indices = @transform_0, window_bounds = array<i64: 16, 32>}, {pipeline_mode = #tpu.pipeline_mode<synchronous>, transform_indices = @transform_1, window_bounds = array<i64: 1, 32>}, {pipeline_mode = #tpu.pipeline_mode<synchronous>, transform_indices = @transform_2, window_bounds = array<i64: 1, 32>}, {pipeline_mode = #tpu.pipeline_mode<synchronous>, transform_indices = @transform_3, window_bounds = array<i64: 16, 32>}]} {
    %c0 = arith.constant 0 : index
    %c0_0 = arith.constant 0 : index
    %0 = vector.load %arg1[%c0, %c0_0] : memref<16x32xf32, #tpu.memory_space<vmem>>, vector<16x32xf32>
    %cst = arith.constant dense<0.000000e+00> : vector<16xf32>
    %1 = vector.multi_reduction <add>, %0, %cst [1] : vector<16x32xf32> to vector<16xf32>
    %2 = vector.shape_cast %1 : vector<16xf32> to vector<16x1xf32>
    %cst_1 = arith.constant 3.200000e+01 : f32
    %3 = vector.broadcast %cst_1 : f32 to vector<16x1xf32>
    %4 = arith.divf %2, %3 : vector<16x1xf32>
    %5 = vector.broadcast %4 : vector<16x1xf32> to vector<16x32xf32>
    %6 = arith.subf %0, %5 : vector<16x32xf32>
    %7 = arith.mulf %6, %6 : vector<16x32xf32>
    %cst_2 = arith.constant dense<0.000000e+00> : vector<16xf32>
    %8 = vector.multi_reduction <add>, %7, %cst_2 [1] : vector<16x32xf32> to vector<16xf32>
    %9 = vector.shape_cast %8 : vector<16xf32> to vector<16x1xf32>
    %cst_3 = arith.constant 3.200000e+01 : f32
    %10 = vector.broadcast %cst_3 : f32 to vector<16x1xf32>
    %11 = arith.divf %9, %10 : vector<16x1xf32>
    %cst_4 = arith.constant 9.99999974E-6 : f32
    %12 = vector.broadcast %cst_4 : f32 to vector<16x1xf32>
    %13 = arith.addf %11, %12 : vector<16x1xf32>
    %14 = math.rsqrt %13 : vector<16x1xf32>
    %15 = vector.broadcast %14 : vector<16x1xf32> to vector<16x32xf32>
    %16 = arith.mulf %6, %15 : vector<16x32xf32>
    %c0_5 = arith.constant 0 : index
    %c0_6 = arith.constant 0 : index
    %17 = vector.load %arg2[%c0_5, %c0_6] : memref<1x32xf32, #tpu.memory_space<vmem>>, vector<1x32xf32>
    %18 = vector.broadcast %17 : vector<1x32xf32> to vector<16x32xf32>
    %19 = arith.mulf %16, %18 : vector<16x32xf32>
    %c0_7 = arith.constant 0 : index
    %c0_8 = arith.constant 0 : index
    %20 = vector.load %arg3[%c0_7, %c0_8] : memref<1x32xf32, #tpu.memory_space<vmem>>, vector<1x32xf32>
    %21 = vector.broadcast %20 : vector<1x32xf32> to vector<16x32xf32>
    %22 = arith.addf %19, %21 : vector<16x32xf32>
    %c0_9 = arith.constant 0 : index
    %c0_10 = arith.constant 0 : index
    %23 = vector.load %arg4[%c0_9, %c0_10] : memref<16x32xf32, #tpu.memory_space<vmem>>, vector<16x32xf32>
    tpu.vector_store %arg4[%c0_9, %c0_10], %22 {strides = array<i32>} : memref<16x32xf32, #tpu.memory_space<vmem>>, vector<16x32xf32>,
    return
  }
  func.func @transform_0(%arg0: i32) -> (i32, i32) {
    %c0_i32 = arith.constant 0 : i32
    %c0_i32_0 = arith.constant 0 : i32
    %c0_i32_1 = arith.constant 0 : i32
    return %c0_i32, %c0_i32_0 : i32, i32
  }
  func.func @transform_1(%arg0: i32) -> (i32, i32) {
    %c0_i32 = arith.constant 0 : i32
    %c0_i32_0 = arith.constant 0 : i32
    %c0_i32_1 = arith.constant 0 : i32
    return %c0_i32, %c0_i32_0 : i32, i32
  }
  func.func @transform_2(%arg0: i32) -> (i32, i32) {
    %c0_i32 = arith.constant 0 : i32
    %c0_i32_0 = arith.constant 0 : i32
    %c0_i32_1 = arith.constant 0 : i32
    return %c0_i32, %c0_i32_0 : i32, i32
  }
  func.func @transform_3(%arg0: i32) -> (i32, i32) {
    %c0_i32 = arith.constant 0 : i32
    %c0_i32_0 = arith.constant 0 : i32
    %c0_i32_1 = arith.constant 0 : i32
    return %c0_i32, %c0_i32_0 : i32, i32
  }
}

module attributes {stable_mosaic.version = 11 : i64} {
  func.func @_final_head_kernel(%arg0: i32, %arg1: memref<16x32xf32, #tpu.memory_space<vmem>>, %arg2: memref<1x32xf32, #tpu.memory_space<vmem>>, %arg3: memref<1x32xf32, #tpu.memory_space<vmem>>, %arg4: memref<32x4xf32, #tpu.memory_space<vmem>>, %arg5: memref<1x4xf32, #tpu.memory_space<vmem>>, %arg6: memref<2x4xf32, #tpu.memory_space<vmem>>) attributes {dimension_semantics = [#tpu.dimension_semantics<arbitrary>], iteration_bounds = array<i64: 1>, scalar_prefetch = 0 : i64, scratch_operands = 0 : i64, tpu.core_type = #tpu.core_type<tc>, window_params = [{pipeline_mode = #tpu.pipeline_mode<synchronous>, transform_indices = @transform_0, window_bounds = array<i64: 16, 32>}, {pipeline_mode = #tpu.pipeline_mode<synchronous>, transform_indices = @transform_1, window_bounds = array<i64: 1, 32>}, {pipeline_mode = #tpu.pipeline_mode<synchronous>, transform_indices = @transform_2, window_bounds = array<i64: 1, 32>}, {pipeline_mode = #tpu.pipeline_mode<synchronous>, transform_indices = @transform_3, window_bounds = array<i64: 32, 4>}, {pipeline_mode = #tpu.pipeline_mode<synchronous>, transform_indices = @transform_4, window_bounds = array<i64: 1, 4>}, {pipeline_mode = #tpu.pipeline_mode<synchronous>, transform_indices = @transform_5, window_bounds = array<i64: 2, 4>}]} {
    %c0 = arith.constant 0 : index
    %c0_0 = arith.constant 0 : index
    %0 = vector.load %arg1[%c0, %c0_0] : memref<16x32xf32, #tpu.memory_space<vmem>>, vector<16x32xf32>
    %1 = vector.extract_strided_slice %0 {offsets = [7, 0], sizes = [1, 32], strides = [1, 1]} : vector<16x32xf32> to vector<1x32xf32>
    %2 = vector.extract_strided_slice %0 {offsets = [15, 0], sizes = [1, 32], strides = [1, 1]} : vector<16x32xf32> to vector<1x32xf32>
    %3 = tpu.concatenate %1, %2 in 0 : vector<1x32xf32>, vector<1x32xf32> -> vector<2x32xf32>
    %cst = arith.constant dense<0.000000e+00> : vector<2xf32>
    %4 = vector.multi_reduction <add>, %3, %cst [1] : vector<2x32xf32> to vector<2xf32>
    %5 = vector.shape_cast %4 : vector<2xf32> to vector<2x1xf32>
    %cst_1 = arith.constant 3.200000e+01 : f32
    %6 = vector.broadcast %cst_1 : f32 to vector<2x1xf32>
    %7 = arith.divf %5, %6 : vector<2x1xf32>
    %8 = vector.broadcast %7 : vector<2x1xf32> to vector<2x32xf32>
    %9 = arith.subf %3, %8 : vector<2x32xf32>
    %10 = arith.mulf %9, %9 : vector<2x32xf32>
    %cst_2 = arith.constant dense<0.000000e+00> : vector<2xf32>
    %11 = vector.multi_reduction <add>, %10, %cst_2 [1] : vector<2x32xf32> to vector<2xf32>
    %12 = vector.shape_cast %11 : vector<2xf32> to vector<2x1xf32>
    %cst_3 = arith.constant 3.200000e+01 : f32
    %13 = vector.broadcast %cst_3 : f32 to vector<2x1xf32>
    %14 = arith.divf %12, %13 : vector<2x1xf32>
    %cst_4 = arith.constant 9.99999974E-6 : f32
    %15 = vector.broadcast %cst_4 : f32 to vector<2x1xf32>
    %16 = arith.addf %14, %15 : vector<2x1xf32>
    %17 = math.rsqrt %16 : vector<2x1xf32>
    %18 = vector.broadcast %17 : vector<2x1xf32> to vector<2x32xf32>
    %19 = arith.mulf %9, %18 : vector<2x32xf32>
    %c0_5 = arith.constant 0 : index
    %c0_6 = arith.constant 0 : index
    %20 = vector.load %arg2[%c0_5, %c0_6] : memref<1x32xf32, #tpu.memory_space<vmem>>, vector<1x32xf32>
    %21 = vector.broadcast %20 : vector<1x32xf32> to vector<2x32xf32>
    %22 = arith.mulf %19, %21 : vector<2x32xf32>
    %c0_7 = arith.constant 0 : index
    %c0_8 = arith.constant 0 : index
    %23 = vector.load %arg3[%c0_7, %c0_8] : memref<1x32xf32, #tpu.memory_space<vmem>>, vector<1x32xf32>
    %24 = vector.broadcast %23 : vector<1x32xf32> to vector<2x32xf32>
    %25 = arith.addf %22, %24 : vector<2x32xf32>
    %c0_9 = arith.constant 0 : index
    %c0_10 = arith.constant 0 : index
    %26 = vector.load %arg4[%c0_9, %c0_10] : memref<32x4xf32, #tpu.memory_space<vmem>>, vector<32x4xf32>
    %cst_11 = arith.constant dense<0.000000e+00> : vector<2x4xf32>
    %27 = tpu.matmul %25, %26, %cst_11 {dimension_numbers = #tpu.dot_dimension_numbers<[1], [0], [0], [1], [0, 0, 1, 1], [], []>} : vector<2x32xf32>, vector<32x4xf32>, vector<2x4xf32> -> vector<2x4xf32>
    %c0_12 = arith.constant 0 : index
    %c0_13 = arith.constant 0 : index
    %28 = vector.load %arg5[%c0_12, %c0_13] : memref<1x4xf32, #tpu.memory_space<vmem>>, vector<1x4xf32>
    %29 = vector.broadcast %28 : vector<1x4xf32> to vector<2x4xf32>
    %30 = arith.addf %27, %29 : vector<2x4xf32>
    %c0_14 = arith.constant 0 : index
    %c0_15 = arith.constant 0 : index
    %31 = vector.load %arg6[%c0_14, %c0_15] : memref<2x4xf32, #tpu.memory_space<vmem>>, vector<2x4xf32>
    tpu.vector_store %arg6[%c0_14, %c0_15], %30 {strides = array<i32>} : memref<2x4xf32, #tpu.memory_space<vmem>>, vector<2x4xf32>,
    return
  }
  func.func @transform_0(%arg0: i32) -> (i32, i32) {
    %c0_i32 = arith.constant 0 : i32
    %c0_i32_0 = arith.constant 0 : i32
    %c0_i32_1 = arith.constant 0 : i32
    return %c0_i32, %c0_i32_0 : i32, i32
  }
  func.func @transform_1(%arg0: i32) -> (i32, i32) {
    %c0_i32 = arith.constant 0 : i32
    %c0_i32_0 = arith.constant 0 : i32
    %c0_i32_1 = arith.constant 0 : i32
    return %c0_i32, %c0_i32_0 : i32, i32
  }
  func.func @transform_2(%arg0: i32) -> (i32, i32) {
    %c0_i32 = arith.constant 0 : i32
    %c0_i32_0 = arith.constant 0 : i32
    %c0_i32_1 = arith.constant 0 : i32
    return %c0_i32, %c0_i32_0 : i32, i32
  }
  func.func @transform_3(%arg0: i32) -> (i32, i32) {
    %c0_i32 = arith.constant 0 : i32
    %c0_i32_0 = arith.constant 0 : i32
    %c0_i32_1 = arith.constant 0 : i32
    return %c0_i32, %c0_i32_0 : i32, i32
  }
  func.func @transform_4(%arg0: i32) -> (i32, i32) {
    %c0_i32 = arith.constant 0 : i32
    %c0_i32_0 = arith.constant 0 : i32
    %c0_i32_1 = arith.constant 0 : i32
    return %c0_i32, %c0_i32_0 : i32, i32
  }
  func.func @transform_5(%arg0: i32) -> (i32, i32) {
    %c0_i32 = arith.constant 0 : i32
    %c0_i32_0 = arith.constant 0 : i32
    %c0_i32_1 = arith.constant 0 : i32
    return %c0_i32, %c0_i32_0 : i32, i32
  }
}

</mosaic_0001>

<llo_original>
// kernel: gru_transformer_forward.18
$region0: #{gru_transformer_forward.18}
  #allocation0 [shape = 'u32[]', space=smem, size = 0x4, offset = 0x4, fixed_abs, tag = 'smem constant byte address 0x4 - core index']
  #allocation1 [shape = 'u32[144,128]{1,0:T(1,128)}', space=vmem, size = 0x12000, scoped, tag = 'internal scratch']
  %s0 = inlined_call_operand.vmem [shape: f32[16,32], index: 0, kind: input, shape index: {}]
  %s1 = inlined_call_operand.vmem [shape: f32[1,32], index: 1, kind: input, shape index: {}]
  %s2 = inlined_call_operand.vmem [shape: f32[1,32], index: 2, kind: input, shape index: {}]
  %s3 = inlined_call_operand.vmem [shape: f32[16,32], index: 3, kind: output, shape index: {}]
  %s4 = sld [smem:[#allocation0]]
  $region22: #{gru_transformer_forward.18} parent=0
    _
  %s6 = ssub.s32 1, %s4
  %s7 = scalar_select 0, %s6, %s4
  // Predicated region
  $region2: #{gru_transformer_forward.18} parent=0 // pred_check
    _
  $region3: #{gru_transformer_forward.18} parent=0 // pred_check_branch
    %9 = sbr.rel (0) target = $region5
  $region4: #{gru_transformer_forward.18} parent=0 // pred_region
    _
  $region5: #{gru_transformer_forward.18} parent=0 // pred_fallthru
    _
  // Predicated region
  $region6: #{gru_transformer_forward.18} parent=0 // pred_check
    _
  $region7: #{gru_transformer_forward.18} parent=0 // pred_check_branch
    %11 = sbr.rel (0) target = $region9
  $region8: #{gru_transformer_forward.18} parent=0 // pred_region
    _
  $region9: #{gru_transformer_forward.18} parent=0 // pred_fallthru
    _
  // Predicated region
  $region10: #{gru_transformer_forward.18} parent=0 // pred_check
    _
  $region11: #{gru_transformer_forward.18} parent=0 // pred_check_branch
    %13 = sbr.rel (0) target = $region13
  $region12: #{gru_transformer_forward.18} parent=0 // pred_region
    _
  $region13: #{gru_transformer_forward.18} parent=0 // pred_fallthru
    _
  %v14 = vld [vmem:[%s0] sm:$0xff]
  %v15 = vld [vmem:[%s0 + $0x8] sm:$0xff]
  %vm16 = vcmask 261120
  %v17 = vsel %vm16, %v14, 0.0
  %18 = vadd.xlane.f32.xlu0 %v17
  %v19 = vpop.xlane.xlu0 %18
  %v20 = vsel %vm16, %v15, 0.0
  %21 = vadd.xlane.f32.xlu0 %v20
  %v22 = vpop.xlane.xlu0 %21
  %v23 = vrcp.pop 32.0
  %v24 = vmul.f32 %v19, %v23
  %v25 = vmul.f32 %v22, %v23
  %v26 = vsub.f32 %v14, %v24
  %v27 = vsub.f32 %v15, %v25
  %v28 = vmul.f32 %v26, %v26
  %v29 = vmul.f32 %v27, %v27
  %v30 = vsel %vm16, %v28, 0.0
  %31 = vadd.xlane.f32.xlu0 %v30
  %v32 = vpop.xlane.xlu0 %31
  %v33 = vsel %vm16, %v29, 0.0
  %34 = vadd.xlane.f32.xlu0 %v33
  %v35 = vpop.xlane.xlu0 %34
  %v36 = vmul.f32 %v32, %v23
  %v37 = vmul.f32 %v35, %v23
  %v38 = vadd.f32 %v36, 1e-05
  %v39 = vadd.f32 %v37, 1e-05
  %v40 = vrsqrt.pop %v38
  %v41 = vrsqrt.pop %v39
  %v42 = vmul.f32 %v26, %v40
  %v43 = vmul.f32 %v27, %v41
  %v44 = vld [vmem:[%s1] sm:$0x1]
  %v46 = vlaneseq
  %v47 = vshrl.u32 %v46, 7
  %v48 = vsub.s32 0, %v47
  %v49 = vrot.slane %v44, %v48
  %v51 = vmul.f32 %v42, %v49
  %v52 = vmul.f32 %v43, %v49
  %v53 = vld [vmem:[%s2] sm:$0x1]
  %v55 = vlaneseq
  %v56 = vshrl.u32 %v55, 7
  %v57 = vsub.s32 0, %v56
  %v58 = vrot.slane %v53, %v57
  %v60 = vadd.f32 %v51, %v58
  %v61 = vadd.f32 %v52, %v58
  %62 = vst.msk [vmem:[%s3] sm:$0xff] %vm16, %v60
  %63 = vst.msk [vmem:[%s3 + $0x8] sm:$0xff] %vm16, %v61
  // Predicated region
  $region14: #{gru_transformer_forward.18} parent=0 // pred_check
    _
  $region15: #{gru_transformer_forward.18} parent=0 // pred_check_branch
    %65 = sbr.rel (0) target = $region17
  $region16: #{gru_transformer_forward.18} parent=0 // pred_region
    _
  $region17: #{gru_transformer_forward.18} parent=0 // pred_fallthru
    _
  // Predicated region
  $region18: #{gru_transformer_forward.18} parent=0 // pred_check
    _
  $region19: #{gru_transformer_forward.18} parent=0 // pred_check_branch
    %67 = sbr.rel (0) target = $region21
  $region20: #{gru_transformer_forward.18} parent=0 // pred_region
    _
  $region21: #{gru_transformer_forward.18} parent=0 // pred_fallthru
    _

// kernel: gru_transformer_forward.15
$region0: #{gru_transformer_forward.15}
  #allocation0 [shape = 'u32[]', space=smem, size = 0x4, offset = 0x4, fixed_abs, tag = 'smem constant byte address 0x4 - core index']
  #allocation1 [shape = 'u32[144,128]{1,0:T(1,128)}', space=vmem, size = 0x12000, scoped, tag = 'internal scratch']
  %s0 = inlined_call_operand.vmem [shape: f32[16,32], index: 0, kind: input, shape index: {}]
  %s1 = inlined_call_operand.vmem [shape: f32[32,64], index: 1, kind: input, shape index: {}]
  %s2 = inlined_call_operand.vmem [shape: f32[1,64], index: 2, kind: input, shape index: {}]
  %s3 = inlined_call_operand.vmem [shape: f32[64,32], index: 3, kind: input, shape index: {}]
  %s4 = inlined_call_operand.vmem [shape: f32[1,32], index: 4, kind: input, shape index: {}]
  %s5 = inlined_call_operand.vmem [shape: f32[1,32], index: 5, kind: input, shape index: {}]
  %s6 = inlined_call_operand.vmem [shape: f32[1,32], index: 6, kind: input, shape index: {}]
  %s7 = inlined_call_operand.vmem [shape: f32[16,32], index: 7, kind: output, shape index: {}]
  %s8 = sld [smem:[#allocation0]]
  $region38: #{gru_transformer_forward.15} parent=0
    _
  %s10 = ssub.s32 1, %s8
  %s11 = scalar_select 0, %s10, %s8
  // Predicated region
  $region2: #{gru_transformer_forward.15} parent=0 // pred_check
    _
  $region3: #{gru_transformer_forward.15} parent=0 // pred_check_branch
    %13 = sbr.rel (0) target = $region5
  $region4: #{gru_transformer_forward.15} parent=0 // pred_region
    _
  $region5: #{gru_transformer_forward.15} parent=0 // pred_fallthru
    _
  // Predicated region
  $region6: #{gru_transformer_forward.15} parent=0 // pred_check
    _
  $region7: #{gru_transformer_forward.15} parent=0 // pred_check_branch
    %15 = sbr.rel (0) target = $region9
  $region8: #{gru_transformer_forward.15} parent=0 // pred_region
    _
  $region9: #{gru_transformer_forward.15} parent=0 // pred_fallthru
    _
  // Predicated region
  $region10: #{gru_transformer_forward.15} parent=0 // pred_check
    _
  $region11: #{gru_transformer_forward.15} parent=0 // pred_check_branch
    %17 = sbr.rel (0) target = $region13
  $region12: #{gru_transformer_forward.15} parent=0 // pred_region
    _
  $region13: #{gru_transformer_forward.15} parent=0 // pred_fallthru
    _
  // Predicated region
  $region14: #{gru_transformer_forward.15} parent=0 // pred_check
    _
  $region15: #{gru_transformer_forward.15} parent=0 // pred_check_branch
    %19 = sbr.rel (0) target = $region17
  $region16: #{gru_transformer_forward.15} parent=0 // pred_region
    _
  $region17: #{gru_transformer_forward.15} parent=0 // pred_fallthru
    _
  // Predicated region
  $region18: #{gru_transformer_forward.15} parent=0 // pred_check
    _
  $region19: #{gru_transformer_forward.15} parent=0 // pred_check_branch
    %21 = sbr.rel (0) target = $region21
  $region20: #{gru_transformer_forward.15} parent=0 // pred_region
    _
  $region21: #{gru_transformer_forward.15} parent=0 // pred_fallthru
    _
  // Predicated region
  $region22: #{gru_transformer_forward.15} parent=0 // pred_check
    _
  $region23: #{gru_transformer_forward.15} parent=0 // pred_check_branch
    %23 = sbr.rel (0) target = $region25
  $region24: #{gru_transformer_forward.15} parent=0 // pred_region
    _
  $region25: #{gru_transformer_forward.15} parent=0 // pred_fallthru
    _
  // Predicated region
  $region26: #{gru_transformer_forward.15} parent=0 // pred_check
    _
  $region27: #{gru_transformer_forward.15} parent=0 // pred_check_branch
    %25 = sbr.rel (0) target = $region29
  $region28: #{gru_transformer_forward.15} parent=0 // pred_region
    _
  $region29: #{gru_transformer_forward.15} parent=0 // pred_fallthru
    _
  %v26 = vld [vmem:[%s0] sm:$0xff]
  %v27 = vld [vmem:[%s0 + $0x8] sm:$0xff]
  %v28 = vld [vmem:[%s1] sm:$0xff]
  %v29 = vld [vmem:[%s1 + $0x8] sm:$0xff]
  %v30 = vld [vmem:[%s1 + $0x10] sm:$0xff]
  %v31 = vld [vmem:[%s1 + $0x18] sm:$0xff]
  %v32 = vld [vmem:[%s2] sm:$0x1]
  %v34 = vlaneseq
  %v35 = vshrl.u32 %v34, 7
  %v36 = vsub.s32 0, %v35
  %v37 = vrot.slane %v32, %v36
  %vm39 = vcmask 261120
  %v41 = vsel %vm39, %v26, 0
  %v44 = vsel %vm39, %v27, 0
  %46 = vmatprep.subr.mxu0 0.0
  %47 = vmatpush1.msra.mxu0 %v28
  %48 = vmatprep.subr.mxu0 0.0
  %49 = vmatpush1.msra.mxu0 %v29
  %50 = vmatprep.subr.mxu0 0.0
  %51 = vmatpush1.msra.mxu0 %v30
  %52 = vmatprep.subr.mxu0 0.0
  %53 = vmatpush1.msra.mxu0 %v31
  %54 = vmatprep.subr.mxu0 0.0
  %55 = vmatpush1.msra.mxu0 0.0
  %56 = vmatprep.subr.mxu0 0.0
  %57 = vmatpush1.msra.mxu0 0.0
  %58 = vmatprep.subr.mxu0 0.0
  %59 = vmatpush1.msra.mxu0 0.0
  %60 = vmatprep.subr.mxu0 0.0
  %61 = vmatpush1.msra.mxu0 0.0
  %62 = vmatprep.subr.mxu0 0.0
  %63 = vmatpush1.msra.mxu0 0.0
  %64 = vmatprep.subr.mxu0 0.0
  %65 = vmatpush1.msra.mxu0 0.0
  %66 = vmatprep.subr.mxu0 0.0
  %67 = vmatpush1.msra.mxu0 0.0
  %68 = vmatprep.subr.mxu0 0.0
  %69 = vmatpush1.msra.mxu0 0.0
  %70 = vmatprep.subr.mxu0 0.0
  %71 = vmatpush1.msra.mxu0 0.0
  %72 = vmatprep.subr.mxu0 0.0
  %73 = vmatpush1.msra.mxu0 0.0
  %74 = vmatprep.subr.mxu0 0.0
  %75 = vmatpush1.msra.mxu0 0.0
  %76 = vmatprep.subr.mxu0 0.0
  %77 = vmatpush1.msra.mxu0 0.0
  %78 = vmatprep.subr.mxu0 0.0
  %79 = vmatpush1.msra.mxu0 0.0
  %80 = vmatprep.subr.mxu0 0.0
  %81 = vmatpush1.msra.mxu0 0.0
  %82 = vmatprep.subr.mxu0 0.0
  %83 = vmatpush1.msra.mxu0 0.0
  %84 = vmatprep.subr.mxu0 0.0
  %85 = vmatpush1.msra.mxu0 0.0
  %86 = vmatprep.subr.mxu0 0.0
  %87 = vmatpush1.msra.mxu0 0.0
  %88 = vmatprep.subr.mxu0 0.0
  %89 = vmatpush1.msra.mxu0 0.0
  %90 = vmatprep.subr.mxu0 0.0
  %91 = vmatpush1.msra.mxu0 0.0
  %92 = vmatprep.subr.mxu0 0.0
  %93 = vmatpush1.msra.mxu0 0.0
  %94 = vmatprep.subr.mxu0 0.0
  %95 = vmatpush1.msra.mxu0 0.0
  %96 = vmatprep.subr.mxu0 0.0
  %97 = vmatpush1.msra.mxu0 0.0
  %98 = vmatprep.subr.mxu0 0.0
  %99 = vmatpush1.msra.mxu0 0.0
  %100 = vmatprep.subr.mxu0 0.0
  %101 = vmatpush1.msra.mxu0 0.0
  %102 = vmatprep.subr.mxu0 0.0
  %103 = vmatpush1.msra.mxu0 0.0
  %104 = vmatprep.subr.mxu0 0.0
  %105 = vmatpush1.msra.mxu0 0.0
  %106 = vmatprep.subr.mxu0 0.0
  %107 = vmatpush1.msra.mxu0 0.0
  %108 = vmatprep.subr.mxu0 0.0
  %109 = vmatpush1.msra.mxu0 0.0
  %110 = vmatprep.mubr.f32.mxu0 0.0
  %111 = vmatmul.mubr.f32.gmra.mrb[0].mxu0 %v41
  %v112 = vpop.f32.mrb[0].mxu0
  %v113 = vadd.f32 %v37, %v112
  %v114 = vpop.f32.mrb[0].mxu0
  %115 = vmatprep.mubr.f32.mxu0 0.0
  %116 = vmatmul.mubr.f32.gmra.mrb[0].mxu0 %v44
  %v117 = vpop.f32.mrb[0].mxu0
  %v118 = vadd.f32 %v37, %v117
  %v119 = vpop.f32.mrb[0].mxu0
  %120 = vdwg.mxu0
  %v121 = vmax.f32 %v113, 0.0
  %v122 = vmax.f32 %v118, 0.0
  %v123 = vld [vmem:[%s3] sm:$0xff]
  %v124 = vld [vmem:[%s3 + $0x8] sm:$0xff]
  %v125 = vld [vmem:[%s3 + $0x10] sm:$0xff]
  %v126 = vld [vmem:[%s3 + $0x18] sm:$0xff]
  %v127 = vld [vmem:[%s3 + $0x20] sm:$0xff]
  %v128 = vld [vmem:[%s3 + $0x28] sm:$0xff]
  %v129 = vld [vmem:[%s3 + $0x30] sm:$0xff]
  %v130 = vld [vmem:[%s3 + $0x38] sm:$0xff]
  %vm131 = vcmask 523264
  %v133 = vsel %vm131, %v121, 0
  %v136 = vsel %vm131, %v122, 0
  %138 = vmatprep.subr.mxu0 0.0
  %139 = vmatpush1.msra.mxu0 %v123
  %140 = vmatprep.subr.mxu0 0.0
  %141 = vmatpush1.msra.mxu0 %v124
  %142 = vmatprep.subr.mxu0 0.0
  %143 = vmatpush1.msra.mxu0 %v125
  %144 = vmatprep.subr.mxu0 0.0
  %145 = vmatpush1.msra.mxu0 %v126
  %146 = vmatprep.subr.mxu0 0.0
  %147 = vmatpush1.msra.mxu0 %v127
  %148 = vmatprep.subr.mxu0 0.0
  %149 = vmatpush1.msra.mxu0 %v128
  %150 = vmatprep.subr.mxu0 0.0
  %151 = vmatpush1.msra.mxu0 %v129
  %152 = vmatprep.subr.mxu0 0.0
  %153 = vmatpush1.msra.mxu0 %v130
  %154 = vmatprep.subr.mxu0 0.0
  %155 = vmatpush1.msra.mxu0 0.0
  %156 = vmatprep.subr.mxu0 0.0
  %157 = vmatpush1.msra.mxu0 0.0
  %158 = vmatprep.subr.mxu0 0.0
  %159 = vmatpush1.msra.mxu0 0.0
  %160 = vmatprep.subr.mxu0 0.0
  %161 = vmatpush1.msra.mxu0 0.0
  %162 = vmatprep.subr.mxu0 0.0
  %163 = vmatpush1.msra.mxu0 0.0
  %164 = vmatprep.subr.mxu0 0.0
  %165 = vmatpush1.msra.mxu0 0.0
  %166 = vmatprep.subr.mxu0 0.0
  %167 = vmatpush1.msra.mxu0 0.0
  %168 = vmatprep.subr.mxu0 0.0
  %169 = vmatpush1.msra.mxu0 0.0
  %170 = vmatprep.subr.mxu0 0.0
  %171 = vmatpush1.msra.mxu0 0.0
  %172 = vmatprep.subr.mxu0 0.0
  %173 = vmatpush1.msra.mxu0 0.0
  %174 = vmatprep.subr.mxu0 0.0
  %175 = vmatpush1.msra.mxu0 0.0
  %176 = vmatprep.subr.mxu0 0.0
  %177 = vmatpush1.msra.mxu0 0.0
  %178 = vmatprep.subr.mxu0 0.0
  %179 = vmatpush1.msra.mxu0 0.0
  %180 = vmatprep.subr.mxu0 0.0
  %181 = vmatpush1.msra.mxu0 0.0
  %182 = vmatprep.subr.mxu0 0.0
  %183 = vmatpush1.msra.mxu0 0.0
  %184 = vmatprep.subr.mxu0 0.0
  %185 = vmatpush1.msra.mxu0 0.0
  %186 = vmatprep.subr.mxu0 0.0
  %187 = vmatpush1.msra.mxu0 0.0
  %188 = vmatprep.subr.mxu0 0.0
  %189 = vmatpush1.msra.mxu0 0.0
  %190 = vmatprep.subr.mxu0 0.0
  %191 = vmatpush1.msra.mxu0 0.0
  %192 = vmatprep.subr.mxu0 0.0
  %193 = vmatpush1.msra.mxu0 0.0
  %194 = vmatprep.subr.mxu0 0.0
  %195 = vmatpush1.msra.mxu0 0.0
  %196 = vmatprep.subr.mxu0 0.0
  %197 = vmatpush1.msra.mxu0 0.0
  %198 = vmatprep.subr.mxu0 0.0
  %199 = vmatpush1.msra.mxu0 0.0
  %200 = vmatprep.subr.mxu0 0.0
  %201 = vmatpush1.msra.mxu0 0.0
  %202 = vmatprep.mubr.f32.mxu0 0.0
  %203 = vmatmul.mubr.f32.gmra.mrb[0].mxu0 %v133
  %v204 = vpop.f32.mrb[0].mxu0
  %v205 = vadd.f32 0.0, %v204
  %v206 = vpop.f32.mrb[0].mxu0
  %207 = vmatprep.mubr.f32.mxu0 0.0
  %208 = vmatmul.mubr.f32.gmra.mrb[0].mxu0 %v136
  %v209 = vpop.f32.mrb[0].mxu0
  %v210 = vadd.f32 0.0, %v209
  %v211 = vpop.f32.mrb[0].mxu0
  %212 = vdwg.mxu0
  %v213 = vadd.f32 %v26, %v205
  %v214 = vadd.f32 %v27, %v210
  %v215 = vld [vmem:[%s4] sm:$0x1]
  %v217 = vlaneseq
  %v218 = vshrl.u32 %v217, 7
  %v219 = vsub.s32 0, %v218
  %v220 = vrot.slane %v215, %v219
  %v222 = vadd.f32 %v213, %v220
  %v223 = vadd.f32 %v214, %v220
  %v224 = vsel %vm39, %v222, 0.0
  %225 = vadd.xlane.f32.xlu0 %v224
  %v226 = vpop.xlane.xlu0 %225
  %v227 = vsel %vm39, %v223, 0.0
  %228 = vadd.xlane.f32.xlu0 %v227
  %v229 = vpop.xlane.xlu0 %228
  %v230 = vrcp.pop 32.0
  %v231 = vmul.f32 %v226, %v230
  %v232 = vmul.f32 %v229, %v230
  %v233 = vsub.f32 %v222, %v231
  %v234 = vsub.f32 %v223, %v232
  %v235 = vmul.f32 %v233, %v233
  %v236 = vmul.f32 %v234, %v234
  %v237 = vsel %vm39, %v235, 0.0
  %238 = vadd.xlane.f32.xlu0 %v237
  %v239 = vpop.xlane.xlu0 %238
  %v240 = vsel %vm39, %v236, 0.0
  %241 = vadd.xlane.f32.xlu0 %v240
  %v242 = vpop.xlane.xlu0 %241
  %v243 = vmul.f32 %v239, %v230
  %v244 = vmul.f32 %v242, %v230
  %v245 = vadd.f32 %v243, 1e-05
  %v246 = vadd.f32 %v244, 1e-05
  %v247 = vrsqrt.pop %v245
  %v248 = vrsqrt.pop %v246
  %v249 = vmul.f32 %v233, %v247
  %v250 = vmul.f32 %v234, %v248
  %v251 = vld [vmem:[%s5] sm:$0x1]
  %v253 = vlaneseq
  %v254 = vshrl.u32 %v253, 7
  %v255 = vsub.s32 0, %v254
  %v256 = vrot.slane %v251, %v255
  %v258 = vmul.f32 %v249, %v256
  %v259 = vmul.f32 %v250, %v256
  %v260 = vld [vmem:[%s6] sm:$0x1]
  %v262 = vlaneseq
  %v263 = vshrl.u32 %v262, 7
  %v264 = vsub.s32 0, %v263
  %v265 = vrot.slane %v260, %v264
  %v267 = vadd.f32 %v258, %v265
  %v268 = vadd.f32 %v259, %v265
  %269 = vst.msk [vmem:[%s7] sm:$0xff] %vm39, %v267
  %270 = vst.msk [vmem:[%s7 + $0x8] sm:$0xff] %vm39, %v268
  // Predicated region
  $region30: #{gru_transformer_forward.15} parent=0 // pred_check
    _
  $region31: #{gru_transformer_forward.15} parent=0 // pred_check_branch
    %272 = sbr.rel (0) target = $region33
  $region32: #{gru_transformer_forward.15} parent=0 // pred_region
    _
  $region33: #{gru_transformer_forward.15} parent=0 // pred_fallthru
    _
  // Predicated region
  $region34: #{gru_transformer_forward.15} parent=0 // pred_check
    _
  $region35: #{gru_transformer_forward.15} parent=0 // pred_check_branch
    %274 = sbr.rel (0) target = $region37
  $region36: #{gru_transformer_forward.15} parent=0 // pred_region
    _
  $region37: #{gru_transformer_forward.15} parent=0 // pred_fallthru
    _

// kernel: gru_transformer_forward.14
$region0: #{gru_transformer_forward.14}
  #allocation0 [shape = 'u32[]', space=smem, size = 0x4, offset = 0x4, fixed_abs, tag = 'smem constant byte address 0x4 - core index']
  #allocation1 [shape = 'u32[144,128]{1,0:T(1,128)}', space=vmem, size = 0x12000, scoped, tag = 'internal scratch']
  %s0 = inlined_call_operand.vmem [shape: f32[16,32], index: 0, kind: input, shape index: {}, may-alias: {0,1}]
  %s1 = inlined_call_operand.vmem [shape: f32[16,32], index: 1, kind: input, shape index: {}, may-alias: {0,1}]
  %s2 = inlined_call_operand.vmem [shape: f32[32,96], index: 2, kind: input, shape index: {}]
  %s3 = inlined_call_operand.vmem [shape: f32[1,96], index: 3, kind: input, shape index: {}]
  %s4 = inlined_call_operand.vmem [shape: f32[32,32], index: 4, kind: input, shape index: {}]
  %s5 = inlined_call_operand.vmem [shape: f32[1,32], index: 5, kind: input, shape index: {}]
  %s6 = inlined_call_operand.vmem [shape: f32[1,32], index: 6, kind: input, shape index: {}]
  %s7 = inlined_call_operand.vmem [shape: f32[1,32], index: 7, kind: input, shape index: {}]
  %s8 = inlined_call_operand.vmem [shape: f32[16,32], index: 8, kind: output, shape index: {}]
  %s9 = sld [smem:[#allocation0]]
  $region42: #{gru_transformer_forward.14} parent=0
    _
  %s11 = ssub.s32 1, %s9
  %s12 = scalar_select 0, %s11, %s9
  // Predicated region
  $region2: #{gru_transformer_forward.14} parent=0 // pred_check
    _
  $region3: #{gru_transformer_forward.14} parent=0 // pred_check_branch
    %14 = sbr.rel (0) target = $region5
  $region4: #{gru_transformer_forward.14} parent=0 // pred_region
    _
  $region5: #{gru_transformer_forward.14} parent=0 // pred_fallthru
    _
  // Predicated region
  $region6: #{gru_transformer_forward.14} parent=0 // pred_check
    _
  $region7: #{gru_transformer_forward.14} parent=0 // pred_check_branch
    %16 = sbr.rel (0) target = $region9
  $region8: #{gru_transformer_forward.14} parent=0 // pred_region
    _
  $region9: #{gru_transformer_forward.14} parent=0 // pred_fallthru
    _
  // Predicated region
  $region10: #{gru_transformer_forward.14} parent=0 // pred_check
    _
  $region11: #{gru_transformer_forward.14} parent=0 // pred_check_branch
    %18 = sbr.rel (0) target = $region13
  $region12: #{gru_transformer_forward.14} parent=0 // pred_region
    _
  $region13: #{gru_transformer_forward.14} parent=0 // pred_fallthru
    _
  // Predicated region
  $region14: #{gru_transformer_forward.14} parent=0 // pred_check
    _
  $region15: #{gru_transformer_forward.14} parent=0 // pred_check_branch
    %20 = sbr.rel (0) target = $region17
  $region16: #{gru_transformer_forward.14} parent=0 // pred_region
    _
  $region17: #{gru_transformer_forward.14} parent=0 // pred_fallthru
    _
  // Predicated region
  $region18: #{gru_transformer_forward.14} parent=0 // pred_check
    _
  $region19: #{gru_transformer_forward.14} parent=0 // pred_check_branch
    %22 = sbr.rel (0) target = $region21
  $region20: #{gru_transformer_forward.14} parent=0 // pred_region
    _
  $region21: #{gru_transformer_forward.14} parent=0 // pred_fallthru
    _
  // Predicated region
  $region22: #{gru_transformer_forward.14} parent=0 // pred_check
    _
  $region23: #{gru_transformer_forward.14} parent=0 // pred_check_branch
    %24 = sbr.rel (0) target = $region25
  $region24: #{gru_transformer_forward.14} parent=0 // pred_region
    _
  $region25: #{gru_transformer_forward.14} parent=0 // pred_fallthru
    _
  // Predicated region
  $region26: #{gru_transformer_forward.14} parent=0 // pred_check
    _
  $region27: #{gru_transformer_forward.14} parent=0 // pred_check_branch
    %26 = sbr.rel (0) target = $region29
  $region28: #{gru_transformer_forward.14} parent=0 // pred_region
    _
  $region29: #{gru_transformer_forward.14} parent=0 // pred_fallthru
    _
  // Predicated region
  $region30: #{gru_transformer_forward.14} parent=0 // pred_check
    _
  $region31: #{gru_transformer_forward.14} parent=0 // pred_check_branch
    %28 = sbr.rel (0) target = $region33
  $region32: #{gru_transformer_forward.14} parent=0 // pred_region
    _
  $region33: #{gru_transformer_forward.14} parent=0 // pred_fallthru
    _
  %v29 = vld [vmem:[%s0] sm:$0xff]
  %v30 = vld [vmem:[%s0 + $0x8] sm:$0xff]
  %v31 = vld [vmem:[%s1] sm:$0xff]
  %v32 = vld [vmem:[%s1 + $0x8] sm:$0xff]
  %v33 = vld [vmem:[%s2] sm:$0xff]
  %v34 = vld [vmem:[%s2 + $0x8] sm:$0xff]
  %v35 = vld [vmem:[%s2 + $0x10] sm:$0xff]
  %v36 = vld [vmem:[%s2 + $0x18] sm:$0xff]
  %v37 = vld [vmem:[%s3] sm:$0x1]
  %v39 = vlaneseq
  %v40 = vshrl.u32 %v39, 7
  %v41 = vsub.s32 0, %v40
  %v42 = vrot.slane %v37, %v41
  %vm44 = vcmask 261120
  %v46 = vsel %vm44, %v29, 0
  %v49 = vsel %vm44, %v30, 0
  %51 = vmatprep.subr.mxu0 0.0
  %52 = vmatpush1.msra.mxu0 %v33
  %53 = vmatprep.subr.mxu0 0.0
  %54 = vmatpush1.msra.mxu0 %v34
  %55 = vmatprep.subr.mxu0 0.0
  %56 = vmatpush1.msra.mxu0 %v35
  %57 = vmatprep.subr.mxu0 0.0
  %58 = vmatpush1.msra.mxu0 %v36
  %59 = vmatprep.subr.mxu0 0.0
  %60 = vmatpush1.msra.mxu0 0.0
  %61 = vmatprep.subr.mxu0 0.0
  %62 = vmatpush1.msra.mxu0 0.0
  %63 = vmatprep.subr.mxu0 0.0
  %64 = vmatpush1.msra.mxu0 0.0
  %65 = vmatprep.subr.mxu0 0.0
  %66 = vmatpush1.msra.mxu0 0.0
  %67 = vmatprep.subr.mxu0 0.0
  %68 = vmatpush1.msra.mxu0 0.0
  %69 = vmatprep.subr.mxu0 0.0
  %70 = vmatpush1.msra.mxu0 0.0
  %71 = vmatprep.subr.mxu0 0.0
  %72 = vmatpush1.msra.mxu0 0.0
  %73 = vmatprep.subr.mxu0 0.0
  %74 = vmatpush1.msra.mxu0 0.0
  %75 = vmatprep.subr.mxu0 0.0
  %76 = vmatpush1.msra.mxu0 0.0
  %77 = vmatprep.subr.mxu0 0.0
  %78 = vmatpush1.msra.mxu0 0.0
  %79 = vmatprep.subr.mxu0 0.0
  %80 = vmatpush1.msra.mxu0 0.0
  %81 = vmatprep.subr.mxu0 0.0
  %82 = vmatpush1.msra.mxu0 0.0
  %83 = vmatprep.subr.mxu0 0.0
  %84 = vmatpush1.msra.mxu0 0.0
  %85 = vmatprep.subr.mxu0 0.0
  %86 = vmatpush1.msra.mxu0 0.0
  %87 = vmatprep.subr.mxu0 0.0
  %88 = vmatpush1.msra.mxu0 0.0
  %89 = vmatprep.subr.mxu0 0.0
  %90 = vmatpush1.msra.mxu0 0.0
  %91 = vmatprep.subr.mxu0 0.0
  %92 = vmatpush1.msra.mxu0 0.0
  %93 = vmatprep.subr.mxu0 0.0
  %94 = vmatpush1.msra.mxu0 0.0
  %95 = vmatprep.subr.mxu0 0.0
  %96 = vmatpush1.msra.mxu0 0.0
  %97 = vmatprep.subr.mxu0 0.0
  %98 = vmatpush1.msra.mxu0 0.0
  %99 = vmatprep.subr.mxu0 0.0
  %100 = vmatpush1.msra.mxu0 0.0
  %101 = vmatprep.subr.mxu0 0.0
  %102 = vmatpush1.msra.mxu0 0.0
  %103 = vmatprep.subr.mxu0 0.0
  %104 = vmatpush1.msra.mxu0 0.0
  %105 = vmatprep.subr.mxu0 0.0
  %106 = vmatpush1.msra.mxu0 0.0
  %107 = vmatprep.subr.mxu0 0.0
  %108 = vmatpush1.msra.mxu0 0.0
  %109 = vmatprep.subr.mxu0 0.0
  %110 = vmatpush1.msra.mxu0 0.0
  %111 = vmatprep.subr.mxu0 0.0
  %112 = vmatpush1.msra.mxu0 0.0
  %113 = vmatprep.subr.mxu0 0.0
  %114 = vmatpush1.msra.mxu0 0.0
  %115 = vmatprep.mubr.f32.mxu0 0.0
  %116 = vmatmul.mubr.f32.gmra.mrb[0].mxu0 %v46
  %v117 = vpop.f32.mrb[0].mxu0
  %v118 = vadd.f32 %v42, %v117
  %v119 = vpop.f32.mrb[0].mxu0
  %120 = vmatprep.mubr.f32.mxu0 0.0
  %121 = vmatmul.mubr.f32.gmra.mrb[0].mxu0 %v49
  %v122 = vpop.f32.mrb[0].mxu0
  %v123 = vadd.f32 %v42, %v122
  %v124 = vpop.f32.mrb[0].mxu0
  %125 = vdwg.mxu0
  %130 = vrot.lane.b32.xlu0 %v33, 96
  %v131 = vpop.permute.xlu0 %130
  %132 = vrot.lane.b32.xlu0 %v34, 96
  %v133 = vpop.permute.xlu0 %132
  %134 = vrot.lane.b32.xlu0 %v35, 96
  %v135 = vpop.permute.xlu0 %134
  %136 = vrot.lane.b32.xlu0 %v36, 96
  %v137 = vpop.permute.xlu0 %136
  %142 = vrot.lane.b32.xlu0 %v42, 96
  %v143 = vpop.permute.xlu0 %142
  %v146 = vsel %vm44, %v31, 0
  %v149 = vsel %vm44, %v32, 0
  %151 = vmatprep.subr.mxu0 0.0
  %152 = vmatpush1.msra.mxu0 %v131
  %153 = vmatprep.subr.mxu0 0.0
  %154 = vmatpush1.msra.mxu0 %v133
  %155 = vmatprep.subr.mxu0 0.0
  %156 = vmatpush1.msra.mxu0 %v135
  %157 = vmatprep.subr.mxu0 0.0
  %158 = vmatpush1.msra.mxu0 %v137
  %159 = vmatprep.subr.mxu0 0.0
  %160 = vmatpush1.msra.mxu0 0.0
  %161 = vmatprep.subr.mxu0 0.0
  %162 = vmatpush1.msra.mxu0 0.0
  %163 = vmatprep.subr.mxu0 0.0
  %164 = vmatpush1.msra.mxu0 0.0
  %165 = vmatprep.subr.mxu0 0.0
  %166 = vmatpush1.msra.mxu0 0.0
  %167 = vmatprep.subr.mxu0 0.0
  %168 = vmatpush1.msra.mxu0 0.0
  %169 = vmatprep.subr.mxu0 0.0
  %170 = vmatpush1.msra.mxu0 0.0
  %171 = vmatprep.subr.mxu0 0.0
  %172 = vmatpush1.msra.mxu0 0.0
  %173 = vmatprep.subr.mxu0 0.0
  %174 = vmatpush1.msra.mxu0 0.0
  %175 = vmatprep.subr.mxu0 0.0
  %176 = vmatpush1.msra.mxu0 0.0
  %177 = vmatprep.subr.mxu0 0.0
  %178 = vmatpush1.msra.mxu0 0.0
  %179 = vmatprep.subr.mxu0 0.0
  %180 = vmatpush1.msra.mxu0 0.0
  %181 = vmatprep.subr.mxu0 0.0
  %182 = vmatpush1.msra.mxu0 0.0
  %183 = vmatprep.subr.mxu0 0.0
  %184 = vmatpush1.msra.mxu0 0.0
  %185 = vmatprep.subr.mxu0 0.0
  %186 = vmatpush1.msra.mxu0 0.0
  %187 = vmatprep.subr.mxu0 0.0
  %188 = vmatpush1.msra.mxu0 0.0
  %189 = vmatprep.subr.mxu0 0.0
  %190 = vmatpush1.msra.mxu0 0.0
  %191 = vmatprep.subr.mxu0 0.0
  %192 = vmatpush1.msra.mxu0 0.0
  %193 = vmatprep.subr.mxu0 0.0
  %194 = vmatpush1.msra.mxu0 0.0
  %195 = vmatprep.subr.mxu0 0.0
  %196 = vmatpush1.msra.mxu0 0.0
  %197 = vmatprep.subr.mxu0 0.0
  %198 = vmatpush1.msra.mxu0 0.0
  %199 = vmatprep.subr.mxu0 0.0
  %200 = vmatpush1.msra.mxu0 0.0
  %201 = vmatprep.subr.mxu0 0.0
  %202 = vmatpush1.msra.mxu0 0.0
  %203 = vmatprep.subr.mxu0 0.0
  %204 = vmatpush1.msra.mxu0 0.0
  %205 = vmatprep.subr.mxu0 0.0
  %206 = vmatpush1.msra.mxu0 0.0
  %207 = vmatprep.subr.mxu0 0.0
  %208 = vmatpush1.msra.mxu0 0.0
  %209 = vmatprep.subr.mxu0 0.0
  %210 = vmatpush1.msra.mxu0 0.0
  %211 = vmatprep.subr.mxu0 0.0
  %212 = vmatpush1.msra.mxu0 0.0
  %213 = vmatprep.subr.mxu0 0.0
  %214 = vmatpush1.msra.mxu0 0.0
  %215 = vmatprep.mubr.f32.mxu0 0.0
  %216 = vmatmul.mubr.f32.gmra.mrb[0].mxu0 %v146
  %v217 = vpop.f32.mrb[0].mxu0
  %v218 = vadd.f32 %v143, %v217
  %v219 = vpop.f32.mrb[0].mxu0
  %220 = vmatprep.mubr.f32.mxu0 0.0
  %221 = vmatmul.mubr.f32.gmra.mrb[0].mxu0 %v149
  %v222 = vpop.f32.mrb[0].mxu0
  %v223 = vadd.f32 %v143, %v222
  %v224 = vpop.f32.mrb[0].mxu0
  %225 = vdwg.mxu0
  %vm226 = vcmask 64512
  %v228 = vsel %vm226, %v118, 0
  %v231 = vsel %vm226, %v218, 0
  %233 = vmatprep.subr.mxu0 0.0
  %234 = vmatpush1.xpose.msra.mxu0 %v231
  %235 = vmatprep.subr.mxu0 0.0
  %236 = vmatpush1.xpose.msra.mxu0 0.0
  %237 = vmatprep.subr.mxu0 0.0
  %238 = vmatpush1.xpose.msra.mxu0 0.0
  %239 = vmatprep.subr.mxu0 0.0
  %240 = vmatpush1.xpose.msra.mxu0 0.0
  %241 = vmatprep.subr.mxu0 0.0
  %242 = vmatpush1.xpose.msra.mxu0 0.0
  %243 = vmatprep.subr.mxu0 0.0
  %244 = vmatpush1.xpose.msra.mxu0 0.0
  %245 = vmatprep.subr.mxu0 0.0
  %246 = vmatpush1.xpose.msra.mxu0 0.0
  %247 = vmatprep.subr.mxu0 0.0
  %248 = vmatpush1.xpose.msra.mxu0 0.0
  %249 = vmatprep.subr.mxu0 0.0
  %250 = vmatpush1.xpose.msra.mxu0 0.0
  %251 = vmatprep.subr.mxu0 0.0
  %252 = vmatpush1.xpose.msra.mxu0 0.0
  %253 = vmatprep.subr.mxu0 0.0
  %254 = vmatpush1.xpose.msra.mxu0 0.0
  %255 = vmatprep.subr.mxu0 0.0
  %256 = vmatpush1.xpose.msra.mxu0 0.0
  %257 = vmatprep.subr.mxu0 0.0
  %258 = vmatpush1.xpose.msra.mxu0 0.0
  %259 = vmatprep.subr.mxu0 0.0
  %260 = vmatpush1.xpose.msra.mxu0 0.0
  %261 = vmatprep.subr.mxu0 0.0
  %262 = vmatpush1.xpose.msra.mxu0 0.0
  %263 = vmatprep.subr.mxu0 0.0
  %264 = vmatpush1.xpose.msra.mxu0 0.0
  %265 = vmatprep.subr.mxu0 0.0
  %266 = vmatpush1.xpose.msra.mxu0 0.0
  %267 = vmatprep.subr.mxu0 0.0
  %268 = vmatpush1.xpose.msra.mxu0 0.0
  %269 = vmatprep.subr.mxu0 0.0
  %270 = vmatpush1.xpose.msra.mxu0 0.0
  %271 = vmatprep.subr.mxu0 0.0
  %272 = vmatpush1.xpose.msra.mxu0 0.0
  %273 = vmatprep.subr.mxu0 0.0
  %274 = vmatpush1.xpose.msra.mxu0 0.0
  %275 = vmatprep.subr.mxu0 0.0
  %276 = vmatpush1.xpose.msra.mxu0 0.0
  %277 = vmatprep.subr.mxu0 0.0
  %278 = vmatpush1.xpose.msra.mxu0 0.0
  %279 = vmatprep.subr.mxu0 0.0
  %280 = vmatpush1.xpose.msra.mxu0 0.0
  %281 = vmatprep.subr.mxu0 0.0
  %282 = vmatpush1.xpose.msra.mxu0 0.0
  %283 = vmatprep.subr.mxu0 0.0
  %284 = vmatpush1.xpose.msra.mxu0 0.0
  %285 = vmatprep.subr.mxu0 0.0
  %286 = vmatpush1.xpose.msra.mxu0 0.0
  %287 = vmatprep.subr.mxu0 0.0
  %288 = vmatpush1.xpose.msra.mxu0 0.0
  %289 = vmatprep.subr.mxu0 0.0
  %290 = vmatpush1.xpose.msra.mxu0 0.0
  %291 = vmatprep.subr.mxu0 0.0
  %292 = vmatpush1.xpose.msra.mxu0 0.0
  %293 = vmatprep.subr.mxu0 0.0
  %294 = vmatpush1.xpose.msra.mxu0 0.0
  %295 = vmatprep.subr.mxu0 0.0
  %296 = vmatpush1.xpose.msra.mxu0 0.0
  %297 = vmatprep.mubr.f32.mxu0 0.0
  %298 = vmatmul.mubr.f32.gmra.mrb[0].mxu0 %v228
  %v299 = vpop.f32.mrb[0].mxu0
  %v300 = vadd.f32 0.0, %v299
  %v301 = vpop.f32.mrb[0].mxu0
  %302 = vdwg.mxu0
  %v303 = vmul.f32 %v300, 0.35355338
  %v304 = vsel %vm226, %v303, -inf
  %305 = vmax.xlane.f32.xlu0 %v304
  %v306 = vpop.xlane.xlu0 %305
  %v307 = vsub.f32 %v303, %v306
  %v308 = vmul.f32 %v307, 1.442695
  %v309 = vpow.pop %v308
  %v310 = vsel %vm226, %v309, 0.0
  %311 = vadd.xlane.f32.xlu0 %v310
  %v312 = vpop.xlane.xlu0 %311
  %v313 = vrcp.pop %v312
  %v314 = vmul.f32 %v309, %v313
  %315 = vrot.lane.b32.xlu0 %v218, 96
  %v316 = vpop.permute.xlu0 %315
  %v319 = vsel %vm226, %v314, 0
  %321 = vmatprep.subr.mxu0 0.0
  %322 = vmatpush1.msra.mxu0 %v316
  %323 = vmatprep.subr.mxu0 0.0
  %324 = vmatpush1.msra.mxu0 0.0
  %325 = vmatprep.subr.mxu0 0.0
  %326 = vmatpush1.msra.mxu0 0.0
  %327 = vmatprep.subr.mxu0 0.0
  %328 = vmatpush1.msra.mxu0 0.0
  %329 = vmatprep.subr.mxu0 0.0
  %330 = vmatpush1.msra.mxu0 0.0
  %331 = vmatprep.subr.mxu0 0.0
  %332 = vmatpush1.msra.mxu0 0.0
  %333 = vmatprep.subr.mxu0 0.0
  %334 = vmatpush1.msra.mxu0 0.0
  %335 = vmatprep.subr.mxu0 0.0
  %336 = vmatpush1.msra.mxu0 0.0
  %337 = vmatprep.subr.mxu0 0.0
  %338 = vmatpush1.msra.mxu0 0.0
  %339 = vmatprep.subr.mxu0 0.0
  %340 = vmatpush1.msra.mxu0 0.0
  %341 = vmatprep.subr.mxu0 0.0
  %342 = vmatpush1.msra.mxu0 0.0
  %343 = vmatprep.subr.mxu0 0.0
  %344 = vmatpush1.msra.mxu0 0.0
  %345 = vmatprep.subr.mxu0 0.0
  %346 = vmatpush1.msra.mxu0 0.0
  %347 = vmatprep.subr.mxu0 0.0
  %348 = vmatpush1.msra.mxu0 0.0
  %349 = vmatprep.subr.mxu0 0.0
  %350 = vmatpush1.msra.mxu0 0.0
  %351 = vmatprep.subr.mxu0 0.0
  %352 = vmatpush1.msra.mxu0 0.0
  %353 = vmatprep.subr.mxu0 0.0
  %354 = vmatpush1.msra.mxu0 0.0
  %355 = vmatprep.subr.mxu0 0.0
  %356 = vmatpush1.msra.mxu0 0.0
  %357 = vmatprep.subr.mxu0 0.0
  %358 = vmatpush1.msra.mxu0 0.0
  %359 = vmatprep.subr.mxu0 0.0
  %360 = vmatpush1.msra.mxu0 0.0
  %361 = vmatprep.subr.mxu0 0.0
  %362 = vmatpush1.msra.mxu0 0.0
  %363 = vmatprep.subr.mxu0 0.0
  %364 = vmatpush1.msra.mxu0 0.0
  %365 = vmatprep.subr.mxu0 0.0
  %366 = vmatpush1.msra.mxu0 0.0
  %367 = vmatprep.subr.mxu0 0.0
  %368 = vmatpush1.msra.mxu0 0.0
  %369 = vmatprep.subr.mxu0 0.0
  %370 = vmatpush1.msra.mxu0 0.0
  %371 = vmatprep.subr.mxu0 0.0
  %372 = vmatpush1.msra.mxu0 0.0
  %373 = vmatprep.subr.mxu0 0.0
  %374 = vmatpush1.msra.mxu0 0.0
  %375 = vmatprep.subr.mxu0 0.0
  %376 = vmatpush1.msra.mxu0 0.0
  %377 = vmatprep.subr.mxu0 0.0
  %378 = vmatpush1.msra.mxu0 0.0
  %379 = vmatprep.subr.mxu0 0.0
  %380 = vmatpush1.msra.mxu0 0.0
  %381 = vmatprep.subr.mxu0 0.0
  %382 = vmatpush1.msra.mxu0 0.0
  %383 = vmatprep.subr.mxu0 0.0
  %384 = vmatpush1.msra.mxu0 0.0
  %385 = vmatprep.mubr.f32.mxu0 0.0
  %386 = vmatmul.mubr.f32.gmra.mrb[0].mxu0 %v319
  %v387 = vpop.f32.mrb[0].mxu0
  %v388 = vadd.f32 0.0, %v387
  %v389 = vpop.f32.mrb[0].mxu0
  %390 = vdwg.mxu0
  %391 = vrot.lane.b32.xlu0 %v118, 120
  %v392 = vpop.permute.xlu0 %391
  %393 = vrot.lane.b32.xlu0 %v218, 120
  %v394 = vpop.permute.xlu0 %393
  %v395 = vsel %vm226, %v392, 0
  %v397 = vsel %vm226, %v394, 0
  %399 = vmatprep.subr.mxu0 0.0
  %400 = vmatpush1.xpose.msra.mxu0 %v397
  %401 = vmatprep.subr.mxu0 0.0
  %402 = vmatpush1.xpose.msra.mxu0 0.0
  %403 = vmatprep.subr.mxu0 0.0
  %404 = vmatpush1.xpose.msra.mxu0 0.0
  %405 = vmatprep.subr.mxu0 0.0
  %406 = vmatpush1.xpose.msra.mxu0 0.0
  %407 = vmatprep.subr.mxu0 0.0
  %408 = vmatpush1.xpose.msra.mxu0 0.0
  %409 = vmatprep.subr.mxu0 0.0
  %410 = vmatpush1.xpose.msra.mxu0 0.0
  %411 = vmatprep.subr.mxu0 0.0
  %412 = vmatpush1.xpose.msra.mxu0 0.0
  %413 = vmatprep.subr.mxu0 0.0
  %414 = vmatpush1.xpose.msra.mxu0 0.0
  %415 = vmatprep.subr.mxu0 0.0
  %416 = vmatpush1.xpose.msra.mxu0 0.0
  %417 = vmatprep.subr.mxu0 0.0
  %418 = vmatpush1.xpose.msra.mxu0 0.0
  %419 = vmatprep.subr.mxu0 0.0
  %420 = vmatpush1.xpose.msra.mxu0 0.0
  %421 = vmatprep.subr.mxu0 0.0
  %422 = vmatpush1.xpose.msra.mxu0 0.0
  %423 = vmatprep.subr.mxu0 0.0
  %424 = vmatpush1.xpose.msra.mxu0 0.0
  %425 = vmatprep.subr.mxu0 0.0
  %426 = vmatpush1.xpose.msra.mxu0 0.0
  %427 = vmatprep.subr.mxu0 0.0
  %428 = vmatpush1.xpose.msra.mxu0 0.0
  %429 = vmatprep.subr.mxu0 0.0
  %430 = vmatpush1.xpose.msra.mxu0 0.0
  %431 = vmatprep.subr.mxu0 0.0
  %432 = vmatpush1.xpose.msra.mxu0 0.0
  %433 = vmatprep.subr.mxu0 0.0
  %434 = vmatpush1.xpose.msra.mxu0 0.0
  %435 = vmatprep.subr.mxu0 0.0
  %436 = vmatpush1.xpose.msra.mxu0 0.0
  %437 = vmatprep.subr.mxu0 0.0
  %438 = vmatpush1.xpose.msra.mxu0 0.0
  %439 = vmatprep.subr.mxu0 0.0
  %440 = vmatpush1.xpose.msra.mxu0 0.0
  %441 = vmatprep.subr.mxu0 0.0
  %442 = vmatpush1.xpose.msra.mxu0 0.0
  %443 = vmatprep.subr.mxu0 0.0
  %444 = vmatpush1.xpose.msra.mxu0 0.0
  %445 = vmatprep.subr.mxu0 0.0
  %446 = vmatpush1.xpose.msra.mxu0 0.0
  %447 = vmatprep.subr.mxu0 0.0
  %448 = vmatpush1.xpose.msra.mxu0 0.0
  %449 = vmatprep.subr.mxu0 0.0
  %450 = vmatpush1.xpose.msra.mxu0 0.0
  %451 = vmatprep.subr.mxu0 0.0
  %452 = vmatpush1.xpose.msra.mxu0 0.0
  %453 = vmatprep.subr.mxu0 0.0
  %454 = vmatpush1.xpose.msra.mxu0 0.0
  %455 = vmatprep.subr.mxu0 0.0
  %456 = vmatpush1.xpose.msra.mxu0 0.0
  %457 = vmatprep.subr.mxu0 0.0
  %458 = vmatpush1.xpose.msra.mxu0 0.0
  %459 = vmatprep.subr.mxu0 0.0
  %460 = vmatpush1.xpose.msra.mxu0 0.0
  %461 = vmatprep.subr.mxu0 0.0
  %462 = vmatpush1.xpose.msra.mxu0 0.0
  %463 = vmatprep.mubr.f32.mxu0 0.0
  %464 = vmatmul.mubr.f32.gmra.mrb[0].mxu0 %v395
  %v465 = vpop.f32.mrb[0].mxu0
  %v466 = vadd.f32 0.0, %v465
  %v467 = vpop.f32.mrb[0].mxu0
  %468 = vdwg.mxu0
  %v469 = vmul.f32 %v466, 0.35355338
  %v470 = vsel %vm226, %v469, -inf
  %471 = vmax.xlane.f32.xlu0 %v470
  %v472 = vpop.xlane.xlu0 %471
  %v473 = vsub.f32 %v469, %v472
  %v474 = vmul.f32 %v473, 1.442695
  %v475 = vpow.pop %v474
  %v476 = vsel %vm226, %v475, 0.0
  %477 = vadd.xlane.f32.xlu0 %v476
  %v478 = vpop.xlane.xlu0 %477
  %v479 = vrcp.pop %v478
  %v480 = vmul.f32 %v475, %v479
  %481 = vrot.lane.b32.xlu0 %v218, 88
  %v482 = vpop.permute.xlu0 %481
  %v485 = vsel %vm226, %v480, 0
  %487 = vmatprep.subr.mxu0 0.0
  %488 = vmatpush1.msra.mxu0 %v482
  %489 = vmatprep.subr.mxu0 0.0
  %490 = vmatpush1.msra.mxu0 0.0
  %491 = vmatprep.subr.mxu0 0.0
  %492 = vmatpush1.msra.mxu0 0.0
  %493 = vmatprep.subr.mxu0 0.0
  %494 = vmatpush1.msra.mxu0 0.0
  %495 = vmatprep.subr.mxu0 0.0
  %496 = vmatpush1.msra.mxu0 0.0
  %497 = vmatprep.subr.mxu0 0.0
  %498 = vmatpush1.msra.mxu0 0.0
  %499 = vmatprep.subr.mxu0 0.0
  %500 = vmatpush1.msra.mxu0 0.0
  %501 = vmatprep.subr.mxu0 0.0
  %502 = vmatpush1.msra.mxu0 0.0
  %503 = vmatprep.subr.mxu0 0.0
  %504 = vmatpush1.msra.mxu0 0.0
  %505 = vmatprep.subr.mxu0 0.0
  %506 = vmatpush1.msra.mxu0 0.0
  %507 = vmatprep.subr.mxu0 0.0
  %508 = vmatpush1.msra.mxu0 0.0
  %509 = vmatprep.subr.mxu0 0.0
  %510 = vmatpush1.msra.mxu0 0.0
  %511 = vmatprep.subr.mxu0 0.0
  %512 = vmatpush1.msra.mxu0 0.0
  %513 = vmatprep.subr.mxu0 0.0
  %514 = vmatpush1.msra.mxu0 0.0
  %515 = vmatprep.subr.mxu0 0.0
  %516 = vmatpush1.msra.mxu0 0.0
  %517 = vmatprep.subr.mxu0 0.0
  %518 = vmatpush1.msra.mxu0 0.0
  %519 = vmatprep.subr.mxu0 0.0
  %520 = vmatpush1.msra.mxu0 0.0
  %521 = vmatprep.subr.mxu0 0.0
  %522 = vmatpush1.msra.mxu0 0.0
  %523 = vmatprep.subr.mxu0 0.0
  %524 = vmatpush1.msra.mxu0 0.0
  %525 = vmatprep.subr.mxu0 0.0
  %526 = vmatpush1.msra.mxu0 0.0
  %527 = vmatprep.subr.mxu0 0.0
  %528 = vmatpush1.msra.mxu0 0.0
  %529 = vmatprep.subr.mxu0 0.0
  %530 = vmatpush1.msra.mxu0 0.0
  %531 = vmatprep.subr.mxu0 0.0
  %532 = vmatpush1.msra.mxu0 0.0
  %533 = vmatprep.subr.mxu0 0.0
  %534 = vmatpush1.msra.mxu0 0.0
  %535 = vmatprep.subr.mxu0 0.0
  %536 = vmatpush1.msra.mxu0 0.0
  %537 = vmatprep.subr.mxu0 0.0
  %538 = vmatpush1.msra.mxu0 0.0
  %539 = vmatprep.subr.mxu0 0.0
  %540 = vmatpush1.msra.mxu0 0.0
  %541 = vmatprep.subr.mxu0 0.0
  %542 = vmatpush1.msra.mxu0 0.0
  %543 = vmatprep.subr.mxu0 0.0
  %544 = vmatpush1.msra.mxu0 0.0
  %545 = vmatprep.subr.mxu0 0.0
  %546 = vmatpush1.msra.mxu0 0.0
  %547 = vmatprep.subr.mxu0 0.0
  %548 = vmatpush1.msra.mxu0 0.0
  %549 = vmatprep.subr.mxu0 0.0
  %550 = vmatpush1.msra.mxu0 0.0
  %551 = vmatprep.mubr.f32.mxu0 0.0
  %552 = vmatmul.mubr.f32.gmra.mrb[0].mxu0 %v485
  %v553 = vpop.f32.mrb[0].mxu0
  %v554 = vadd.f32 0.0, %v553
  %v555 = vpop.f32.mrb[0].mxu0
  %556 = vdwg.mxu0
  %557 = vrot.lane.b32.xlu0 %v118, 112
  %v558 = vpop.permute.xlu0 %557
  %559 = vrot.lane.b32.xlu0 %v218, 112
  %v560 = vpop.permute.xlu0 %559
  %v561 = vsel %vm226, %v558, 0
  %v563 = vsel %vm226, %v560, 0
  %565 = vmatprep.subr.mxu0 0.0
  %566 = vmatpush1.xpose.msra.mxu0 %v563
  %567 = vmatprep.subr.mxu0 0.0
  %568 = vmatpush1.xpose.msra.mxu0 0.0
  %569 = vmatprep.subr.mxu0 0.0
  %570 = vmatpush1.xpose.msra.mxu0 0.0
  %571 = vmatprep.subr.mxu0 0.0
  %572 = vmatpush1.xpose.msra.mxu0 0.0
  %573 = vmatprep.subr.mxu0 0.0
  %574 = vmatpush1.xpose.msra.mxu0 0.0
  %575 = vmatprep.subr.mxu0 0.0
  %576 = vmatpush1.xpose.msra.mxu0 0.0
  %577 = vmatprep.subr.mxu0 0.0
  %578 = vmatpush1.xpose.msra.mxu0 0.0
  %579 = vmatprep.subr.mxu0 0.0
  %580 = vmatpush1.xpose.msra.mxu0 0.0
  %581 = vmatprep.subr.mxu0 0.0
  %582 = vmatpush1.xpose.msra.mxu0 0.0
  %583 = vmatprep.subr.mxu0 0.0
  %584 = vmatpush1.xpose.msra.mxu0 0.0
  %585 = vmatprep.subr.mxu0 0.0
  %586 = vmatpush1.xpose.msra.mxu0 0.0
  %587 = vmatprep.subr.mxu0 0.0
  %588 = vmatpush1.xpose.msra.mxu0 0.0
  %589 = vmatprep.subr.mxu0 0.0
  %590 = vmatpush1.xpose.msra.mxu0 0.0
  %591 = vmatprep.subr.mxu0 0.0
  %592 = vmatpush1.xpose.msra.mxu0 0.0
  %593 = vmatprep.subr.mxu0 0.0
  %594 = vmatpush1.xpose.msra.mxu0 0.0
  %595 = vmatprep.subr.mxu0 0.0
  %596 = vmatpush1.xpose.msra.mxu0 0.0
  %597 = vmatprep.subr.mxu0 0.0
  %598 = vmatpush1.xpose.msra.mxu0 0.0
  %599 = vmatprep.subr.mxu0 0.0
  %600 = vmatpush1.xpose.msra.mxu0 0.0
  %601 = vmatprep.subr.mxu0 0.0
  %602 = vmatpush1.xpose.msra.mxu0 0.0
  %603 = vmatprep.subr.mxu0 0.0
  %604 = vmatpush1.xpose.msra.mxu0 0.0
  %605 = vmatprep.subr.mxu0 0.0
  %606 = vmatpush1.xpose.msra.mxu0 0.0
  %607 = vmatprep.subr.mxu0 0.0
  %608 = vmatpush1.xpose.msra.mxu0 0.0
  %609 = vmatprep.subr.mxu0 0.0
  %610 = vmatpush1.xpose.msra.mxu0 0.0
  %611 = vmatprep.subr.mxu0 0.0
  %612 = vmatpush1.xpose.msra.mxu0 0.0
  %613 = vmatprep.subr.mxu0 0.0
  %614 = vmatpush1.xpose.msra.mxu0 0.0
  %615 = vmatprep.subr.mxu0 0.0
  %616 = vmatpush1.xpose.msra.mxu0 0.0
  %617 = vmatprep.subr.mxu0 0.0
  %618 = vmatpush1.xpose.msra.mxu0 0.0
  %619 = vmatprep.subr.mxu0 0.0
  %620 = vmatpush1.xpose.msra.mxu0 0.0
  %621 = vmatprep.subr.mxu0 0.0
  %622 = vmatpush1.xpose.msra.mxu0 0.0
  %623 = vmatprep.subr.mxu0 0.0
  %624 = vmatpush1.xpose.msra.mxu0 0.0
  %625 = vmatprep.subr.mxu0 0.0
  %626 = vmatpush1.xpose.msra.mxu0 0.0
  %627 = vmatprep.subr.mxu0 0.0
  %628 = vmatpush1.xpose.msra.mxu0 0.0
  %629 = vmatprep.mubr.f32.mxu0 0.0
  %630 = vmatmul.mubr.f32.gmra.mrb[0].mxu0 %v561
  %v631 = vpop.f32.mrb[0].mxu0
  %v632 = vadd.f32 0.0, %v631
  %v633 = vpop.f32.mrb[0].mxu0
  %634 = vdwg.mxu0
  %v635 = vmul.f32 %v632, 0.35355338
  %v636 = vsel %vm226, %v635, -inf
  %637 = vmax.xlane.f32.xlu0 %v636
  %v638 = vpop.xlane.xlu0 %637
  %v639 = vsub.f32 %v635, %v638
  %v640 = vmul.f32 %v639, 1.442695
  %v641 = vpow.pop %v640
  %v642 = vsel %vm226, %v641, 0.0
  %643 = vadd.xlane.f32.xlu0 %v642
  %v644 = vpop.xlane.xlu0 %643
  %v645 = vrcp.pop %v644
  %v646 = vmul.f32 %v641, %v645
  %647 = vrot.lane.b32.xlu0 %v218, 80
  %v648 = vpop.permute.xlu0 %647
  %v651 = vsel %vm226, %v646, 0
  %653 = vmatprep.subr.mxu0 0.0
  %654 = vmatpush1.msra.mxu0 %v648
  %655 = vmatprep.subr.mxu0 0.0
  %656 = vmatpush1.msra.mxu0 0.0
  %657 = vmatprep.subr.mxu0 0.0
  %658 = vmatpush1.msra.mxu0 0.0
  %659 = vmatprep.subr.mxu0 0.0
  %660 = vmatpush1.msra.mxu0 0.0
  %661 = vmatprep.subr.mxu0 0.0
  %662 = vmatpush1.msra.mxu0 0.0
  %663 = vmatprep.subr.mxu0 0.0
  %664 = vmatpush1.msra.mxu0 0.0
  %665 = vmatprep.subr.mxu0 0.0
  %666 = vmatpush1.msra.mxu0 0.0
  %667 = vmatprep.subr.mxu0 0.0
  %668 = vmatpush1.msra.mxu0 0.0
  %669 = vmatprep.subr.mxu0 0.0
  %670 = vmatpush1.msra.mxu0 0.0
  %671 = vmatprep.subr.mxu0 0.0
  %672 = vmatpush1.msra.mxu0 0.0
  %673 = vmatprep.subr.mxu0 0.0
  %674 = vmatpush1.msra.mxu0 0.0
  %675 = vmatprep.subr.mxu0 0.0
  %676 = vmatpush1.msra.mxu0 0.0
  %677 = vmatprep.subr.mxu0 0.0
  %678 = vmatpush1.msra.mxu0 0.0
  %679 = vmatprep.subr.mxu0 0.0
  %680 = vmatpush1.msra.mxu0 0.0
  %681 = vmatprep.subr.mxu0 0.0
  %682 = vmatpush1.msra.mxu0 0.0
  %683 = vmatprep.subr.mxu0 0.0
  %684 = vmatpush1.msra.mxu0 0.0
  %685 = vmatprep.subr.mxu0 0.0
  %686 = vmatpush1.msra.mxu0 0.0
  %687 = vmatprep.subr.mxu0 0.0
  %688 = vmatpush1.msra.mxu0 0.0
  %689 = vmatprep.subr.mxu0 0.0
  %690 = vmatpush1.msra.mxu0 0.0
  %691 = vmatprep.subr.mxu0 0.0
  %692 = vmatpush1.msra.mxu0 0.0
  %693 = vmatprep.subr.mxu0 0.0
  %694 = vmatpush1.msra.mxu0 0.0
  %695 = vmatprep.subr.mxu0 0.0
  %696 = vmatpush1.msra.mxu0 0.0
  %697 = vmatprep.subr.mxu0 0.0
  %698 = vmatpush1.msra.mxu0 0.0
  %699 = vmatprep.subr.mxu0 0.0
  %700 = vmatpush1.msra.mxu0 0.0
  %701 = vmatprep.subr.mxu0 0.0
  %702 = vmatpush1.msra.mxu0 0.0
  %703 = vmatprep.subr.mxu0 0.0
  %704 = vmatpush1.msra.mxu0 0.0
  %705 = vmatprep.subr.mxu0 0.0
  %706 = vmatpush1.msra.mxu0 0.0
  %707 = vmatprep.subr.mxu0 0.0
  %708 = vmatpush1.msra.mxu0 0.0
  %709 = vmatprep.subr.mxu0 0.0
  %710 = vmatpush1.msra.mxu0 0.0
  %711 = vmatprep.subr.mxu0 0.0
  %712 = vmatpush1.msra.mxu0 0.0
  %713 = vmatprep.subr.mxu0 0.0
  %714 = vmatpush1.msra.mxu0 0.0
  %715 = vmatprep.subr.mxu0 0.0
  %716 = vmatpush1.msra.mxu0 0.0
  %717 = vmatprep.mubr.f32.mxu0 0.0
  %718 = vmatmul.mubr.f32.gmra.mrb[0].mxu0 %v651
  %v719 = vpop.f32.mrb[0].mxu0
  %v720 = vadd.f32 0.0, %v719
  %v721 = vpop.f32.mrb[0].mxu0
  %722 = vdwg.mxu0
  %723 = vrot.lane.b32.xlu0 %v118, 104
  %v724 = vpop.permute.xlu0 %723
  %725 = vrot.lane.b32.xlu0 %v218, 104
  %v726 = vpop.permute.xlu0 %725
  %v727 = vsel %vm226, %v724, 0
  %v729 = vsel %vm226, %v726, 0
  %731 = vmatprep.subr.mxu0 0.0
  %732 = vmatpush1.xpose.msra.mxu0 %v729
  %733 = vmatprep.subr.mxu0 0.0
  %734 = vmatpush1.xpose.msra.mxu0 0.0
  %735 = vmatprep.subr.mxu0 0.0
  %736 = vmatpush1.xpose.msra.mxu0 0.0
  %737 = vmatprep.subr.mxu0 0.0
  %738 = vmatpush1.xpose.msra.mxu0 0.0
  %739 = vmatprep.subr.mxu0 0.0
  %740 = vmatpush1.xpose.msra.mxu0 0.0
  %741 = vmatprep.subr.mxu0 0.0
  %742 = vmatpush1.xpose.msra.mxu0 0.0
  %743 = vmatprep.subr.mxu0 0.0
  %744 = vmatpush1.xpose.msra.mxu0 0.0
  %745 = vmatprep.subr.mxu0 0.0
  %746 = vmatpush1.xpose.msra.mxu0 0.0
  %747 = vmatprep.subr.mxu0 0.0
  %748 = vmatpush1.xpose.msra.mxu0 0.0
  %749 = vmatprep.subr.mxu0 0.0
  %750 = vmatpush1.xpose.msra.mxu0 0.0
  %751 = vmatprep.subr.mxu0 0.0
  %752 = vmatpush1.xpose.msra.mxu0 0.0
  %753 = vmatprep.subr.mxu0 0.0
  %754 = vmatpush1.xpose.msra.mxu0 0.0
  %755 = vmatprep.subr.mxu0 0.0
  %756 = vmatpush1.xpose.msra.mxu0 0.0
  %757 = vmatprep.subr.mxu0 0.0
  %758 = vmatpush1.xpose.msra.mxu0 0.0
  %759 = vmatprep.subr.mxu0 0.0
  %760 = vmatpush1.xpose.msra.mxu0 0.0
  %761 = vmatprep.subr.mxu0 0.0
  %762 = vmatpush1.xpose.msra.mxu0 0.0
  %763 = vmatprep.subr.mxu0 0.0
  %764 = vmatpush1.xpose.msra.mxu0 0.0
  %765 = vmatprep.subr.mxu0 0.0
  %766 = vmatpush1.xpose.msra.mxu0 0.0
  %767 = vmatprep.subr.mxu0 0.0
  %768 = vmatpush1.xpose.msra.mxu0 0.0
  %769 = vmatprep.subr.mxu0 0.0
  %770 = vmatpush1.xpose.msra.mxu0 0.0
  %771 = vmatprep.subr.mxu0 0.0
  %772 = vmatpush1.xpose.msra.mxu0 0.0
  %773 = vmatprep.subr.mxu0 0.0
  %774 = vmatpush1.xpose.msra.mxu0 0.0
  %775 = vmatprep.subr.mxu0 0.0
  %776 = vmatpush1.xpose.msra.mxu0 0.0
  %777 = vmatprep.subr.mxu0 0.0
  %778 = vmatpush1.xpose.msra.mxu0 0.0
  %779 = vmatprep.subr.mxu0 0.0
  %780 = vmatpush1.xpose.msra.mxu0 0.0
  %781 = vmatprep.subr.mxu0 0.0
  %782 = vmatpush1.xpose.msra.mxu0 0.0
  %783 = vmatprep.subr.mxu0 0.0
  %784 = vmatpush1.xpose.msra.mxu0 0.0
  %785 = vmatprep.subr.mxu0 0.0
  %786 = vmatpush1.xpose.msra.mxu0 0.0
  %787 = vmatprep.subr.mxu0 0.0
  %788 = vmatpush1.xpose.msra.mxu0 0.0
  %789 = vmatprep.subr.mxu0 0.0
  %790 = vmatpush1.xpose.msra.mxu0 0.0
  %791 = vmatprep.subr.mxu0 0.0
  %792 = vmatpush1.xpose.msra.mxu0 0.0
  %793 = vmatprep.subr.mxu0 0.0
  %794 = vmatpush1.xpose.msra.mxu0 0.0
  %795 = vmatprep.mubr.f32.mxu0 0.0
  %796 = vmatmul.mubr.f32.gmra.mrb[0].mxu0 %v727
  %v797 = vpop.f32.mrb[0].mxu0
  %v798 = vadd.f32 0.0, %v797
  %v799 = vpop.f32.mrb[0].mxu0
  %800 = vdwg.mxu0
  %v801 = vmul.f32 %v798, 0.35355338
  %v802 = vsel %vm226, %v801, -inf
  %803 = vmax.xlane.f32.xlu0 %v802
  %v804 = vpop.xlane.xlu0 %803
  %v805 = vsub.f32 %v801, %v804
  %v806 = vmul.f32 %v805, 1.442695
  %v807 = vpow.pop %v806
  %v808 = vsel %vm226, %v807, 0.0
  %809 = vadd.xlane.f32.xlu0 %v808
  %v810 = vpop.xlane.xlu0 %809
  %v811 = vrcp.pop %v810
  %v812 = vmul.f32 %v807, %v811
  %813 = vrot.lane.b32.xlu0 %v218, 72
  %v814 = vpop.permute.xlu0 %813
  %v817 = vsel %vm226, %v812, 0
  %819 = vmatprep.subr.mxu0 0.0
  %820 = vmatpush1.msra.mxu0 %v814
  %821 = vmatprep.subr.mxu0 0.0
  %822 = vmatpush1.msra.mxu0 0.0
  %823 = vmatprep.subr.mxu0 0.0
  %824 = vmatpush1.msra.mxu0 0.0
  %825 = vmatprep.subr.mxu0 0.0
  %826 = vmatpush1.msra.mxu0 0.0
  %827 = vmatprep.subr.mxu0 0.0
  %828 = vmatpush1.msra.mxu0 0.0
  %829 = vmatprep.subr.mxu0 0.0
  %830 = vmatpush1.msra.mxu0 0.0
  %831 = vmatprep.subr.mxu0 0.0
  %832 = vmatpush1.msra.mxu0 0.0
  %833 = vmatprep.subr.mxu0 0.0
  %834 = vmatpush1.msra.mxu0 0.0
  %835 = vmatprep.subr.mxu0 0.0
  %836 = vmatpush1.msra.mxu0 0.0
  %837 = vmatprep.subr.mxu0 0.0
  %838 = vmatpush1.msra.mxu0 0.0
  %839 = vmatprep.subr.mxu0 0.0
  %840 = vmatpush1.msra.mxu0 0.0
  %841 = vmatprep.subr.mxu0 0.0
  %842 = vmatpush1.msra.mxu0 0.0
  %843 = vmatprep.subr.mxu0 0.0
  %844 = vmatpush1.msra.mxu0 0.0
  %845 = vmatprep.subr.mxu0 0.0
  %846 = vmatpush1.msra.mxu0 0.0
  %847 = vmatprep.subr.mxu0 0.0
  %848 = vmatpush1.msra.mxu0 0.0
  %849 = vmatprep.subr.mxu0 0.0
  %850 = vmatpush1.msra.mxu0 0.0
  %851 = vmatprep.subr.mxu0 0.0
  %852 = vmatpush1.msra.mxu0 0.0
  %853 = vmatprep.subr.mxu0 0.0
  %854 = vmatpush1.msra.mxu0 0.0
  %855 = vmatprep.subr.mxu0 0.0
  %856 = vmatpush1.msra.mxu0 0.0
  %857 = vmatprep.subr.mxu0 0.0
  %858 = vmatpush1.msra.mxu0 0.0
  %859 = vmatprep.subr.mxu0 0.0
  %860 = vmatpush1.msra.mxu0 0.0
  %861 = vmatprep.subr.mxu0 0.0
  %862 = vmatpush1.msra.mxu0 0.0
  %863 = vmatprep.subr.mxu0 0.0
  %864 = vmatpush1.msra.mxu0 0.0
  %865 = vmatprep.subr.mxu0 0.0
  %866 = vmatpush1.msra.mxu0 0.0
  %867 = vmatprep.subr.mxu0 0.0
  %868 = vmatpush1.msra.mxu0 0.0
  %869 = vmatprep.subr.mxu0 0.0
  %870 = vmatpush1.msra.mxu0 0.0
  %871 = vmatprep.subr.mxu0 0.0
  %872 = vmatpush1.msra.mxu0 0.0
  %873 = vmatprep.subr.mxu0 0.0
  %874 = vmatpush1.msra.mxu0 0.0
  %875 = vmatprep.subr.mxu0 0.0
  %876 = vmatpush1.msra.mxu0 0.0
  %877 = vmatprep.subr.mxu0 0.0
  %878 = vmatpush1.msra.mxu0 0.0
  %879 = vmatprep.subr.mxu0 0.0
  %880 = vmatpush1.msra.mxu0 0.0
  %881 = vmatprep.subr.mxu0 0.0
  %882 = vmatpush1.msra.mxu0 0.0
  %883 = vmatprep.mubr.f32.mxu0 0.0
  %884 = vmatmul.mubr.f32.gmra.mrb[0].mxu0 %v817
  %v885 = vpop.f32.mrb[0].mxu0
  %v886 = vadd.f32 0.0, %v885
  %v887 = vpop.f32.mrb[0].mxu0
  %888 = vdwg.mxu0
  %890 = vrot.lane.b32.xlu0 %v554, 8
  %v891 = vpop.permute.xlu0 %890
  %894 = vrot.lane.b32.xlu0 %v720, 16
  %v895 = vpop.permute.xlu0 %894
  %898 = vrot.lane.b32.xlu0 %v886, 24
  %v899 = vpop.permute.xlu0 %898
  %v901 = vsel %vm226, %v388, %v891
  %vm902 = vcmask 130048
  %v903 = vsel %vm902, %v901, %v895
  %vm904 = vcmask 195584
  %v905 = vsel %vm904, %v903, %v899
  %v907 = vsel %vm226, %v123, 0
  %v910 = vsel %vm226, %v223, 0
  %912 = vmatprep.subr.mxu0 0.0
  %913 = vmatpush1.xpose.msra.mxu0 %v910
  %914 = vmatprep.subr.mxu0 0.0
  %915 = vmatpush1.xpose.msra.mxu0 0.0
  %916 = vmatprep.subr.mxu0 0.0
  %917 = vmatpush1.xpose.msra.mxu0 0.0
  %918 = vmatprep.subr.mxu0 0.0
  %919 = vmatpush1.xpose.msra.mxu0 0.0
  %920 = vmatprep.subr.mxu0 0.0
  %921 = vmatpush1.xpose.msra.mxu0 0.0
  %922 = vmatprep.subr.mxu0 0.0
  %923 = vmatpush1.xpose.msra.mxu0 0.0
  %924 = vmatprep.subr.mxu0 0.0
  %925 = vmatpush1.xpose.msra.mxu0 0.0
  %926 = vmatprep.subr.mxu0 0.0
  %927 = vmatpush1.xpose.msra.mxu0 0.0
  %928 = vmatprep.subr.mxu0 0.0
  %929 = vmatpush1.xpose.msra.mxu0 0.0
  %930 = vmatprep.subr.mxu0 0.0
  %931 = vmatpush1.xpose.msra.mxu0 0.0
  %932 = vmatprep.subr.mxu0 0.0
  %933 = vmatpush1.xpose.msra.mxu0 0.0
  %934 = vmatprep.subr.mxu0 0.0
  %935 = vmatpush1.xpose.msra.mxu0 0.0
  %936 = vmatprep.subr.mxu0 0.0
  %937 = vmatpush1.xpose.msra.mxu0 0.0
  %938 = vmatprep.subr.mxu0 0.0
  %939 = vmatpush1.xpose.msra.mxu0 0.0
  %940 = vmatprep.subr.mxu0 0.0
  %941 = vmatpush1.xpose.msra.mxu0 0.0
  %942 = vmatprep.subr.mxu0 0.0
  %943 = vmatpush1.xpose.msra.mxu0 0.0
  %944 = vmatprep.subr.mxu0 0.0
  %945 = vmatpush1.xpose.msra.mxu0 0.0
  %946 = vmatprep.subr.mxu0 0.0
  %947 = vmatpush1.xpose.msra.mxu0 0.0
  %948 = vmatprep.subr.mxu0 0.0
  %949 = vmatpush1.xpose.msra.mxu0 0.0
  %950 = vmatprep.subr.mxu0 0.0
  %951 = vmatpush1.xpose.msra.mxu0 0.0
  %952 = vmatprep.subr.mxu0 0.0
  %953 = vmatpush1.xpose.msra.mxu0 0.0
  %954 = vmatprep.subr.mxu0 0.0
  %955 = vmatpush1.xpose.msra.mxu0 0.0
  %956 = vmatprep.subr.mxu0 0.0
  %957 = vmatpush1.xpose.msra.mxu0 0.0
  %958 = vmatprep.subr.mxu0 0.0
  %959 = vmatpush1.xpose.msra.mxu0 0.0
  %960 = vmatprep.subr.mxu0 0.0
  %961 = vmatpush1.xpose.msra.mxu0 0.0
  %962 = vmatprep.subr.mxu0 0.0
  %963 = vmatpush1.xpose.msra.mxu0 0.0
  %964 = vmatprep.subr.mxu0 0.0
  %965 = vmatpush1.xpose.msra.mxu0 0.0
  %966 = vmatprep.subr.mxu0 0.0
  %967 = vmatpush1.xpose.msra.mxu0 0.0
  %968 = vmatprep.subr.mxu0 0.0
  %969 = vmatpush1.xpose.msra.mxu0 0.0
  %970 = vmatprep.subr.mxu0 0.0
  %971 = vmatpush1.xpose.msra.mxu0 0.0
  %972 = vmatprep.subr.mxu0 0.0
  %973 = vmatpush1.xpose.msra.mxu0 0.0
  %974 = vmatprep.subr.mxu0 0.0
  %975 = vmatpush1.xpose.msra.mxu0 0.0
  %976 = vmatprep.mubr.f32.mxu0 0.0
  %977 = vmatmul.mubr.f32.gmra.mrb[0].mxu0 %v907
  %v978 = vpop.f32.mrb[0].mxu0
  %v979 = vadd.f32 0.0, %v978
  %v980 = vpop.f32.mrb[0].mxu0
  %981 = vdwg.mxu0
  %v982 = vmul.f32 %v979, 0.35355338
  %v983 = vsel %vm226, %v982, -inf
  %984 = vmax.xlane.f32.xlu0 %v983
  %v985 = vpop.xlane.xlu0 %984
  %v986 = vsub.f32 %v982, %v985
  %v987 = vmul.f32 %v986, 1.442695
  %v988 = vpow.pop %v987
  %v989 = vsel %vm226, %v988, 0.0
  %990 = vadd.xlane.f32.xlu0 %v989
  %v991 = vpop.xlane.xlu0 %990
  %v992 = vrcp.pop %v991
  %v993 = vmul.f32 %v988, %v992
  %994 = vrot.lane.b32.xlu0 %v223, 96
  %v995 = vpop.permute.xlu0 %994
  %v998 = vsel %vm226, %v993, 0
  %1000 = vmatprep.subr.mxu0 0.0
  %1001 = vmatpush1.msra.mxu0 %v995
  %1002 = vmatprep.subr.mxu0 0.0
  %1003 = vmatpush1.msra.mxu0 0.0
  %1004 = vmatprep.subr.mxu0 0.0
  %1005 = vmatpush1.msra.mxu0 0.0
  %1006 = vmatprep.subr.mxu0 0.0
  %1007 = vmatpush1.msra.mxu0 0.0
  %1008 = vmatprep.subr.mxu0 0.0
  %1009 = vmatpush1.msra.mxu0 0.0
  %1010 = vmatprep.subr.mxu0 0.0
  %1011 = vmatpush1.msra.mxu0 0.0
  %1012 = vmatprep.subr.mxu0 0.0
  %1013 = vmatpush1.msra.mxu0 0.0
  %1014 = vmatprep.subr.mxu0 0.0
  %1015 = vmatpush1.msra.mxu0 0.0
  %1016 = vmatprep.subr.mxu0 0.0
  %1017 = vmatpush1.msra.mxu0 0.0
  %1018 = vmatprep.subr.mxu0 0.0
  %1019 = vmatpush1.msra.mxu0 0.0
  %1020 = vmatprep.subr.mxu0 0.0
  %1021 = vmatpush1.msra.mxu0 0.0
  %1022 = vmatprep.subr.mxu0 0.0
  %1023 = vmatpush1.msra.mxu0 0.0
  %1024 = vmatprep.subr.mxu0 0.0
  %1025 = vmatpush1.msra.mxu0 0.0
  %1026 = vmatprep.subr.mxu0 0.0
  %1027 = vmatpush1.msra.mxu0 0.0
  %1028 = vmatprep.subr.mxu0 0.0
  %1029 = vmatpush1.msra.mxu0 0.0
  %1030 = vmatprep.subr.mxu0 0.0
  %1031 = vmatpush1.msra.mxu0 0.0
  %1032 = vmatprep.subr.mxu0 0.0
  %1033 = vmatpush1.msra.mxu0 0.0
  %1034 = vmatprep.subr.mxu0 0.0
  %1035 = vmatpush1.msra.mxu0 0.0
  %1036 = vmatprep.subr.mxu0 0.0
  %1037 = vmatpush1.msra.mxu0 0.0
  %1038 = vmatprep.subr.mxu0 0.0
  %1039 = vmatpush1.msra.mxu0 0.0
  %1040 = vmatprep.subr.mxu0 0.0
  %1041 = vmatpush1.msra.mxu0 0.0
  %1042 = vmatprep.subr.mxu0 0.0
  %1043 = vmatpush1.msra.mxu0 0.0
  %1044 = vmatprep.subr.mxu0 0.0
  %1045 = vmatpush1.msra.mxu0 0.0
  %1046 = vmatprep.subr.mxu0 0.0
  %1047 = vmatpush1.msra.mxu0 0.0
  %1048 = vmatprep.subr.mxu0 0.0
  %1049 = vmatpush1.msra.mxu0 0.0
  %1050 = vmatprep.subr.mxu0 0.0
  %1051 = vmatpush1.msra.mxu0 0.0
  %1052 = vmatprep.subr.mxu0 0.0
  %1053 = vmatpush1.msra.mxu0 0.0
  %1054 = vmatprep.subr.mxu0 0.0
  %1055 = vmatpush1.msra.mxu0 0.0
  %1056 = vmatprep.subr.mxu0 0.0
  %1057 = vmatpush1.msra.mxu0 0.0
  %1058 = vmatprep.subr.mxu0 0.0
  %1059 = vmatpush1.msra.mxu0 0.0
  %1060 = vmatprep.subr.mxu0 0.0
  %1061 = vmatpush1.msra.mxu0 0.0
  %1062 = vmatprep.subr.mxu0 0.0
  %1063 = vmatpush1.msra.mxu0 0.0
  %1064 = vmatprep.mubr.f32.mxu0 0.0
  %1065 = vmatmul.mubr.f32.gmra.mrb[0].mxu0 %v998
  %v1066 = vpop.f32.mrb[0].mxu0
  %v1067 = vadd.f32 0.0, %v1066
  %v1068 = vpop.f32.mrb[0].mxu0
  %1069 = vdwg.mxu0
  %1070 = vrot.lane.b32.xlu0 %v123, 120
  %v1071 = vpop.permute.xlu0 %1070
  %1072 = vrot.lane.b32.xlu0 %v223, 120
  %v1073 = vpop.permute.xlu0 %1072
  %v1074 = vsel %vm226, %v1071, 0
  %v1076 = vsel %vm226, %v1073, 0
  %1078 = vmatprep.subr.mxu0 0.0
  %1079 = vmatpush1.xpose.msra.mxu0 %v1076
  %1080 = vmatprep.subr.mxu0 0.0
  %1081 = vmatpush1.xpose.msra.mxu0 0.0
  %1082 = vmatprep.subr.mxu0 0.0
  %1083 = vmatpush1.xpose.msra.mxu0 0.0
  %1084 = vmatprep.subr.mxu0 0.0
  %1085 = vmatpush1.xpose.msra.mxu0 0.0
  %1086 = vmatprep.subr.mxu0 0.0
  %1087 = vmatpush1.xpose.msra.mxu0 0.0
  %1088 = vmatprep.subr.mxu0 0.0
  %1089 = vmatpush1.xpose.msra.mxu0 0.0
  %1090 = vmatprep.subr.mxu0 0.0
  %1091 = vmatpush1.xpose.msra.mxu0 0.0
  %1092 = vmatprep.subr.mxu0 0.0
  %1093 = vmatpush1.xpose.msra.mxu0 0.0
  %1094 = vmatprep.subr.mxu0 0.0
  %1095 = vmatpush1.xpose.msra.mxu0 0.0
  %1096 = vmatprep.subr.mxu0 0.0
  %1097 = vmatpush1.xpose.msra.mxu0 0.0
  %1098 = vmatprep.subr.mxu0 0.0
  %1099 = vmatpush1.xpose.msra.mxu0 0.0
  %1100 = vmatprep.subr.mxu0 0.0
  %1101 = vmatpush1.xpose.msra.mxu0 0.0
  %1102 = vmatprep.subr.mxu0 0.0
  %1103 = vmatpush1.xpose.msra.mxu0 0.0
  %1104 = vmatprep.subr.mxu0 0.0
  %1105 = vmatpush1.xpose.msra.mxu0 0.0
  %1106 = vmatprep.subr.mxu0 0.0
  %1107 = vmatpush1.xpose.msra.mxu0 0.0
  %1108 = vmatprep.subr.mxu0 0.0
  %1109 = vmatpush1.xpose.msra.mxu0 0.0
  %1110 = vmatprep.subr.mxu0 0.0
  %1111 = vmatpush1.xpose.msra.mxu0 0.0
  %1112 = vmatprep.subr.mxu0 0.0
  %1113 = vmatpush1.xpose.msra.mxu0 0.0
  %1114 = vmatprep.subr.mxu0 0.0
  %1115 = vmatpush1.xpose.msra.mxu0 0.0
  %1116 = vmatprep.subr.mxu0 0.0
  %1117 = vmatpush1.xpose.msra.mxu0 0.0
  %1118 = vmatprep.subr.mxu0 0.0
  %1119 = vmatpush1.xpose.msra.mxu0 0.0
  %1120 = vmatprep.subr.mxu0 0.0
  %1121 = vmatpush1.xpose.msra.mxu0 0.0
  %1122 = vmatprep.subr.mxu0 0.0
  %1123 = vmatpush1.xpose.msra.mxu0 0.0
  %1124 = vmatprep.subr.mxu0 0.0
  %1125 = vmatpush1.xpose.msra.mxu0 0.0
  %1126 = vmatprep.subr.mxu0 0.0
  %1127 = vmatpush1.xpose.msra.mxu0 0.0
  %1128 = vmatprep.subr.mxu0 0.0
  %1129 = vmatpush1.xpose.msra.mxu0 0.0
  %1130 = vmatprep.subr.mxu0 0.0
  %1131 = vmatpush1.xpose.msra.mxu0 0.0
  %1132 = vmatprep.subr.mxu0 0.0
  %1133 = vmatpush1.xpose.msra.mxu0 0.0
  %1134 = vmatprep.subr.mxu0 0.0
  %1135 = vmatpush1.xpose.msra.mxu0 0.0
  %1136 = vmatprep.subr.mxu0 0.0
  %1137 = vmatpush1.xpose.msra.mxu0 0.0
  %1138 = vmatprep.subr.mxu0 0.0
  %1139 = vmatpush1.xpose.msra.mxu0 0.0
  %1140 = vmatprep.subr.mxu0 0.0
  %1141 = vmatpush1.xpose.msra.mxu0 0.0
  %1142 = vmatprep.mubr.f32.mxu0 0.0
  %1143 = vmatmul.mubr.f32.gmra.mrb[0].mxu0 %v1074
  %v1144 = vpop.f32.mrb[0].mxu0
  %v1145 = vadd.f32 0.0, %v1144
  %v1146 = vpop.f32.mrb[0].mxu0
  %1147 = vdwg.mxu0
  %v1148 = vmul.f32 %v1145, 0.35355338
  %v1149 = vsel %vm226, %v1148, -inf
  %1150 = vmax.xlane.f32.xlu0 %v1149
  %v1151 = vpop.xlane.xlu0 %1150
  %v1152 = vsub.f32 %v1148, %v1151
  %v1153 = vmul.f32 %v1152, 1.442695
  %v1154 = vpow.pop %v1153
  %v1155 = vsel %vm226, %v1154, 0.0
  %1156 = vadd.xlane.f32.xlu0 %v1155
  %v1157 = vpop.xlane.xlu0 %1156
  %v1158 = vrcp.pop %v1157
  %v1159 = vmul.f32 %v1154, %v1158
  %1160 = vrot.lane.b32.xlu0 %v223, 88
  %v1161 = vpop.permute.xlu0 %1160
  %v1164 = vsel %vm226, %v1159, 0
  %1166 = vmatprep.subr.mxu0 0.0
  %1167 = vmatpush1.msra.mxu0 %v1161
  %1168 = vmatprep.subr.mxu0 0.0
  %1169 = vmatpush1.msra.mxu0 0.0
  %1170 = vmatprep.subr.mxu0 0.0
  %1171 = vmatpush1.msra.mxu0 0.0
  %1172 = vmatprep.subr.mxu0 0.0
  %1173 = vmatpush1.msra.mxu0 0.0
  %1174 = vmatprep.subr.mxu0 0.0
  %1175 = vmatpush1.msra.mxu0 0.0
  %1176 = vmatprep.subr.mxu0 0.0
  %1177 = vmatpush1.msra.mxu0 0.0
  %1178 = vmatprep.subr.mxu0 0.0
  %1179 = vmatpush1.msra.mxu0 0.0
  %1180 = vmatprep.subr.mxu0 0.0
  %1181 = vmatpush1.msra.mxu0 0.0
  %1182 = vmatprep.subr.mxu0 0.0
  %1183 = vmatpush1.msra.mxu0 0.0
  %1184 = vmatprep.subr.mxu0 0.0
  %1185 = vmatpush1.msra.mxu0 0.0
  %1186 = vmatprep.subr.mxu0 0.0
  %1187 = vmatpush1.msra.mxu0 0.0
  %1188 = vmatprep.subr.mxu0 0.0
  %1189 = vmatpush1.msra.mxu0 0.0
  %1190 = vmatprep.subr.mxu0 0.0
  %1191 = vmatpush1.msra.mxu0 0.0
  %1192 = vmatprep.subr.mxu0 0.0
  %1193 = vmatpush1.msra.mxu0 0.0
  %1194 = vmatprep.subr.mxu0 0.0
  %1195 = vmatpush1.msra.mxu0 0.0
  %1196 = vmatprep.subr.mxu0 0.0
  %1197 = vmatpush1.msra.mxu0 0.0
  %1198 = vmatprep.subr.mxu0 0.0
  %1199 = vmatpush1.msra.mxu0 0.0
  %1200 = vmatprep.subr.mxu0 0.0
  %1201 = vmatpush1.msra.mxu0 0.0
  %1202 = vmatprep.subr.mxu0 0.0
  %1203 = vmatpush1.msra.mxu0 0.0
  %1204 = vmatprep.subr.mxu0 0.0
  %1205 = vmatpush1.msra.mxu0 0.0
  %1206 = vmatprep.subr.mxu0 0.0
  %1207 = vmatpush1.msra.mxu0 0.0
  %1208 = vmatprep.subr.mxu0 0.0
  %1209 = vmatpush1.msra.mxu0 0.0
  %1210 = vmatprep.subr.mxu0 0.0
  %1211 = vmatpush1.msra.mxu0 0.0
  %1212 = vmatprep.subr.mxu0 0.0
  %1213 = vmatpush1.msra.mxu0 0.0
  %1214 = vmatprep.subr.mxu0 0.0
  %1215 = vmatpush1.msra.mxu0 0.0
  %1216 = vmatprep.subr.mxu0 0.0
  %1217 = vmatpush1.msra.mxu0 0.0
  %1218 = vmatprep.subr.mxu0 0.0
  %1219 = vmatpush1.msra.mxu0 0.0
  %1220 = vmatprep.subr.mxu0 0.0
  %1221 = vmatpush1.msra.mxu0 0.0
  %1222 = vmatprep.subr.mxu0 0.0
  %1223 = vmatpush1.msra.mxu0 0.0
  %1224 = vmatprep.subr.mxu0 0.0
  %1225 = vmatpush1.msra.mxu0 0.0
  %1226 = vmatprep.subr.mxu0 0.0
  %1227 = vmatpush1.msra.mxu0 0.0
  %1228 = vmatprep.subr.mxu0 0.0
  %1229 = vmatpush1.msra.mxu0 0.0
  %1230 = vmatprep.mubr.f32.mxu0 0.0
  %1231 = vmatmul.mubr.f32.gmra.mrb[0].mxu0 %v1164
  %v1232 = vpop.f32.mrb[0].mxu0
  %v1233 = vadd.f32 0.0, %v1232
  %v1234 = vpop.f32.mrb[0].mxu0
  %1235 = vdwg.mxu0
  %1236 = vrot.lane.b32.xlu0 %v123, 112
  %v1237 = vpop.permute.xlu0 %1236
  %1238 = vrot.lane.b32.xlu0 %v223, 112
  %v1239 = vpop.permute.xlu0 %1238
  %v1240 = vsel %vm226, %v1237, 0
  %v1242 = vsel %vm226, %v1239, 0
  %1244 = vmatprep.subr.mxu0 0.0
  %1245 = vmatpush1.xpose.msra.mxu0 %v1242
  %1246 = vmatprep.subr.mxu0 0.0
  %1247 = vmatpush1.xpose.msra.mxu0 0.0
  %1248 = vmatprep.subr.mxu0 0.0
  %1249 = vmatpush1.xpose.msra.mxu0 0.0
  %1250 = vmatprep.subr.mxu0 0.0
  %1251 = vmatpush1.xpose.msra.mxu0 0.0
  %1252 = vmatprep.subr.mxu0 0.0
  %1253 = vmatpush1.xpose.msra.mxu0 0.0
  %1254 = vmatprep.subr.mxu0 0.0
  %1255 = vmatpush1.xpose.msra.mxu0 0.0
  %1256 = vmatprep.subr.mxu0 0.0
  %1257 = vmatpush1.xpose.msra.mxu0 0.0
  %1258 = vmatprep.subr.mxu0 0.0
  %1259 = vmatpush1.xpose.msra.mxu0 0.0
  %1260 = vmatprep.subr.mxu0 0.0
  %1261 = vmatpush1.xpose.msra.mxu0 0.0
  %1262 = vmatprep.subr.mxu0 0.0
  %1263 = vmatpush1.xpose.msra.mxu0 0.0
  %1264 = vmatprep.subr.mxu0 0.0
  %1265 = vmatpush1.xpose.msra.mxu0 0.0
  %1266 = vmatprep.subr.mxu0 0.0
  %1267 = vmatpush1.xpose.msra.mxu0 0.0
  %1268 = vmatprep.subr.mxu0 0.0
  %1269 = vmatpush1.xpose.msra.mxu0 0.0
  %1270 = vmatprep.subr.mxu0 0.0
  %1271 = vmatpush1.xpose.msra.mxu0 0.0
  %1272 = vmatprep.subr.mxu0 0.0
  %1273 = vmatpush1.xpose.msra.mxu0 0.0
  %1274 = vmatprep.subr.mxu0 0.0
  %1275 = vmatpush1.xpose.msra.mxu0 0.0
  %1276 = vmatprep.subr.mxu0 0.0
  %1277 = vmatpush1.xpose.msra.mxu0 0.0
  %1278 = vmatprep.subr.mxu0 0.0
  %1279 = vmatpush1.xpose.msra.mxu0 0.0
  %1280 = vmatprep.subr.mxu0 0.0
  %1281 = vmatpush1.xpose.msra.mxu0 0.0
  %1282 = vmatprep.subr.mxu0 0.0
  %1283 = vmatpush1.xpose.msra.mxu0 0.0
  %1284 = vmatprep.subr.mxu0 0.0
  %1285 = vmatpush1.xpose.msra.mxu0 0.0
  %1286 = vmatprep.subr.mxu0 0.0
  %1287 = vmatpush1.xpose.msra.mxu0 0.0
  %1288 = vmatprep.subr.mxu0 0.0
  %1289 = vmatpush1.xpose.msra.mxu0 0.0
  %1290 = vmatprep.subr.mxu0 0.0
  %1291 = vmatpush1.xpose.msra.mxu0 0.0
  %1292 = vmatprep.subr.mxu0 0.0
  %1293 = vmatpush1.xpose.msra.mxu0 0.0
  %1294 = vmatprep.subr.mxu0 0.0
  %1295 = vmatpush1.xpose.msra.mxu0 0.0
  %1296 = vmatprep.subr.mxu0 0.0
  %1297 = vmatpush1.xpose.msra.mxu0 0.0
  %1298 = vmatprep.subr.mxu0 0.0
  %1299 = vmatpush1.xpose.msra.mxu0 0.0
  %1300 = vmatprep.subr.mxu0 0.0
  %1301 = vmatpush1.xpose.msra.mxu0 0.0
  %1302 = vmatprep.subr.mxu0 0.0
  %1303 = vmatpush1.xpose.msra.mxu0 0.0
  %1304 = vmatprep.subr.mxu0 0.0
  %1305 = vmatpush1.xpose.msra.mxu0 0.0
  %1306 = vmatprep.subr.mxu0 0.0
  %1307 = vmatpush1.xpose.msra.mxu0 0.0
  %1308 = vmatprep.mubr.f32.mxu0 0.0
  %1309 = vmatmul.mubr.f32.gmra.mrb[0].mxu0 %v1240
  %v1310 = vpop.f32.mrb[0].mxu0
  %v1311 = vadd.f32 0.0, %v1310
  %v1312 = vpop.f32.mrb[0].mxu0
  %1313 = vdwg.mxu0
  %v1314 = vmul.f32 %v1311, 0.35355338
  %v1315 = vsel %vm226, %v1314, -inf
  %1316 = vmax.xlane.f32.xlu0 %v1315
  %v1317 = vpop.xlane.xlu0 %1316
  %v1318 = vsub.f32 %v1314, %v1317
  %v1319 = vmul.f32 %v1318, 1.442695
  %v1320 = vpow.pop %v1319
  %v1321 = vsel %vm226, %v1320, 0.0
  %1322 = vadd.xlane.f32.xlu0 %v1321
  %v1323 = vpop.xlane.xlu0 %1322
  %v1324 = vrcp.pop %v1323
  %v1325 = vmul.f32 %v1320, %v1324
  %1326 = vrot.lane.b32.xlu0 %v223, 80
  %v1327 = vpop.permute.xlu0 %1326
  %v1330 = vsel %vm226, %v1325, 0
  %1332 = vmatprep.subr.mxu0 0.0
  %1333 = vmatpush1.msra.mxu0 %v1327
  %1334 = vmatprep.subr.mxu0 0.0
  %1335 = vmatpush1.msra.mxu0 0.0
  %1336 = vmatprep.subr.mxu0 0.0
  %1337 = vmatpush1.msra.mxu0 0.0
  %1338 = vmatprep.subr.mxu0 0.0
  %1339 = vmatpush1.msra.mxu0 0.0
  %1340 = vmatprep.subr.mxu0 0.0
  %1341 = vmatpush1.msra.mxu0 0.0
  %1342 = vmatprep.subr.mxu0 0.0
  %1343 = vmatpush1.msra.mxu0 0.0
  %1344 = vmatprep.subr.mxu0 0.0
  %1345 = vmatpush1.msra.mxu0 0.0
  %1346 = vmatprep.subr.mxu0 0.0
  %1347 = vmatpush1.msra.mxu0 0.0
  %1348 = vmatprep.subr.mxu0 0.0
  %1349 = vmatpush1.msra.mxu0 0.0
  %1350 = vmatprep.subr.mxu0 0.0
  %1351 = vmatpush1.msra.mxu0 0.0
  %1352 = vmatprep.subr.mxu0 0.0
  %1353 = vmatpush1.msra.mxu0 0.0
  %1354 = vmatprep.subr.mxu0 0.0
  %1355 = vmatpush1.msra.mxu0 0.0
  %1356 = vmatprep.subr.mxu0 0.0
  %1357 = vmatpush1.msra.mxu0 0.0
  %1358 = vmatprep.subr.mxu0 0.0
  %1359 = vmatpush1.msra.mxu0 0.0
  %1360 = vmatprep.subr.mxu0 0.0
  %1361 = vmatpush1.msra.mxu0 0.0
  %1362 = vmatprep.subr.mxu0 0.0
  %1363 = vmatpush1.msra.mxu0 0.0
  %1364 = vmatprep.subr.mxu0 0.0
  %1365 = vmatpush1.msra.mxu0 0.0
  %1366 = vmatprep.subr.mxu0 0.0
  %1367 = vmatpush1.msra.mxu0 0.0
  %1368 = vmatprep.subr.mxu0 0.0
  %1369 = vmatpush1.msra.mxu0 0.0
  %1370 = vmatprep.subr.mxu0 0.0
  %1371 = vmatpush1.msra.mxu0 0.0
  %1372 = vmatprep.subr.mxu0 0.0
  %1373 = vmatpush1.msra.mxu0 0.0
  %1374 = vmatprep.subr.mxu0 0.0
  %1375 = vmatpush1.msra.mxu0 0.0
  %1376 = vmatprep.subr.mxu0 0.0
  %1377 = vmatpush1.msra.mxu0 0.0
  %1378 = vmatprep.subr.mxu0 0.0
  %1379 = vmatpush1.msra.mxu0 0.0
  %1380 = vmatprep.subr.mxu0 0.0
  %1381 = vmatpush1.msra.mxu0 0.0
  %1382 = vmatprep.subr.mxu0 0.0
  %1383 = vmatpush1.msra.mxu0 0.0
  %1384 = vmatprep.subr.mxu0 0.0
  %1385 = vmatpush1.msra.mxu0 0.0
  %1386 = vmatprep.subr.mxu0 0.0
  %1387 = vmatpush1.msra.mxu0 0.0
  %1388 = vmatprep.subr.mxu0 0.0
  %1389 = vmatpush1.msra.mxu0 0.0
  %1390 = vmatprep.subr.mxu0 0.0
  %1391 = vmatpush1.msra.mxu0 0.0
  %1392 = vmatprep.subr.mxu0 0.0
  %1393 = vmatpush1.msra.mxu0 0.0
  %1394 = vmatprep.subr.mxu0 0.0
  %1395 = vmatpush1.msra.mxu0 0.0
  %1396 = vmatprep.mubr.f32.mxu0 0.0
  %1397 = vmatmul.mubr.f32.gmra.mrb[0].mxu0 %v1330
  %v1398 = vpop.f32.mrb[0].mxu0
  %v1399 = vadd.f32 0.0, %v1398
  %v1400 = vpop.f32.mrb[0].mxu0
  %1401 = vdwg.mxu0
  %1402 = vrot.lane.b32.xlu0 %v123, 104
  %v1403 = vpop.permute.xlu0 %1402
  %1404 = vrot.lane.b32.xlu0 %v223, 104
  %v1405 = vpop.permute.xlu0 %1404
  %v1406 = vsel %vm226, %v1403, 0
  %v1408 = vsel %vm226, %v1405, 0
  %1410 = vmatprep.subr.mxu0 0.0
  %1411 = vmatpush1.xpose.msra.mxu0 %v1408
  %1412 = vmatprep.subr.mxu0 0.0
  %1413 = vmatpush1.xpose.msra.mxu0 0.0
  %1414 = vmatprep.subr.mxu0 0.0
  %1415 = vmatpush1.xpose.msra.mxu0 0.0
  %1416 = vmatprep.subr.mxu0 0.0
  %1417 = vmatpush1.xpose.msra.mxu0 0.0
  %1418 = vmatprep.subr.mxu0 0.0
  %1419 = vmatpush1.xpose.msra.mxu0 0.0
  %1420 = vmatprep.subr.mxu0 0.0
  %1421 = vmatpush1.xpose.msra.mxu0 0.0
  %1422 = vmatprep.subr.mxu0 0.0
  %1423 = vmatpush1.xpose.msra.mxu0 0.0
  %1424 = vmatprep.subr.mxu0 0.0
  %1425 = vmatpush1.xpose.msra.mxu0 0.0
  %1426 = vmatprep.subr.mxu0 0.0
  %1427 = vmatpush1.xpose.msra.mxu0 0.0
  %1428 = vmatprep.subr.mxu0 0.0
  %1429 = vmatpush1.xpose.msra.mxu0 0.0
  %1430 = vmatprep.subr.mxu0 0.0
  %1431 = vmatpush1.xpose.msra.mxu0 0.0
  %1432 = vmatprep.subr.mxu0 0.0
  %1433 = vmatpush1.xpose.msra.mxu0 0.0
  %1434 = vmatprep.subr.mxu0 0.0
  %1435 = vmatpush1.xpose.msra.mxu0 0.0
  %1436 = vmatprep.subr.mxu0 0.0
  %1437 = vmatpush1.xpose.msra.mxu0 0.0
  %1438 = vmatprep.subr.mxu0 0.0
  %1439 = vmatpush1.xpose.msra.mxu0 0.0
  %1440 = vmatprep.subr.mxu0 0.0
  %1441 = vmatpush1.xpose.msra.mxu0 0.0
  %1442 = vmatprep.subr.mxu0 0.0
  %1443 = vmatpush1.xpose.msra.mxu0 0.0
  %1444 = vmatprep.subr.mxu0 0.0
  %1445 = vmatpush1.xpose.msra.mxu0 0.0
  %1446 = vmatprep.subr.mxu0 0.0
  %1447 = vmatpush1.xpose.msra.mxu0 0.0
  %1448 = vmatprep.subr.mxu0 0.0
  %1449 = vmatpush1.xpose.msra.mxu0 0.0
  %1450 = vmatprep.subr.mxu0 0.0
  %1451 = vmatpush1.xpose.msra.mxu0 0.0
  %1452 = vmatprep.subr.mxu0 0.0
  %1453 = vmatpush1.xpose.msra.mxu0 0.0
  %1454 = vmatprep.subr.mxu0 0.0
  %1455 = vmatpush1.xpose.msra.mxu0 0.0
  %1456 = vmatprep.subr.mxu0 0.0
  %1457 = vmatpush1.xpose.msra.mxu0 0.0
  %1458 = vmatprep.subr.mxu0 0.0
  %1459 = vmatpush1.xpose.msra.mxu0 0.0
  %1460 = vmatprep.subr.mxu0 0.0
  %1461 = vmatpush1.xpose.msra.mxu0 0.0
  %1462 = vmatprep.subr.mxu0 0.0
  %1463 = vmatpush1.xpose.msra.mxu0 0.0
  %1464 = vmatprep.subr.mxu0 0.0
  %1465 = vmatpush1.xpose.msra.mxu0 0.0
  %1466 = vmatprep.subr.mxu0 0.0
  %1467 = vmatpush1.xpose.msra.mxu0 0.0
  %1468 = vmatprep.subr.mxu0 0.0
  %1469 = vmatpush1.xpose.msra.mxu0 0.0
  %1470 = vmatprep.subr.mxu0 0.0
  %1471 = vmatpush1.xpose.msra.mxu0 0.0
  %1472 = vmatprep.subr.mxu0 0.0
  %1473 = vmatpush1.xpose.msra.mxu0 0.0
  %1474 = vmatprep.mubr.f32.mxu0 0.0
  %1475 = vmatmul.mubr.f32.gmra.mrb[0].mxu0 %v1406
  %v1476 = vpop.f32.mrb[0].mxu0
  %v1477 = vadd.f32 0.0, %v1476
  %v1478 = vpop.f32.mrb[0].mxu0
  %1479 = vdwg.mxu0
  %v1480 = vmul.f32 %v1477, 0.35355338
  %v1481 = vsel %vm226, %v1480, -inf
  %1482 = vmax.xlane.f32.xlu0 %v1481
  %v1483 = vpop.xlane.xlu0 %1482
  %v1484 = vsub.f32 %v1480, %v1483
  %v1485 = vmul.f32 %v1484, 1.442695
  %v1486 = vpow.pop %v1485
  %v1487 = vsel %vm226, %v1486, 0.0
  %1488 = vadd.xlane.f32.xlu0 %v1487
  %v1489 = vpop.xlane.xlu0 %1488
  %v1490 = vrcp.pop %v1489
  %v1491 = vmul.f32 %v1486, %v1490
  %1492 = vrot.lane.b32.xlu0 %v223, 72
  %v1493 = vpop.permute.xlu0 %1492
  %v1496 = vsel %vm226, %v1491, 0
  %1498 = vmatprep.subr.mxu0 0.0
  %1499 = vmatpush1.msra.mxu0 %v1493
  %1500 = vmatprep.subr.mxu0 0.0
  %1501 = vmatpush1.msra.mxu0 0.0
  %1502 = vmatprep.subr.mxu0 0.0
  %1503 = vmatpush1.msra.mxu0 0.0
  %1504 = vmatprep.subr.mxu0 0.0
  %1505 = vmatpush1.msra.mxu0 0.0
  %1506 = vmatprep.subr.mxu0 0.0
  %1507 = vmatpush1.msra.mxu0 0.0
  %1508 = vmatprep.subr.mxu0 0.0
  %1509 = vmatpush1.msra.mxu0 0.0
  %1510 = vmatprep.subr.mxu0 0.0
  %1511 = vmatpush1.msra.mxu0 0.0
  %1512 = vmatprep.subr.mxu0 0.0
  %1513 = vmatpush1.msra.mxu0 0.0
  %1514 = vmatprep.subr.mxu0 0.0
  %1515 = vmatpush1.msra.mxu0 0.0
  %1516 = vmatprep.subr.mxu0 0.0
  %1517 = vmatpush1.msra.mxu0 0.0
  %1518 = vmatprep.subr.mxu0 0.0
  %1519 = vmatpush1.msra.mxu0 0.0
  %1520 = vmatprep.subr.mxu0 0.0
  %1521 = vmatpush1.msra.mxu0 0.0
  %1522 = vmatprep.subr.mxu0 0.0
  %1523 = vmatpush1.msra.mxu0 0.0
  %1524 = vmatprep.subr.mxu0 0.0
  %1525 = vmatpush1.msra.mxu0 0.0
  %1526 = vmatprep.subr.mxu0 0.0
  %1527 = vmatpush1.msra.mxu0 0.0
  %1528 = vmatprep.subr.mxu0 0.0
  %1529 = vmatpush1.msra.mxu0 0.0
  %1530 = vmatprep.subr.mxu0 0.0
  %1531 = vmatpush1.msra.mxu0 0.0
  %1532 = vmatprep.subr.mxu0 0.0
  %1533 = vmatpush1.msra.mxu0 0.0
  %1534 = vmatprep.subr.mxu0 0.0
  %1535 = vmatpush1.msra.mxu0 0.0
  %1536 = vmatprep.subr.mxu0 0.0
  %1537 = vmatpush1.msra.mxu0 0.0
  %1538 = vmatprep.subr.mxu0 0.0
  %1539 = vmatpush1.msra.mxu0 0.0
  %1540 = vmatprep.subr.mxu0 0.0
  %1541 = vmatpush1.msra.mxu0 0.0
  %1542 = vmatprep.subr.mxu0 0.0
  %1543 = vmatpush1.msra.mxu0 0.0
  %1544 = vmatprep.subr.mxu0 0.0
  %1545 = vmatpush1.msra.mxu0 0.0
  %1546 = vmatprep.subr.mxu0 0.0
  %1547 = vmatpush1.msra.mxu0 0.0
  %1548 = vmatprep.subr.mxu0 0.0
  %1549 = vmatpush1.msra.mxu0 0.0
  %1550 = vmatprep.subr.mxu0 0.0
  %1551 = vmatpush1.msra.mxu0 0.0
  %1552 = vmatprep.subr.mxu0 0.0
  %1553 = vmatpush1.msra.mxu0 0.0
  %1554 = vmatprep.subr.mxu0 0.0
  %1555 = vmatpush1.msra.mxu0 0.0
  %1556 = vmatprep.subr.mxu0 0.0
  %1557 = vmatpush1.msra.mxu0 0.0
  %1558 = vmatprep.subr.mxu0 0.0
  %1559 = vmatpush1.msra.mxu0 0.0
  %1560 = vmatprep.subr.mxu0 0.0
  %1561 = vmatpush1.msra.mxu0 0.0
  %1562 = vmatprep.mubr.f32.mxu0 0.0
  %1563 = vmatmul.mubr.f32.gmra.mrb[0].mxu0 %v1496
  %v1564 = vpop.f32.mrb[0].mxu0
  %v1565 = vadd.f32 0.0, %v1564
  %v1566 = vpop.f32.mrb[0].mxu0
  %1567 = vdwg.mxu0
  %1569 = vrot.lane.b32.xlu0 %v1233, 8
  %v1570 = vpop.permute.xlu0 %1569
  %1573 = vrot.lane.b32.xlu0 %v1399, 16
  %v1574 = vpop.permute.xlu0 %1573
  %1577 = vrot.lane.b32.xlu0 %v1565, 24
  %v1578 = vpop.permute.xlu0 %1577
  %v1580 = vsel %vm226, %v1067, %v1570
  %v1581 = vsel %vm902, %v1580, %v1574
  %v1582 = vsel %vm904, %v1581, %v1578
  %v1583 = vld [vmem:[%s4] sm:$0xff]
  %v1584 = vld [vmem:[%s4 + $0x8] sm:$0xff]
  %v1585 = vld [vmem:[%s4 + $0x10] sm:$0xff]
  %v1586 = vld [vmem:[%s4 + $0x18] sm:$0xff]
  %v1588 = vsel %vm44, %v905, 0
  %v1591 = vsel %vm44, %v1582, 0
  %1593 = vmatprep.subr.mxu0 0.0
  %1594 = vmatpush1.msra.mxu0 %v1583
  %1595 = vmatprep.subr.mxu0 0.0
  %1596 = vmatpush1.msra.mxu0 %v1584
  %1597 = vmatprep.subr.mxu0 0.0
  %1598 = vmatpush1.msra.mxu0 %v1585
  %1599 = vmatprep.subr.mxu0 0.0
  %1600 = vmatpush1.msra.mxu0 %v1586
  %1601 = vmatprep.subr.mxu0 0.0
  %1602 = vmatpush1.msra.mxu0 0.0
  %1603 = vmatprep.subr.mxu0 0.0
  %1604 = vmatpush1.msra.mxu0 0.0
  %1605 = vmatprep.subr.mxu0 0.0
  %1606 = vmatpush1.msra.mxu0 0.0
  %1607 = vmatprep.subr.mxu0 0.0
  %1608 = vmatpush1.msra.mxu0 0.0
  %1609 = vmatprep.subr.mxu0 0.0
  %1610 = vmatpush1.msra.mxu0 0.0
  %1611 = vmatprep.subr.mxu0 0.0
  %1612 = vmatpush1.msra.mxu0 0.0
  %1613 = vmatprep.subr.mxu0 0.0
  %1614 = vmatpush1.msra.mxu0 0.0
  %1615 = vmatprep.subr.mxu0 0.0
  %1616 = vmatpush1.msra.mxu0 0.0
  %1617 = vmatprep.subr.mxu0 0.0
  %1618 = vmatpush1.msra.mxu0 0.0
  %1619 = vmatprep.subr.mxu0 0.0
  %1620 = vmatpush1.msra.mxu0 0.0
  %1621 = vmatprep.subr.mxu0 0.0
  %1622 = vmatpush1.msra.mxu0 0.0
  %1623 = vmatprep.subr.mxu0 0.0
  %1624 = vmatpush1.msra.mxu0 0.0
  %1625 = vmatprep.subr.mxu0 0.0
  %1626 = vmatpush1.msra.mxu0 0.0
  %1627 = vmatprep.subr.mxu0 0.0
  %1628 = vmatpush1.msra.mxu0 0.0
  %1629 = vmatprep.subr.mxu0 0.0
  %1630 = vmatpush1.msra.mxu0 0.0
  %1631 = vmatprep.subr.mxu0 0.0
  %1632 = vmatpush1.msra.mxu0 0.0
  %1633 = vmatprep.subr.mxu0 0.0
  %1634 = vmatpush1.msra.mxu0 0.0
  %1635 = vmatprep.subr.mxu0 0.0
  %1636 = vmatpush1.msra.mxu0 0.0
  %1637 = vmatprep.subr.mxu0 0.0
  %1638 = vmatpush1.msra.mxu0 0.0
  %1639 = vmatprep.subr.mxu0 0.0
  %1640 = vmatpush1.msra.mxu0 0.0
  %1641 = vmatprep.subr.mxu0 0.0
  %1642 = vmatpush1.msra.mxu0 0.0
  %1643 = vmatprep.subr.mxu0 0.0
  %1644 = vmatpush1.msra.mxu0 0.0
  %1645 = vmatprep.subr.mxu0 0.0
  %1646 = vmatpush1.msra.mxu0 0.0
  %1647 = vmatprep.subr.mxu0 0.0
  %1648 = vmatpush1.msra.mxu0 0.0
  %1649 = vmatprep.subr.mxu0 0.0
  %1650 = vmatpush1.msra.mxu0 0.0
  %1651 = vmatprep.subr.mxu0 0.0
  %1652 = vmatpush1.msra.mxu0 0.0
  %1653 = vmatprep.subr.mxu0 0.0
  %1654 = vmatpush1.msra.mxu0 0.0
  %1655 = vmatprep.subr.mxu0 0.0
  %1656 = vmatpush1.msra.mxu0 0.0
  %1657 = vmatprep.mubr.f32.mxu0 0.0
  %1658 = vmatmul.mubr.f32.gmra.mrb[0].mxu0 %v1588
  %v1659 = vpop.f32.mrb[0].mxu0
  %v1660 = vadd.f32 0.0, %v1659
  %v1661 = vpop.f32.mrb[0].mxu0
  %1662 = vmatprep.mubr.f32.mxu0 0.0
  %1663 = vmatmul.mubr.f32.gmra.mrb[0].mxu0 %v1591
  %v1664 = vpop.f32.mrb[0].mxu0
  %v1665 = vadd.f32 0.0, %v1664
  %v1666 = vpop.f32.mrb[0].mxu0
  %1667 = vdwg.mxu0
  %v1668 = vadd.f32 %v29, %v1660
  %v1669 = vadd.f32 %v30, %v1665
  %v1670 = vld [vmem:[%s5] sm:$0x1]
  %v1672 = vlaneseq
  %v1673 = vshrl.u32 %v1672, 7
  %v1674 = vsub.s32 0, %v1673
  %v1675 = vrot.slane %v1670, %v1674
  %v1677 = vadd.f32 %v1668, %v1675
  %v1678 = vadd.f32 %v1669, %v1675
  %v1679 = vsel %vm44, %v1677, 0.0
  %1680 = vadd.xlane.f32.xlu0 %v1679
  %v1681 = vpop.xlane.xlu0 %1680
  %v1682 = vsel %vm44, %v1678, 0.0
  %1683 = vadd.xlane.f32.xlu0 %v1682
  %v1684 = vpop.xlane.xlu0 %1683
  %v1685 = vrcp.pop 32.0
  %v1686 = vmul.f32 %v1681, %v1685
  %v1687 = vmul.f32 %v1684, %v1685
  %v1688 = vsub.f32 %v1677, %v1686
  %v1689 = vsub.f32 %v1678, %v1687
  %v1690 = vmul.f32 %v1688, %v1688
  %v1691 = vmul.f32 %v1689, %v1689
  %v1692 = vsel %vm44, %v1690, 0.0
  %1693 = vadd.xlane.f32.xlu0 %v1692
  %v1694 = vpop.xlane.xlu0 %1693
  %v1695 = vsel %vm44, %v1691, 0.0
  %1696 = vadd.xlane.f32.xlu0 %v1695
  %v1697 = vpop.xlane.xlu0 %1696
  %v1698 = vmul.f32 %v1694, %v1685
  %v1699 = vmul.f32 %v1697, %v1685
  %v1700 = vadd.f32 %v1698, 1e-05
  %v1701 = vadd.f32 %v1699, 1e-05
  %v1702 = vrsqrt.pop %v1700
  %v1703 = vrsqrt.pop %v1701
  %v1704 = vmul.f32 %v1688, %v1702
  %v1705 = vmul.f32 %v1689, %v1703
  %v1706 = vld [vmem:[%s6] sm:$0x1]
  %v1708 = vlaneseq
  %v1709 = vshrl.u32 %v1708, 7
  %v1710 = vsub.s32 0, %v1709
  %v1711 = vrot.slane %v1706, %v1710
  %v1713 = vmul.f32 %v1704, %v1711
  %v1714 = vmul.f32 %v1705, %v1711
  %v1715 = vld [vmem:[%s7] sm:$0x1]
  %v1717 = vlaneseq
  %v1718 = vshrl.u32 %v1717, 7
  %v1719 = vsub.s32 0, %v1718
  %v1720 = vrot.slane %v1715, %v1719
  %v1722 = vadd.f32 %v1713, %v1720
  %v1723 = vadd.f32 %v1714, %v1720
  %1724 = vst.msk [vmem:[%s8] sm:$0xff] %vm44, %v1722
  %1725 = vst.msk [vmem:[%s8 + $0x8] sm:$0xff] %vm44, %v1723
  // Predicated region
  $region34: #{gru_transformer_forward.14} parent=0 // pred_check
    _
  $region35: #{gru_transformer_forward.14} parent=0 // pred_check_branch
    %1727 = sbr.rel (0) target = $region37
  $region36: #{gru_transformer_forward.14} parent=0 // pred_region
    _
  $region37: #{gru_transformer_forward.14} parent=0 // pred_fallthru
    _
  // Predicated region
  $region38: #{gru_transformer_forward.14} parent=0 // pred_check
    _
  $region39: #{gru_transformer_forward.14} parent=0 // pred_check_branch
    %1729 = sbr.rel (0) target = $region41
  $region40: #{gru_transformer_forward.14} parent=0 // pred_region
    _
  $region41: #{gru_transformer_forward.14} parent=0 // pred_fallthru
    _

// kernel: gru_transformer_forward.25
$region0: #{gru_transformer_forward.25}
  #allocation0 [shape = 'u32[]', space=smem, size = 0x4, offset = 0x4, fixed_abs, tag = 'smem constant byte address 0x4 - core index']
  #allocation1 [shape = 'u32[144,128]{1,0:T(1,128)}', space=vmem, size = 0x12000, scoped, tag = 'internal scratch']
  %s0 = inlined_call_operand.vmem [shape: f32[16,32], index: 0, kind: input, shape index: {}]
  %s1 = inlined_call_operand.vmem [shape: f32[1,32], index: 1, kind: input, shape index: {}]
  %s2 = inlined_call_operand.vmem [shape: f32[1,32], index: 2, kind: input, shape index: {}]
  %s3 = inlined_call_operand.vmem [shape: f32[32,4], index: 3, kind: input, shape index: {}]
  %s4 = inlined_call_operand.vmem [shape: f32[1,4], index: 4, kind: input, shape index: {}]
  %s5 = inlined_call_operand.hbm [shape: f32[2,4], index: 5, kind: output, shape index: {}]
  %s6 = sld [smem:[#allocation0]]
  $region30: #{gru_transformer_forward.25} parent=0
    _
  %s8 = ssub.s32 1, %s6
  %s9 = scalar_select 0, %s8, %s6
  $region1: #{gru_transformer_forward.25} parent=0
    #allocation2 [shape = 'u8[1024]{0}', space=vmem, size = 0x400, scoped, tag = 'output window, operand 0, single buffered']
    #allocation3 [shape = 's32[1]{0}', space=sflag, size = 0x4, scoped, tag = 'scoped memory for gru_transformer_forward.25']
    %10 = vsyncpa [#allocation3], 0
    // Predicated region
    $region2: #{gru_transformer_forward.25} parent=1 // pred_check
      _
    $region3: #{gru_transformer_forward.25} parent=1 // pred_check_branch
      %12 = sbr.rel (0) target = $region5
    $region4: #{gru_transformer_forward.25} parent=1 // pred_region
      _
    $region5: #{gru_transformer_forward.25} parent=1 // pred_fallthru
      _
    // Predicated region
    $region6: #{gru_transformer_forward.25} parent=1 // pred_check
      _
    $region7: #{gru_transformer_forward.25} parent=1 // pred_check_branch
      %14 = sbr.rel (0) target = $region9
    $region8: #{gru_transformer_forward.25} parent=1 // pred_region
      _
    $region9: #{gru_transformer_forward.25} parent=1 // pred_fallthru
      _
    // Predicated region
    $region10: #{gru_transformer_forward.25} parent=1 // pred_check
      _
    $region11: #{gru_transformer_forward.25} parent=1 // pred_check_branch
      %16 = sbr.rel (0) target = $region13
    $region12: #{gru_transformer_forward.25} parent=1 // pred_region
      _
    $region13: #{gru_transformer_forward.25} parent=1 // pred_fallthru
      _
    // Predicated region
    $region14: #{gru_transformer_forward.25} parent=1 // pred_check
      _
    $region15: #{gru_transformer_forward.25} parent=1 // pred_check_branch
      %18 = sbr.rel (0) target = $region17
    $region16: #{gru_transformer_forward.25} parent=1 // pred_region
      _
    $region17: #{gru_transformer_forward.25} parent=1 // pred_fallthru
      _
    // Predicated region
    $region18: #{gru_transformer_forward.25} parent=1 // pred_check
      _
    $region19: #{gru_transformer_forward.25} parent=1 // pred_check_branch
      %20 = sbr.rel (0) target = $region21
    $region20: #{gru_transformer_forward.25} parent=1 // pred_region
      _
    $region21: #{gru_transformer_forward.25} parent=1 // pred_fallthru
      _
    %v21 = vld [vmem:[%s0] sm:$0xff]
    %v22 = vld [vmem:[%s0 + $0x8] sm:$0xff]
    %v24 = vrot.slane %v21, 7
    %v27 = vrot.slane %v22, 6
    %vm29 = vcmask 1040384
    %v30 = vsel %vm29, %v24, %v27
    %vm31 = vcmask 254976
    %v32 = vsel %vm31, %v30, 0.0
    %33 = vadd.xlane.f32.xlu0 %v32
    %v34 = vpop.xlane.xlu0 %33
    %v35 = vrcp.pop 32.0
    %v36 = vmul.f32 %v34, %v35
    %v37 = vsub.f32 %v30, %v36
    %v38 = vmul.f32 %v37, %v37
    %v39 = vsel %vm31, %v38, 0.0
    %40 = vadd.xlane.f32.xlu0 %v39
    %v41 = vpop.xlane.xlu0 %40
    %v42 = vmul.f32 %v41, %v35
    %v43 = vadd.f32 %v42, 1e-05
    %v44 = vrsqrt.pop %v43
    %v45 = vmul.f32 %v37, %v44
    %v46 = vld [vmem:[%s1] sm:$0x1]
    %v48 = vlaneseq
    %v49 = vshrl.u32 %v48, 7
    %v50 = vsub.s32 0, %v49
    %v51 = vrot.slane %v46, %v50
    %v53 = vmul.f32 %v45, %v51
    %v54 = vld [vmem:[%s2] sm:$0x1]
    %v56 = vlaneseq
    %v57 = vshrl.u32 %v56, 7
    %v58 = vsub.s32 0, %v57
    %v59 = vrot.slane %v54, %v58
    %v61 = vadd.f32 %v53, %v59
    %v62 = vld [vmem:[%s3] sm:$0xff]
    %v63 = vld [vmem:[%s3 + $0x8] sm:$0xff]
    %v64 = vld [vmem:[%s3 + $0x10] sm:$0xff]
    %v65 = vld [vmem:[%s3 + $0x18] sm:$0xff]
    %v66 = vld [vmem:[%s4] sm:$0x1]
    %v68 = vlaneseq
    %v69 = vshrl.u32 %v68, 7
    %v70 = vsub.s32 0, %v69
    %v71 = vrot.slane %v66, %v70
    %vm73 = vcmask 261120
    %v75 = vsel %vm73, %v61, 0
    %77 = vmatprep.subr.mxu0 0.0
    %78 = vmatpush1.msra.mxu0 %v62
    %79 = vmatprep.subr.mxu0 0.0
    %80 = vmatpush1.msra.mxu0 %v63
    %81 = vmatprep.subr.mxu0 0.0
    %82 = vmatpush1.msra.mxu0 %v64
    %83 = vmatprep.subr.mxu0 0.0
    %84 = vmatpush1.msra.mxu0 %v65
    %85 = vmatprep.subr.mxu0 0.0
    %86 = vmatpush1.msra.mxu0 0.0
    %87 = vmatprep.subr.mxu0 0.0
    %88 = vmatpush1.msra.mxu0 0.0
    %89 = vmatprep.subr.mxu0 0.0
    %90 = vmatpush1.msra.mxu0 0.0
    %91 = vmatprep.subr.mxu0 0.0
    %92 = vmatpush1.msra.mxu0 0.0
    %93 = vmatprep.subr.mxu0 0.0
    %94 = vmatpush1.msra.mxu0 0.0
    %95 = vmatprep.subr.mxu0 0.0
    %96 = vmatpush1.msra.mxu0 0.0
    %97 = vmatprep.subr.mxu0 0.0
    %98 = vmatpush1.msra.mxu0 0.0
    %99 = vmatprep.subr.mxu0 0.0
    %100 = vmatpush1.msra.mxu0 0.0
    %101 = vmatprep.subr.mxu0 0.0
    %102 = vmatpush1.msra.mxu0 0.0
    %103 = vmatprep.subr.mxu0 0.0
    %104 = vmatpush1.msra.mxu0 0.0
    %105 = vmatprep.subr.mxu0 0.0
    %106 = vmatpush1.msra.mxu0 0.0
    %107 = vmatprep.subr.mxu0 0.0
    %108 = vmatpush1.msra.mxu0 0.0
    %109 = vmatprep.subr.mxu0 0.0
    %110 = vmatpush1.msra.mxu0 0.0
    %111 = vmatprep.subr.mxu0 0.0
    %112 = vmatpush1.msra.mxu0 0.0
    %113 = vmatprep.subr.mxu0 0.0
    %114 = vmatpush1.msra.mxu0 0.0
    %115 = vmatprep.subr.mxu0 0.0
    %116 = vmatpush1.msra.mxu0 0.0
    %117 = vmatprep.subr.mxu0 0.0
    %118 = vmatpush1.msra.mxu0 0.0
    %119 = vmatprep.subr.mxu0 0.0
    %120 = vmatpush1.msra.mxu0 0.0
    %121 = vmatprep.subr.mxu0 0.0
    %122 = vmatpush1.msra.mxu0 0.0
    %123 = vmatprep.subr.mxu0 0.0
    %124 = vmatpush1.msra.mxu0 0.0
    %125 = vmatprep.subr.mxu0 0.0
    %126 = vmatpush1.msra.mxu0 0.0
    %127 = vmatprep.subr.mxu0 0.0
    %128 = vmatpush1.msra.mxu0 0.0
    %129 = vmatprep.subr.mxu0 0.0
    %130 = vmatpush1.msra.mxu0 0.0
    %131 = vmatprep.subr.mxu0 0.0
    %132 = vmatpush1.msra.mxu0 0.0
    %133 = vmatprep.subr.mxu0 0.0
    %134 = vmatpush1.msra.mxu0 0.0
    %135 = vmatprep.subr.mxu0 0.0
    %136 = vmatpush1.msra.mxu0 0.0
    %137 = vmatprep.subr.mxu0 0.0
    %138 = vmatpush1.msra.mxu0 0.0
    %139 = vmatprep.subr.mxu0 0.0
    %140 = vmatpush1.msra.mxu0 0.0
    %141 = vmatprep.mubr.f32.mxu0 0.0
    %142 = vmatmul.mubr.f32.gmra.mrb[0].mxu0 %v75
    %v143 = vpop.f32.mrb[0].mxu0
    %v144 = vadd.f32 %v71, %v143
    %v145 = vpop.f32.mrb[0].mxu0
    %146 = vdwg.mxu0
    %vm147 = vcmask 25600
    %148 = vst.msk [vmem:[#allocation2] sm:$0x3] %vm147, %v144
    // Predicated region
    $region22: #{gru_transformer_forward.25} parent=1 // pred_check
      _
    $region23: #{gru_transformer_forward.25} parent=1 // pred_check_branch
      %150 = sbr.rel (0) target = $region25
    $region24: #{gru_transformer_forward.25} parent=1 // pred_region
      %s152 = ssub.s32 32, 32
      %153 = vsyncadd [#allocation3], %s152
      %s155 = sshll.u32 [#allocation2], 4
      %s156 = int_to_ptr.vmem [resolvable:$true] %s155
      %158 = dma.vmem_to_hbm [thread:$0]  %s156, 32, %s5, [#allocation3]
    $region25: #{gru_transformer_forward.25} parent=1 // pred_fallthru
      _
    // Predicated region
    $region26: #{gru_transformer_forward.25} parent=1 // pred_check
      _
    $region27: #{gru_transformer_forward.25} parent=1 // pred_check_branch
      %160 = sbr.rel (0) target = $region29
    $region28: #{gru_transformer_forward.25} parent=1 // pred_region
      %161 = dma.done [#allocation3], 32
    $region29: #{gru_transformer_forward.25} parent=1 // pred_fallthru
      _
    %162 = vsyncpa [#allocation3], 1

// kernel: gru_transformer_forward.13
$region0: #{gru_transformer_forward.13}
  #allocation0 [shape = 'u32[]', space=smem, size = 0x4, offset = 0x4, fixed_abs, tag = 'smem constant byte address 0x4 - core index']
  #allocation1 [shape = 'u32[144,128]{1,0:T(1,128)}', space=vmem, size = 0x12000, scoped, tag = 'internal scratch']
  %s0 = inlined_call_operand.vmem [shape: f32[2,8,8], index: 0, kind: input, shape index: {}]
  %s1 = inlined_call_operand.vmem [shape: f32[8,96], index: 1, kind: input, shape index: {}]
  %s2 = inlined_call_operand.vmem [shape: f32[32,96], index: 2, kind: input, shape index: {}]
  %s3 = inlined_call_operand.vmem [shape: f32[1,96], index: 3, kind: input, shape index: {}]
  %s4 = inlined_call_operand.vmem [shape: f32[1,96], index: 4, kind: input, shape index: {}]
  %s5 = inlined_call_operand.vmem [shape: f32[32,96], index: 5, kind: input, shape index: {}]
  %s6 = inlined_call_operand.vmem [shape: f32[32,96], index: 6, kind: input, shape index: {}]
  %s7 = inlined_call_operand.vmem [shape: f32[1,96], index: 7, kind: input, shape index: {}]
  %s8 = inlined_call_operand.vmem [shape: f32[1,96], index: 8, kind: input, shape index: {}]
  %s9 = inlined_call_operand.vmem [shape: f32[16,32], index: 9, kind: output, shape index: {}]
  %s10 = sld [smem:[#allocation0]]
  $region46: #{gru_transformer_forward.13} parent=0
    _
  %s12 = ssub.s32 1, %s10
  %s13 = scalar_select 0, %s12, %s10
  // Predicated region
  $region2: #{gru_transformer_forward.13} parent=0 // pred_check
    _
  $region3: #{gru_transformer_forward.13} parent=0 // pred_check_branch
    %15 = sbr.rel (0) target = $region5
  $region4: #{gru_transformer_forward.13} parent=0 // pred_region
    _
  $region5: #{gru_transformer_forward.13} parent=0 // pred_fallthru
    _
  // Predicated region
  $region6: #{gru_transformer_forward.13} parent=0 // pred_check
    _
  $region7: #{gru_transformer_forward.13} parent=0 // pred_check_branch
    %17 = sbr.rel (0) target = $region9
  $region8: #{gru_transformer_forward.13} parent=0 // pred_region
    _
  $region9: #{gru_transformer_forward.13} parent=0 // pred_fallthru
    _
  // Predicated region
  $region10: #{gru_transformer_forward.13} parent=0 // pred_check
    _
  $region11: #{gru_transformer_forward.13} parent=0 // pred_check_branch
    %19 = sbr.rel (0) target = $region13
  $region12: #{gru_transformer_forward.13} parent=0 // pred_region
    _
  $region13: #{gru_transformer_forward.13} parent=0 // pred_fallthru
    _
  // Predicated region
  $region14: #{gru_transformer_forward.13} parent=0 // pred_check
    _
  $region15: #{gru_transformer_forward.13} parent=0 // pred_check_branch
    %21 = sbr.rel (0) target = $region17
  $region16: #{gru_transformer_forward.13} parent=0 // pred_region
    _
  $region17: #{gru_transformer_forward.13} parent=0 // pred_fallthru
    _
  // Predicated region
  $region18: #{gru_transformer_forward.13} parent=0 // pred_check
    _
  $region19: #{gru_transformer_forward.13} parent=0 // pred_check_branch
    %23 = sbr.rel (0) target = $region21
  $region20: #{gru_transformer_forward.13} parent=0 // pred_region
    _
  $region21: #{gru_transformer_forward.13} parent=0 // pred_fallthru
    _
  // Predicated region
  $region22: #{gru_transformer_forward.13} parent=0 // pred_check
    _
  $region23: #{gru_transformer_forward.13} parent=0 // pred_check_branch
    %25 = sbr.rel (0) target = $region25
  $region24: #{gru_transformer_forward.13} parent=0 // pred_region
    _
  $region25: #{gru_transformer_forward.13} parent=0 // pred_fallthru
    _
  // Predicated region
  $region26: #{gru_transformer_forward.13} parent=0 // pred_check
    _
  $region27: #{gru_transformer_forward.13} parent=0 // pred_check_branch
    %27 = sbr.rel (0) target = $region29
  $region28: #{gru_transformer_forward.13} parent=0 // pred_region
    _
  $region29: #{gru_transformer_forward.13} parent=0 // pred_fallthru
    _
  // Predicated region
  $region30: #{gru_transformer_forward.13} parent=0 // pred_check
    _
  $region31: #{gru_transformer_forward.13} parent=0 // pred_check_branch
    %29 = sbr.rel (0) target = $region33
  $region32: #{gru_transformer_forward.13} parent=0 // pred_region
    _
  $region33: #{gru_transformer_forward.13} parent=0 // pred_fallthru
    _
  // Predicated region
  $region34: #{gru_transformer_forward.13} parent=0 // pred_check
    _
  $region35: #{gru_transformer_forward.13} parent=0 // pred_check_branch
    %31 = sbr.rel (0) target = $region37
  $region36: #{gru_transformer_forward.13} parent=0 // pred_region
    _
  $region37: #{gru_transformer_forward.13} parent=0 // pred_fallthru
    _
  %v32 = vld [vmem:[%s0] sm:$0xff]
  %v33 = vld [vmem:[%s0 + $0x8] sm:$0xff]
  %v34 = vld [vmem:[%s1] sm:$0xff]
  %v35 = vld [vmem:[%s3] sm:$0x1]
  %v37 = vlaneseq
  %v38 = vshrl.u32 %v37, 7
  %v39 = vsub.s32 0, %v38
  %v40 = vrot.slane %v35, %v39
  %vm42 = vcmask 64512
  %v44 = vsel %vm42, %v32, 0
  %v47 = vsel %vm42, %v33, 0
  %49 = vmatprep.subr.mxu0 0.0
  %50 = vmatpush1.msra.mxu0 %v34
  %51 = vmatprep.subr.mxu0 0.0
  %52 = vmatpush1.msra.mxu0 0.0
  %53 = vmatprep.subr.mxu0 0.0
  %54 = vmatpush1.msra.mxu0 0.0
  %55 = vmatprep.subr.mxu0 0.0
  %56 = vmatpush1.msra.mxu0 0.0
  %57 = vmatprep.subr.mxu0 0.0
  %58 = vmatpush1.msra.mxu0 0.0
  %59 = vmatprep.subr.mxu0 0.0
  %60 = vmatpush1.msra.mxu0 0.0
  %61 = vmatprep.subr.mxu0 0.0
  %62 = vmatpush1.msra.mxu0 0.0
  %63 = vmatprep.subr.mxu0 0.0
  %64 = vmatpush1.msra.mxu0 0.0
  %65 = vmatprep.subr.mxu0 0.0
  %66 = vmatpush1.msra.mxu0 0.0
  %67 = vmatprep.subr.mxu0 0.0
  %68 = vmatpush1.msra.mxu0 0.0
  %69 = vmatprep.subr.mxu0 0.0
  %70 = vmatpush1.msra.mxu0 0.0
  %71 = vmatprep.subr.mxu0 0.0
  %72 = vmatpush1.msra.mxu0 0.0
  %73 = vmatprep.subr.mxu0 0.0
  %74 = vmatpush1.msra.mxu0 0.0
  %75 = vmatprep.subr.mxu0 0.0
  %76 = vmatpush1.msra.mxu0 0.0
  %77 = vmatprep.subr.mxu0 0.0
  %78 = vmatpush1.msra.mxu0 0.0
  %79 = vmatprep.subr.mxu0 0.0
  %80 = vmatpush1.msra.mxu0 0.0
  %81 = vmatprep.subr.mxu0 0.0
  %82 = vmatpush1.msra.mxu0 0.0
  %83 = vmatprep.subr.mxu0 0.0
  %84 = vmatpush1.msra.mxu0 0.0
  %85 = vmatprep.subr.mxu0 0.0
  %86 = vmatpush1.msra.mxu0 0.0
  %87 = vmatprep.subr.mxu0 0.0
  %88 = vmatpush1.msra.mxu0 0.0
  %89 = vmatprep.subr.mxu0 0.0
  %90 = vmatpush1.msra.mxu0 0.0
  %91 = vmatprep.subr.mxu0 0.0
  %92 = vmatpush1.msra.mxu0 0.0
  %93 = vmatprep.subr.mxu0 0.0
  %94 = vmatpush1.msra.mxu0 0.0
  %95 = vmatprep.subr.mxu0 0.0
  %96 = vmatpush1.msra.mxu0 0.0
  %97 = vmatprep.subr.mxu0 0.0
  %98 = vmatpush1.msra.mxu0 0.0
  %99 = vmatprep.subr.mxu0 0.0
  %100 = vmatpush1.msra.mxu0 0.0
  %101 = vmatprep.subr.mxu0 0.0
  %102 = vmatpush1.msra.mxu0 0.0
  %103 = vmatprep.subr.mxu0 0.0
  %104 = vmatpush1.msra.mxu0 0.0
  %105 = vmatprep.subr.mxu0 0.0
  %106 = vmatpush1.msra.mxu0 0.0
  %107 = vmatprep.subr.mxu0 0.0
  %108 = vmatpush1.msra.mxu0 0.0
  %109 = vmatprep.subr.mxu0 0.0
  %110 = vmatpush1.msra.mxu0 0.0
  %111 = vmatprep.subr.mxu0 0.0
  %112 = vmatpush1.msra.mxu0 0.0
  %113 = vmatprep.mubr.f32.mxu0 0.0
  %114 = vmatmul.mubr.f32.gmra.mrb[0].mxu0 %v44
  %v115 = vpop.f32.mrb[0].mxu0
  %v116 = vadd.f32 %v40, %v115
  %v117 = vpop.f32.mrb[0].mxu0
  %118 = vmatprep.mubr.f32.mxu0 0.0
  %119 = vmatmul.mubr.f32.gmra.mrb[0].mxu0 %v47
  %v120 = vpop.f32.mrb[0].mxu0
  %v121 = vadd.f32 %v40, %v120
  %v122 = vpop.f32.mrb[0].mxu0
  %123 = vdwg.mxu0
  %v124 = vld [vmem:[%s2] sm:$0xff]
  %v125 = vld [vmem:[%s2 + $0x8] sm:$0xff]
  %v126 = vld [vmem:[%s2 + $0x10] sm:$0xff]
  %v127 = vld [vmem:[%s2 + $0x18] sm:$0xff]
  %v128 = vld [vmem:[%s4] sm:$0x1]
  %v130 = vlaneseq
  %v131 = vshrl.u32 %v130, 7
  %v132 = vsub.s32 0, %v131
  %v133 = vrot.slane %v128, %v132
  %vm135 = vcmask 261120
  %v137 = vsel %vm135, 0.0, 0
  %139 = vmatprep.subr.mxu0 0.0
  %140 = vmatpush1.msra.mxu0 %v124
  %141 = vmatprep.subr.mxu0 0.0
  %142 = vmatpush1.msra.mxu0 %v125
  %143 = vmatprep.subr.mxu0 0.0
  %144 = vmatpush1.msra.mxu0 %v126
  %145 = vmatprep.subr.mxu0 0.0
  %146 = vmatpush1.msra.mxu0 %v127
  %147 = vmatprep.subr.mxu0 0.0
  %148 = vmatpush1.msra.mxu0 0.0
  %149 = vmatprep.subr.mxu0 0.0
  %150 = vmatpush1.msra.mxu0 0.0
  %151 = vmatprep.subr.mxu0 0.0
  %152 = vmatpush1.msra.mxu0 0.0
  %153 = vmatprep.subr.mxu0 0.0
  %154 = vmatpush1.msra.mxu0 0.0
  %155 = vmatprep.subr.mxu0 0.0
  %156 = vmatpush1.msra.mxu0 0.0
  %157 = vmatprep.subr.mxu0 0.0
  %158 = vmatpush1.msra.mxu0 0.0
  %159 = vmatprep.subr.mxu0 0.0
  %160 = vmatpush1.msra.mxu0 0.0
  %161 = vmatprep.subr.mxu0 0.0
  %162 = vmatpush1.msra.mxu0 0.0
  %163 = vmatprep.subr.mxu0 0.0
  %164 = vmatpush1.msra.mxu0 0.0
  %165 = vmatprep.subr.mxu0 0.0
  %166 = vmatpush1.msra.mxu0 0.0
  %167 = vmatprep.subr.mxu0 0.0
  %168 = vmatpush1.msra.mxu0 0.0
  %169 = vmatprep.subr.mxu0 0.0
  %170 = vmatpush1.msra.mxu0 0.0
  %171 = vmatprep.subr.mxu0 0.0
  %172 = vmatpush1.msra.mxu0 0.0
  %173 = vmatprep.subr.mxu0 0.0
  %174 = vmatpush1.msra.mxu0 0.0
  %175 = vmatprep.subr.mxu0 0.0
  %176 = vmatpush1.msra.mxu0 0.0
  %177 = vmatprep.subr.mxu0 0.0
  %178 = vmatpush1.msra.mxu0 0.0
  %179 = vmatprep.subr.mxu0 0.0
  %180 = vmatpush1.msra.mxu0 0.0
  %181 = vmatprep.subr.mxu0 0.0
  %182 = vmatpush1.msra.mxu0 0.0
  %183 = vmatprep.subr.mxu0 0.0
  %184 = vmatpush1.msra.mxu0 0.0
  %185 = vmatprep.subr.mxu0 0.0
  %186 = vmatpush1.msra.mxu0 0.0
  %187 = vmatprep.subr.mxu0 0.0
  %188 = vmatpush1.msra.mxu0 0.0
  %189 = vmatprep.subr.mxu0 0.0
  %190 = vmatpush1.msra.mxu0 0.0
  %191 = vmatprep.subr.mxu0 0.0
  %192 = vmatpush1.msra.mxu0 0.0
  %193 = vmatprep.subr.mxu0 0.0
  %194 = vmatpush1.msra.mxu0 0.0
  %195 = vmatprep.subr.mxu0 0.0
  %196 = vmatpush1.msra.mxu0 0.0
  %197 = vmatprep.subr.mxu0 0.0
  %198 = vmatpush1.msra.mxu0 0.0
  %199 = vmatprep.subr.mxu0 0.0
  %200 = vmatpush1.msra.mxu0 0.0
  %201 = vmatprep.subr.mxu0 0.0
  %202 = vmatpush1.msra.mxu0 0.0
  %203 = vmatprep.mubr.f32.mxu0 0.0
  %204 = vmatmul.mubr.f32.gmra.mrb[0].mxu0 %v137
  %v205 = vpop.f32.mrb[0].mxu0
  %v206 = vadd.f32 %v133, %v205
  %v207 = vpop.f32.mrb[0].mxu0
  %208 = vdwg.mxu0
  %v210 = vrot.slane %v206, 1
  %v213 = vadd.f32 %v116, %v206
  %v214 = vadd.f32 %v121, %v210
  %v215 = vxor.u32 %v213, 2147483648
  %v216 = vxor.u32 %v214, 2147483648
  %v217 = vmul.f32 %v215, 1.442695
  %v218 = vpow.pop %v217
  %v219 = vmul.f32 %v216, 1.442695
  %v220 = vpow.pop %v219
  %v221 = vadd.f32 %v218, 1.0
  %v222 = vadd.f32 %v220, 1.0
  %v223 = vrcp.pop %v221
  %v224 = vmul.f32 1.0, %v223
  %v225 = vrcp.pop %v222
  %v226 = vmul.f32 1.0, %v225
  %227 = vrot.lane.b32.xlu0 %v206, 64
  %v228 = vpop.permute.xlu0 %227
  %229 = vrot.lane.b32.xlu0 %v210, 64
  %v230 = vpop.permute.xlu0 %229
  %v233 = vmul.f32 %v224, %v228
  %v234 = vmul.f32 %v226, %v230
  %237 = vrot.lane.b32.xlu0 %v233, 64
  %v238 = vpop.permute.xlu0 %237
  %239 = vrot.lane.b32.xlu0 %v234, 64
  %v240 = vpop.permute.xlu0 %239
  %v243 = vadd.f32 %v116, %v238
  %v244 = vadd.f32 %v121, %v240
  %v245 = vtanh.pop %v243
  %v246 = vtanh.pop %v244
  %v247 = vsub.f32 1.0, %v224
  %v248 = vsub.f32 1.0, %v226
  %251 = vrot.lane.b32.xlu0 %v245, 96
  %v252 = vpop.permute.xlu0 %251
  %253 = vrot.lane.b32.xlu0 %v246, 96
  %v254 = vpop.permute.xlu0 %253
  %v257 = vmul.f32 %v247, %v252
  %v258 = vmul.f32 %v248, %v254
  %v259 = vmul.f32 %v224, 0.0
  %v260 = vmul.f32 %v226, 0.0
  %v261 = vadd.f32 %v257, %v259
  %v262 = vadd.f32 %v258, %v260
  %v265 = vrot.slane %v262, 7
  %vm266 = vcmask 1041409
  %v267 = vsel %vm266, %v265, %v261
  %268 = vrot.lane.b32.xlu0 %v267, 96
  %v269 = vpop.permute.xlu0 %268
  %v270 = vsel %vm135, %v269, 0
  %272 = vmatprep.subr.mxu0 0.0
  %273 = vmatpush1.msra.mxu0 %v124
  %274 = vmatprep.subr.mxu0 0.0
  %275 = vmatpush1.msra.mxu0 %v125
  %276 = vmatprep.subr.mxu0 0.0
  %277 = vmatpush1.msra.mxu0 %v126
  %278 = vmatprep.subr.mxu0 0.0
  %279 = vmatpush1.msra.mxu0 %v127
  %280 = vmatprep.subr.mxu0 0.0
  %281 = vmatpush1.msra.mxu0 0.0
  %282 = vmatprep.subr.mxu0 0.0
  %283 = vmatpush1.msra.mxu0 0.0
  %284 = vmatprep.subr.mxu0 0.0
  %285 = vmatpush1.msra.mxu0 0.0
  %286 = vmatprep.subr.mxu0 0.0
  %287 = vmatpush1.msra.mxu0 0.0
  %288 = vmatprep.subr.mxu0 0.0
  %289 = vmatpush1.msra.mxu0 0.0
  %290 = vmatprep.subr.mxu0 0.0
  %291 = vmatpush1.msra.mxu0 0.0
  %292 = vmatprep.subr.mxu0 0.0
  %293 = vmatpush1.msra.mxu0 0.0
  %294 = vmatprep.subr.mxu0 0.0
  %295 = vmatpush1.msra.mxu0 0.0
  %296 = vmatprep.subr.mxu0 0.0
  %297 = vmatpush1.msra.mxu0 0.0
  %298 = vmatprep.subr.mxu0 0.0
  %299 = vmatpush1.msra.mxu0 0.0
  %300 = vmatprep.subr.mxu0 0.0
  %301 = vmatpush1.msra.mxu0 0.0
  %302 = vmatprep.subr.mxu0 0.0
  %303 = vmatpush1.msra.mxu0 0.0
  %304 = vmatprep.subr.mxu0 0.0
  %305 = vmatpush1.msra.mxu0 0.0
  %306 = vmatprep.subr.mxu0 0.0
  %307 = vmatpush1.msra.mxu0 0.0
  %308 = vmatprep.subr.mxu0 0.0
  %309 = vmatpush1.msra.mxu0 0.0
  %310 = vmatprep.subr.mxu0 0.0
  %311 = vmatpush1.msra.mxu0 0.0
  %312 = vmatprep.subr.mxu0 0.0
  %313 = vmatpush1.msra.mxu0 0.0
  %314 = vmatprep.subr.mxu0 0.0
  %315 = vmatpush1.msra.mxu0 0.0
  %316 = vmatprep.subr.mxu0 0.0
  %317 = vmatpush1.msra.mxu0 0.0
  %318 = vmatprep.subr.mxu0 0.0
  %319 = vmatpush1.msra.mxu0 0.0
  %320 = vmatprep.subr.mxu0 0.0
  %321 = vmatpush1.msra.mxu0 0.0
  %322 = vmatprep.subr.mxu0 0.0
  %323 = vmatpush1.msra.mxu0 0.0
  %324 = vmatprep.subr.mxu0 0.0
  %325 = vmatpush1.msra.mxu0 0.0
  %326 = vmatprep.subr.mxu0 0.0
  %327 = vmatpush1.msra.mxu0 0.0
  %328 = vmatprep.subr.mxu0 0.0
  %329 = vmatpush1.msra.mxu0 0.0
  %330 = vmatprep.subr.mxu0 0.0
  %331 = vmatpush1.msra.mxu0 0.0
  %332 = vmatprep.subr.mxu0 0.0
  %333 = vmatpush1.msra.mxu0 0.0
  %334 = vmatprep.subr.mxu0 0.0
  %335 = vmatpush1.msra.mxu0 0.0
  %336 = vmatprep.mubr.f32.mxu0 0.0
  %337 = vmatmul.mubr.f32.gmra.mrb[0].mxu0 %v270
  %v338 = vpop.f32.mrb[0].mxu0
  %v339 = vadd.f32 %v133, %v338
  %v340 = vpop.f32.mrb[0].mxu0
  %341 = vdwg.mxu0
  %v343 = vrot.slane %v339, 7
  %v346 = vadd.f32 %v116, %v343
  %v347 = vadd.f32 %v121, %v339
  %v348 = vxor.u32 %v346, 2147483648
  %v349 = vxor.u32 %v347, 2147483648
  %v350 = vmul.f32 %v348, 1.442695
  %v351 = vpow.pop %v350
  %v352 = vmul.f32 %v349, 1.442695
  %v353 = vpow.pop %v352
  %v354 = vadd.f32 %v351, 1.0
  %v355 = vadd.f32 %v353, 1.0
  %v356 = vrcp.pop %v354
  %v357 = vmul.f32 1.0, %v356
  %v358 = vrcp.pop %v355
  %v359 = vmul.f32 1.0, %v358
  %360 = vrot.lane.b32.xlu0 %v343, 64
  %v361 = vpop.permute.xlu0 %360
  %362 = vrot.lane.b32.xlu0 %v339, 64
  %v363 = vpop.permute.xlu0 %362
  %v366 = vmul.f32 %v357, %v361
  %v367 = vmul.f32 %v359, %v363
  %370 = vrot.lane.b32.xlu0 %v366, 64
  %v371 = vpop.permute.xlu0 %370
  %372 = vrot.lane.b32.xlu0 %v367, 64
  %v373 = vpop.permute.xlu0 %372
  %v376 = vadd.f32 %v116, %v371
  %v377 = vadd.f32 %v121, %v373
  %v378 = vtanh.pop %v376
  %v379 = vtanh.pop %v377
  %v380 = vsub.f32 1.0, %v357
  %v381 = vsub.f32 1.0, %v359
  %384 = vrot.lane.b32.xlu0 %v378, 96
  %v385 = vpop.permute.xlu0 %384
  %386 = vrot.lane.b32.xlu0 %v379, 96
  %v387 = vpop.permute.xlu0 %386
  %v390 = vmul.f32 %v380, %v385
  %v391 = vmul.f32 %v381, %v387
  %v392 = vrot.slane %v261, 7
  %v395 = vmul.f32 %v357, %v392
  %v396 = vmul.f32 %v359, %v265
  %v397 = vadd.f32 %v390, %v395
  %v398 = vadd.f32 %v391, %v396
  %v401 = vrot.slane %v397, 1
  %v402 = vsel %vm266, %v398, %v401
  %403 = vrot.lane.b32.xlu0 %v402, 96
  %v404 = vpop.permute.xlu0 %403
  %v405 = vsel %vm135, %v404, 0
  %407 = vmatprep.subr.mxu0 0.0
  %408 = vmatpush1.msra.mxu0 %v124
  %409 = vmatprep.subr.mxu0 0.0
  %410 = vmatpush1.msra.mxu0 %v125
  %411 = vmatprep.subr.mxu0 0.0
  %412 = vmatpush1.msra.mxu0 %v126
  %413 = vmatprep.subr.mxu0 0.0
  %414 = vmatpush1.msra.mxu0 %v127
  %415 = vmatprep.subr.mxu0 0.0
  %416 = vmatpush1.msra.mxu0 0.0
  %417 = vmatprep.subr.mxu0 0.0
  %418 = vmatpush1.msra.mxu0 0.0
  %419 = vmatprep.subr.mxu0 0.0
  %420 = vmatpush1.msra.mxu0 0.0
  %421 = vmatprep.subr.mxu0 0.0
  %422 = vmatpush1.msra.mxu0 0.0
  %423 = vmatprep.subr.mxu0 0.0
  %424 = vmatpush1.msra.mxu0 0.0
  %425 = vmatprep.subr.mxu0 0.0
  %426 = vmatpush1.msra.mxu0 0.0
  %427 = vmatprep.subr.mxu0 0.0
  %428 = vmatpush1.msra.mxu0 0.0
  %429 = vmatprep.subr.mxu0 0.0
  %430 = vmatpush1.msra.mxu0 0.0
  %431 = vmatprep.subr.mxu0 0.0
  %432 = vmatpush1.msra.mxu0 0.0
  %433 = vmatprep.subr.mxu0 0.0
  %434 = vmatpush1.msra.mxu0 0.0
  %435 = vmatprep.subr.mxu0 0.0
  %436 = vmatpush1.msra.mxu0 0.0
  %437 = vmatprep.subr.mxu0 0.0
  %438 = vmatpush1.msra.mxu0 0.0
  %439 = vmatprep.subr.mxu0 0.0
  %440 = vmatpush1.msra.mxu0 0.0
  %441 = vmatprep.subr.mxu0 0.0
  %442 = vmatpush1.msra.mxu0 0.0
  %443 = vmatprep.subr.mxu0 0.0
  %444 = vmatpush1.msra.mxu0 0.0
  %445 = vmatprep.subr.mxu0 0.0
  %446 = vmatpush1.msra.mxu0 0.0
  %447 = vmatprep.subr.mxu0 0.0
  %448 = vmatpush1.msra.mxu0 0.0
  %449 = vmatprep.subr.mxu0 0.0
  %450 = vmatpush1.msra.mxu0 0.0
  %451 = vmatprep.subr.mxu0 0.0
  %452 = vmatpush1.msra.mxu0 0.0
  %453 = vmatprep.subr.mxu0 0.0
  %454 = vmatpush1.msra.mxu0 0.0
  %455 = vmatprep.subr.mxu0 0.0
  %456 = vmatpush1.msra.mxu0 0.0
  %457 = vmatprep.subr.mxu0 0.0
  %458 = vmatpush1.msra.mxu0 0.0
  %459 = vmatprep.subr.mxu0 0.0
  %460 = vmatpush1.msra.mxu0 0.0
  %461 = vmatprep.subr.mxu0 0.0
  %462 = vmatpush1.msra.mxu0 0.0
  %463 = vmatprep.subr.mxu0 0.0
  %464 = vmatpush1.msra.mxu0 0.0
  %465 = vmatprep.subr.mxu0 0.0
  %466 = vmatpush1.msra.mxu0 0.0
  %467 = vmatprep.subr.mxu0 0.0
  %468 = vmatpush1.msra.mxu0 0.0
  %469 = vmatprep.subr.mxu0 0.0
  %470 = vmatpush1.msra.mxu0 0.0
  %471 = vmatprep.mubr.f32.mxu0 0.0
  %472 = vmatmul.mubr.f32.gmra.mrb[0].mxu0 %v405
  %v473 = vpop.f32.mrb[0].mxu0
  %v474 = vadd.f32 %v133, %v473
  %v475 = vpop.f32.mrb[0].mxu0
  %476 = vdwg.mxu0
  %v478 = vrot.slane %v474, 6
  %v479 = vrot.slane %v474, 7
  %v482 = vadd.f32 %v116, %v478
  %v483 = vadd.f32 %v121, %v479
  %v484 = vxor.u32 %v482, 2147483648
  %v485 = vxor.u32 %v483, 2147483648
  %v486 = vmul.f32 %v484, 1.442695
  %v487 = vpow.pop %v486
  %v488 = vmul.f32 %v485, 1.442695
  %v489 = vpow.pop %v488
  %v490 = vadd.f32 %v487, 1.0
  %v491 = vadd.f32 %v489, 1.0
  %v492 = vrcp.pop %v490
  %v493 = vmul.f32 1.0, %v492
  %v494 = vrcp.pop %v491
  %v495 = vmul.f32 1.0, %v494
  %496 = vrot.lane.b32.xlu0 %v478, 64
  %v497 = vpop.permute.xlu0 %496
  %498 = vrot.lane.b32.xlu0 %v479, 64
  %v499 = vpop.permute.xlu0 %498
  %v502 = vmul.f32 %v493, %v497
  %v503 = vmul.f32 %v495, %v499
  %506 = vrot.lane.b32.xlu0 %v502, 64
  %v507 = vpop.permute.xlu0 %506
  %508 = vrot.lane.b32.xlu0 %v503, 64
  %v509 = vpop.permute.xlu0 %508
  %v512 = vadd.f32 %v116, %v507
  %v513 = vadd.f32 %v121, %v509
  %v514 = vtanh.pop %v512
  %v515 = vtanh.pop %v513
  %v516 = vsub.f32 1.0, %v493
  %v517 = vsub.f32 1.0, %v495
  %520 = vrot.lane.b32.xlu0 %v514, 96
  %v521 = vpop.permute.xlu0 %520
  %522 = vrot.lane.b32.xlu0 %v515, 96
  %v523 = vpop.permute.xlu0 %522
  %v526 = vmul.f32 %v516, %v521
  %v527 = vmul.f32 %v517, %v523
  %v528 = vrot.slane %v397, 7
  %v529 = vrot.slane %v398, 7
  %v532 = vmul.f32 %v493, %v528
  %v533 = vmul.f32 %v495, %v529
  %v534 = vadd.f32 %v526, %v532
  %v535 = vadd.f32 %v527, %v533
  %v538 = vrot.slane %v534, 2
  %v539 = vrot.slane %v535, 1
  %v540 = vsel %vm266, %v539, %v538
  %541 = vrot.lane.b32.xlu0 %v540, 96
  %v542 = vpop.permute.xlu0 %541
  %v543 = vsel %vm135, %v542, 0
  %545 = vmatprep.subr.mxu0 0.0
  %546 = vmatpush1.msra.mxu0 %v124
  %547 = vmatprep.subr.mxu0 0.0
  %548 = vmatpush1.msra.mxu0 %v125
  %549 = vmatprep.subr.mxu0 0.0
  %550 = vmatpush1.msra.mxu0 %v126
  %551 = vmatprep.subr.mxu0 0.0
  %552 = vmatpush1.msra.mxu0 %v127
  %553 = vmatprep.subr.mxu0 0.0
  %554 = vmatpush1.msra.mxu0 0.0
  %555 = vmatprep.subr.mxu0 0.0
  %556 = vmatpush1.msra.mxu0 0.0
  %557 = vmatprep.subr.mxu0 0.0
  %558 = vmatpush1.msra.mxu0 0.0
  %559 = vmatprep.subr.mxu0 0.0
  %560 = vmatpush1.msra.mxu0 0.0
  %561 = vmatprep.subr.mxu0 0.0
  %562 = vmatpush1.msra.mxu0 0.0
  %563 = vmatprep.subr.mxu0 0.0
  %564 = vmatpush1.msra.mxu0 0.0
  %565 = vmatprep.subr.mxu0 0.0
  %566 = vmatpush1.msra.mxu0 0.0
  %567 = vmatprep.subr.mxu0 0.0
  %568 = vmatpush1.msra.mxu0 0.0
  %569 = vmatprep.subr.mxu0 0.0
  %570 = vmatpush1.msra.mxu0 0.0
  %571 = vmatprep.subr.mxu0 0.0
  %572 = vmatpush1.msra.mxu0 0.0
  %573 = vmatprep.subr.mxu0 0.0
  %574 = vmatpush1.msra.mxu0 0.0
  %575 = vmatprep.subr.mxu0 0.0
  %576 = vmatpush1.msra.mxu0 0.0
  %577 = vmatprep.subr.mxu0 0.0
  %578 = vmatpush1.msra.mxu0 0.0
  %579 = vmatprep.subr.mxu0 0.0
  %580 = vmatpush1.msra.mxu0 0.0
  %581 = vmatprep.subr.mxu0 0.0
  %582 = vmatpush1.msra.mxu0 0.0
  %583 = vmatprep.subr.mxu0 0.0
  %584 = vmatpush1.msra.mxu0 0.0
  %585 = vmatprep.subr.mxu0 0.0
  %586 = vmatpush1.msra.mxu0 0.0
  %587 = vmatprep.subr.mxu0 0.0
  %588 = vmatpush1.msra.mxu0 0.0
  %589 = vmatprep.subr.mxu0 0.0
  %590 = vmatpush1.msra.mxu0 0.0
  %591 = vmatprep.subr.mxu0 0.0
  %592 = vmatpush1.msra.mxu0 0.0
  %593 = vmatprep.subr.mxu0 0.0
  %594 = vmatpush1.msra.mxu0 0.0
  %595 = vmatprep.subr.mxu0 0.0
  %596 = vmatpush1.msra.mxu0 0.0
  %597 = vmatprep.subr.mxu0 0.0
  %598 = vmatpush1.msra.mxu0 0.0
  %599 = vmatprep.subr.mxu0 0.0
  %600 = vmatpush1.msra.mxu0 0.0
  %601 = vmatprep.subr.mxu0 0.0
  %602 = vmatpush1.msra.mxu0 0.0
  %603 = vmatprep.subr.mxu0 0.0
  %604 = vmatpush1.msra.mxu0 0.0
  %605 = vmatprep.subr.mxu0 0.0
  %606 = vmatpush1.msra.mxu0 0.0
  %607 = vmatprep.subr.mxu0 0.0
  %608 = vmatpush1.msra.mxu0 0.0
  %609 = vmatprep.mubr.f32.mxu0 0.0
  %610 = vmatmul.mubr.f32.gmra.mrb[0].mxu0 %v543
  %v611 = vpop.f32.mrb[0].mxu0
  %v612 = vadd.f32 %v133, %v611
  %v613 = vpop.f32.mrb[0].mxu0
  %614 = vdwg.mxu0
  %v616 = vrot.slane %v612, 5
  %v617 = vrot.slane %v612, 6
  %v620 = vadd.f32 %v116, %v616
  %v621 = vadd.f32 %v121, %v617
  %v622 = vxor.u32 %v620, 2147483648
  %v623 = vxor.u32 %v621, 2147483648
  %v624 = vmul.f32 %v622, 1.442695
  %v625 = vpow.pop %v624
  %v626 = vmul.f32 %v623, 1.442695
  %v627 = vpow.pop %v626
  %v628 = vadd.f32 %v625, 1.0
  %v629 = vadd.f32 %v627, 1.0
  %v630 = vrcp.pop %v628
  %v631 = vmul.f32 1.0, %v630
  %v632 = vrcp.pop %v629
  %v633 = vmul.f32 1.0, %v632
  %634 = vrot.lane.b32.xlu0 %v616, 64
  %v635 = vpop.permute.xlu0 %634
  %636 = vrot.lane.b32.xlu0 %v617, 64
  %v637 = vpop.permute.xlu0 %636
  %v640 = vmul.f32 %v631, %v635
  %v641 = vmul.f32 %v633, %v637
  %644 = vrot.lane.b32.xlu0 %v640, 64
  %v645 = vpop.permute.xlu0 %644
  %646 = vrot.lane.b32.xlu0 %v641, 64
  %v647 = vpop.permute.xlu0 %646
  %v650 = vadd.f32 %v116, %v645
  %v651 = vadd.f32 %v121, %v647
  %v652 = vtanh.pop %v650
  %v653 = vtanh.pop %v651
  %v654 = vsub.f32 1.0, %v631
  %v655 = vsub.f32 1.0, %v633
  %658 = vrot.lane.b32.xlu0 %v652, 96
  %v659 = vpop.permute.xlu0 %658
  %660 = vrot.lane.b32.xlu0 %v653, 96
  %v661 = vpop.permute.xlu0 %660
  %v664 = vmul.f32 %v654, %v659
  %v665 = vmul.f32 %v655, %v661
  %v666 = vrot.slane %v534, 7
  %v667 = vrot.slane %v535, 7
  %v670 = vmul.f32 %v631, %v666
  %v671 = vmul.f32 %v633, %v667
  %v672 = vadd.f32 %v664, %v670
  %v673 = vadd.f32 %v665, %v671
  %v676 = vrot.slane %v672, 3
  %v677 = vrot.slane %v673, 2
  %v678 = vsel %vm266, %v677, %v676
  %679 = vrot.lane.b32.xlu0 %v678, 96
  %v680 = vpop.permute.xlu0 %679
  %v681 = vsel %vm135, %v680, 0
  %683 = vmatprep.subr.mxu0 0.0
  %684 = vmatpush1.msra.mxu0 %v124
  %685 = vmatprep.subr.mxu0 0.0
  %686 = vmatpush1.msra.mxu0 %v125
  %687 = vmatprep.subr.mxu0 0.0
  %688 = vmatpush1.msra.mxu0 %v126
  %689 = vmatprep.subr.mxu0 0.0
  %690 = vmatpush1.msra.mxu0 %v127
  %691 = vmatprep.subr.mxu0 0.0
  %692 = vmatpush1.msra.mxu0 0.0
  %693 = vmatprep.subr.mxu0 0.0
  %694 = vmatpush1.msra.mxu0 0.0
  %695 = vmatprep.subr.mxu0 0.0
  %696 = vmatpush1.msra.mxu0 0.0
  %697 = vmatprep.subr.mxu0 0.0
  %698 = vmatpush1.msra.mxu0 0.0
  %699 = vmatprep.subr.mxu0 0.0
  %700 = vmatpush1.msra.mxu0 0.0
  %701 = vmatprep.subr.mxu0 0.0
  %702 = vmatpush1.msra.mxu0 0.0
  %703 = vmatprep.subr.mxu0 0.0
  %704 = vmatpush1.msra.mxu0 0.0
  %705 = vmatprep.subr.mxu0 0.0
  %706 = vmatpush1.msra.mxu0 0.0
  %707 = vmatprep.subr.mxu0 0.0
  %708 = vmatpush1.msra.mxu0 0.0
  %709 = vmatprep.subr.mxu0 0.0
  %710 = vmatpush1.msra.mxu0 0.0
  %711 = vmatprep.subr.mxu0 0.0
  %712 = vmatpush1.msra.mxu0 0.0
  %713 = vmatprep.subr.mxu0 0.0
  %714 = vmatpush1.msra.mxu0 0.0
  %715 = vmatprep.subr.mxu0 0.0
  %716 = vmatpush1.msra.mxu0 0.0
  %717 = vmatprep.subr.mxu0 0.0
  %718 = vmatpush1.msra.mxu0 0.0
  %719 = vmatprep.subr.mxu0 0.0
  %720 = vmatpush1.msra.mxu0 0.0
  %721 = vmatprep.subr.mxu0 0.0
  %722 = vmatpush1.msra.mxu0 0.0
  %723 = vmatprep.subr.mxu0 0.0
  %724 = vmatpush1.msra.mxu0 0.0
  %725 = vmatprep.subr.mxu0 0.0
  %726 = vmatpush1.msra.mxu0 0.0
  %727 = vmatprep.subr.mxu0 0.0
  %728 = vmatpush1.msra.mxu0 0.0
  %729 = vmatprep.subr.mxu0 0.0
  %730 = vmatpush1.msra.mxu0 0.0
  %731 = vmatprep.subr.mxu0 0.0
  %732 = vmatpush1.msra.mxu0 0.0
  %733 = vmatprep.subr.mxu0 0.0
  %734 = vmatpush1.msra.mxu0 0.0
  %735 = vmatprep.subr.mxu0 0.0
  %736 = vmatpush1.msra.mxu0 0.0
  %737 = vmatprep.subr.mxu0 0.0
  %738 = vmatpush1.msra.mxu0 0.0
  %739 = vmatprep.subr.mxu0 0.0
  %740 = vmatpush1.msra.mxu0 0.0
  %741 = vmatprep.subr.mxu0 0.0
  %742 = vmatpush1.msra.mxu0 0.0
  %743 = vmatprep.subr.mxu0 0.0
  %744 = vmatpush1.msra.mxu0 0.0
  %745 = vmatprep.subr.mxu0 0.0
  %746 = vmatpush1.msra.mxu0 0.0
  %747 = vmatprep.mubr.f32.mxu0 0.0
  %748 = vmatmul.mubr.f32.gmra.mrb[0].mxu0 %v681
  %v749 = vpop.f32.mrb[0].mxu0
  %v750 = vadd.f32 %v133, %v749
  %v751 = vpop.f32.mrb[0].mxu0
  %752 = vdwg.mxu0
  %v754 = vrot.slane %v750, 4
  %v755 = vrot.slane %v750, 5
  %v758 = vadd.f32 %v116, %v754
  %v759 = vadd.f32 %v121, %v755
  %v760 = vxor.u32 %v758, 2147483648
  %v761 = vxor.u32 %v759, 2147483648
  %v762 = vmul.f32 %v760, 1.442695
  %v763 = vpow.pop %v762
  %v764 = vmul.f32 %v761, 1.442695
  %v765 = vpow.pop %v764
  %v766 = vadd.f32 %v763, 1.0
  %v767 = vadd.f32 %v765, 1.0
  %v768 = vrcp.pop %v766
  %v769 = vmul.f32 1.0, %v768
  %v770 = vrcp.pop %v767
  %v771 = vmul.f32 1.0, %v770
  %772 = vrot.lane.b32.xlu0 %v754, 64
  %v773 = vpop.permute.xlu0 %772
  %774 = vrot.lane.b32.xlu0 %v755, 64
  %v775 = vpop.permute.xlu0 %774
  %v778 = vmul.f32 %v769, %v773
  %v779 = vmul.f32 %v771, %v775
  %782 = vrot.lane.b32.xlu0 %v778, 64
  %v783 = vpop.permute.xlu0 %782
  %784 = vrot.lane.b32.xlu0 %v779, 64
  %v785 = vpop.permute.xlu0 %784
  %v788 = vadd.f32 %v116, %v783
  %v789 = vadd.f32 %v121, %v785
  %v790 = vtanh.pop %v788
  %v791 = vtanh.pop %v789
  %v792 = vsub.f32 1.0, %v769
  %v793 = vsub.f32 1.0, %v771
  %796 = vrot.lane.b32.xlu0 %v790, 96
  %v797 = vpop.permute.xlu0 %796
  %798 = vrot.lane.b32.xlu0 %v791, 96
  %v799 = vpop.permute.xlu0 %798
  %v802 = vmul.f32 %v792, %v797
  %v803 = vmul.f32 %v793, %v799
  %v804 = vrot.slane %v672, 7
  %v805 = vrot.slane %v673, 7
  %v808 = vmul.f32 %v769, %v804
  %v809 = vmul.f32 %v771, %v805
  %v810 = vadd.f32 %v802, %v808
  %v811 = vadd.f32 %v803, %v809
  %v814 = vrot.slane %v810, 4
  %v815 = vrot.slane %v811, 3
  %v816 = vsel %vm266, %v815, %v814
  %817 = vrot.lane.b32.xlu0 %v816, 96
  %v818 = vpop.permute.xlu0 %817
  %v819 = vsel %vm135, %v818, 0
  %821 = vmatprep.subr.mxu0 0.0
  %822 = vmatpush1.msra.mxu0 %v124
  %823 = vmatprep.subr.mxu0 0.0
  %824 = vmatpush1.msra.mxu0 %v125
  %825 = vmatprep.subr.mxu0 0.0
  %826 = vmatpush1.msra.mxu0 %v126
  %827 = vmatprep.subr.mxu0 0.0
  %828 = vmatpush1.msra.mxu0 %v127
  %829 = vmatprep.subr.mxu0 0.0
  %830 = vmatpush1.msra.mxu0 0.0
  %831 = vmatprep.subr.mxu0 0.0
  %832 = vmatpush1.msra.mxu0 0.0
  %833 = vmatprep.subr.mxu0 0.0
  %834 = vmatpush1.msra.mxu0 0.0
  %835 = vmatprep.subr.mxu0 0.0
  %836 = vmatpush1.msra.mxu0 0.0
  %837 = vmatprep.subr.mxu0 0.0
  %838 = vmatpush1.msra.mxu0 0.0
  %839 = vmatprep.subr.mxu0 0.0
  %840 = vmatpush1.msra.mxu0 0.0
  %841 = vmatprep.subr.mxu0 0.0
  %842 = vmatpush1.msra.mxu0 0.0
  %843 = vmatprep.subr.mxu0 0.0
  %844 = vmatpush1.msra.mxu0 0.0
  %845 = vmatprep.subr.mxu0 0.0
  %846 = vmatpush1.msra.mxu0 0.0
  %847 = vmatprep.subr.mxu0 0.0
  %848 = vmatpush1.msra.mxu0 0.0
  %849 = vmatprep.subr.mxu0 0.0
  %850 = vmatpush1.msra.mxu0 0.0
  %851 = vmatprep.subr.mxu0 0.0
  %852 = vmatpush1.msra.mxu0 0.0
  %853 = vmatprep.subr.mxu0 0.0
  %854 = vmatpush1.msra.mxu0 0.0
  %855 = vmatprep.subr.mxu0 0.0
  %856 = vmatpush1.msra.mxu0 0.0
  %857 = vmatprep.subr.mxu0 0.0
  %858 = vmatpush1.msra.mxu0 0.0
  %859 = vmatprep.subr.mxu0 0.0
  %860 = vmatpush1.msra.mxu0 0.0
  %861 = vmatprep.subr.mxu0 0.0
  %862 = vmatpush1.msra.mxu0 0.0
  %863 = vmatprep.subr.mxu0 0.0
  %864 = vmatpush1.msra.mxu0 0.0
  %865 = vmatprep.subr.mxu0 0.0
  %866 = vmatpush1.msra.mxu0 0.0
  %867 = vmatprep.subr.mxu0 0.0
  %868 = vmatpush1.msra.mxu0 0.0
  %869 = vmatprep.subr.mxu0 0.0
  %870 = vmatpush1.msra.mxu0 0.0
  %871 = vmatprep.subr.mxu0 0.0
  %872 = vmatpush1.msra.mxu0 0.0
  %873 = vmatprep.subr.mxu0 0.0
  %874 = vmatpush1.msra.mxu0 0.0
  %875 = vmatprep.subr.mxu0 0.0
  %876 = vmatpush1.msra.mxu0 0.0
  %877 = vmatprep.subr.mxu0 0.0
  %878 = vmatpush1.msra.mxu0 0.0
  %879 = vmatprep.subr.mxu0 0.0
  %880 = vmatpush1.msra.mxu0 0.0
  %881 = vmatprep.subr.mxu0 0.0
  %882 = vmatpush1.msra.mxu0 0.0
  %883 = vmatprep.subr.mxu0 0.0
  %884 = vmatpush1.msra.mxu0 0.0
  %885 = vmatprep.mubr.f32.mxu0 0.0
  %886 = vmatmul.mubr.f32.gmra.mrb[0].mxu0 %v819
  %v887 = vpop.f32.mrb[0].mxu0
  %v888 = vadd.f32 %v133, %v887
  %v889 = vpop.f32.mrb[0].mxu0
  %890 = vdwg.mxu0
  %v892 = vrot.slane %v888, 3
  %v893 = vrot.slane %v888, 4
  %v896 = vadd.f32 %v116, %v892
  %v897 = vadd.f32 %v121, %v893
  %v898 = vxor.u32 %v896, 2147483648
  %v899 = vxor.u32 %v897, 2147483648
  %v900 = vmul.f32 %v898, 1.442695
  %v901 = vpow.pop %v900
  %v902 = vmul.f32 %v899, 1.442695
  %v903 = vpow.pop %v902
  %v904 = vadd.f32 %v901, 1.0
  %v905 = vadd.f32 %v903, 1.0
  %v906 = vrcp.pop %v904
  %v907 = vmul.f32 1.0, %v906
  %v908 = vrcp.pop %v905
  %v909 = vmul.f32 1.0, %v908
  %910 = vrot.lane.b32.xlu0 %v892, 64
  %v911 = vpop.permute.xlu0 %910
  %912 = vrot.lane.b32.xlu0 %v893, 64
  %v913 = vpop.permute.xlu0 %912
  %v916 = vmul.f32 %v907, %v911
  %v917 = vmul.f32 %v909, %v913
  %920 = vrot.lane.b32.xlu0 %v916, 64
  %v921 = vpop.permute.xlu0 %920
  %922 = vrot.lane.b32.xlu0 %v917, 64
  %v923 = vpop.permute.xlu0 %922
  %v926 = vadd.f32 %v116, %v921
  %v927 = vadd.f32 %v121, %v923
  %v928 = vtanh.pop %v926
  %v929 = vtanh.pop %v927
  %v930 = vsub.f32 1.0, %v907
  %v931 = vsub.f32 1.0, %v909
  %934 = vrot.lane.b32.xlu0 %v928, 96
  %v935 = vpop.permute.xlu0 %934
  %936 = vrot.lane.b32.xlu0 %v929, 96
  %v937 = vpop.permute.xlu0 %936
  %v940 = vmul.f32 %v930, %v935
  %v941 = vmul.f32 %v931, %v937
  %v942 = vrot.slane %v810, 7
  %v943 = vrot.slane %v811, 7
  %v946 = vmul.f32 %v907, %v942
  %v947 = vmul.f32 %v909, %v943
  %v948 = vadd.f32 %v940, %v946
  %v949 = vadd.f32 %v941, %v947
  %v952 = vrot.slane %v948, 5
  %v953 = vrot.slane %v949, 4
  %v954 = vsel %vm266, %v953, %v952
  %955 = vrot.lane.b32.xlu0 %v954, 96
  %v956 = vpop.permute.xlu0 %955
  %v957 = vsel %vm135, %v956, 0
  %959 = vmatprep.subr.mxu0 0.0
  %960 = vmatpush1.msra.mxu0 %v124
  %961 = vmatprep.subr.mxu0 0.0
  %962 = vmatpush1.msra.mxu0 %v125
  %963 = vmatprep.subr.mxu0 0.0
  %964 = vmatpush1.msra.mxu0 %v126
  %965 = vmatprep.subr.mxu0 0.0
  %966 = vmatpush1.msra.mxu0 %v127
  %967 = vmatprep.subr.mxu0 0.0
  %968 = vmatpush1.msra.mxu0 0.0
  %969 = vmatprep.subr.mxu0 0.0
  %970 = vmatpush1.msra.mxu0 0.0
  %971 = vmatprep.subr.mxu0 0.0
  %972 = vmatpush1.msra.mxu0 0.0
  %973 = vmatprep.subr.mxu0 0.0
  %974 = vmatpush1.msra.mxu0 0.0
  %975 = vmatprep.subr.mxu0 0.0
  %976 = vmatpush1.msra.mxu0 0.0
  %977 = vmatprep.subr.mxu0 0.0
  %978 = vmatpush1.msra.mxu0 0.0
  %979 = vmatprep.subr.mxu0 0.0
  %980 = vmatpush1.msra.mxu0 0.0
  %981 = vmatprep.subr.mxu0 0.0
  %982 = vmatpush1.msra.mxu0 0.0
  %983 = vmatprep.subr.mxu0 0.0
  %984 = vmatpush1.msra.mxu0 0.0
  %985 = vmatprep.subr.mxu0 0.0
  %986 = vmatpush1.msra.mxu0 0.0
  %987 = vmatprep.subr.mxu0 0.0
  %988 = vmatpush1.msra.mxu0 0.0
  %989 = vmatprep.subr.mxu0 0.0
  %990 = vmatpush1.msra.mxu0 0.0
  %991 = vmatprep.subr.mxu0 0.0
  %992 = vmatpush1.msra.mxu0 0.0
  %993 = vmatprep.subr.mxu0 0.0
  %994 = vmatpush1.msra.mxu0 0.0
  %995 = vmatprep.subr.mxu0 0.0
  %996 = vmatpush1.msra.mxu0 0.0
  %997 = vmatprep.subr.mxu0 0.0
  %998 = vmatpush1.msra.mxu0 0.0
  %999 = vmatprep.subr.mxu0 0.0
  %1000 = vmatpush1.msra.mxu0 0.0
  %1001 = vmatprep.subr.mxu0 0.0
  %1002 = vmatpush1.msra.mxu0 0.0
  %1003 = vmatprep.subr.mxu0 0.0
  %1004 = vmatpush1.msra.mxu0 0.0
  %1005 = vmatprep.subr.mxu0 0.0
  %1006 = vmatpush1.msra.mxu0 0.0
  %1007 = vmatprep.subr.mxu0 0.0
  %1008 = vmatpush1.msra.mxu0 0.0
  %1009 = vmatprep.subr.mxu0 0.0
  %1010 = vmatpush1.msra.mxu0 0.0
  %1011 = vmatprep.subr.mxu0 0.0
  %1012 = vmatpush1.msra.mxu0 0.0
  %1013 = vmatprep.subr.mxu0 0.0
  %1014 = vmatpush1.msra.mxu0 0.0
  %1015 = vmatprep.subr.mxu0 0.0
  %1016 = vmatpush1.msra.mxu0 0.0
  %1017 = vmatprep.subr.mxu0 0.0
  %1018 = vmatpush1.msra.mxu0 0.0
  %1019 = vmatprep.subr.mxu0 0.0
  %1020 = vmatpush1.msra.mxu0 0.0
  %1021 = vmatprep.subr.mxu0 0.0
  %1022 = vmatpush1.msra.mxu0 0.0
  %1023 = vmatprep.mubr.f32.mxu0 0.0
  %1024 = vmatmul.mubr.f32.gmra.mrb[0].mxu0 %v957
  %v1025 = vpop.f32.mrb[0].mxu0
  %v1026 = vadd.f32 %v133, %v1025
  %v1027 = vpop.f32.mrb[0].mxu0
  %1028 = vdwg.mxu0
  %v1030 = vrot.slane %v1026, 2
  %v1031 = vrot.slane %v1026, 3
  %v1034 = vadd.f32 %v116, %v1030
  %v1035 = vadd.f32 %v121, %v1031
  %v1036 = vxor.u32 %v1034, 2147483648
  %v1037 = vxor.u32 %v1035, 2147483648
  %v1038 = vmul.f32 %v1036, 1.442695
  %v1039 = vpow.pop %v1038
  %v1040 = vmul.f32 %v1037, 1.442695
  %v1041 = vpow.pop %v1040
  %v1042 = vadd.f32 %v1039, 1.0
  %v1043 = vadd.f32 %v1041, 1.0
  %v1044 = vrcp.pop %v1042
  %v1045 = vmul.f32 1.0, %v1044
  %v1046 = vrcp.pop %v1043
  %v1047 = vmul.f32 1.0, %v1046
  %1048 = vrot.lane.b32.xlu0 %v1030, 64
  %v1049 = vpop.permute.xlu0 %1048
  %1050 = vrot.lane.b32.xlu0 %v1031, 64
  %v1051 = vpop.permute.xlu0 %1050
  %v1054 = vmul.f32 %v1045, %v1049
  %v1055 = vmul.f32 %v1047, %v1051
  %1058 = vrot.lane.b32.xlu0 %v1054, 64
  %v1059 = vpop.permute.xlu0 %1058
  %1060 = vrot.lane.b32.xlu0 %v1055, 64
  %v1061 = vpop.permute.xlu0 %1060
  %v1064 = vadd.f32 %v116, %v1059
  %v1065 = vadd.f32 %v121, %v1061
  %v1066 = vtanh.pop %v1064
  %v1067 = vtanh.pop %v1065
  %v1068 = vsub.f32 1.0, %v1045
  %v1069 = vsub.f32 1.0, %v1047
  %1072 = vrot.lane.b32.xlu0 %v1066, 96
  %v1073 = vpop.permute.xlu0 %1072
  %1074 = vrot.lane.b32.xlu0 %v1067, 96
  %v1075 = vpop.permute.xlu0 %1074
  %v1078 = vmul.f32 %v1068, %v1073
  %v1079 = vmul.f32 %v1069, %v1075
  %v1080 = vrot.slane %v948, 7
  %v1081 = vrot.slane %v949, 7
  %v1084 = vmul.f32 %v1045, %v1080
  %v1085 = vmul.f32 %v1047, %v1081
  %v1086 = vadd.f32 %v1078, %v1084
  %v1087 = vadd.f32 %v1079, %v1085
  %v1090 = vrot.slane %v1086, 6
  %v1091 = vrot.slane %v1087, 5
  %v1092 = vsel %vm266, %v1091, %v1090
  %1093 = vrot.lane.b32.xlu0 %v1092, 96
  %v1094 = vpop.permute.xlu0 %1093
  %v1095 = vsel %vm135, %v1094, 0
  %1097 = vmatprep.subr.mxu0 0.0
  %1098 = vmatpush1.msra.mxu0 %v124
  %1099 = vmatprep.subr.mxu0 0.0
  %1100 = vmatpush1.msra.mxu0 %v125
  %1101 = vmatprep.subr.mxu0 0.0
  %1102 = vmatpush1.msra.mxu0 %v126
  %1103 = vmatprep.subr.mxu0 0.0
  %1104 = vmatpush1.msra.mxu0 %v127
  %1105 = vmatprep.subr.mxu0 0.0
  %1106 = vmatpush1.msra.mxu0 0.0
  %1107 = vmatprep.subr.mxu0 0.0
  %1108 = vmatpush1.msra.mxu0 0.0
  %1109 = vmatprep.subr.mxu0 0.0
  %1110 = vmatpush1.msra.mxu0 0.0
  %1111 = vmatprep.subr.mxu0 0.0
  %1112 = vmatpush1.msra.mxu0 0.0
  %1113 = vmatprep.subr.mxu0 0.0
  %1114 = vmatpush1.msra.mxu0 0.0
  %1115 = vmatprep.subr.mxu0 0.0
  %1116 = vmatpush1.msra.mxu0 0.0
  %1117 = vmatprep.subr.mxu0 0.0
  %1118 = vmatpush1.msra.mxu0 0.0
  %1119 = vmatprep.subr.mxu0 0.0
  %1120 = vmatpush1.msra.mxu0 0.0
  %1121 = vmatprep.subr.mxu0 0.0
  %1122 = vmatpush1.msra.mxu0 0.0
  %1123 = vmatprep.subr.mxu0 0.0
  %1124 = vmatpush1.msra.mxu0 0.0
  %1125 = vmatprep.subr.mxu0 0.0
  %1126 = vmatpush1.msra.mxu0 0.0
  %1127 = vmatprep.subr.mxu0 0.0
  %1128 = vmatpush1.msra.mxu0 0.0
  %1129 = vmatprep.subr.mxu0 0.0
  %1130 = vmatpush1.msra.mxu0 0.0
  %1131 = vmatprep.subr.mxu0 0.0
  %1132 = vmatpush1.msra.mxu0 0.0
  %1133 = vmatprep.subr.mxu0 0.0
  %1134 = vmatpush1.msra.mxu0 0.0
  %1135 = vmatprep.subr.mxu0 0.0
  %1136 = vmatpush1.msra.mxu0 0.0
  %1137 = vmatprep.subr.mxu0 0.0
  %1138 = vmatpush1.msra.mxu0 0.0
  %1139 = vmatprep.subr.mxu0 0.0
  %1140 = vmatpush1.msra.mxu0 0.0
  %1141 = vmatprep.subr.mxu0 0.0
  %1142 = vmatpush1.msra.mxu0 0.0
  %1143 = vmatprep.subr.mxu0 0.0
  %1144 = vmatpush1.msra.mxu0 0.0
  %1145 = vmatprep.subr.mxu0 0.0
  %1146 = vmatpush1.msra.mxu0 0.0
  %1147 = vmatprep.subr.mxu0 0.0
  %1148 = vmatpush1.msra.mxu0 0.0
  %1149 = vmatprep.subr.mxu0 0.0
  %1150 = vmatpush1.msra.mxu0 0.0
  %1151 = vmatprep.subr.mxu0 0.0
  %1152 = vmatpush1.msra.mxu0 0.0
  %1153 = vmatprep.subr.mxu0 0.0
  %1154 = vmatpush1.msra.mxu0 0.0
  %1155 = vmatprep.subr.mxu0 0.0
  %1156 = vmatpush1.msra.mxu0 0.0
  %1157 = vmatprep.subr.mxu0 0.0
  %1158 = vmatpush1.msra.mxu0 0.0
  %1159 = vmatprep.subr.mxu0 0.0
  %1160 = vmatpush1.msra.mxu0 0.0
  %1161 = vmatprep.mubr.f32.mxu0 0.0
  %1162 = vmatmul.mubr.f32.gmra.mrb[0].mxu0 %v1095
  %v1163 = vpop.f32.mrb[0].mxu0
  %v1164 = vadd.f32 %v133, %v1163
  %v1165 = vpop.f32.mrb[0].mxu0
  %1166 = vdwg.mxu0
  %v1168 = vrot.slane %v1164, 1
  %v1169 = vrot.slane %v1164, 2
  %v1172 = vadd.f32 %v116, %v1168
  %v1173 = vadd.f32 %v121, %v1169
  %v1174 = vxor.u32 %v1172, 2147483648
  %v1175 = vxor.u32 %v1173, 2147483648
  %v1176 = vmul.f32 %v1174, 1.442695
  %v1177 = vpow.pop %v1176
  %v1178 = vmul.f32 %v1175, 1.442695
  %v1179 = vpow.pop %v1178
  %v1180 = vadd.f32 %v1177, 1.0
  %v1181 = vadd.f32 %v1179, 1.0
  %v1182 = vrcp.pop %v1180
  %v1183 = vmul.f32 1.0, %v1182
  %v1184 = vrcp.pop %v1181
  %v1185 = vmul.f32 1.0, %v1184
  %1186 = vrot.lane.b32.xlu0 %v1168, 64
  %v1187 = vpop.permute.xlu0 %1186
  %1188 = vrot.lane.b32.xlu0 %v1169, 64
  %v1189 = vpop.permute.xlu0 %1188
  %v1192 = vmul.f32 %v1183, %v1187
  %v1193 = vmul.f32 %v1185, %v1189
  %1196 = vrot.lane.b32.xlu0 %v1192, 64
  %v1197 = vpop.permute.xlu0 %1196
  %1198 = vrot.lane.b32.xlu0 %v1193, 64
  %v1199 = vpop.permute.xlu0 %1198
  %v1202 = vadd.f32 %v116, %v1197
  %v1203 = vadd.f32 %v121, %v1199
  %v1204 = vtanh.pop %v1202
  %v1205 = vtanh.pop %v1203
  %v1206 = vsub.f32 1.0, %v1183
  %v1207 = vsub.f32 1.0, %v1185
  %1210 = vrot.lane.b32.xlu0 %v1204, 96
  %v1211 = vpop.permute.xlu0 %1210
  %1212 = vrot.lane.b32.xlu0 %v1205, 96
  %v1213 = vpop.permute.xlu0 %1212
  %v1216 = vmul.f32 %v1206, %v1211
  %v1217 = vmul.f32 %v1207, %v1213
  %v1218 = vrot.slane %v1086, 7
  %v1219 = vrot.slane %v1087, 7
  %v1222 = vmul.f32 %v1183, %v1218
  %v1223 = vmul.f32 %v1185, %v1219
  %v1224 = vadd.f32 %v1216, %v1222
  %v1225 = vadd.f32 %v1217, %v1223
  %vm1226 = vcmask 1040384
  %v1227 = vsel %vm1226, %v261, %v397
  %v1228 = vsel %vm1226, %v262, %v398
  %vm1229 = vcmask 1041408
  %v1230 = vsel %vm1229, %v1227, %v534
  %v1231 = vsel %vm1229, %v1228, %v535
  %vm1232 = vcmask 1042432
  %v1233 = vsel %vm1232, %v1230, %v672
  %v1234 = vsel %vm1232, %v1231, %v673
  %vm1235 = vcmask 1043456
  %v1236 = vsel %vm1235, %v1233, %v810
  %v1237 = vsel %vm1235, %v1234, %v811
  %vm1238 = vcmask 1044480
  %v1239 = vsel %vm1238, %v1236, %v948
  %v1240 = vsel %vm1238, %v1237, %v949
  %vm1241 = vcmask 1045504
  %v1242 = vsel %vm1241, %v1239, %v1086
  %v1243 = vsel %vm1241, %v1240, %v1087
  %vm1244 = vcmask 1046528
  %v1245 = vsel %vm1244, %v1242, %v1224
  %v1246 = vsel %vm1244, %v1243, %v1225
  %v1247 = vld [vmem:[%s5] sm:$0xff]
  %v1248 = vld [vmem:[%s5 + $0x8] sm:$0xff]
  %v1249 = vld [vmem:[%s5 + $0x10] sm:$0xff]
  %v1250 = vld [vmem:[%s5 + $0x18] sm:$0xff]
  %v1251 = vld [vmem:[%s7] sm:$0x1]
  %v1253 = vlaneseq
  %v1254 = vshrl.u32 %v1253, 7
  %v1255 = vsub.s32 0, %v1254
  %v1256 = vrot.slane %v1251, %v1255
  %1260 = vrot.lane.b32.xlu0 %v1245, 96
  %v1261 = vpop.permute.xlu0 %1260
  %1262 = vrot.lane.b32.xlu0 %v1246, 96
  %v1263 = vpop.permute.xlu0 %1262
  %v1264 = vsel %vm135, %v1261, 0
  %v1266 = vsel %vm135, %v1263, 0
  %1268 = vmatprep.subr.mxu0 0.0
  %1269 = vmatpush1.msra.mxu0 %v1247
  %1270 = vmatprep.subr.mxu0 0.0
  %1271 = vmatpush1.msra.mxu0 %v1248
  %1272 = vmatprep.subr.mxu0 0.0
  %1273 = vmatpush1.msra.mxu0 %v1249
  %1274 = vmatprep.subr.mxu0 0.0
  %1275 = vmatpush1.msra.mxu0 %v1250
  %1276 = vmatprep.subr.mxu0 0.0
  %1277 = vmatpush1.msra.mxu0 0.0
  %1278 = vmatprep.subr.mxu0 0.0
  %1279 = vmatpush1.msra.mxu0 0.0
  %1280 = vmatprep.subr.mxu0 0.0
  %1281 = vmatpush1.msra.mxu0 0.0
  %1282 = vmatprep.subr.mxu0 0.0
  %1283 = vmatpush1.msra.mxu0 0.0
  %1284 = vmatprep.subr.mxu0 0.0
  %1285 = vmatpush1.msra.mxu0 0.0
  %1286 = vmatprep.subr.mxu0 0.0
  %1287 = vmatpush1.msra.mxu0 0.0
  %1288 = vmatprep.subr.mxu0 0.0
  %1289 = vmatpush1.msra.mxu0 0.0
  %1290 = vmatprep.subr.mxu0 0.0
  %1291 = vmatpush1.msra.mxu0 0.0
  %1292 = vmatprep.subr.mxu0 0.0
  %1293 = vmatpush1.msra.mxu0 0.0
  %1294 = vmatprep.subr.mxu0 0.0
  %1295 = vmatpush1.msra.mxu0 0.0
  %1296 = vmatprep.subr.mxu0 0.0
  %1297 = vmatpush1.msra.mxu0 0.0
  %1298 = vmatprep.subr.mxu0 0.0
  %1299 = vmatpush1.msra.mxu0 0.0
  %1300 = vmatprep.subr.mxu0 0.0
  %1301 = vmatpush1.msra.mxu0 0.0
  %1302 = vmatprep.subr.mxu0 0.0
  %1303 = vmatpush1.msra.mxu0 0.0
  %1304 = vmatprep.subr.mxu0 0.0
  %1305 = vmatpush1.msra.mxu0 0.0
  %1306 = vmatprep.subr.mxu0 0.0
  %1307 = vmatpush1.msra.mxu0 0.0
  %1308 = vmatprep.subr.mxu0 0.0
  %1309 = vmatpush1.msra.mxu0 0.0
  %1310 = vmatprep.subr.mxu0 0.0
  %1311 = vmatpush1.msra.mxu0 0.0
  %1312 = vmatprep.subr.mxu0 0.0
  %1313 = vmatpush1.msra.mxu0 0.0
  %1314 = vmatprep.subr.mxu0 0.0
  %1315 = vmatpush1.msra.mxu0 0.0
  %1316 = vmatprep.subr.mxu0 0.0
  %1317 = vmatpush1.msra.mxu0 0.0
  %1318 = vmatprep.subr.mxu0 0.0
  %1319 = vmatpush1.msra.mxu0 0.0
  %1320 = vmatprep.subr.mxu0 0.0
  %1321 = vmatpush1.msra.mxu0 0.0
  %1322 = vmatprep.subr.mxu0 0.0
  %1323 = vmatpush1.msra.mxu0 0.0
  %1324 = vmatprep.subr.mxu0 0.0
  %1325 = vmatpush1.msra.mxu0 0.0
  %1326 = vmatprep.subr.mxu0 0.0
  %1327 = vmatpush1.msra.mxu0 0.0
  %1328 = vmatprep.subr.mxu0 0.0
  %1329 = vmatpush1.msra.mxu0 0.0
  %1330 = vmatprep.subr.mxu0 0.0
  %1331 = vmatpush1.msra.mxu0 0.0
  %1332 = vmatprep.mubr.f32.mxu0 0.0
  %1333 = vmatmul.mubr.f32.gmra.mrb[0].mxu0 %v1264
  %v1334 = vpop.f32.mrb[0].mxu0
  %v1335 = vadd.f32 %v1256, %v1334
  %v1336 = vpop.f32.mrb[0].mxu0
  %1337 = vmatprep.mubr.f32.mxu0 0.0
  %1338 = vmatmul.mubr.f32.gmra.mrb[0].mxu0 %v1266
  %v1339 = vpop.f32.mrb[0].mxu0
  %v1340 = vadd.f32 %v1256, %v1339
  %v1341 = vpop.f32.mrb[0].mxu0
  %1342 = vdwg.mxu0
  %v1343 = vld [vmem:[%s6] sm:$0xff]
  %v1344 = vld [vmem:[%s6 + $0x8] sm:$0xff]
  %v1345 = vld [vmem:[%s6 + $0x10] sm:$0xff]
  %v1346 = vld [vmem:[%s6 + $0x18] sm:$0xff]
  %v1347 = vld [vmem:[%s8] sm:$0x1]
  %v1349 = vlaneseq
  %v1350 = vshrl.u32 %v1349, 7
  %v1351 = vsub.s32 0, %v1350
  %v1352 = vrot.slane %v1347, %v1351
  %1354 = vmatprep.subr.mxu0 0.0
  %1355 = vmatpush1.msra.mxu0 %v1343
  %1356 = vmatprep.subr.mxu0 0.0
  %1357 = vmatpush1.msra.mxu0 %v1344
  %1358 = vmatprep.subr.mxu0 0.0
  %1359 = vmatpush1.msra.mxu0 %v1345
  %1360 = vmatprep.subr.mxu0 0.0
  %1361 = vmatpush1.msra.mxu0 %v1346
  %1362 = vmatprep.subr.mxu0 0.0
  %1363 = vmatpush1.msra.mxu0 0.0
  %1364 = vmatprep.subr.mxu0 0.0
  %1365 = vmatpush1.msra.mxu0 0.0
  %1366 = vmatprep.subr.mxu0 0.0
  %1367 = vmatpush1.msra.mxu0 0.0
  %1368 = vmatprep.subr.mxu0 0.0
  %1369 = vmatpush1.msra.mxu0 0.0
  %1370 = vmatprep.subr.mxu0 0.0
  %1371 = vmatpush1.msra.mxu0 0.0
  %1372 = vmatprep.subr.mxu0 0.0
  %1373 = vmatpush1.msra.mxu0 0.0
  %1374 = vmatprep.subr.mxu0 0.0
  %1375 = vmatpush1.msra.mxu0 0.0
  %1376 = vmatprep.subr.mxu0 0.0
  %1377 = vmatpush1.msra.mxu0 0.0
  %1378 = vmatprep.subr.mxu0 0.0
  %1379 = vmatpush1.msra.mxu0 0.0
  %1380 = vmatprep.subr.mxu0 0.0
  %1381 = vmatpush1.msra.mxu0 0.0
  %1382 = vmatprep.subr.mxu0 0.0
  %1383 = vmatpush1.msra.mxu0 0.0
  %1384 = vmatprep.subr.mxu0 0.0
  %1385 = vmatpush1.msra.mxu0 0.0
  %1386 = vmatprep.subr.mxu0 0.0
  %1387 = vmatpush1.msra.mxu0 0.0
  %1388 = vmatprep.subr.mxu0 0.0
  %1389 = vmatpush1.msra.mxu0 0.0
  %1390 = vmatprep.subr.mxu0 0.0
  %1391 = vmatpush1.msra.mxu0 0.0
  %1392 = vmatprep.subr.mxu0 0.0
  %1393 = vmatpush1.msra.mxu0 0.0
  %1394 = vmatprep.subr.mxu0 0.0
  %1395 = vmatpush1.msra.mxu0 0.0
  %1396 = vmatprep.subr.mxu0 0.0
  %1397 = vmatpush1.msra.mxu0 0.0
  %1398 = vmatprep.subr.mxu0 0.0
  %1399 = vmatpush1.msra.mxu0 0.0
  %1400 = vmatprep.subr.mxu0 0.0
  %1401 = vmatpush1.msra.mxu0 0.0
  %1402 = vmatprep.subr.mxu0 0.0
  %1403 = vmatpush1.msra.mxu0 0.0
  %1404 = vmatprep.subr.mxu0 0.0
  %1405 = vmatpush1.msra.mxu0 0.0
  %1406 = vmatprep.subr.mxu0 0.0
  %1407 = vmatpush1.msra.mxu0 0.0
  %1408 = vmatprep.subr.mxu0 0.0
  %1409 = vmatpush1.msra.mxu0 0.0
  %1410 = vmatprep.subr.mxu0 0.0
  %1411 = vmatpush1.msra.mxu0 0.0
  %1412 = vmatprep.subr.mxu0 0.0
  %1413 = vmatpush1.msra.mxu0 0.0
  %1414 = vmatprep.subr.mxu0 0.0
  %1415 = vmatpush1.msra.mxu0 0.0
  %1416 = vmatprep.subr.mxu0 0.0
  %1417 = vmatpush1.msra.mxu0 0.0
  %1418 = vmatprep.mubr.f32.mxu0 0.0
  %1419 = vmatmul.mubr.f32.gmra.mrb[0].mxu0 %v137
  %v1420 = vpop.f32.mrb[0].mxu0
  %v1421 = vadd.f32 %v1352, %v1420
  %v1422 = vpop.f32.mrb[0].mxu0
  %1423 = vdwg.mxu0
  %v1425 = vrot.slane %v1421, 1
  %v1428 = vadd.f32 %v1335, %v1421
  %v1429 = vadd.f32 %v1340, %v1425
  %v1430 = vxor.u32 %v1428, 2147483648
  %v1431 = vxor.u32 %v1429, 2147483648
  %v1432 = vmul.f32 %v1430, 1.442695
  %v1433 = vpow.pop %v1432
  %v1434 = vmul.f32 %v1431, 1.442695
  %v1435 = vpow.pop %v1434
  %v1436 = vadd.f32 %v1433, 1.0
  %v1437 = vadd.f32 %v1435, 1.0
  %v1438 = vrcp.pop %v1436
  %v1439 = vmul.f32 1.0, %v1438
  %v1440 = vrcp.pop %v1437
  %v1441 = vmul.f32 1.0, %v1440
  %1442 = vrot.lane.b32.xlu0 %v1421, 64
  %v1443 = vpop.permute.xlu0 %1442
  %1444 = vrot.lane.b32.xlu0 %v1425, 64
  %v1445 = vpop.permute.xlu0 %1444
  %v1448 = vmul.f32 %v1439, %v1443
  %v1449 = vmul.f32 %v1441, %v1445
  %1452 = vrot.lane.b32.xlu0 %v1448, 64
  %v1453 = vpop.permute.xlu0 %1452
  %1454 = vrot.lane.b32.xlu0 %v1449, 64
  %v1455 = vpop.permute.xlu0 %1454
  %v1458 = vadd.f32 %v1335, %v1453
  %v1459 = vadd.f32 %v1340, %v1455
  %v1460 = vtanh.pop %v1458
  %v1461 = vtanh.pop %v1459
  %v1462 = vsub.f32 1.0, %v1439
  %v1463 = vsub.f32 1.0, %v1441
  %1466 = vrot.lane.b32.xlu0 %v1460, 96
  %v1467 = vpop.permute.xlu0 %1466
  %1468 = vrot.lane.b32.xlu0 %v1461, 96
  %v1469 = vpop.permute.xlu0 %1468
  %v1472 = vmul.f32 %v1462, %v1467
  %v1473 = vmul.f32 %v1463, %v1469
  %v1474 = vmul.f32 %v1439, 0.0
  %v1475 = vmul.f32 %v1441, 0.0
  %v1476 = vadd.f32 %v1472, %v1474
  %v1477 = vadd.f32 %v1473, %v1475
  %v1480 = vrot.slane %v1477, 7
  %v1481 = vsel %vm266, %v1480, %v1476
  %1482 = vrot.lane.b32.xlu0 %v1481, 96
  %v1483 = vpop.permute.xlu0 %1482
  %v1484 = vsel %vm135, %v1483, 0
  %1486 = vmatprep.subr.mxu0 0.0
  %1487 = vmatpush1.msra.mxu0 %v1343
  %1488 = vmatprep.subr.mxu0 0.0
  %1489 = vmatpush1.msra.mxu0 %v1344
  %1490 = vmatprep.subr.mxu0 0.0
  %1491 = vmatpush1.msra.mxu0 %v1345
  %1492 = vmatprep.subr.mxu0 0.0
  %1493 = vmatpush1.msra.mxu0 %v1346
  %1494 = vmatprep.subr.mxu0 0.0
  %1495 = vmatpush1.msra.mxu0 0.0
  %1496 = vmatprep.subr.mxu0 0.0
  %1497 = vmatpush1.msra.mxu0 0.0
  %1498 = vmatprep.subr.mxu0 0.0
  %1499 = vmatpush1.msra.mxu0 0.0
  %1500 = vmatprep.subr.mxu0 0.0
  %1501 = vmatpush1.msra.mxu0 0.0
  %1502 = vmatprep.subr.mxu0 0.0
  %1503 = vmatpush1.msra.mxu0 0.0
  %1504 = vmatprep.subr.mxu0 0.0
  %1505 = vmatpush1.msra.mxu0 0.0
  %1506 = vmatprep.subr.mxu0 0.0
  %1507 = vmatpush1.msra.mxu0 0.0
  %1508 = vmatprep.subr.mxu0 0.0
  %1509 = vmatpush1.msra.mxu0 0.0
  %1510 = vmatprep.subr.mxu0 0.0
  %1511 = vmatpush1.msra.mxu0 0.0
  %1512 = vmatprep.subr.mxu0 0.0
  %1513 = vmatpush1.msra.mxu0 0.0
  %1514 = vmatprep.subr.mxu0 0.0
  %1515 = vmatpush1.msra.mxu0 0.0
  %1516 = vmatprep.subr.mxu0 0.0
  %1517 = vmatpush1.msra.mxu0 0.0
  %1518 = vmatprep.subr.mxu0 0.0
  %1519 = vmatpush1.msra.mxu0 0.0
  %1520 = vmatprep.subr.mxu0 0.0
  %1521 = vmatpush1.msra.mxu0 0.0
  %1522 = vmatprep.subr.mxu0 0.0
  %1523 = vmatpush1.msra.mxu0 0.0
  %1524 = vmatprep.subr.mxu0 0.0
  %1525 = vmatpush1.msra.mxu0 0.0
  %1526 = vmatprep.subr.mxu0 0.0
  %1527 = vmatpush1.msra.mxu0 0.0
  %1528 = vmatprep.subr.mxu0 0.0
  %1529 = vmatpush1.msra.mxu0 0.0
  %1530 = vmatprep.subr.mxu0 0.0
  %1531 = vmatpush1.msra.mxu0 0.0
  %1532 = vmatprep.subr.mxu0 0.0
  %1533 = vmatpush1.msra.mxu0 0.0
  %1534 = vmatprep.subr.mxu0 0.0
  %1535 = vmatpush1.msra.mxu0 0.0
  %1536 = vmatprep.subr.mxu0 0.0
  %1537 = vmatpush1.msra.mxu0 0.0
  %1538 = vmatprep.subr.mxu0 0.0
  %1539 = vmatpush1.msra.mxu0 0.0
  %1540 = vmatprep.subr.mxu0 0.0
  %1541 = vmatpush1.msra.mxu0 0.0
  %1542 = vmatprep.subr.mxu0 0.0
  %1543 = vmatpush1.msra.mxu0 0.0
  %1544 = vmatprep.subr.mxu0 0.0
  %1545 = vmatpush1.msra.mxu0 0.0
  %1546 = vmatprep.subr.mxu0 0.0
  %1547 = vmatpush1.msra.mxu0 0.0
  %1548 = vmatprep.subr.mxu0 0.0
  %1549 = vmatpush1.msra.mxu0 0.0
  %1550 = vmatprep.mubr.f32.mxu0 0.0
  %1551 = vmatmul.mubr.f32.gmra.mrb[0].mxu0 %v1484
  %v1552 = vpop.f32.mrb[0].mxu0
  %v1553 = vadd.f32 %v1352, %v1552
  %v1554 = vpop.f32.mrb[0].mxu0
  %1555 = vdwg.mxu0
  %v1557 = vrot.slane %v1553, 7
  %v1560 = vadd.f32 %v1335, %v1557
  %v1561 = vadd.f32 %v1340, %v1553
  %v1562 = vxor.u32 %v1560, 2147483648
  %v1563 = vxor.u32 %v1561, 2147483648
  %v1564 = vmul.f32 %v1562, 1.442695
  %v1565 = vpow.pop %v1564
  %v1566 = vmul.f32 %v1563, 1.442695
  %v1567 = vpow.pop %v1566
  %v1568 = vadd.f32 %v1565, 1.0
  %v1569 = vadd.f32 %v1567, 1.0
  %v1570 = vrcp.pop %v1568
  %v1571 = vmul.f32 1.0, %v1570
  %v1572 = vrcp.pop %v1569
  %v1573 = vmul.f32 1.0, %v1572
  %1574 = vrot.lane.b32.xlu0 %v1557, 64
  %v1575 = vpop.permute.xlu0 %1574
  %1576 = vrot.lane.b32.xlu0 %v1553, 64
  %v1577 = vpop.permute.xlu0 %1576
  %v1580 = vmul.f32 %v1571, %v1575
  %v1581 = vmul.f32 %v1573, %v1577
  %1584 = vrot.lane.b32.xlu0 %v1580, 64
  %v1585 = vpop.permute.xlu0 %1584
  %1586 = vrot.lane.b32.xlu0 %v1581, 64
  %v1587 = vpop.permute.xlu0 %1586
  %v1590 = vadd.f32 %v1335, %v1585
  %v1591 = vadd.f32 %v1340, %v1587
  %v1592 = vtanh.pop %v1590
  %v1593 = vtanh.pop %v1591
  %v1594 = vsub.f32 1.0, %v1571
  %v1595 = vsub.f32 1.0, %v1573
  %1598 = vrot.lane.b32.xlu0 %v1592, 96
  %v1599 = vpop.permute.xlu0 %1598
  %1600 = vrot.lane.b32.xlu0 %v1593, 96
  %v1601 = vpop.permute.xlu0 %1600
  %v1604 = vmul.f32 %v1594, %v1599
  %v1605 = vmul.f32 %v1595, %v1601
  %v1606 = vrot.slane %v1476, 7
  %v1609 = vmul.f32 %v1571, %v1606
  %v1610 = vmul.f32 %v1573, %v1480
  %v1611 = vadd.f32 %v1604, %v1609
  %v1612 = vadd.f32 %v1605, %v1610
  %v1615 = vrot.slane %v1611, 1
  %v1616 = vsel %vm266, %v1612, %v1615
  %1617 = vrot.lane.b32.xlu0 %v1616, 96
  %v1618 = vpop.permute.xlu0 %1617
  %v1619 = vsel %vm135, %v1618, 0
  %1621 = vmatprep.subr.mxu0 0.0
  %1622 = vmatpush1.msra.mxu0 %v1343
  %1623 = vmatprep.subr.mxu0 0.0
  %1624 = vmatpush1.msra.mxu0 %v1344
  %1625 = vmatprep.subr.mxu0 0.0
  %1626 = vmatpush1.msra.mxu0 %v1345
  %1627 = vmatprep.subr.mxu0 0.0
  %1628 = vmatpush1.msra.mxu0 %v1346
  %1629 = vmatprep.subr.mxu0 0.0
  %1630 = vmatpush1.msra.mxu0 0.0
  %1631 = vmatprep.subr.mxu0 0.0
  %1632 = vmatpush1.msra.mxu0 0.0
  %1633 = vmatprep.subr.mxu0 0.0
  %1634 = vmatpush1.msra.mxu0 0.0
  %1635 = vmatprep.subr.mxu0 0.0
  %1636 = vmatpush1.msra.mxu0 0.0
  %1637 = vmatprep.subr.mxu0 0.0
  %1638 = vmatpush1.msra.mxu0 0.0
  %1639 = vmatprep.subr.mxu0 0.0
  %1640 = vmatpush1.msra.mxu0 0.0
  %1641 = vmatprep.subr.mxu0 0.0
  %1642 = vmatpush1.msra.mxu0 0.0
  %1643 = vmatprep.subr.mxu0 0.0
  %1644 = vmatpush1.msra.mxu0 0.0
  %1645 = vmatprep.subr.mxu0 0.0
  %1646 = vmatpush1.msra.mxu0 0.0
  %1647 = vmatprep.subr.mxu0 0.0
  %1648 = vmatpush1.msra.mxu0 0.0
  %1649 = vmatprep.subr.mxu0 0.0
  %1650 = vmatpush1.msra.mxu0 0.0
  %1651 = vmatprep.subr.mxu0 0.0
  %1652 = vmatpush1.msra.mxu0 0.0
  %1653 = vmatprep.subr.mxu0 0.0
  %1654 = vmatpush1.msra.mxu0 0.0
  %1655 = vmatprep.subr.mxu0 0.0
  %1656 = vmatpush1.msra.mxu0 0.0
  %1657 = vmatprep.subr.mxu0 0.0
  %1658 = vmatpush1.msra.mxu0 0.0
  %1659 = vmatprep.subr.mxu0 0.0
  %1660 = vmatpush1.msra.mxu0 0.0
  %1661 = vmatprep.subr.mxu0 0.0
  %1662 = vmatpush1.msra.mxu0 0.0
  %1663 = vmatprep.subr.mxu0 0.0
  %1664 = vmatpush1.msra.mxu0 0.0
  %1665 = vmatprep.subr.mxu0 0.0
  %1666 = vmatpush1.msra.mxu0 0.0
  %1667 = vmatprep.subr.mxu0 0.0
  %1668 = vmatpush1.msra.mxu0 0.0
  %1669 = vmatprep.subr.mxu0 0.0
  %1670 = vmatpush1.msra.mxu0 0.0
  %1671 = vmatprep.subr.mxu0 0.0
  %1672 = vmatpush1.msra.mxu0 0.0
  %1673 = vmatprep.subr.mxu0 0.0
  %1674 = vmatpush1.msra.mxu0 0.0
  %1675 = vmatprep.subr.mxu0 0.0
  %1676 = vmatpush1.msra.mxu0 0.0
  %1677 = vmatprep.subr.mxu0 0.0
  %1678 = vmatpush1.msra.mxu0 0.0
  %1679 = vmatprep.subr.mxu0 0.0
  %1680 = vmatpush1.msra.mxu0 0.0
  %1681 = vmatprep.subr.mxu0 0.0
  %1682 = vmatpush1.msra.mxu0 0.0
  %1683 = vmatprep.subr.mxu0 0.0
  %1684 = vmatpush1.msra.mxu0 0.0
  %1685 = vmatprep.mubr.f32.mxu0 0.0
  %1686 = vmatmul.mubr.f32.gmra.mrb[0].mxu0 %v1619
  %v1687 = vpop.f32.mrb[0].mxu0
  %v1688 = vadd.f32 %v1352, %v1687
  %v1689 = vpop.f32.mrb[0].mxu0
  %1690 = vdwg.mxu0
  %v1692 = vrot.slane %v1688, 6
  %v1693 = vrot.slane %v1688, 7
  %v1696 = vadd.f32 %v1335, %v1692
  %v1697 = vadd.f32 %v1340, %v1693
  %v1698 = vxor.u32 %v1696, 2147483648
  %v1699 = vxor.u32 %v1697, 2147483648
  %v1700 = vmul.f32 %v1698, 1.442695
  %v1701 = vpow.pop %v1700
  %v1702 = vmul.f32 %v1699, 1.442695
  %v1703 = vpow.pop %v1702
  %v1704 = vadd.f32 %v1701, 1.0
  %v1705 = vadd.f32 %v1703, 1.0
  %v1706 = vrcp.pop %v1704
  %v1707 = vmul.f32 1.0, %v1706
  %v1708 = vrcp.pop %v1705
  %v1709 = vmul.f32 1.0, %v1708
  %1710 = vrot.lane.b32.xlu0 %v1692, 64
  %v1711 = vpop.permute.xlu0 %1710
  %1712 = vrot.lane.b32.xlu0 %v1693, 64
  %v1713 = vpop.permute.xlu0 %1712
  %v1716 = vmul.f32 %v1707, %v1711
  %v1717 = vmul.f32 %v1709, %v1713
  %1720 = vrot.lane.b32.xlu0 %v1716, 64
  %v1721 = vpop.permute.xlu0 %1720
  %1722 = vrot.lane.b32.xlu0 %v1717, 64
  %v1723 = vpop.permute.xlu0 %1722
  %v1726 = vadd.f32 %v1335, %v1721
  %v1727 = vadd.f32 %v1340, %v1723
  %v1728 = vtanh.pop %v1726
  %v1729 = vtanh.pop %v1727
  %v1730 = vsub.f32 1.0, %v1707
  %v1731 = vsub.f32 1.0, %v1709
  %1734 = vrot.lane.b32.xlu0 %v1728, 96
  %v1735 = vpop.permute.xlu0 %1734
  %1736 = vrot.lane.b32.xlu0 %v1729, 96
  %v1737 = vpop.permute.xlu0 %1736
  %v1740 = vmul.f32 %v1730, %v1735
  %v1741 = vmul.f32 %v1731, %v1737
  %v1742 = vrot.slane %v1611, 7
  %v1743 = vrot.slane %v1612, 7
  %v1746 = vmul.f32 %v1707, %v1742
  %v1747 = vmul.f32 %v1709, %v1743
  %v1748 = vadd.f32 %v1740, %v1746
  %v1749 = vadd.f32 %v1741, %v1747
  %v1752 = vrot.slane %v1748, 2
  %v1753 = vrot.slane %v1749, 1
  %v1754 = vsel %vm266, %v1753, %v1752
  %1755 = vrot.lane.b32.xlu0 %v1754, 96
  %v1756 = vpop.permute.xlu0 %1755
  %v1757 = vsel %vm135, %v1756, 0
  %1759 = vmatprep.subr.mxu0 0.0
  %1760 = vmatpush1.msra.mxu0 %v1343
  %1761 = vmatprep.subr.mxu0 0.0
  %1762 = vmatpush1.msra.mxu0 %v1344
  %1763 = vmatprep.subr.mxu0 0.0
  %1764 = vmatpush1.msra.mxu0 %v1345
  %1765 = vmatprep.subr.mxu0 0.0
  %1766 = vmatpush1.msra.mxu0 %v1346
  %1767 = vmatprep.subr.mxu0 0.0
  %1768 = vmatpush1.msra.mxu0 0.0
  %1769 = vmatprep.subr.mxu0 0.0
  %1770 = vmatpush1.msra.mxu0 0.0
  %1771 = vmatprep.subr.mxu0 0.0
  %1772 = vmatpush1.msra.mxu0 0.0
  %1773 = vmatprep.subr.mxu0 0.0
  %1774 = vmatpush1.msra.mxu0 0.0
  %1775 = vmatprep.subr.mxu0 0.0
  %1776 = vmatpush1.msra.mxu0 0.0
  %1777 = vmatprep.subr.mxu0 0.0
  %1778 = vmatpush1.msra.mxu0 0.0
  %1779 = vmatprep.subr.mxu0 0.0
  %1780 = vmatpush1.msra.mxu0 0.0
  %1781 = vmatprep.subr.mxu0 0.0
  %1782 = vmatpush1.msra.mxu0 0.0
  %1783 = vmatprep.subr.mxu0 0.0
  %1784 = vmatpush1.msra.mxu0 0.0
  %1785 = vmatprep.subr.mxu0 0.0
  %1786 = vmatpush1.msra.mxu0 0.0
  %1787 = vmatprep.subr.mxu0 0.0
  %1788 = vmatpush1.msra.mxu0 0.0
  %1789 = vmatprep.subr.mxu0 0.0
  %1790 = vmatpush1.msra.mxu0 0.0
  %1791 = vmatprep.subr.mxu0 0.0
  %1792 = vmatpush1.msra.mxu0 0.0
  %1793 = vmatprep.subr.mxu0 0.0
  %1794 = vmatpush1.msra.mxu0 0.0
  %1795 = vmatprep.subr.mxu0 0.0
  %1796 = vmatpush1.msra.mxu0 0.0
  %1797 = vmatprep.subr.mxu0 0.0
  %1798 = vmatpush1.msra.mxu0 0.0
  %1799 = vmatprep.subr.mxu0 0.0
  %1800 = vmatpush1.msra.mxu0 0.0
  %1801 = vmatprep.subr.mxu0 0.0
  %1802 = vmatpush1.msra.mxu0 0.0
  %1803 = vmatprep.subr.mxu0 0.0
  %1804 = vmatpush1.msra.mxu0 0.0
  %1805 = vmatprep.subr.mxu0 0.0
  %1806 = vmatpush1.msra.mxu0 0.0
  %1807 = vmatprep.subr.mxu0 0.0
  %1808 = vmatpush1.msra.mxu0 0.0
  %1809 = vmatprep.subr.mxu0 0.0
  %1810 = vmatpush1.msra.mxu0 0.0
  %1811 = vmatprep.subr.mxu0 0.0
  %1812 = vmatpush1.msra.mxu0 0.0
  %1813 = vmatprep.subr.mxu0 0.0
  %1814 = vmatpush1.msra.mxu0 0.0
  %1815 = vmatprep.subr.mxu0 0.0
  %1816 = vmatpush1.msra.mxu0 0.0
  %1817 = vmatprep.subr.mxu0 0.0
  %1818 = vmatpush1.msra.mxu0 0.0
  %1819 = vmatprep.subr.mxu0 0.0
  %1820 = vmatpush1.msra.mxu0 0.0
  %1821 = vmatprep.subr.mxu0 0.0
  %1822 = vmatpush1.msra.mxu0 0.0
  %1823 = vmatprep.mubr.f32.mxu0 0.0
  %1824 = vmatmul.mubr.f32.gmra.mrb[0].mxu0 %v1757
  %v1825 = vpop.f32.mrb[0].mxu0
  %v1826 = vadd.f32 %v1352, %v1825
  %v1827 = vpop.f32.mrb[0].mxu0
  %1828 = vdwg.mxu0
  %v1830 = vrot.slane %v1826, 5
  %v1831 = vrot.slane %v1826, 6
  %v1834 = vadd.f32 %v1335, %v1830
  %v1835 = vadd.f32 %v1340, %v1831
  %v1836 = vxor.u32 %v1834, 2147483648
  %v1837 = vxor.u32 %v1835, 2147483648
  %v1838 = vmul.f32 %v1836, 1.442695
  %v1839 = vpow.pop %v1838
  %v1840 = vmul.f32 %v1837, 1.442695
  %v1841 = vpow.pop %v1840
  %v1842 = vadd.f32 %v1839, 1.0
  %v1843 = vadd.f32 %v1841, 1.0
  %v1844 = vrcp.pop %v1842
  %v1845 = vmul.f32 1.0, %v1844
  %v1846 = vrcp.pop %v1843
  %v1847 = vmul.f32 1.0, %v1846
  %1848 = vrot.lane.b32.xlu0 %v1830, 64
  %v1849 = vpop.permute.xlu0 %1848
  %1850 = vrot.lane.b32.xlu0 %v1831, 64
  %v1851 = vpop.permute.xlu0 %1850
  %v1854 = vmul.f32 %v1845, %v1849
  %v1855 = vmul.f32 %v1847, %v1851
  %1858 = vrot.lane.b32.xlu0 %v1854, 64
  %v1859 = vpop.permute.xlu0 %1858
  %1860 = vrot.lane.b32.xlu0 %v1855, 64
  %v1861 = vpop.permute.xlu0 %1860
  %v1864 = vadd.f32 %v1335, %v1859
  %v1865 = vadd.f32 %v1340, %v1861
  %v1866 = vtanh.pop %v1864
  %v1867 = vtanh.pop %v1865
  %v1868 = vsub.f32 1.0, %v1845
  %v1869 = vsub.f32 1.0, %v1847
  %1872 = vrot.lane.b32.xlu0 %v1866, 96
  %v1873 = vpop.permute.xlu0 %1872
  %1874 = vrot.lane.b32.xlu0 %v1867, 96
  %v1875 = vpop.permute.xlu0 %1874
  %v1878 = vmul.f32 %v1868, %v1873
  %v1879 = vmul.f32 %v1869, %v1875
  %v1880 = vrot.slane %v1748, 7
  %v1881 = vrot.slane %v1749, 7
  %v1884 = vmul.f32 %v1845, %v1880
  %v1885 = vmul.f32 %v1847, %v1881
  %v1886 = vadd.f32 %v1878, %v1884
  %v1887 = vadd.f32 %v1879, %v1885
  %v1890 = vrot.slane %v1886, 3
  %v1891 = vrot.slane %v1887, 2
  %v1892 = vsel %vm266, %v1891, %v1890
  %1893 = vrot.lane.b32.xlu0 %v1892, 96
  %v1894 = vpop.permute.xlu0 %1893
  %v1895 = vsel %vm135, %v1894, 0
  %1897 = vmatprep.subr.mxu0 0.0
  %1898 = vmatpush1.msra.mxu0 %v1343
  %1899 = vmatprep.subr.mxu0 0.0
  %1900 = vmatpush1.msra.mxu0 %v1344
  %1901 = vmatprep.subr.mxu0 0.0
  %1902 = vmatpush1.msra.mxu0 %v1345
  %1903 = vmatprep.subr.mxu0 0.0
  %1904 = vmatpush1.msra.mxu0 %v1346
  %1905 = vmatprep.subr.mxu0 0.0
  %1906 = vmatpush1.msra.mxu0 0.0
  %1907 = vmatprep.subr.mxu0 0.0
  %1908 = vmatpush1.msra.mxu0 0.0
  %1909 = vmatprep.subr.mxu0 0.0
  %1910 = vmatpush1.msra.mxu0 0.0
  %1911 = vmatprep.subr.mxu0 0.0
  %1912 = vmatpush1.msra.mxu0 0.0
  %1913 = vmatprep.subr.mxu0 0.0
  %1914 = vmatpush1.msra.mxu0 0.0
  %1915 = vmatprep.subr.mxu0 0.0
  %1916 = vmatpush1.msra.mxu0 0.0
  %1917 = vmatprep.subr.mxu0 0.0
  %1918 = vmatpush1.msra.mxu0 0.0
  %1919 = vmatprep.subr.mxu0 0.0
  %1920 = vmatpush1.msra.mxu0 0.0
  %1921 = vmatprep.subr.mxu0 0.0
  %1922 = vmatpush1.msra.mxu0 0.0
  %1923 = vmatprep.subr.mxu0 0.0
  %1924 = vmatpush1.msra.mxu0 0.0
  %1925 = vmatprep.subr.mxu0 0.0
  %1926 = vmatpush1.msra.mxu0 0.0
  %1927 = vmatprep.subr.mxu0 0.0
  %1928 = vmatpush1.msra.mxu0 0.0
  %1929 = vmatprep.subr.mxu0 0.0
  %1930 = vmatpush1.msra.mxu0 0.0
  %1931 = vmatprep.subr.mxu0 0.0
  %1932 = vmatpush1.msra.mxu0 0.0
  %1933 = vmatprep.subr.mxu0 0.0
  %1934 = vmatpush1.msra.mxu0 0.0
  %1935 = vmatprep.subr.mxu0 0.0
  %1936 = vmatpush1.msra.mxu0 0.0
  %1937 = vmatprep.subr.mxu0 0.0
  %1938 = vmatpush1.msra.mxu0 0.0
  %1939 = vmatprep.subr.mxu0 0.0
  %1940 = vmatpush1.msra.mxu0 0.0
  %1941 = vmatprep.subr.mxu0 0.0
  %1942 = vmatpush1.msra.mxu0 0.0
  %1943 = vmatprep.subr.mxu0 0.0
  %1944 = vmatpush1.msra.mxu0 0.0
  %1945 = vmatprep.subr.mxu0 0.0
  %1946 = vmatpush1.msra.mxu0 0.0
  %1947 = vmatprep.subr.mxu0 0.0
  %1948 = vmatpush1.msra.mxu0 0.0
  %1949 = vmatprep.subr.mxu0 0.0
  %1950 = vmatpush1.msra.mxu0 0.0
  %1951 = vmatprep.subr.mxu0 0.0
  %1952 = vmatpush1.msra.mxu0 0.0
  %1953 = vmatprep.subr.mxu0 0.0
  %1954 = vmatpush1.msra.mxu0 0.0
  %1955 = vmatprep.subr.mxu0 0.0
  %1956 = vmatpush1.msra.mxu0 0.0
  %1957 = vmatprep.subr.mxu0 0.0
  %1958 = vmatpush1.msra.mxu0 0.0
  %1959 = vmatprep.subr.mxu0 0.0
  %1960 = vmatpush1.msra.mxu0 0.0
  %1961 = vmatprep.mubr.f32.mxu0 0.0
  %1962 = vmatmul.mubr.f32.gmra.mrb[0].mxu0 %v1895
  %v1963 = vpop.f32.mrb[0].mxu0
  %v1964 = vadd.f32 %v1352, %v1963
  %v1965 = vpop.f32.mrb[0].mxu0
  %1966 = vdwg.mxu0
  %v1968 = vrot.slane %v1964, 4
  %v1969 = vrot.slane %v1964, 5
  %v1972 = vadd.f32 %v1335, %v1968
  %v1973 = vadd.f32 %v1340, %v1969
  %v1974 = vxor.u32 %v1972, 2147483648
  %v1975 = vxor.u32 %v1973, 2147483648
  %v1976 = vmul.f32 %v1974, 1.442695
  %v1977 = vpow.pop %v1976
  %v1978 = vmul.f32 %v1975, 1.442695
  %v1979 = vpow.pop %v1978
  %v1980 = vadd.f32 %v1977, 1.0
  %v1981 = vadd.f32 %v1979, 1.0
  %v1982 = vrcp.pop %v1980
  %v1983 = vmul.f32 1.0, %v1982
  %v1984 = vrcp.pop %v1981
  %v1985 = vmul.f32 1.0, %v1984
  %1986 = vrot.lane.b32.xlu0 %v1968, 64
  %v1987 = vpop.permute.xlu0 %1986
  %1988 = vrot.lane.b32.xlu0 %v1969, 64
  %v1989 = vpop.permute.xlu0 %1988
  %v1992 = vmul.f32 %v1983, %v1987
  %v1993 = vmul.f32 %v1985, %v1989
  %1996 = vrot.lane.b32.xlu0 %v1992, 64
  %v1997 = vpop.permute.xlu0 %1996
  %1998 = vrot.lane.b32.xlu0 %v1993, 64
  %v1999 = vpop.permute.xlu0 %1998
  %v2002 = vadd.f32 %v1335, %v1997
  %v2003 = vadd.f32 %v1340, %v1999
  %v2004 = vtanh.pop %v2002
  %v2005 = vtanh.pop %v2003
  %v2006 = vsub.f32 1.0, %v1983
  %v2007 = vsub.f32 1.0, %v1985
  %2010 = vrot.lane.b32.xlu0 %v2004, 96
  %v2011 = vpop.permute.xlu0 %2010
  %2012 = vrot.lane.b32.xlu0 %v2005, 96
  %v2013 = vpop.permute.xlu0 %2012
  %v2016 = vmul.f32 %v2006, %v2011
  %v2017 = vmul.f32 %v2007, %v2013
  %v2018 = vrot.slane %v1886, 7
  %v2019 = vrot.slane %v1887, 7
  %v2022 = vmul.f32 %v1983, %v2018
  %v2023 = vmul.f32 %v1985, %v2019
  %v2024 = vadd.f32 %v2016, %v2022
  %v2025 = vadd.f32 %v2017, %v2023
  %v2028 = vrot.slane %v2024, 4
  %v2029 = vrot.slane %v2025, 3
  %v2030 = vsel %vm266, %v2029, %v2028
  %2031 = vrot.lane.b32.xlu0 %v2030, 96
  %v2032 = vpop.permute.xlu0 %2031
  %v2033 = vsel %vm135, %v2032, 0
  %2035 = vmatprep.subr.mxu0 0.0
  %2036 = vmatpush1.msra.mxu0 %v1343
  %2037 = vmatprep.subr.mxu0 0.0
  %2038 = vmatpush1.msra.mxu0 %v1344
  %2039 = vmatprep.subr.mxu0 0.0
  %2040 = vmatpush1.msra.mxu0 %v1345
  %2041 = vmatprep.subr.mxu0 0.0
  %2042 = vmatpush1.msra.mxu0 %v1346
  %2043 = vmatprep.subr.mxu0 0.0
  %2044 = vmatpush1.msra.mxu0 0.0
  %2045 = vmatprep.subr.mxu0 0.0
  %2046 = vmatpush1.msra.mxu0 0.0
  %2047 = vmatprep.subr.mxu0 0.0
  %2048 = vmatpush1.msra.mxu0 0.0
  %2049 = vmatprep.subr.mxu0 0.0
  %2050 = vmatpush1.msra.mxu0 0.0
  %2051 = vmatprep.subr.mxu0 0.0
  %2052 = vmatpush1.msra.mxu0 0.0
  %2053 = vmatprep.subr.mxu0 0.0
  %2054 = vmatpush1.msra.mxu0 0.0
  %2055 = vmatprep.subr.mxu0 0.0
  %2056 = vmatpush1.msra.mxu0 0.0
  %2057 = vmatprep.subr.mxu0 0.0
  %2058 = vmatpush1.msra.mxu0 0.0
  %2059 = vmatprep.subr.mxu0 0.0
  %2060 = vmatpush1.msra.mxu0 0.0
  %2061 = vmatprep.subr.mxu0 0.0
  %2062 = vmatpush1.msra.mxu0 0.0
  %2063 = vmatprep.subr.mxu0 0.0
  %2064 = vmatpush1.msra.mxu0 0.0
  %2065 = vmatprep.subr.mxu0 0.0
  %2066 = vmatpush1.msra.mxu0 0.0
  %2067 = vmatprep.subr.mxu0 0.0
  %2068 = vmatpush1.msra.mxu0 0.0
  %2069 = vmatprep.subr.mxu0 0.0
  %2070 = vmatpush1.msra.mxu0 0.0
  %2071 = vmatprep.subr.mxu0 0.0
  %2072 = vmatpush1.msra.mxu0 0.0
  %2073 = vmatprep.subr.mxu0 0.0
  %2074 = vmatpush1.msra.mxu0 0.0
  %2075 = vmatprep.subr.mxu0 0.0
  %2076 = vmatpush1.msra.mxu0 0.0
  %2077 = vmatprep.subr.mxu0 0.0
  %2078 = vmatpush1.msra.mxu0 0.0
  %2079 = vmatprep.subr.mxu0 0.0
  %2080 = vmatpush1.msra.mxu0 0.0
  %2081 = vmatprep.subr.mxu0 0.0
  %2082 = vmatpush1.msra.mxu0 0.0
  %2083 = vmatprep.subr.mxu0 0.0
  %2084 = vmatpush1.msra.mxu0 0.0
  %2085 = vmatprep.subr.mxu0 0.0
  %2086 = vmatpush1.msra.mxu0 0.0
  %2087 = vmatprep.subr.mxu0 0.0
  %2088 = vmatpush1.msra.mxu0 0.0
  %2089 = vmatprep.subr.mxu0 0.0
  %2090 = vmatpush1.msra.mxu0 0.0
  %2091 = vmatprep.subr.mxu0 0.0
  %2092 = vmatpush1.msra.mxu0 0.0
  %2093 = vmatprep.subr.mxu0 0.0
  %2094 = vmatpush1.msra.mxu0 0.0
  %2095 = vmatprep.subr.mxu0 0.0
  %2096 = vmatpush1.msra.mxu0 0.0
  %2097 = vmatprep.subr.mxu0 0.0
  %2098 = vmatpush1.msra.mxu0 0.0
  %2099 = vmatprep.mubr.f32.mxu0 0.0
  %2100 = vmatmul.mubr.f32.gmra.mrb[0].mxu0 %v2033
  %v2101 = vpop.f32.mrb[0].mxu0
  %v2102 = vadd.f32 %v1352, %v2101
  %v2103 = vpop.f32.mrb[0].mxu0
  %2104 = vdwg.mxu0
  %v2106 = vrot.slane %v2102, 3
  %v2107 = vrot.slane %v2102, 4
  %v2110 = vadd.f32 %v1335, %v2106
  %v2111 = vadd.f32 %v1340, %v2107
  %v2112 = vxor.u32 %v2110, 2147483648
  %v2113 = vxor.u32 %v2111, 2147483648
  %v2114 = vmul.f32 %v2112, 1.442695
  %v2115 = vpow.pop %v2114
  %v2116 = vmul.f32 %v2113, 1.442695
  %v2117 = vpow.pop %v2116
  %v2118 = vadd.f32 %v2115, 1.0
  %v2119 = vadd.f32 %v2117, 1.0
  %v2120 = vrcp.pop %v2118
  %v2121 = vmul.f32 1.0, %v2120
  %v2122 = vrcp.pop %v2119
  %v2123 = vmul.f32 1.0, %v2122
  %2124 = vrot.lane.b32.xlu0 %v2106, 64
  %v2125 = vpop.permute.xlu0 %2124
  %2126 = vrot.lane.b32.xlu0 %v2107, 64
  %v2127 = vpop.permute.xlu0 %2126
  %v2130 = vmul.f32 %v2121, %v2125
  %v2131 = vmul.f32 %v2123, %v2127
  %2134 = vrot.lane.b32.xlu0 %v2130, 64
  %v2135 = vpop.permute.xlu0 %2134
  %2136 = vrot.lane.b32.xlu0 %v2131, 64
  %v2137 = vpop.permute.xlu0 %2136
  %v2140 = vadd.f32 %v1335, %v2135
  %v2141 = vadd.f32 %v1340, %v2137
  %v2142 = vtanh.pop %v2140
  %v2143 = vtanh.pop %v2141
  %v2144 = vsub.f32 1.0, %v2121
  %v2145 = vsub.f32 1.0, %v2123
  %2148 = vrot.lane.b32.xlu0 %v2142, 96
  %v2149 = vpop.permute.xlu0 %2148
  %2150 = vrot.lane.b32.xlu0 %v2143, 96
  %v2151 = vpop.permute.xlu0 %2150
  %v2154 = vmul.f32 %v2144, %v2149
  %v2155 = vmul.f32 %v2145, %v2151
  %v2156 = vrot.slane %v2024, 7
  %v2157 = vrot.slane %v2025, 7
  %v2160 = vmul.f32 %v2121, %v2156
  %v2161 = vmul.f32 %v2123, %v2157
  %v2162 = vadd.f32 %v2154, %v2160
  %v2163 = vadd.f32 %v2155, %v2161
  %v2166 = vrot.slane %v2162, 5
  %v2167 = vrot.slane %v2163, 4
  %v2168 = vsel %vm266, %v2167, %v2166
  %2169 = vrot.lane.b32.xlu0 %v2168, 96
  %v2170 = vpop.permute.xlu0 %2169
  %v2171 = vsel %vm135, %v2170, 0
  %2173 = vmatprep.subr.mxu0 0.0
  %2174 = vmatpush1.msra.mxu0 %v1343
  %2175 = vmatprep.subr.mxu0 0.0
  %2176 = vmatpush1.msra.mxu0 %v1344
  %2177 = vmatprep.subr.mxu0 0.0
  %2178 = vmatpush1.msra.mxu0 %v1345
  %2179 = vmatprep.subr.mxu0 0.0
  %2180 = vmatpush1.msra.mxu0 %v1346
  %2181 = vmatprep.subr.mxu0 0.0
  %2182 = vmatpush1.msra.mxu0 0.0
  %2183 = vmatprep.subr.mxu0 0.0
  %2184 = vmatpush1.msra.mxu0 0.0
  %2185 = vmatprep.subr.mxu0 0.0
  %2186 = vmatpush1.msra.mxu0 0.0
  %2187 = vmatprep.subr.mxu0 0.0
  %2188 = vmatpush1.msra.mxu0 0.0
  %2189 = vmatprep.subr.mxu0 0.0
  %2190 = vmatpush1.msra.mxu0 0.0
  %2191 = vmatprep.subr.mxu0 0.0
  %2192 = vmatpush1.msra.mxu0 0.0
  %2193 = vmatprep.subr.mxu0 0.0
  %2194 = vmatpush1.msra.mxu0 0.0
  %2195 = vmatprep.subr.mxu0 0.0
  %2196 = vmatpush1.msra.mxu0 0.0
  %2197 = vmatprep.subr.mxu0 0.0
  %2198 = vmatpush1.msra.mxu0 0.0
  %2199 = vmatprep.subr.mxu0 0.0
  %2200 = vmatpush1.msra.mxu0 0.0
  %2201 = vmatprep.subr.mxu0 0.0
  %2202 = vmatpush1.msra.mxu0 0.0
  %2203 = vmatprep.subr.mxu0 0.0
  %2204 = vmatpush1.msra.mxu0 0.0
  %2205 = vmatprep.subr.mxu0 0.0
  %2206 = vmatpush1.msra.mxu0 0.0
  %2207 = vmatprep.subr.mxu0 0.0
  %2208 = vmatpush1.msra.mxu0 0.0
  %2209 = vmatprep.subr.mxu0 0.0
  %2210 = vmatpush1.msra.mxu0 0.0
  %2211 = vmatprep.subr.mxu0 0.0
  %2212 = vmatpush1.msra.mxu0 0.0
  %2213 = vmatprep.subr.mxu0 0.0
  %2214 = vmatpush1.msra.mxu0 0.0
  %2215 = vmatprep.subr.mxu0 0.0
  %2216 = vmatpush1.msra.mxu0 0.0
  %2217 = vmatprep.subr.mxu0 0.0
  %2218 = vmatpush1.msra.mxu0 0.0
  %2219 = vmatprep.subr.mxu0 0.0
  %2220 = vmatpush1.msra.mxu0 0.0
  %2221 = vmatprep.subr.mxu0 0.0
  %2222 = vmatpush1.msra.mxu0 0.0
  %2223 = vmatprep.subr.mxu0 0.0
  %2224 = vmatpush1.msra.mxu0 0.0
  %2225 = vmatprep.subr.mxu0 0.0
  %2226 = vmatpush1.msra.mxu0 0.0
  %2227 = vmatprep.subr.mxu0 0.0
  %2228 = vmatpush1.msra.mxu0 0.0
  %2229 = vmatprep.subr.mxu0 0.0
  %2230 = vmatpush1.msra.mxu0 0.0
  %2231 = vmatprep.subr.mxu0 0.0
  %2232 = vmatpush1.msra.mxu0 0.0
  %2233 = vmatprep.subr.mxu0 0.0
  %2234 = vmatpush1.msra.mxu0 0.0
  %2235 = vmatprep.subr.mxu0 0.0
  %2236 = vmatpush1.msra.mxu0 0.0
  %2237 = vmatprep.mubr.f32.mxu0 0.0
  %2238 = vmatmul.mubr.f32.gmra.mrb[0].mxu0 %v2171
  %v2239 = vpop.f32.mrb[0].mxu0
  %v2240 = vadd.f32 %v1352, %v2239
  %v2241 = vpop.f32.mrb[0].mxu0
  %2242 = vdwg.mxu0
  %v2244 = vrot.slane %v2240, 2
  %v2245 = vrot.slane %v2240, 3
  %v2248 = vadd.f32 %v1335, %v2244
  %v2249 = vadd.f32 %v1340, %v2245
  %v2250 = vxor.u32 %v2248, 2147483648
  %v2251 = vxor.u32 %v2249, 2147483648
  %v2252 = vmul.f32 %v2250, 1.442695
  %v2253 = vpow.pop %v2252
  %v2254 = vmul.f32 %v2251, 1.442695
  %v2255 = vpow.pop %v2254
  %v2256 = vadd.f32 %v2253, 1.0
  %v2257 = vadd.f32 %v2255, 1.0
  %v2258 = vrcp.pop %v2256
  %v2259 = vmul.f32 1.0, %v2258
  %v2260 = vrcp.pop %v2257
  %v2261 = vmul.f32 1.0, %v2260
  %2262 = vrot.lane.b32.xlu0 %v2244, 64
  %v2263 = vpop.permute.xlu0 %2262
  %2264 = vrot.lane.b32.xlu0 %v2245, 64
  %v2265 = vpop.permute.xlu0 %2264
  %v2268 = vmul.f32 %v2259, %v2263
  %v2269 = vmul.f32 %v2261, %v2265
  %2272 = vrot.lane.b32.xlu0 %v2268, 64
  %v2273 = vpop.permute.xlu0 %2272
  %2274 = vrot.lane.b32.xlu0 %v2269, 64
  %v2275 = vpop.permute.xlu0 %2274
  %v2278 = vadd.f32 %v1335, %v2273
  %v2279 = vadd.f32 %v1340, %v2275
  %v2280 = vtanh.pop %v2278
  %v2281 = vtanh.pop %v2279
  %v2282 = vsub.f32 1.0, %v2259
  %v2283 = vsub.f32 1.0, %v2261
  %2286 = vrot.lane.b32.xlu0 %v2280, 96
  %v2287 = vpop.permute.xlu0 %2286
  %2288 = vrot.lane.b32.xlu0 %v2281, 96
  %v2289 = vpop.permute.xlu0 %2288
  %v2292 = vmul.f32 %v2282, %v2287
  %v2293 = vmul.f32 %v2283, %v2289
  %v2294 = vrot.slane %v2162, 7
  %v2295 = vrot.slane %v2163, 7
  %v2298 = vmul.f32 %v2259, %v2294
  %v2299 = vmul.f32 %v2261, %v2295
  %v2300 = vadd.f32 %v2292, %v2298
  %v2301 = vadd.f32 %v2293, %v2299
  %v2304 = vrot.slane %v2300, 6
  %v2305 = vrot.slane %v2301, 5
  %v2306 = vsel %vm266, %v2305, %v2304
  %2307 = vrot.lane.b32.xlu0 %v2306, 96
  %v2308 = vpop.permute.xlu0 %2307
  %v2309 = vsel %vm135, %v2308, 0
  %2311 = vmatprep.subr.mxu0 0.0
  %2312 = vmatpush1.msra.mxu0 %v1343
  %2313 = vmatprep.subr.mxu0 0.0
  %2314 = vmatpush1.msra.mxu0 %v1344
  %2315 = vmatprep.subr.mxu0 0.0
  %2316 = vmatpush1.msra.mxu0 %v1345
  %2317 = vmatprep.subr.mxu0 0.0
  %2318 = vmatpush1.msra.mxu0 %v1346
  %2319 = vmatprep.subr.mxu0 0.0
  %2320 = vmatpush1.msra.mxu0 0.0
  %2321 = vmatprep.subr.mxu0 0.0
  %2322 = vmatpush1.msra.mxu0 0.0
  %2323 = vmatprep.subr.mxu0 0.0
  %2324 = vmatpush1.msra.mxu0 0.0
  %2325 = vmatprep.subr.mxu0 0.0
  %2326 = vmatpush1.msra.mxu0 0.0
  %2327 = vmatprep.subr.mxu0 0.0
  %2328 = vmatpush1.msra.mxu0 0.0
  %2329 = vmatprep.subr.mxu0 0.0
  %2330 = vmatpush1.msra.mxu0 0.0
  %2331 = vmatprep.subr.mxu0 0.0
  %2332 = vmatpush1.msra.mxu0 0.0
  %2333 = vmatprep.subr.mxu0 0.0
  %2334 = vmatpush1.msra.mxu0 0.0
  %2335 = vmatprep.subr.mxu0 0.0
  %2336 = vmatpush1.msra.mxu0 0.0
  %2337 = vmatprep.subr.mxu0 0.0
  %2338 = vmatpush1.msra.mxu0 0.0
  %2339 = vmatprep.subr.mxu0 0.0
  %2340 = vmatpush1.msra.mxu0 0.0
  %2341 = vmatprep.subr.mxu0 0.0
  %2342 = vmatpush1.msra.mxu0 0.0
  %2343 = vmatprep.subr.mxu0 0.0
  %2344 = vmatpush1.msra.mxu0 0.0
  %2345 = vmatprep.subr.mxu0 0.0
  %2346 = vmatpush1.msra.mxu0 0.0
  %2347 = vmatprep.subr.mxu0 0.0
  %2348 = vmatpush1.msra.mxu0 0.0
  %2349 = vmatprep.subr.mxu0 0.0
  %2350 = vmatpush1.msra.mxu0 0.0
  %2351 = vmatprep.subr.mxu0 0.0
  %2352 = vmatpush1.msra.mxu0 0.0
  %2353 = vmatprep.subr.mxu0 0.0
  %2354 = vmatpush1.msra.mxu0 0.0
  %2355 = vmatprep.subr.mxu0 0.0
  %2356 = vmatpush1.msra.mxu0 0.0
  %2357 = vmatprep.subr.mxu0 0.0
  %2358 = vmatpush1.msra.mxu0 0.0
  %2359 = vmatprep.subr.mxu0 0.0
  %2360 = vmatpush1.msra.mxu0 0.0
  %2361 = vmatprep.subr.mxu0 0.0
  %2362 = vmatpush1.msra.mxu0 0.0
  %2363 = vmatprep.subr.mxu0 0.0
  %2364 = vmatpush1.msra.mxu0 0.0
  %2365 = vmatprep.subr.mxu0 0.0
  %2366 = vmatpush1.msra.mxu0 0.0
  %2367 = vmatprep.subr.mxu0 0.0
  %2368 = vmatpush1.msra.mxu0 0.0
  %2369 = vmatprep.subr.mxu0 0.0
  %2370 = vmatpush1.msra.mxu0 0.0
  %2371 = vmatprep.subr.mxu0 0.0
  %2372 = vmatpush1.msra.mxu0 0.0
  %2373 = vmatprep.subr.mxu0 0.0
  %2374 = vmatpush1.msra.mxu0 0.0
  %2375 = vmatprep.mubr.f32.mxu0 0.0
  %2376 = vmatmul.mubr.f32.gmra.mrb[0].mxu0 %v2309
  %v2377 = vpop.f32.mrb[0].mxu0
  %v2378 = vadd.f32 %v1352, %v2377
  %v2379 = vpop.f32.mrb[0].mxu0
  %2380 = vdwg.mxu0
  %v2382 = vrot.slane %v2378, 1
  %v2383 = vrot.slane %v2378, 2
  %v2386 = vadd.f32 %v1335, %v2382
  %v2387 = vadd.f32 %v1340, %v2383
  %v2388 = vxor.u32 %v2386, 2147483648
  %v2389 = vxor.u32 %v2387, 2147483648
  %v2390 = vmul.f32 %v2388, 1.442695
  %v2391 = vpow.pop %v2390
  %v2392 = vmul.f32 %v2389, 1.442695
  %v2393 = vpow.pop %v2392
  %v2394 = vadd.f32 %v2391, 1.0
  %v2395 = vadd.f32 %v2393, 1.0
  %v2396 = vrcp.pop %v2394
  %v2397 = vmul.f32 1.0, %v2396
  %v2398 = vrcp.pop %v2395
  %v2399 = vmul.f32 1.0, %v2398
  %2400 = vrot.lane.b32.xlu0 %v2382, 64
  %v2401 = vpop.permute.xlu0 %2400
  %2402 = vrot.lane.b32.xlu0 %v2383, 64
  %v2403 = vpop.permute.xlu0 %2402
  %v2406 = vmul.f32 %v2397, %v2401
  %v2407 = vmul.f32 %v2399, %v2403
  %2410 = vrot.lane.b32.xlu0 %v2406, 64
  %v2411 = vpop.permute.xlu0 %2410
  %2412 = vrot.lane.b32.xlu0 %v2407, 64
  %v2413 = vpop.permute.xlu0 %2412
  %v2416 = vadd.f32 %v1335, %v2411
  %v2417 = vadd.f32 %v1340, %v2413
  %v2418 = vtanh.pop %v2416
  %v2419 = vtanh.pop %v2417
  %v2420 = vsub.f32 1.0, %v2397
  %v2421 = vsub.f32 1.0, %v2399
  %2424 = vrot.lane.b32.xlu0 %v2418, 96
  %v2425 = vpop.permute.xlu0 %2424
  %2426 = vrot.lane.b32.xlu0 %v2419, 96
  %v2427 = vpop.permute.xlu0 %2426
  %v2430 = vmul.f32 %v2420, %v2425
  %v2431 = vmul.f32 %v2421, %v2427
  %v2432 = vrot.slane %v2300, 7
  %v2433 = vrot.slane %v2301, 7
  %v2436 = vmul.f32 %v2397, %v2432
  %v2437 = vmul.f32 %v2399, %v2433
  %v2438 = vadd.f32 %v2430, %v2436
  %v2439 = vadd.f32 %v2431, %v2437
  %v2440 = vsel %vm1226, %v1476, %v1611
  %v2441 = vsel %vm1226, %v1477, %v1612
  %v2442 = vsel %vm1229, %v2440, %v1748
  %v2443 = vsel %vm1229, %v2441, %v1749
  %v2444 = vsel %vm1232, %v2442, %v1886
  %v2445 = vsel %vm1232, %v2443, %v1887
  %v2446 = vsel %vm1235, %v2444, %v2024
  %v2447 = vsel %vm1235, %v2445, %v2025
  %v2448 = vsel %vm1238, %v2446, %v2162
  %v2449 = vsel %vm1238, %v2447, %v2163
  %v2450 = vsel %vm1241, %v2448, %v2300
  %v2451 = vsel %vm1241, %v2449, %v2301
  %v2452 = vsel %vm1244, %v2450, %v2438
  %v2453 = vsel %vm1244, %v2451, %v2439
  %2456 = vrot.lane.b32.xlu0 %v2452, 96
  %v2457 = vpop.permute.xlu0 %2456
  %2458 = vrot.lane.b32.xlu0 %v2453, 96
  %v2459 = vpop.permute.xlu0 %2458
  %2462 = vst.msk [vmem:[%s9] sm:$0xff] %vm135, %v2457
  %2463 = vst.msk [vmem:[%s9 + $0x8] sm:$0xff] %vm135, %v2459
  // Predicated region
  $region38: #{gru_transformer_forward.13} parent=0 // pred_check
    _
  $region39: #{gru_transformer_forward.13} parent=0 // pred_check_branch
    %2465 = sbr.rel (0) target = $region41
  $region40: #{gru_transformer_forward.13} parent=0 // pred_region
    _
  $region41: #{gru_transformer_forward.13} parent=0 // pred_fallthru
    _
  // Predicated region
  $region42: #{gru_transformer_forward.13} parent=0 // pred_check
    _
  $region43: #{gru_transformer_forward.13} parent=0 // pred_check_branch
    %2467 = sbr.rel (0) target = $region45
  $region44: #{gru_transformer_forward.13} parent=0 // pred_region
    _
  $region45: #{gru_transformer_forward.13} parent=0 // pred_fallthru
    _

</llo_original>
